<compile_context>
chip_gen: v5e
topology: v5e:2x2
jax: 0.10.0
libtpu: 0.0.40
codegen_flags: <defaults>
</compile_context>

<pallas_src>
import functools

import jax
import jax.numpy as jnp
import numpy as np
from jax.experimental import pallas as pl
from jax.experimental.pallas import tpu as pltpu

EPS = 1e-5
_LANES = 128              # channel tile width (lane axis)
_UNROLL_TAP_LIMIT = 64    # fully unroll up to this many taps (K*K)


# ----------------------------- Pallas kernel ------------------------------- #

def _dw_conv_kernel(w_ref, b_ref, x_ref, o_ref, xp_ref, *, K, pad, H, W, Ho, Wo):
    """Depthwise conv for one (batch, channel-tile) block, channels on lanes.

    w_ref : VMEM (KK_pad, Cb)  fused per-tap weights, tap-major (kh*K + kw)
    b_ref : VMEM (1, Cb)       fused bias
    x_ref : VMEM (H, W, Cb)    un-padded input block (NHWC layout)
    o_ref : VMEM (Ho, Wo, Cb)  output block
    xp_ref: VMEM (Hp, Wp, Cb)  scratch: spatially padded copy of the input
    """
    # In-kernel halo: zero the scratch, then drop the input into the interior.
    # Avoids a separate jnp.pad HBM round-trip of the activations.
    if pad > 0:
        xp_ref[...] = jnp.zeros_like(xp_ref)
    xp_ref[pl.ds(pad, H), pl.ds(pad, W), :] = x_ref[...]

    cb = x_ref.shape[-1]
    acc = jnp.zeros((Ho, Wo, cb), jnp.float32)

    if K * K <= _UNROLL_TAP_LIMIT:
        # Small kernels: fully static unroll; each tap is a plain offset vld
        # from the padded scratch plus a lane-broadcast multiply-accumulate.
        for kh in range(K):
            for kw in range(K):
                w = w_ref[kh * K + kw, :]                        # (Cb,)
                patch = xp_ref[pl.ds(kh, Ho), pl.ds(kw, Wo), :]  # (Ho, Wo, Cb)
                acc = acc + patch * w
    else:
        # RepLKNet-scale kernels (13..31): loop over kernel rows to bound
        # live ranges / compile size; the K taps of a row stay unrolled.
        def row_taps(kh, a):
            for kw in range(K):
                w = w_ref[kh * K + kw, :]
                patch = xp_ref[pl.ds(kh, Ho), pl.ds(kw, Wo), :]
                a = a + patch * w
            return a

        acc = jax.lax.fori_loop(0, K, row_taps, acc, unroll=2)

    o_ref[...] = (acc + b_ref[0, :]).astype(o_ref.dtype)


def depthwise_conv2d_pallas(x, weight, bias, *, stride, padding, c_block=_LANES):
    """Depthwise 2-D convolution, NCHW in / NCHW out.

    x: (N, C, H, W) f32, weight: (C, K, K) f32 (fused), bias: (C,) f32 (fused).
    """
    N, C, H, W = x.shape
    K = weight.shape[-1]
    if stride != 1:
        # TODO(synk): stride > 1 depthwise is not implemented in the Pallas
        # path; RepLKNet's large-kernel branches use stride == 1.
        raise NotImplementedError("Pallas depthwise path supports stride == 1 only")

    Ho = H + 2 * padding - K + 1
    Wo = W + 2 * padding - K + 1
    Hp = H + 2 * padding
    Wp = W + 2 * padding

    # Channels-on-lanes layout: NHWC with C zero-padded up to a multiple of
    # 128. For real RepLKNet widths (128..1024) this pad is a no-op; the
    # lane-dense blocks make every tap a full-width VPU op and the output
    # store an unmasked vst.
    Cp = ((C + c_block - 1) // c_block) * c_block
    x_nhwc = jnp.transpose(x, (0, 2, 3, 1)).astype(jnp.float32)
    if Cp != C:
        x_nhwc = jnp.pad(x_nhwc, ((0, 0), (0, 0), (0, 0), (0, Cp - C)))

    KK = K * K
    KK_pad = ((KK + 7) // 8) * 8  # sublane-align the tap axis
    w_tc = jnp.transpose(weight.reshape(C, KK).astype(jnp.float32), (1, 0))  # (KK, C)
    w_tc = jnp.pad(w_tc, ((0, KK_pad - KK), (0, Cp - C)))
    b2 = jnp.pad(bias.reshape(1, C).astype(jnp.float32), ((0, 0), (0, Cp - C)))

    kernel = functools.partial(_dw_conv_kernel, K=K, pad=padding,
                               H=H, W=W, Ho=Ho, Wo=Wo)
    out_nhwc = pl.pallas_call(
        kernel,
        out_shape=jax.ShapeDtypeStruct((N, Ho, Wo, Cp), jnp.float32),
        grid=(N, Cp // c_block),
        in_specs=[
            pl.BlockSpec((KK_pad, c_block), lambda n, ct: (0, ct)),     # weights
            pl.BlockSpec((1, c_block), lambda n, ct: (0, ct)),          # bias
            pl.BlockSpec((None, H, W, c_block), lambda n, ct: (n, 0, 0, ct)),
        ],
        out_specs=pl.BlockSpec((None, Ho, Wo, c_block),
                               lambda n, ct: (n, 0, 0, ct)),
        scratch_shapes=[pltpu.VMEM((Hp, Wp, c_block), jnp.float32)],
        compiler_params=pltpu.CompilerParams(
            dimension_semantics=("parallel", "parallel"),
            vmem_limit_bytes=32 * 1024 * 1024),
    )(w_tc, b2, x_nhwc)

    # Back to NCHW, drop the channel padding.
    return jnp.transpose(out_nhwc[..., :C], (0, 3, 1, 2))


# ----------------------- Parameter setup (plain JAX glue) ------------------ #

def init_params(key, channels, kernel_size, small_kernel):
    """Deterministic synthetic parameters (conv + BatchNorm for both branches)."""
    ks = jax.random.split(key, 10)

    def bn_params(k0, k1, k2, k3):
        gamma = 0.5 + jax.random.uniform(k0, (channels,), jnp.float32)
        beta = 0.1 * jax.random.normal(k1, (channels,), jnp.float32)
        mean = 0.1 * jax.random.normal(k2, (channels,), jnp.float32)
        var = 0.5 + jax.random.uniform(k3, (channels,), jnp.float32)
        return gamma, beta, mean, var

    p = {}
    # Depthwise conv weights: (C_out, C_in/groups = 1, K, K)
    p["w_large"] = 0.1 * jax.random.normal(
        ks[0], (channels, 1, kernel_size, kernel_size), jnp.float32)
    p["bn_large"] = bn_params(ks[1], ks[2], ks[3], ks[4])
    p["w_small"] = 0.1 * jax.random.normal(
        ks[5], (channels, 1, small_kernel, small_kernel), jnp.float32)
    p["bn_small"] = bn_params(ks[6], ks[7], ks[8], ks[9])
    return p


def fuse_bn(kernel, bn):
    gamma, beta, mean, var = bn
    std = jnp.sqrt(var + EPS)
    t = (gamma / std).reshape(-1, 1, 1, 1)
    return kernel * t, beta - mean * gamma / std


def reparam_large_kernel_conv_forward(x, params, *, kernel_size, small_kernel,
                                      stride, groups):
    """Equivalent of ReparamLargeKernelConv.forward (non-merged, eval BN)."""
    C = x.shape[1]
    assert groups == C, (
        "Pallas path implements the depthwise case (groups == channels) used "
        "throughout RepLKNet.")
    eq_k, eq_b = fuse_bn(params["w_large"], params["bn_large"])
    if small_kernel is not None:
        small_k, small_b = fuse_bn(params["w_small"], params["bn_small"])
        pad = (kernel_size - small_kernel) // 2
        eq_k = eq_k + jnp.pad(small_k, ((0, 0), (0, 0), (pad, pad), (pad, pad)))
        eq_b = eq_b + small_b
    eq_k = eq_k[:, 0]  # depthwise: (C, 1, K, K) -> (C, K, K)
    return depthwise_conv2d_pallas(x, eq_k, eq_b, stride=stride,
                                   padding=kernel_size // 2)


# --------------------------- Pure-JAX reference ---------------------------- #

def _ref_conv_bn(x, w, bn, stride, padding, groups):
    y = jax.lax.conv_general_dilated(
        x, w, window_strides=(stride, stride),
        padding=((padding, padding), (padding, padding)),
        dimension_numbers=("NCHW", "OIHW", "NCHW"),
        feature_group_count=groups)
    gamma, beta, mean, var = bn
    scale = gamma / jnp.sqrt(var + EPS)
    return y * scale[None, :, None, None] + (beta - mean * scale)[None, :, None, None]


def reference_forward(x, params, *, kernel_size, small_kernel, stride, groups):
    out = _ref_conv_bn(x, params["w_large"], params["bn_large"],
                       stride, kernel_size // 2, groups)
    if small_kernel is not None:
        out = out + _ref_conv_bn(x, params["w_small"], params["bn_small"],
                                 stride, small_kernel // 2, groups)
    return out


# ----------------------------------- Main ---------------------------------- #

if __name__ == "__main__":
    key = jax.random.PRNGKey(0)

    configs = [
        # Small RepLKNet-consistent config (depthwise large-kernel conv).
        dict(N=2, C=4, H=16, W=16, kernel_size=7, small_kernel=3, stride=1),
        # Larger kernel size: exercises the fori_loop tap path.
        dict(N=1, C=4, H=16, W=16, kernel_size=13, small_kernel=5, stride=1),
    ]

    for cfg in configs:
        key, k_x, k_p = jax.random.split(key, 3)
        x = jax.random.normal(k_x, (cfg["N"], cfg["C"], cfg["H"], cfg["W"]),
                              jnp.float32)
        params = init_params(k_p, cfg["C"], cfg["kernel_size"],
                             cfg["small_kernel"])

        out = reparam_large_kernel_conv_forward(
            x, params, kernel_size=cfg["kernel_size"],
            small_kernel=cfg["small_kernel"], stride=cfg["stride"],
            groups=cfg["C"])
        out = jax.block_until_ready(out)

        ref = reference_forward(
            x, params, kernel_size=cfg["kernel_size"],
            small_kernel=cfg["small_kernel"], stride=cfg["stride"],
            groups=cfg["C"])
        ref = jax.block_until_ready(ref)

        assert out.shape == ref.shape, (out.shape, ref.shape)
        np.testing.assert_allclose(np.asarray(out), np.asarray(ref),
                                   rtol=1e-4, atol=1e-4)

    print("KERNEL_OK")
</pallas_src>

<mosaic_0001>
module attributes {stable_mosaic.version = 11 : i64} {
  func.func @_dw_conv_kernel(%arg0: i32, %arg1: i32, %arg2: memref<56x128xf32, #tpu.memory_space<vmem>>, %arg3: memref<1x128xf32, #tpu.memory_space<vmem>>, %arg4: memref<1x16x16x128xf32, #tpu.memory_space<vmem>>, %arg5: memref<1x16x16x128xf32, #tpu.memory_space<vmem>>, %arg6: memref<22x22x128xf32, #tpu.memory_space<vmem>>) attributes {dimension_semantics = [#tpu.dimension_semantics<parallel>, #tpu.dimension_semantics<parallel>], iteration_bounds = array<i64: 2, 1>, scalar_prefetch = 0 : i64, scratch_operands = 1 : i64, tpu.core_type = #tpu.core_type<tc>, window_params = [{transform_indices = @transform_0, window_bounds = array<i64: 56, 128>}, {transform_indices = @transform_1, window_bounds = array<i64: 1, 128>}, {transform_indices = @transform_2, window_bounds = array<i64: 1, 16, 16, 128>}, {transform_indices = @transform_3, window_bounds = array<i64: 1, 16, 16, 128>}]} {
    %cst = arith.constant 0.000000e+00 : f32
    %0 = vector.broadcast %cst : f32 to vector<22x22x128xf32>
    %c0 = arith.constant 0 : index
    %c0_0 = arith.constant 0 : index
    %c0_1 = arith.constant 0 : index
    %1 = vector.load %arg6[%c0, %c0_0, %c0_1] : memref<22x22x128xf32, #tpu.memory_space<vmem>>, vector<22x22x128xf32>
    tpu.vector_store %arg6[%c0, %c0_0, %c0_1], %0 {strides = array<i32>} : memref<22x22x128xf32, #tpu.memory_space<vmem>>, vector<22x22x128xf32>,
    %c0_2 = arith.constant 0 : index
    %c0_3 = arith.constant 0 : index
    %c0_4 = arith.constant 0 : index
    %c0_5 = arith.constant 0 : index
    %2 = vector.load %arg4[%c0_2, %c0_3, %c0_4, %c0_5] : memref<1x16x16x128xf32, #tpu.memory_space<vmem>>, vector<1x16x16x128xf32>
    %3 = vector.shape_cast %2 : vector<1x16x16x128xf32> to vector<16x16x128xf32>
    %c3 = arith.constant 3 : index
    %c3_6 = arith.constant 3 : index
    %c0_7 = arith.constant 0 : index
    %4 = vector.load %arg6[%c3, %c3_6, %c0_7] : memref<22x22x128xf32, #tpu.memory_space<vmem>>, vector<16x16x128xf32>
    tpu.vector_store %arg6[%c3, %c3_6, %c0_7], %3 {strides = array<i32>} : memref<22x22x128xf32, #tpu.memory_space<vmem>>, vector<16x16x128xf32>,
    %cst_8 = arith.constant 0.000000e+00 : f32
    %5 = vector.broadcast %cst_8 : f32 to vector<16x16x128xf32>
    %c0_9 = arith.constant 0 : index
    %c0_10 = arith.constant 0 : index
    %6 = vector.load %arg2[%c0_9, %c0_10] : memref<56x128xf32, #tpu.memory_space<vmem>>, vector<1x128xf32>
    %7 = vector.shape_cast %6 : vector<1x128xf32> to vector<128xf32>
    %c0_11 = arith.constant 0 : index
    %c0_12 = arith.constant 0 : index
    %c0_13 = arith.constant 0 : index
    %8 = vector.load %arg6[%c0_11, %c0_12, %c0_13] : memref<22x22x128xf32, #tpu.memory_space<vmem>>, vector<16x16x128xf32>
    %9 = vector.shape_cast %7 : vector<128xf32> to vector<1x1x128xf32>
    %10 = vector.broadcast %9 : vector<1x1x128xf32> to vector<16x16x128xf32>
    %11 = arith.mulf %8, %10 : vector<16x16x128xf32>
    %12 = arith.addf %5, %11 : vector<16x16x128xf32>
    %c1 = arith.constant 1 : index
    %c0_14 = arith.constant 0 : index
    %13 = vector.load %arg2[%c1, %c0_14] : memref<56x128xf32, #tpu.memory_space<vmem>>, vector<1x128xf32>
    %14 = vector.shape_cast %13 : vector<1x128xf32> to vector<128xf32>
    %c0_15 = arith.constant 0 : index
    %c1_16 = arith.constant 1 : index
    %c0_17 = arith.constant 0 : index
    %15 = vector.load %arg6[%c0_15, %c1_16, %c0_17] : memref<22x22x128xf32, #tpu.memory_space<vmem>>, vector<16x16x128xf32>
    %16 = vector.shape_cast %14 : vector<128xf32> to vector<1x1x128xf32>
    %17 = vector.broadcast %16 : vector<1x1x128xf32> to vector<16x16x128xf32>
    %18 = arith.mulf %15, %17 : vector<16x16x128xf32>
    %19 = arith.addf %12, %18 : vector<16x16x128xf32>
    %c2 = arith.constant 2 : index
    %c0_18 = arith.constant 0 : index
    %20 = vector.load %arg2[%c2, %c0_18] : memref<56x128xf32, #tpu.memory_space<vmem>>, vector<1x128xf32>
    %21 = vector.shape_cast %20 : vector<1x128xf32> to vector<128xf32>
    %c0_19 = arith.constant 0 : index
    %c2_20 = arith.constant 2 : index
    %c0_21 = arith.constant 0 : index
    %22 = vector.load %arg6[%c0_19, %c2_20, %c0_21] : memref<22x22x128xf32, #tpu.memory_space<vmem>>, vector<16x16x128xf32>
    %23 = vector.shape_cast %21 : vector<128xf32> to vector<1x1x128xf32>
    %24 = vector.broadcast %23 : vector<1x1x128xf32> to vector<16x16x128xf32>
    %25 = arith.mulf %22, %24 : vector<16x16x128xf32>
    %26 = arith.addf %19, %25 : vector<16x16x128xf32>
    %c3_22 = arith.constant 3 : index
    %c0_23 = arith.constant 0 : index
    %27 = vector.load %arg2[%c3_22, %c0_23] : memref<56x128xf32, #tpu.memory_space<vmem>>, vector<1x128xf32>
    %28 = vector.shape_cast %27 : vector<1x128xf32> to vector<128xf32>
    %c0_24 = arith.constant 0 : index
    %c3_25 = arith.constant 3 : index
    %c0_26 = arith.constant 0 : index
    %29 = vector.load %arg6[%c0_24, %c3_25, %c0_26] : memref<22x22x128xf32, #tpu.memory_space<vmem>>, vector<16x16x128xf32>
    %30 = vector.shape_cast %28 : vector<128xf32> to vector<1x1x128xf32>
    %31 = vector.broadcast %30 : vector<1x1x128xf32> to vector<16x16x128xf32>
    %32 = arith.mulf %29, %31 : vector<16x16x128xf32>
    %33 = arith.addf %26, %32 : vector<16x16x128xf32>
    %c4 = arith.constant 4 : index
    %c0_27 = arith.constant 0 : index
    %34 = vector.load %arg2[%c4, %c0_27] : memref<56x128xf32, #tpu.memory_space<vmem>>, vector<1x128xf32>
    %35 = vector.shape_cast %34 : vector<1x128xf32> to vector<128xf32>
    %c0_28 = arith.constant 0 : index
    %c4_29 = arith.constant 4 : index
    %c0_30 = arith.constant 0 : index
    %36 = vector.load %arg6[%c0_28, %c4_29, %c0_30] : memref<22x22x128xf32, #tpu.memory_space<vmem>>, vector<16x16x128xf32>
    %37 = vector.shape_cast %35 : vector<128xf32> to vector<1x1x128xf32>
    %38 = vector.broadcast %37 : vector<1x1x128xf32> to vector<16x16x128xf32>
    %39 = arith.mulf %36, %38 : vector<16x16x128xf32>
    %40 = arith.addf %33, %39 : vector<16x16x128xf32>
    %c5 = arith.constant 5 : index
    %c0_31 = arith.constant 0 : index
    %41 = vector.load %arg2[%c5, %c0_31] : memref<56x128xf32, #tpu.memory_space<vmem>>, vector<1x128xf32>
    %42 = vector.shape_cast %41 : vector<1x128xf32> to vector<128xf32>
    %c0_32 = arith.constant 0 : index
    %c5_33 = arith.constant 5 : index
    %c0_34 = arith.constant 0 : index
    %43 = vector.load %arg6[%c0_32, %c5_33, %c0_34] : memref<22x22x128xf32, #tpu.memory_space<vmem>>, vector<16x16x128xf32>
    %44 = vector.shape_cast %42 : vector<128xf32> to vector<1x1x128xf32>
    %45 = vector.broadcast %44 : vector<1x1x128xf32> to vector<16x16x128xf32>
    %46 = arith.mulf %43, %45 : vector<16x16x128xf32>
    %47 = arith.addf %40, %46 : vector<16x16x128xf32>
    %c6 = arith.constant 6 : index
    %c0_35 = arith.constant 0 : index
    %48 = vector.load %arg2[%c6, %c0_35] : memref<56x128xf32, #tpu.memory_space<vmem>>, vector<1x128xf32>
    %49 = vector.shape_cast %48 : vector<1x128xf32> to vector<128xf32>
    %c0_36 = arith.constant 0 : index
    %c6_37 = arith.constant 6 : index
    %c0_38 = arith.constant 0 : index
    %50 = vector.load %arg6[%c0_36, %c6_37, %c0_38] : memref<22x22x128xf32, #tpu.memory_space<vmem>>, vector<16x16x128xf32>
    %51 = vector.shape_cast %49 : vector<128xf32> to vector<1x1x128xf32>
    %52 = vector.broadcast %51 : vector<1x1x128xf32> to vector<16x16x128xf32>
    %53 = arith.mulf %50, %52 : vector<16x16x128xf32>
    %54 = arith.addf %47, %53 : vector<16x16x128xf32>
    %c7 = arith.constant 7 : index
    %c0_39 = arith.constant 0 : index
    %55 = vector.load %arg2[%c7, %c0_39] : memref<56x128xf32, #tpu.memory_space<vmem>>, vector<1x128xf32>
    %56 = vector.shape_cast %55 : vector<1x128xf32> to vector<128xf32>
    %c1_40 = arith.constant 1 : index
    %c0_41 = arith.constant 0 : index
    %c0_42 = arith.constant 0 : index
    %57 = vector.load %arg6[%c1_40, %c0_41, %c0_42] : memref<22x22x128xf32, #tpu.memory_space<vmem>>, vector<16x16x128xf32>
    %58 = vector.shape_cast %56 : vector<128xf32> to vector<1x1x128xf32>
    %59 = vector.broadcast %58 : vector<1x1x128xf32> to vector<16x16x128xf32>
    %60 = arith.mulf %57, %59 : vector<16x16x128xf32>
    %61 = arith.addf %54, %60 : vector<16x16x128xf32>
    %c8 = arith.constant 8 : index
    %c0_43 = arith.constant 0 : index
    %62 = vector.load %arg2[%c8, %c0_43] : memref<56x128xf32, #tpu.memory_space<vmem>>, vector<1x128xf32>
    %63 = vector.shape_cast %62 : vector<1x128xf32> to vector<128xf32>
    %c1_44 = arith.constant 1 : index
    %c1_45 = arith.constant 1 : index
    %c0_46 = arith.constant 0 : index
    %64 = vector.load %arg6[%c1_44, %c1_45, %c0_46] : memref<22x22x128xf32, #tpu.memory_space<vmem>>, vector<16x16x128xf32>
    %65 = vector.shape_cast %63 : vector<128xf32> to vector<1x1x128xf32>
    %66 = vector.broadcast %65 : vector<1x1x128xf32> to vector<16x16x128xf32>
    %67 = arith.mulf %64, %66 : vector<16x16x128xf32>
    %68 = arith.addf %61, %67 : vector<16x16x128xf32>
    %c9 = arith.constant 9 : index
    %c0_47 = arith.constant 0 : index
    %69 = vector.load %arg2[%c9, %c0_47] : memref<56x128xf32, #tpu.memory_space<vmem>>, vector<1x128xf32>
    %70 = vector.shape_cast %69 : vector<1x128xf32> to vector<128xf32>
    %c1_48 = arith.constant 1 : index
    %c2_49 = arith.constant 2 : index
    %c0_50 = arith.constant 0 : index
    %71 = vector.load %arg6[%c1_48, %c2_49, %c0_50] : memref<22x22x128xf32, #tpu.memory_space<vmem>>, vector<16x16x128xf32>
    %72 = vector.shape_cast %70 : vector<128xf32> to vector<1x1x128xf32>
    %73 = vector.broadcast %72 : vector<1x1x128xf32> to vector<16x16x128xf32>
    %74 = arith.mulf %71, %73 : vector<16x16x128xf32>
    %75 = arith.addf %68, %74 : vector<16x16x128xf32>
    %c10 = arith.constant 10 : index
    %c0_51 = arith.constant 0 : index
    %76 = vector.load %arg2[%c10, %c0_51] : memref<56x128xf32, #tpu.memory_space<vmem>>, vector<1x128xf32>
    %77 = vector.shape_cast %76 : vector<1x128xf32> to vector<128xf32>
    %c1_52 = arith.constant 1 : index
    %c3_53 = arith.constant 3 : index
    %c0_54 = arith.constant 0 : index
    %78 = vector.load %arg6[%c1_52, %c3_53, %c0_54] : memref<22x22x128xf32, #tpu.memory_space<vmem>>, vector<16x16x128xf32>
    %79 = vector.shape_cast %77 : vector<128xf32> to vector<1x1x128xf32>
    %80 = vector.broadcast %79 : vector<1x1x128xf32> to vector<16x16x128xf32>
    %81 = arith.mulf %78, %80 : vector<16x16x128xf32>
    %82 = arith.addf %75, %81 : vector<16x16x128xf32>
    %c11 = arith.constant 11 : index
    %c0_55 = arith.constant 0 : index
    %83 = vector.load %arg2[%c11, %c0_55] : memref<56x128xf32, #tpu.memory_space<vmem>>, vector<1x128xf32>
    %84 = vector.shape_cast %83 : vector<1x128xf32> to vector<128xf32>
    %c1_56 = arith.constant 1 : index
    %c4_57 = arith.constant 4 : index
    %c0_58 = arith.constant 0 : index
    %85 = vector.load %arg6[%c1_56, %c4_57, %c0_58] : memref<22x22x128xf32, #tpu.memory_space<vmem>>, vector<16x16x128xf32>
    %86 = vector.shape_cast %84 : vector<128xf32> to vector<1x1x128xf32>
    %87 = vector.broadcast %86 : vector<1x1x128xf32> to vector<16x16x128xf32>
    %88 = arith.mulf %85, %87 : vector<16x16x128xf32>
    %89 = arith.addf %82, %88 : vector<16x16x128xf32>
    %c12 = arith.constant 12 : index
    %c0_59 = arith.constant 0 : index
    %90 = vector.load %arg2[%c12, %c0_59] : memref<56x128xf32, #tpu.memory_space<vmem>>, vector<1x128xf32>
    %91 = vector.shape_cast %90 : vector<1x128xf32> to vector<128xf32>
    %c1_60 = arith.constant 1 : index
    %c5_61 = arith.constant 5 : index
    %c0_62 = arith.constant 0 : index
    %92 = vector.load %arg6[%c1_60, %c5_61, %c0_62] : memref<22x22x128xf32, #tpu.memory_space<vmem>>, vector<16x16x128xf32>
    %93 = vector.shape_cast %91 : vector<128xf32> to vector<1x1x128xf32>
    %94 = vector.broadcast %93 : vector<1x1x128xf32> to vector<16x16x128xf32>
    %95 = arith.mulf %92, %94 : vector<16x16x128xf32>
    %96 = arith.addf %89, %95 : vector<16x16x128xf32>
    %c13 = arith.constant 13 : index
    %c0_63 = arith.constant 0 : index
    %97 = vector.load %arg2[%c13, %c0_63] : memref<56x128xf32, #tpu.memory_space<vmem>>, vector<1x128xf32>
    %98 = vector.shape_cast %97 : vector<1x128xf32> to vector<128xf32>
    %c1_64 = arith.constant 1 : index
    %c6_65 = arith.constant 6 : index
    %c0_66 = arith.constant 0 : index
    %99 = vector.load %arg6[%c1_64, %c6_65, %c0_66] : memref<22x22x128xf32, #tpu.memory_space<vmem>>, vector<16x16x128xf32>
    %100 = vector.shape_cast %98 : vector<128xf32> to vector<1x1x128xf32>
    %101 = vector.broadcast %100 : vector<1x1x128xf32> to vector<16x16x128xf32>
    %102 = arith.mulf %99, %101 : vector<16x16x128xf32>
    %103 = arith.addf %96, %102 : vector<16x16x128xf32>
    %c14 = arith.constant 14 : index
    %c0_67 = arith.constant 0 : index
    %104 = vector.load %arg2[%c14, %c0_67] : memref<56x128xf32, #tpu.memory_space<vmem>>, vector<1x128xf32>
    %105 = vector.shape_cast %104 : vector<1x128xf32> to vector<128xf32>
    %c2_68 = arith.constant 2 : index
    %c0_69 = arith.constant 0 : index
    %c0_70 = arith.constant 0 : index
    %106 = vector.load %arg6[%c2_68, %c0_69, %c0_70] : memref<22x22x128xf32, #tpu.memory_space<vmem>>, vector<16x16x128xf32>
    %107 = vector.shape_cast %105 : vector<128xf32> to vector<1x1x128xf32>
    %108 = vector.broadcast %107 : vector<1x1x128xf32> to vector<16x16x128xf32>
    %109 = arith.mulf %106, %108 : vector<16x16x128xf32>
    %110 = arith.addf %103, %109 : vector<16x16x128xf32>
    %c15 = arith.constant 15 : index
    %c0_71 = arith.constant 0 : index
    %111 = vector.load %arg2[%c15, %c0_71] : memref<56x128xf32, #tpu.memory_space<vmem>>, vector<1x128xf32>
    %112 = vector.shape_cast %111 : vector<1x128xf32> to vector<128xf32>
    %c2_72 = arith.constant 2 : index
    %c1_73 = arith.constant 1 : index
    %c0_74 = arith.constant 0 : index
    %113 = vector.load %arg6[%c2_72, %c1_73, %c0_74] : memref<22x22x128xf32, #tpu.memory_space<vmem>>, vector<16x16x128xf32>
    %114 = vector.shape_cast %112 : vector<128xf32> to vector<1x1x128xf32>
    %115 = vector.broadcast %114 : vector<1x1x128xf32> to vector<16x16x128xf32>
    %116 = arith.mulf %113, %115 : vector<16x16x128xf32>
    %117 = arith.addf %110, %116 : vector<16x16x128xf32>
    %c16 = arith.constant 16 : index
    %c0_75 = arith.constant 0 : index
    %118 = vector.load %arg2[%c16, %c0_75] : memref<56x128xf32, #tpu.memory_space<vmem>>, vector<1x128xf32>
    %119 = vector.shape_cast %118 : vector<1x128xf32> to vector<128xf32>
    %c2_76 = arith.constant 2 : index
    %c2_77 = arith.constant 2 : index
    %c0_78 = arith.constant 0 : index
    %120 = vector.load %arg6[%c2_76, %c2_77, %c0_78] : memref<22x22x128xf32, #tpu.memory_space<vmem>>, vector<16x16x128xf32>
    %121 = vector.shape_cast %119 : vector<128xf32> to vector<1x1x128xf32>
    %122 = vector.broadcast %121 : vector<1x1x128xf32> to vector<16x16x128xf32>
    %123 = arith.mulf %120, %122 : vector<16x16x128xf32>
    %124 = arith.addf %117, %123 : vector<16x16x128xf32>
    %c17 = arith.constant 17 : index
    %c0_79 = arith.constant 0 : index
    %125 = vector.load %arg2[%c17, %c0_79] : memref<56x128xf32, #tpu.memory_space<vmem>>, vector<1x128xf32>
    %126 = vector.shape_cast %125 : vector<1x128xf32> to vector<128xf32>
    %c2_80 = arith.constant 2 : index
    %c3_81 = arith.constant 3 : index
    %c0_82 = arith.constant 0 : index
    %127 = vector.load %arg6[%c2_80, %c3_81, %c0_82] : memref<22x22x128xf32, #tpu.memory_space<vmem>>, vector<16x16x128xf32>
    %128 = vector.shape_cast %126 : vector<128xf32> to vector<1x1x128xf32>
    %129 = vector.broadcast %128 : vector<1x1x128xf32> to vector<16x16x128xf32>
    %130 = arith.mulf %127, %129 : vector<16x16x128xf32>
    %131 = arith.addf %124, %130 : vector<16x16x128xf32>
    %c18 = arith.constant 18 : index
    %c0_83 = arith.constant 0 : index
    %132 = vector.load %arg2[%c18, %c0_83] : memref<56x128xf32, #tpu.memory_space<vmem>>, vector<1x128xf32>
    %133 = vector.shape_cast %132 : vector<1x128xf32> to vector<128xf32>
    %c2_84 = arith.constant 2 : index
    %c4_85 = arith.constant 4 : index
    %c0_86 = arith.constant 0 : index
    %134 = vector.load %arg6[%c2_84, %c4_85, %c0_86] : memref<22x22x128xf32, #tpu.memory_space<vmem>>, vector<16x16x128xf32>
    %135 = vector.shape_cast %133 : vector<128xf32> to vector<1x1x128xf32>
    %136 = vector.broadcast %135 : vector<1x1x128xf32> to vector<16x16x128xf32>
    %137 = arith.mulf %134, %136 : vector<16x16x128xf32>
    %138 = arith.addf %131, %137 : vector<16x16x128xf32>
    %c19 = arith.constant 19 : index
    %c0_87 = arith.constant 0 : index
    %139 = vector.load %arg2[%c19, %c0_87] : memref<56x128xf32, #tpu.memory_space<vmem>>, vector<1x128xf32>
    %140 = vector.shape_cast %139 : vector<1x128xf32> to vector<128xf32>
    %c2_88 = arith.constant 2 : index
    %c5_89 = arith.constant 5 : index
    %c0_90 = arith.constant 0 : index
    %141 = vector.load %arg6[%c2_88, %c5_89, %c0_90] : memref<22x22x128xf32, #tpu.memory_space<vmem>>, vector<16x16x128xf32>
    %142 = vector.shape_cast %140 : vector<128xf32> to vector<1x1x128xf32>
    %143 = vector.broadcast %142 : vector<1x1x128xf32> to vector<16x16x128xf32>
    %144 = arith.mulf %141, %143 : vector<16x16x128xf32>
    %145 = arith.addf %138, %144 : vector<16x16x128xf32>
    %c20 = arith.constant 20 : index
    %c0_91 = arith.constant 0 : index
    %146 = vector.load %arg2[%c20, %c0_91] : memref<56x128xf32, #tpu.memory_space<vmem>>, vector<1x128xf32>
    %147 = vector.shape_cast %146 : vector<1x128xf32> to vector<128xf32>
    %c2_92 = arith.constant 2 : index
    %c6_93 = arith.constant 6 : index
    %c0_94 = arith.constant 0 : index
    %148 = vector.load %arg6[%c2_92, %c6_93, %c0_94] : memref<22x22x128xf32, #tpu.memory_space<vmem>>, vector<16x16x128xf32>
    %149 = vector.shape_cast %147 : vector<128xf32> to vector<1x1x128xf32>
    %150 = vector.broadcast %149 : vector<1x1x128xf32> to vector<16x16x128xf32>
    %151 = arith.mulf %148, %150 : vector<16x16x128xf32>
    %152 = arith.addf %145, %151 : vector<16x16x128xf32>
    %c21 = arith.constant 21 : index
    %c0_95 = arith.constant 0 : index
    %153 = vector.load %arg2[%c21, %c0_95] : memref<56x128xf32, #tpu.memory_space<vmem>>, vector<1x128xf32>
    %154 = vector.shape_cast %153 : vector<1x128xf32> to vector<128xf32>
    %c3_96 = arith.constant 3 : index
    %c0_97 = arith.constant 0 : index
    %c0_98 = arith.constant 0 : index
    %155 = vector.load %arg6[%c3_96, %c0_97, %c0_98] : memref<22x22x128xf32, #tpu.memory_space<vmem>>, vector<16x16x128xf32>
    %156 = vector.shape_cast %154 : vector<128xf32> to vector<1x1x128xf32>
    %157 = vector.broadcast %156 : vector<1x1x128xf32> to vector<16x16x128xf32>
    %158 = arith.mulf %155, %157 : vector<16x16x128xf32>
    %159 = arith.addf %152, %158 : vector<16x16x128xf32>
    %c22 = arith.constant 22 : index
    %c0_99 = arith.constant 0 : index
    %160 = vector.load %arg2[%c22, %c0_99] : memref<56x128xf32, #tpu.memory_space<vmem>>, vector<1x128xf32>
    %161 = vector.shape_cast %160 : vector<1x128xf32> to vector<128xf32>
    %c3_100 = arith.constant 3 : index
    %c1_101 = arith.constant 1 : index
    %c0_102 = arith.constant 0 : index
    %162 = vector.load %arg6[%c3_100, %c1_101, %c0_102] : memref<22x22x128xf32, #tpu.memory_space<vmem>>, vector<16x16x128xf32>
    %163 = vector.shape_cast %161 : vector<128xf32> to vector<1x1x128xf32>
    %164 = vector.broadcast %163 : vector<1x1x128xf32> to vector<16x16x128xf32>
    %165 = arith.mulf %162, %164 : vector<16x16x128xf32>
    %166 = arith.addf %159, %165 : vector<16x16x128xf32>
    %c23 = arith.constant 23 : index
    %c0_103 = arith.constant 0 : index
    %167 = vector.load %arg2[%c23, %c0_103] : memref<56x128xf32, #tpu.memory_space<vmem>>, vector<1x128xf32>
    %168 = vector.shape_cast %167 : vector<1x128xf32> to vector<128xf32>
    %c3_104 = arith.constant 3 : index
    %c2_105 = arith.constant 2 : index
    %c0_106 = arith.constant 0 : index
    %169 = vector.load %arg6[%c3_104, %c2_105, %c0_106] : memref<22x22x128xf32, #tpu.memory_space<vmem>>, vector<16x16x128xf32>
    %170 = vector.shape_cast %168 : vector<128xf32> to vector<1x1x128xf32>
    %171 = vector.broadcast %170 : vector<1x1x128xf32> to vector<16x16x128xf32>
    %172 = arith.mulf %169, %171 : vector<16x16x128xf32>
    %173 = arith.addf %166, %172 : vector<16x16x128xf32>
    %c24 = arith.constant 24 : index
    %c0_107 = arith.constant 0 : index
    %174 = vector.load %arg2[%c24, %c0_107] : memref<56x128xf32, #tpu.memory_space<vmem>>, vector<1x128xf32>
    %175 = vector.shape_cast %174 : vector<1x128xf32> to vector<128xf32>
    %c3_108 = arith.constant 3 : index
    %c3_109 = arith.constant 3 : index
    %c0_110 = arith.constant 0 : index
    %176 = vector.load %arg6[%c3_108, %c3_109, %c0_110] : memref<22x22x128xf32, #tpu.memory_space<vmem>>, vector<16x16x128xf32>
    %177 = vector.shape_cast %175 : vector<128xf32> to vector<1x1x128xf32>
    %178 = vector.broadcast %177 : vector<1x1x128xf32> to vector<16x16x128xf32>
    %179 = arith.mulf %176, %178 : vector<16x16x128xf32>
    %180 = arith.addf %173, %179 : vector<16x16x128xf32>
    %c25 = arith.constant 25 : index
    %c0_111 = arith.constant 0 : index
    %181 = vector.load %arg2[%c25, %c0_111] : memref<56x128xf32, #tpu.memory_space<vmem>>, vector<1x128xf32>
    %182 = vector.shape_cast %181 : vector<1x128xf32> to vector<128xf32>
    %c3_112 = arith.constant 3 : index
    %c4_113 = arith.constant 4 : index
    %c0_114 = arith.constant 0 : index
    %183 = vector.load %arg6[%c3_112, %c4_113, %c0_114] : memref<22x22x128xf32, #tpu.memory_space<vmem>>, vector<16x16x128xf32>
    %184 = vector.shape_cast %182 : vector<128xf32> to vector<1x1x128xf32>
    %185 = vector.broadcast %184 : vector<1x1x128xf32> to vector<16x16x128xf32>
    %186 = arith.mulf %183, %185 : vector<16x16x128xf32>
    %187 = arith.addf %180, %186 : vector<16x16x128xf32>
    %c26 = arith.constant 26 : index
    %c0_115 = arith.constant 0 : index
    %188 = vector.load %arg2[%c26, %c0_115] : memref<56x128xf32, #tpu.memory_space<vmem>>, vector<1x128xf32>
    %189 = vector.shape_cast %188 : vector<1x128xf32> to vector<128xf32>
    %c3_116 = arith.constant 3 : index
    %c5_117 = arith.constant 5 : index
    %c0_118 = arith.constant 0 : index
    %190 = vector.load %arg6[%c3_116, %c5_117, %c0_118] : memref<22x22x128xf32, #tpu.memory_space<vmem>>, vector<16x16x128xf32>
    %191 = vector.shape_cast %189 : vector<128xf32> to vector<1x1x128xf32>
    %192 = vector.broadcast %191 : vector<1x1x128xf32> to vector<16x16x128xf32>
    %193 = arith.mulf %190, %192 : vector<16x16x128xf32>
    %194 = arith.addf %187, %193 : vector<16x16x128xf32>
    %c27 = arith.constant 27 : index
    %c0_119 = arith.constant 0 : index
    %195 = vector.load %arg2[%c27, %c0_119] : memref<56x128xf32, #tpu.memory_space<vmem>>, vector<1x128xf32>
    %196 = vector.shape_cast %195 : vector<1x128xf32> to vector<128xf32>
    %c3_120 = arith.constant 3 : index
    %c6_121 = arith.constant 6 : index
    %c0_122 = arith.constant 0 : index
    %197 = vector.load %arg6[%c3_120, %c6_121, %c0_122] : memref<22x22x128xf32, #tpu.memory_space<vmem>>, vector<16x16x128xf32>
    %198 = vector.shape_cast %196 : vector<128xf32> to vector<1x1x128xf32>
    %199 = vector.broadcast %198 : vector<1x1x128xf32> to vector<16x16x128xf32>
    %200 = arith.mulf %197, %199 : vector<16x16x128xf32>
    %201 = arith.addf %194, %200 : vector<16x16x128xf32>
    %c28 = arith.constant 28 : index
    %c0_123 = arith.constant 0 : index
    %202 = vector.load %arg2[%c28, %c0_123] : memref<56x128xf32, #tpu.memory_space<vmem>>, vector<1x128xf32>
    %203 = vector.shape_cast %202 : vector<1x128xf32> to vector<128xf32>
    %c4_124 = arith.constant 4 : index
    %c0_125 = arith.constant 0 : index
    %c0_126 = arith.constant 0 : index
    %204 = vector.load %arg6[%c4_124, %c0_125, %c0_126] : memref<22x22x128xf32, #tpu.memory_space<vmem>>, vector<16x16x128xf32>
    %205 = vector.shape_cast %203 : vector<128xf32> to vector<1x1x128xf32>
    %206 = vector.broadcast %205 : vector<1x1x128xf32> to vector<16x16x128xf32>
    %207 = arith.mulf %204, %206 : vector<16x16x128xf32>
    %208 = arith.addf %201, %207 : vector<16x16x128xf32>
    %c29 = arith.constant 29 : index
    %c0_127 = arith.constant 0 : index
    %209 = vector.load %arg2[%c29, %c0_127] : memref<56x128xf32, #tpu.memory_space<vmem>>, vector<1x128xf32>
    %210 = vector.shape_cast %209 : vector<1x128xf32> to vector<128xf32>
    %c4_128 = arith.constant 4 : index
    %c1_129 = arith.constant 1 : index
    %c0_130 = arith.constant 0 : index
    %211 = vector.load %arg6[%c4_128, %c1_129, %c0_130] : memref<22x22x128xf32, #tpu.memory_space<vmem>>, vector<16x16x128xf32>
    %212 = vector.shape_cast %210 : vector<128xf32> to vector<1x1x128xf32>
    %213 = vector.broadcast %212 : vector<1x1x128xf32> to vector<16x16x128xf32>
    %214 = arith.mulf %211, %213 : vector<16x16x128xf32>
    %215 = arith.addf %208, %214 : vector<16x16x128xf32>
    %c30 = arith.constant 30 : index
    %c0_131 = arith.constant 0 : index
    %216 = vector.load %arg2[%c30, %c0_131] : memref<56x128xf32, #tpu.memory_space<vmem>>, vector<1x128xf32>
    %217 = vector.shape_cast %216 : vector<1x128xf32> to vector<128xf32>
    %c4_132 = arith.constant 4 : index
    %c2_133 = arith.constant 2 : index
    %c0_134 = arith.constant 0 : index
    %218 = vector.load %arg6[%c4_132, %c2_133, %c0_134] : memref<22x22x128xf32, #tpu.memory_space<vmem>>, vector<16x16x128xf32>
    %219 = vector.shape_cast %217 : vector<128xf32> to vector<1x1x128xf32>
    %220 = vector.broadcast %219 : vector<1x1x128xf32> to vector<16x16x128xf32>
    %221 = arith.mulf %218, %220 : vector<16x16x128xf32>
    %222 = arith.addf %215, %221 : vector<16x16x128xf32>
    %c31 = arith.constant 31 : index
    %c0_135 = arith.constant 0 : index
    %223 = vector.load %arg2[%c31, %c0_135] : memref<56x128xf32, #tpu.memory_space<vmem>>, vector<1x128xf32>
    %224 = vector.shape_cast %223 : vector<1x128xf32> to vector<128xf32>
    %c4_136 = arith.constant 4 : index
    %c3_137 = arith.constant 3 : index
    %c0_138 = arith.constant 0 : index
    %225 = vector.load %arg6[%c4_136, %c3_137, %c0_138] : memref<22x22x128xf32, #tpu.memory_space<vmem>>, vector<16x16x128xf32>
    %226 = vector.shape_cast %224 : vector<128xf32> to vector<1x1x128xf32>
    %227 = vector.broadcast %226 : vector<1x1x128xf32> to vector<16x16x128xf32>
    %228 = arith.mulf %225, %227 : vector<16x16x128xf32>
    %229 = arith.addf %222, %228 : vector<16x16x128xf32>
    %c32 = arith.constant 32 : index
    %c0_139 = arith.constant 0 : index
    %230 = vector.load %arg2[%c32, %c0_139] : memref<56x128xf32, #tpu.memory_space<vmem>>, vector<1x128xf32>
    %231 = vector.shape_cast %230 : vector<1x128xf32> to vector<128xf32>
    %c4_140 = arith.constant 4 : index
    %c4_141 = arith.constant 4 : index
    %c0_142 = arith.constant 0 : index
    %232 = vector.load %arg6[%c4_140, %c4_141, %c0_142] : memref<22x22x128xf32, #tpu.memory_space<vmem>>, vector<16x16x128xf32>
    %233 = vector.shape_cast %231 : vector<128xf32> to vector<1x1x128xf32>
    %234 = vector.broadcast %233 : vector<1x1x128xf32> to vector<16x16x128xf32>
    %235 = arith.mulf %232, %234 : vector<16x16x128xf32>
    %236 = arith.addf %229, %235 : vector<16x16x128xf32>
    %c33 = arith.constant 33 : index
    %c0_143 = arith.constant 0 : index
    %237 = vector.load %arg2[%c33, %c0_143] : memref<56x128xf32, #tpu.memory_space<vmem>>, vector<1x128xf32>
    %238 = vector.shape_cast %237 : vector<1x128xf32> to vector<128xf32>
    %c4_144 = arith.constant 4 : index
    %c5_145 = arith.constant 5 : index
    %c0_146 = arith.constant 0 : index
    %239 = vector.load %arg6[%c4_144, %c5_145, %c0_146] : memref<22x22x128xf32, #tpu.memory_space<vmem>>, vector<16x16x128xf32>
    %240 = vector.shape_cast %238 : vector<128xf32> to vector<1x1x128xf32>
    %241 = vector.broadcast %240 : vector<1x1x128xf32> to vector<16x16x128xf32>
    %242 = arith.mulf %239, %241 : vector<16x16x128xf32>
    %243 = arith.addf %236, %242 : vector<16x16x128xf32>
    %c34 = arith.constant 34 : index
    %c0_147 = arith.constant 0 : index
    %244 = vector.load %arg2[%c34, %c0_147] : memref<56x128xf32, #tpu.memory_space<vmem>>, vector<1x128xf32>
    %245 = vector.shape_cast %244 : vector<1x128xf32> to vector<128xf32>
    %c4_148 = arith.constant 4 : index
    %c6_149 = arith.constant 6 : index
    %c0_150 = arith.constant 0 : index
    %246 = vector.load %arg6[%c4_148, %c6_149, %c0_150] : memref<22x22x128xf32, #tpu.memory_space<vmem>>, vector<16x16x128xf32>
    %247 = vector.shape_cast %245 : vector<128xf32> to vector<1x1x128xf32>
    %248 = vector.broadcast %247 : vector<1x1x128xf32> to vector<16x16x128xf32>
    %249 = arith.mulf %246, %248 : vector<16x16x128xf32>
    %250 = arith.addf %243, %249 : vector<16x16x128xf32>
    %c35 = arith.constant 35 : index
    %c0_151 = arith.constant 0 : index
    %251 = vector.load %arg2[%c35, %c0_151] : memref<56x128xf32, #tpu.memory_space<vmem>>, vector<1x128xf32>
    %252 = vector.shape_cast %251 : vector<1x128xf32> to vector<128xf32>
    %c5_152 = arith.constant 5 : index
    %c0_153 = arith.constant 0 : index
    %c0_154 = arith.constant 0 : index
    %253 = vector.load %arg6[%c5_152, %c0_153, %c0_154] : memref<22x22x128xf32, #tpu.memory_space<vmem>>, vector<16x16x128xf32>
    %254 = vector.shape_cast %252 : vector<128xf32> to vector<1x1x128xf32>
    %255 = vector.broadcast %254 : vector<1x1x128xf32> to vector<16x16x128xf32>
    %256 = arith.mulf %253, %255 : vector<16x16x128xf32>
    %257 = arith.addf %250, %256 : vector<16x16x128xf32>
    %c36 = arith.constant 36 : index
    %c0_155 = arith.constant 0 : index
    %258 = vector.load %arg2[%c36, %c0_155] : memref<56x128xf32, #tpu.memory_space<vmem>>, vector<1x128xf32>
    %259 = vector.shape_cast %258 : vector<1x128xf32> to vector<128xf32>
    %c5_156 = arith.constant 5 : index
    %c1_157 = arith.constant 1 : index
    %c0_158 = arith.constant 0 : index
    %260 = vector.load %arg6[%c5_156, %c1_157, %c0_158] : memref<22x22x128xf32, #tpu.memory_space<vmem>>, vector<16x16x128xf32>
    %261 = vector.shape_cast %259 : vector<128xf32> to vector<1x1x128xf32>
    %262 = vector.broadcast %261 : vector<1x1x128xf32> to vector<16x16x128xf32>
    %263 = arith.mulf %260, %262 : vector<16x16x128xf32>
    %264 = arith.addf %257, %263 : vector<16x16x128xf32>
    %c37 = arith.constant 37 : index
    %c0_159 = arith.constant 0 : index
    %265 = vector.load %arg2[%c37, %c0_159] : memref<56x128xf32, #tpu.memory_space<vmem>>, vector<1x128xf32>
    %266 = vector.shape_cast %265 : vector<1x128xf32> to vector<128xf32>
    %c5_160 = arith.constant 5 : index
    %c2_161 = arith.constant 2 : index
    %c0_162 = arith.constant 0 : index
    %267 = vector.load %arg6[%c5_160, %c2_161, %c0_162] : memref<22x22x128xf32, #tpu.memory_space<vmem>>, vector<16x16x128xf32>
    %268 = vector.shape_cast %266 : vector<128xf32> to vector<1x1x128xf32>
    %269 = vector.broadcast %268 : vector<1x1x128xf32> to vector<16x16x128xf32>
    %270 = arith.mulf %267, %269 : vector<16x16x128xf32>
    %271 = arith.addf %264, %270 : vector<16x16x128xf32>
    %c38 = arith.constant 38 : index
    %c0_163 = arith.constant 0 : index
    %272 = vector.load %arg2[%c38, %c0_163] : memref<56x128xf32, #tpu.memory_space<vmem>>, vector<1x128xf32>
    %273 = vector.shape_cast %272 : vector<1x128xf32> to vector<128xf32>
    %c5_164 = arith.constant 5 : index
    %c3_165 = arith.constant 3 : index
    %c0_166 = arith.constant 0 : index
    %274 = vector.load %arg6[%c5_164, %c3_165, %c0_166] : memref<22x22x128xf32, #tpu.memory_space<vmem>>, vector<16x16x128xf32>
    %275 = vector.shape_cast %273 : vector<128xf32> to vector<1x1x128xf32>
    %276 = vector.broadcast %275 : vector<1x1x128xf32> to vector<16x16x128xf32>
    %277 = arith.mulf %274, %276 : vector<16x16x128xf32>
    %278 = arith.addf %271, %277 : vector<16x16x128xf32>
    %c39 = arith.constant 39 : index
    %c0_167 = arith.constant 0 : index
    %279 = vector.load %arg2[%c39, %c0_167] : memref<56x128xf32, #tpu.memory_space<vmem>>, vector<1x128xf32>
    %280 = vector.shape_cast %279 : vector<1x128xf32> to vector<128xf32>
    %c5_168 = arith.constant 5 : index
    %c4_169 = arith.constant 4 : index
    %c0_170 = arith.constant 0 : index
    %281 = vector.load %arg6[%c5_168, %c4_169, %c0_170] : memref<22x22x128xf32, #tpu.memory_space<vmem>>, vector<16x16x128xf32>
    %282 = vector.shape_cast %280 : vector<128xf32> to vector<1x1x128xf32>
    %283 = vector.broadcast %282 : vector<1x1x128xf32> to vector<16x16x128xf32>
    %284 = arith.mulf %281, %283 : vector<16x16x128xf32>
    %285 = arith.addf %278, %284 : vector<16x16x128xf32>
    %c40 = arith.constant 40 : index
    %c0_171 = arith.constant 0 : index
    %286 = vector.load %arg2[%c40, %c0_171] : memref<56x128xf32, #tpu.memory_space<vmem>>, vector<1x128xf32>
    %287 = vector.shape_cast %286 : vector<1x128xf32> to vector<128xf32>
    %c5_172 = arith.constant 5 : index
    %c5_173 = arith.constant 5 : index
    %c0_174 = arith.constant 0 : index
    %288 = vector.load %arg6[%c5_172, %c5_173, %c0_174] : memref<22x22x128xf32, #tpu.memory_space<vmem>>, vector<16x16x128xf32>
    %289 = vector.shape_cast %287 : vector<128xf32> to vector<1x1x128xf32>
    %290 = vector.broadcast %289 : vector<1x1x128xf32> to vector<16x16x128xf32>
    %291 = arith.mulf %288, %290 : vector<16x16x128xf32>
    %292 = arith.addf %285, %291 : vector<16x16x128xf32>
    %c41 = arith.constant 41 : index
    %c0_175 = arith.constant 0 : index
    %293 = vector.load %arg2[%c41, %c0_175] : memref<56x128xf32, #tpu.memory_space<vmem>>, vector<1x128xf32>
    %294 = vector.shape_cast %293 : vector<1x128xf32> to vector<128xf32>
    %c5_176 = arith.constant 5 : index
    %c6_177 = arith.constant 6 : index
    %c0_178 = arith.constant 0 : index
    %295 = vector.load %arg6[%c5_176, %c6_177, %c0_178] : memref<22x22x128xf32, #tpu.memory_space<vmem>>, vector<16x16x128xf32>
    %296 = vector.shape_cast %294 : vector<128xf32> to vector<1x1x128xf32>
    %297 = vector.broadcast %296 : vector<1x1x128xf32> to vector<16x16x128xf32>
    %298 = arith.mulf %295, %297 : vector<16x16x128xf32>
    %299 = arith.addf %292, %298 : vector<16x16x128xf32>
    %c42 = arith.constant 42 : index
    %c0_179 = arith.constant 0 : index
    %300 = vector.load %arg2[%c42, %c0_179] : memref<56x128xf32, #tpu.memory_space<vmem>>, vector<1x128xf32>
    %301 = vector.shape_cast %300 : vector<1x128xf32> to vector<128xf32>
    %c6_180 = arith.constant 6 : index
    %c0_181 = arith.constant 0 : index
    %c0_182 = arith.constant 0 : index
    %302 = vector.load %arg6[%c6_180, %c0_181, %c0_182] : memref<22x22x128xf32, #tpu.memory_space<vmem>>, vector<16x16x128xf32>
    %303 = vector.shape_cast %301 : vector<128xf32> to vector<1x1x128xf32>
    %304 = vector.broadcast %303 : vector<1x1x128xf32> to vector<16x16x128xf32>
    %305 = arith.mulf %302, %304 : vector<16x16x128xf32>
    %306 = arith.addf %299, %305 : vector<16x16x128xf32>
    %c43 = arith.constant 43 : index
    %c0_183 = arith.constant 0 : index
    %307 = vector.load %arg2[%c43, %c0_183] : memref<56x128xf32, #tpu.memory_space<vmem>>, vector<1x128xf32>
    %308 = vector.shape_cast %307 : vector<1x128xf32> to vector<128xf32>
    %c6_184 = arith.constant 6 : index
    %c1_185 = arith.constant 1 : index
    %c0_186 = arith.constant 0 : index
    %309 = vector.load %arg6[%c6_184, %c1_185, %c0_186] : memref<22x22x128xf32, #tpu.memory_space<vmem>>, vector<16x16x128xf32>
    %310 = vector.shape_cast %308 : vector<128xf32> to vector<1x1x128xf32>
    %311 = vector.broadcast %310 : vector<1x1x128xf32> to vector<16x16x128xf32>
    %312 = arith.mulf %309, %311 : vector<16x16x128xf32>
    %313 = arith.addf %306, %312 : vector<16x16x128xf32>
    %c44 = arith.constant 44 : index
    %c0_187 = arith.constant 0 : index
    %314 = vector.load %arg2[%c44, %c0_187] : memref<56x128xf32, #tpu.memory_space<vmem>>, vector<1x128xf32>
    %315 = vector.shape_cast %314 : vector<1x128xf32> to vector<128xf32>
    %c6_188 = arith.constant 6 : index
    %c2_189 = arith.constant 2 : index
    %c0_190 = arith.constant 0 : index
    %316 = vector.load %arg6[%c6_188, %c2_189, %c0_190] : memref<22x22x128xf32, #tpu.memory_space<vmem>>, vector<16x16x128xf32>
    %317 = vector.shape_cast %315 : vector<128xf32> to vector<1x1x128xf32>
    %318 = vector.broadcast %317 : vector<1x1x128xf32> to vector<16x16x128xf32>
    %319 = arith.mulf %316, %318 : vector<16x16x128xf32>
    %320 = arith.addf %313, %319 : vector<16x16x128xf32>
    %c45 = arith.constant 45 : index
    %c0_191 = arith.constant 0 : index
    %321 = vector.load %arg2[%c45, %c0_191] : memref<56x128xf32, #tpu.memory_space<vmem>>, vector<1x128xf32>
    %322 = vector.shape_cast %321 : vector<1x128xf32> to vector<128xf32>
    %c6_192 = arith.constant 6 : index
    %c3_193 = arith.constant 3 : index
    %c0_194 = arith.constant 0 : index
    %323 = vector.load %arg6[%c6_192, %c3_193, %c0_194] : memref<22x22x128xf32, #tpu.memory_space<vmem>>, vector<16x16x128xf32>
    %324 = vector.shape_cast %322 : vector<128xf32> to vector<1x1x128xf32>
    %325 = vector.broadcast %324 : vector<1x1x128xf32> to vector<16x16x128xf32>
    %326 = arith.mulf %323, %325 : vector<16x16x128xf32>
    %327 = arith.addf %320, %326 : vector<16x16x128xf32>
    %c46 = arith.constant 46 : index
    %c0_195 = arith.constant 0 : index
    %328 = vector.load %arg2[%c46, %c0_195] : memref<56x128xf32, #tpu.memory_space<vmem>>, vector<1x128xf32>
    %329 = vector.shape_cast %328 : vector<1x128xf32> to vector<128xf32>
    %c6_196 = arith.constant 6 : index
    %c4_197 = arith.constant 4 : index
    %c0_198 = arith.constant 0 : index
    %330 = vector.load %arg6[%c6_196, %c4_197, %c0_198] : memref<22x22x128xf32, #tpu.memory_space<vmem>>, vector<16x16x128xf32>
    %331 = vector.shape_cast %329 : vector<128xf32> to vector<1x1x128xf32>
    %332 = vector.broadcast %331 : vector<1x1x128xf32> to vector<16x16x128xf32>
    %333 = arith.mulf %330, %332 : vector<16x16x128xf32>
    %334 = arith.addf %327, %333 : vector<16x16x128xf32>
    %c47 = arith.constant 47 : index
    %c0_199 = arith.constant 0 : index
    %335 = vector.load %arg2[%c47, %c0_199] : memref<56x128xf32, #tpu.memory_space<vmem>>, vector<1x128xf32>
    %336 = vector.shape_cast %335 : vector<1x128xf32> to vector<128xf32>
    %c6_200 = arith.constant 6 : index
    %c5_201 = arith.constant 5 : index
    %c0_202 = arith.constant 0 : index
    %337 = vector.load %arg6[%c6_200, %c5_201, %c0_202] : memref<22x22x128xf32, #tpu.memory_space<vmem>>, vector<16x16x128xf32>
    %338 = vector.shape_cast %336 : vector<128xf32> to vector<1x1x128xf32>
    %339 = vector.broadcast %338 : vector<1x1x128xf32> to vector<16x16x128xf32>
    %340 = arith.mulf %337, %339 : vector<16x16x128xf32>
    %341 = arith.addf %334, %340 : vector<16x16x128xf32>
    %c48 = arith.constant 48 : index
    %c0_203 = arith.constant 0 : index
    %342 = vector.load %arg2[%c48, %c0_203] : memref<56x128xf32, #tpu.memory_space<vmem>>, vector<1x128xf32>
    %343 = vector.shape_cast %342 : vector<1x128xf32> to vector<128xf32>
    %c6_204 = arith.constant 6 : index
    %c6_205 = arith.constant 6 : index
    %c0_206 = arith.constant 0 : index
    %344 = vector.load %arg6[%c6_204, %c6_205, %c0_206] : memref<22x22x128xf32, #tpu.memory_space<vmem>>, vector<16x16x128xf32>
    %345 = vector.shape_cast %343 : vector<128xf32> to vector<1x1x128xf32>
    %346 = vector.broadcast %345 : vector<1x1x128xf32> to vector<16x16x128xf32>
    %347 = arith.mulf %344, %346 : vector<16x16x128xf32>
    %348 = arith.addf %341, %347 : vector<16x16x128xf32>
    %c0_207 = arith.constant 0 : index
    %c0_208 = arith.constant 0 : index
    %349 = vector.load %arg3[%c0_207, %c0_208] : memref<1x128xf32, #tpu.memory_space<vmem>>, vector<1x128xf32>
    %350 = vector.shape_cast %349 : vector<1x128xf32> to vector<128xf32>
    %351 = vector.shape_cast %350 : vector<128xf32> to vector<1x1x128xf32>
    %352 = vector.broadcast %351 : vector<1x1x128xf32> to vector<16x16x128xf32>
    %353 = arith.addf %348, %352 : vector<16x16x128xf32>
    %c0_209 = arith.constant 0 : index
    %c0_210 = arith.constant 0 : index
    %c0_211 = arith.constant 0 : index
    %c0_212 = arith.constant 0 : index
    %354 = vector.load %arg5[%c0_209, %c0_210, %c0_211, %c0_212] : memref<1x16x16x128xf32, #tpu.memory_space<vmem>>, vector<1x16x16x128xf32>
    %355 = vector.shape_cast %354 : vector<1x16x16x128xf32> to vector<16x16x128xf32>
    %356 = vector.shape_cast %353 : vector<16x16x128xf32> to vector<1x16x16x128xf32>
    tpu.vector_store %arg5[%c0_209, %c0_210, %c0_211, %c0_212], %356 {strides = array<i32>} : memref<1x16x16x128xf32, #tpu.memory_space<vmem>>, vector<1x16x16x128xf32>,
    return
  }
  func.func @transform_0(%arg0: i32, %arg1: i32) -> (i32, i32) {
    %c0_i32 = arith.constant 0 : i32
    %c0_i32_0 = arith.constant 0 : i32
    return %c0_i32, %arg1 : i32, i32
  }
  func.func @transform_1(%arg0: i32, %arg1: i32) -> (i32, i32) {
    %c0_i32 = arith.constant 0 : i32
    %c0_i32_0 = arith.constant 0 : i32
    return %c0_i32, %arg1 : i32, i32
  }
  func.func @transform_2(%arg0: i32, %arg1: i32) -> (i32, i32, i32, i32) {
    %c0_i32 = arith.constant 0 : i32
    %c0_i32_0 = arith.constant 0 : i32
    %c0_i32_1 = arith.constant 0 : i32
    return %arg0, %c0_i32, %c0_i32_0, %arg1 : i32, i32, i32, i32
  }
  func.func @transform_3(%arg0: i32, %arg1: i32) -> (i32, i32, i32, i32) {
    %c0_i32 = arith.constant 0 : i32
    %c0_i32_0 = arith.constant 0 : i32
    %c0_i32_1 = arith.constant 0 : i32
    return %arg0, %c0_i32, %c0_i32_0, %arg1 : i32, i32, i32, i32
  }
}

</mosaic_0001>

<llo_original>
// kernel: tpu_custom_call.1
$region0: #{tpu_custom_call.1}
  #allocation0 [shape = 'u32[]', space=smem, size = 0x4, offset = 0x4, fixed_abs, tag = 'smem constant byte address 0x4 - core index']
  #allocation1 [shape = 'u32[72,128]{1,0:T(1,128)}', space=vmem, size = 0x9000, scoped, tag = 'internal scratch']
  #allocation2 [shape = 'f32[22,22,128]{2,1,0:T(8,128)}', space=vmem, size = 0x42000, scoped, tag = 'scratch operand']
  %s0 = inlined_call_operand.hbm [shape: f32[56,128], index: 0, kind: input, shape index: {}]
  %s1 = inlined_call_operand.hbm [shape: f32[1,128], index: 1, kind: input, shape index: {}]
  %s2 = inlined_call_operand.hbm [shape: f32[2,16,16,128], index: 2, kind: input, shape index: {}]
  %s3 = inlined_call_operand.hbm [shape: f32[2,16,16,128], index: 3, kind: output, shape index: {}]
  %s4 = sld [smem:[#allocation0]]
  $region57: #{tpu_custom_call.1} parent=0
    _
  %s6 = ssub.s32 1, %s4
  %s7 = scalar_select 0, %s6, %s4
  $region1: #{tpu_custom_call.1} parent=0
    #allocation3 [shape = 'u8[28672]{0}', space=vmem, size = 0x7000, scoped, tag = 'input window, operand 0, single buffered']
    #allocation4 [shape = 's32[2]{0}', space=sflag, size = 0x8, scoped, tag = 'scoped memory for tpu_custom_call.1']
    #allocation5 [shape = 's32[2]{0}', space=sflag, size = 0x8, scoped, tag = 'scoped memory for tpu_custom_call.1']
    #allocation6 [shape = 'u8[512]{0}', space=vmem, size = 0x400, scoped, tag = 'input window, operand 1, single buffered']
    #allocation7 [shape = 's32[1]{0}', space=sflag, size = 0x4, scoped, tag = 'scoped memory for tpu_custom_call.1']
    #allocation8 [shape = 'u8[262144]{0}', space=vmem, size = 0x40000, scoped, tag = 'input window, operand 2']
    #allocation9 [shape = 'u8[262144]{0}', space=vmem, size = 0x40000, scoped, tag = 'output window, operand 0']
    %8 = vsyncpa [#allocation4], 0
    %9 = vsyncpa [#allocation7], 0
    %10 = vsyncpa [#allocation5], 0
    %s11 = scalar_lea.sflag [#allocation5], 1
    %12 = vsyncpa %s11, 0
    loop: start=0, step=1, limit=4
    $region2: #{tpu_custom_call.1} parent=1 // loop_pre_header
      _
    $region3: #{tpu_custom_call.1} parent=1 // loop_header
      %s14 = sphi 0, %s18
      %p15 = scmp.ge.s32.totalorder %s14, 4
      %s21 = sphi 0, %s33
      %s22 = sphi 0, %s29
      %s23 = sphi 0, %s21
      %s24 = sphi 0, %s22
      %s25 = sphi 0, %s23
      %s26 = sphi 0, %s24
      %s36 = sphi 0, %s38
      %s39 = sphi 0, %s36
      %s40 = sphi 0, %s39
      %s56 = sphi 0, %s40
      %s62 = sphi 0, %s64
      %s65 = sphi 0, %s62
      %s66 = sphi 0, %s65
      %s82 = sphi 0, %s66
      %s90 = sphi 0, %s92
      %s93 = sphi 0, %s90
      %s94 = sphi 0, %s93
      %s110 = sphi 0, %s94
      %s118 = sphi 0, %s120
      %s121 = sphi 0, %s118
      %s122 = sphi 0, %s121
      %s138 = sphi 0, %s122
    $region4: #{tpu_custom_call.1} parent=1 // loop_header_branch
      %17 = sbr.rel (%p15) target = $region8
    $region5: #{tpu_custom_call.1} parent=1 // loop_body
      %s19 = ssub.s32 %s14, 1
      %s20 = ssub.s32 %s14, 2
      %s27 = sadd.s32 1, %s22
      %p28 = scmp.ge.s32.totalorder %s27, 1
      %s29 = scalar_select %p28, 0, %s27
      %s30 = sadd.s32 1, %s21
      %s31 = scalar_select %p28, %s30, %s21
      %p32 = scmp.ge.s32.totalorder %s31, 2
      %s33 = scalar_select %p32, 0, %s31
      %s34 = ssub.s32 %s22, %s29
      %p35 = scmp.eq.s32.totalorder %s34, 0
      %s37 = sadd.s32 %s36, 1
      %s38 = scalar_select %p35, %s36, %s37
      %p41 = pneg %p35
      %p42 = scmp.eq.s32.totalorder %s14, 1
      %p43 = por %p41, %p42
      %p44 = scmp.ne.s32.totalorder %s36, %s39
      %p45 = scmp.eq.s32.totalorder %s14, 0
      %p46 = por %p44, %p45
      %p47 = scmp.ne.s32.totalorder %s36, %s39
      %p48 = scmp.eq.s32.totalorder %s19, 1
      %p49 = por %p47, %p48
      %p50 = scmp.ne.s32.totalorder %s39, %s40
      %p51 = scmp.eq.s32.totalorder %s19, 0
      %p52 = por %p50, %p51
      %p53 = scmp.ne.s32.totalorder %s39, %s40
      %p54 = scmp.eq.s32.totalorder %s20, 1
      %p55 = por %p53, %p54
      %p57 = scmp.ne.s32.totalorder %s40, %s56
      %p58 = scmp.eq.s32.totalorder %s20, 0
      %p59 = por %p57, %p58
      %s60 = ssub.s32 %s22, %s29
      %p61 = scmp.eq.s32.totalorder %s60, 0
      %s63 = sadd.s32 %s62, 1
      %s64 = scalar_select %p61, %s62, %s63
      %p67 = pneg %p61
      %p68 = scmp.eq.s32.totalorder %s14, 1
      %p69 = por %p67, %p68
      %p70 = scmp.ne.s32.totalorder %s62, %s65
      %p71 = scmp.eq.s32.totalorder %s14, 0
      %p72 = por %p70, %p71
      %p73 = scmp.ne.s32.totalorder %s62, %s65
      %p74 = scmp.eq.s32.totalorder %s19, 1
      %p75 = por %p73, %p74
      %p76 = scmp.ne.s32.totalorder %s65, %s66
      %p77 = scmp.eq.s32.totalorder %s19, 0
      %p78 = por %p76, %p77
      %p79 = scmp.ne.s32.totalorder %s65, %s66
      %p80 = scmp.eq.s32.totalorder %s20, 1
      %p81 = por %p79, %p80
      %p83 = scmp.ne.s32.totalorder %s66, %s82
      %p84 = scmp.eq.s32.totalorder %s20, 0
      %p85 = por %p83, %p84
      %s86 = ssub.s32 %s21, %s33
      %s87 = ssub.s32 %s22, %s29
      %s88 = sor.u32 %s86, %s87
      %p89 = scmp.eq.s32.totalorder %s88, 0
      %s91 = sadd.s32 %s90, 1
      %s92 = scalar_select %p89, %s90, %s91
      %p95 = pneg %p89
      %p96 = scmp.eq.s32.totalorder %s14, 1
      %p97 = por %p95, %p96
      %p98 = scmp.ne.s32.totalorder %s90, %s93
      %p99 = scmp.eq.s32.totalorder %s14, 0
      %p100 = por %p98, %p99
      %p101 = scmp.ne.s32.totalorder %s90, %s93
      %p102 = scmp.eq.s32.totalorder %s19, 1
      %p103 = por %p101, %p102
      %p104 = scmp.ne.s32.totalorder %s93, %s94
      %p105 = scmp.eq.s32.totalorder %s19, 0
      %p106 = por %p104, %p105
      %p107 = scmp.ne.s32.totalorder %s93, %s94
      %p108 = scmp.eq.s32.totalorder %s20, 1
      %p109 = por %p107, %p108
      %p111 = scmp.ne.s32.totalorder %s94, %s110
      %p112 = scmp.eq.s32.totalorder %s20, 0
      %p113 = por %p111, %p112
      %s114 = ssub.s32 %s21, %s33
      %s115 = ssub.s32 %s22, %s29
      %s116 = sor.u32 %s114, %s115
      %p117 = scmp.eq.s32.totalorder %s116, 0
      %s119 = sadd.s32 %s118, 1
      %s120 = scalar_select %p117, %s118, %s119
      %p123 = pneg %p117
      %p124 = scmp.eq.s32.totalorder %s14, 1
      %p125 = por %p123, %p124
      %p126 = scmp.ne.s32.totalorder %s118, %s121
      %p127 = scmp.eq.s32.totalorder %s14, 0
      %p128 = por %p126, %p127
      %p129 = scmp.ne.s32.totalorder %s118, %s121
      %p130 = scmp.eq.s32.totalorder %s19, 1
      %p131 = por %p129, %p130
      %p132 = scmp.ne.s32.totalorder %s121, %s122
      %p133 = scmp.eq.s32.totalorder %s19, 0
      %p134 = por %p132, %p133
      %p135 = scmp.ne.s32.totalorder %s121, %s122
      %p136 = scmp.eq.s32.totalorder %s20, 1
      %p137 = por %p135, %p136
      %p139 = scmp.ne.s32.totalorder %s122, %s138
      %p140 = scmp.eq.s32.totalorder %s20, 0
      %p141 = por %p139, %p140
      %p142 = scmp.le.s32.totalorder 1, %s14
      %p143 = scmp.lt.s32.totalorder %s14, 3
      %p144 = pnand %p142, %p143
      %p145 = pneg %p144
      // Predicated region
      $region9: #{tpu_custom_call.1} parent=5 // pred_check
        _
      $region10: #{tpu_custom_call.1} parent=5 // pred_check_branch
        %147 = sbr.rel (%p144) target = $region12
      $region11: #{tpu_custom_call.1} parent=5 // pred_region
        %s148 = ssub.s32 %s14, 1
        // Predicated region
        $region13: #{tpu_custom_call.1} parent=11 // pred_check
          %p149 = pneg %p52
        $region14: #{tpu_custom_call.1} parent=11 // pred_check_branch
          %151 = sbr.rel (%p149) target = $region16
        $region15: #{tpu_custom_call.1} parent=11 // pred_region
          %153 = vsyncadd [#allocation4], 0
          %s154 = smul.addr %s24, 8
          %s155 = scalar_lea.hbm %s0, %s154
          %s156 = sshll.u32 %s155, 4
          %s157 = int_to_ptr.hbm [resolvable:$true] %s156
          %s158 = sshll.u32 [#allocation3], 4
          %s159 = int_to_ptr.vmem [resolvable:$true] %s158
          %164 = dma.hbm_to_vmem [thread:$0]  %s157, 896, %s159, [#allocation4], 128, 128, 8
        $region16: #{tpu_custom_call.1} parent=11 // pred_fallthru
          _
        // Predicated region
        $region17: #{tpu_custom_call.1} parent=11 // pred_check
          %p165 = pneg %p78
        $region18: #{tpu_custom_call.1} parent=11 // pred_check_branch
          %167 = sbr.rel (%p165) target = $region20
        $region19: #{tpu_custom_call.1} parent=11 // pred_region
          %169 = vsyncadd [#allocation7], 0
          %s170 = scalar_lea.hbm %s1, %s24
          %s172 = sshll.u32 %s170, 4
          %s173 = int_to_ptr.hbm [resolvable:$true] %s172
          %s174 = sshll.u32 [#allocation6], 4
          %s175 = int_to_ptr.vmem [resolvable:$true] %s174
          %177 = dma.hbm_to_vmem [thread:$0]  %s173, 16, %s175, [#allocation7]
        $region20: #{tpu_custom_call.1} parent=11 // pred_fallthru
          _
      $region12: #{tpu_custom_call.1} parent=5 // pred_fallthru
        _
      %p178 = scmp.lt.s32.totalorder %s14, 2
      // Predicated region
      $region21: #{tpu_custom_call.1} parent=5 // pred_check
        %p179 = pneg %p178
      $region22: #{tpu_custom_call.1} parent=5 // pred_check_branch
        %181 = sbr.rel (%p179) target = $region24
      $region23: #{tpu_custom_call.1} parent=5 // pred_region
        // Predicated region
        $region25: #{tpu_custom_call.1} parent=23 // pred_check
          %p182 = pneg %p100
        $region26: #{tpu_custom_call.1} parent=23 // pred_check_branch
          %184 = sbr.rel (%p182) target = $region28
        $region27: #{tpu_custom_call.1} parent=23 // pred_region
          %s185 = sand.u32 %s14, 1
          %s186 = scalar_lea.sflag [#allocation4], %s185
          %s187 = sand.u32 %s90, 1
          %s188 = smul.addr %s187, 256
          %s189 = scalar_lea.vmem [#allocation8], %s188
          %191 = vsyncadd %s186, 0
          %s192 = smul.addr %s21, 32
          %s193 = sadd.s32 %s22, %s192
          %s194 = smul.addr %s193, 8
          %s195 = scalar_lea.hbm %s2, %s194
          %s196 = sshll.u32 %s195, 4
          %s197 = int_to_ptr.hbm [resolvable:$true] %s196
          %s198 = sshll.u32 %s189, 4
          %s199 = int_to_ptr.vmem [resolvable:$true] %s198
          %204 = dma.hbm_to_vmem [thread:$0]  %s197, 4096, %s199, %s186, 128, 128, 8
        $region28: #{tpu_custom_call.1} parent=23 // pred_fallthru
          _
      $region24: #{tpu_custom_call.1} parent=5 // pred_fallthru
        _
      %p205 = scmp.le.s32.totalorder 1, %s14
      %p206 = scmp.lt.s32.totalorder %s14, 3
      %p207 = pnand %p205, %p206
      %p208 = pneg %p207
      // Predicated region
      $region29: #{tpu_custom_call.1} parent=5 // pred_check
        _
      $region30: #{tpu_custom_call.1} parent=5 // pred_check_branch
        %210 = sbr.rel (%p207) target = $region32
      $region31: #{tpu_custom_call.1} parent=5 // pred_region
        %s211 = ssub.s32 %s14, 1
        // Predicated region
        $region33: #{tpu_custom_call.1} parent=31 // pred_check
          %p212 = pneg %p52
        $region34: #{tpu_custom_call.1} parent=31 // pred_check_branch
          %214 = sbr.rel (%p212) target = $region36
        $region35: #{tpu_custom_call.1} parent=31 // pred_region
          %216 = dma.done [#allocation4], 896
        $region36: #{tpu_custom_call.1} parent=31 // pred_fallthru
          _
        // Predicated region
        $region37: #{tpu_custom_call.1} parent=31 // pred_check
          %p217 = pneg %p78
        $region38: #{tpu_custom_call.1} parent=31 // pred_check_branch
          %219 = sbr.rel (%p217) target = $region40
        $region39: #{tpu_custom_call.1} parent=31 // pred_region
          %221 = dma.done [#allocation7], 16
        $region40: #{tpu_custom_call.1} parent=31 // pred_fallthru
          _
        %s222 = sand.u32 %s19, 1
        %s223 = scalar_lea.sflag [#allocation4], %s222
        %s224 = sand.u32 %s93, 1
        %s225 = smul.addr %s224, 256
        %s226 = scalar_lea.vmem [#allocation8], %s225
        // Predicated region
        $region41: #{tpu_custom_call.1} parent=31 // pred_check
          %p227 = pneg %p106
        $region42: #{tpu_custom_call.1} parent=31 // pred_check_branch
          %229 = sbr.rel (%p227) target = $region44
        $region43: #{tpu_custom_call.1} parent=31 // pred_region
          %231 = dma.done %s223, 4096
        $region44: #{tpu_custom_call.1} parent=31 // pred_fallthru
          _
        %p232 = pneg %p52
        %p233 = pneg %p49
        %p234 = pneg %p78
        %p235 = pneg %p75
        %s236 = sand.u32 %s19, 1
        %s237 = scalar_lea.sflag [#allocation4], %s236
        %s238 = sand.u32 %s93, 1
        %s239 = smul.addr %s238, 256
        %s240 = scalar_lea.vmem [#allocation8], %s239
        %p241 = pneg %p106
        %p242 = pneg %p103
        %p243 = pneg %p134
        %p244 = pneg %p131
        %s245 = sand.u32 %s121, 1
        %s246 = scalar_lea.sflag [#allocation5], %s245
        %s247 = sand.u32 %s121, 1
        %s248 = smul.addr %s247, 256
        %s249 = scalar_lea.vmem [#allocation9], %s248
        %250 = vst [vmem:[#allocation2] sm:$0xff] 0.0
        %251 = vst [vmem:[#allocation2 + $0x8] sm:$0xff] 0.0
        %252 = vst [vmem:[#allocation2 + $0x10] sm:$0x3f] 0.0
        %253 = vst [vmem:[#allocation2 + $0x18] sm:$0xff] 0.0
        %254 = vst [vmem:[#allocation2 + $0x20] sm:$0xff] 0.0
        %255 = vst [vmem:[#allocation2 + $0x28] sm:$0x3f] 0.0
        %256 = vst [vmem:[#allocation2 + $0x30] sm:$0xff] 0.0
        %257 = vst [vmem:[#allocation2 + $0x38] sm:$0xff] 0.0
        %258 = vst [vmem:[#allocation2 + $0x40] sm:$0x3f] 0.0
        %259 = vst [vmem:[#allocation2 + $0x48] sm:$0xff] 0.0
        %260 = vst [vmem:[#allocation2 + $0x50] sm:$0xff] 0.0
        %261 = vst [vmem:[#allocation2 + $0x58] sm:$0x3f] 0.0
        %262 = vst [vmem:[#allocation2 + $0x60] sm:$0xff] 0.0
        %263 = vst [vmem:[#allocation2 + $0x68] sm:$0xff] 0.0
        %264 = vst [vmem:[#allocation2 + $0x70] sm:$0x3f] 0.0
        %265 = vst [vmem:[#allocation2 + $0x78] sm:$0xff] 0.0
        %266 = vst [vmem:[#allocation2 + $0x80] sm:$0xff] 0.0
        %267 = vst [vmem:[#allocation2 + $0x88] sm:$0x3f] 0.0
        %268 = vst [vmem:[#allocation2 + $0x90] sm:$0xff] 0.0
        %269 = vst [vmem:[#allocation2 + $0x98] sm:$0xff] 0.0
        %270 = vst [vmem:[#allocation2 + $0xa0] sm:$0x3f] 0.0
        %271 = vst [vmem:[#allocation2 + $0xa8] sm:$0xff] 0.0
        %272 = vst [vmem:[#allocation2 + $0xb0] sm:$0xff] 0.0
        %273 = vst [vmem:[#allocation2 + $0xb8] sm:$0x3f] 0.0
        %274 = vst [vmem:[#allocation2 + $0xc0] sm:$0xff] 0.0
        %275 = vst [vmem:[#allocation2 + $0xc8] sm:$0xff] 0.0
        %276 = vst [vmem:[#allocation2 + $0xd0] sm:$0x3f] 0.0
        %277 = vst [vmem:[#allocation2 + $0xd8] sm:$0xff] 0.0
        %278 = vst [vmem:[#allocation2 + $0xe0] sm:$0xff] 0.0
        %279 = vst [vmem:[#allocation2 + $0xe8] sm:$0x3f] 0.0
        %280 = vst [vmem:[#allocation2 + $0xf0] sm:$0xff] 0.0
        %281 = vst [vmem:[#allocation2 + $0xf8] sm:$0xff] 0.0
        %282 = vst [vmem:[#allocation2 + $0x100] sm:$0x3f] 0.0
        %283 = vst [vmem:[#allocation2 + $0x108] sm:$0xff] 0.0
        %284 = vst [vmem:[#allocation2 + $0x110] sm:$0xff] 0.0
        %285 = vst [vmem:[#allocation2 + $0x118] sm:$0x3f] 0.0
        %286 = vst [vmem:[#allocation2 + $0x120] sm:$0xff] 0.0
        %287 = vst [vmem:[#allocation2 + $0x128] sm:$0xff] 0.0
        %288 = vst [vmem:[#allocation2 + $0x130] sm:$0x3f] 0.0
        %289 = vst [vmem:[#allocation2 + $0x138] sm:$0xff] 0.0
        %290 = vst [vmem:[#allocation2 + $0x140] sm:$0xff] 0.0
        %291 = vst [vmem:[#allocation2 + $0x148] sm:$0x3f] 0.0
        %292 = vst [vmem:[#allocation2 + $0x150] sm:$0xff] 0.0
        %293 = vst [vmem:[#allocation2 + $0x158] sm:$0xff] 0.0
        %294 = vst [vmem:[#allocation2 + $0x160] sm:$0x3f] 0.0
        %295 = vst [vmem:[#allocation2 + $0x168] sm:$0xff] 0.0
        %296 = vst [vmem:[#allocation2 + $0x170] sm:$0xff] 0.0
        %297 = vst [vmem:[#allocation2 + $0x178] sm:$0x3f] 0.0
        %298 = vst [vmem:[#allocation2 + $0x180] sm:$0xff] 0.0
        %299 = vst [vmem:[#allocation2 + $0x188] sm:$0xff] 0.0
        %300 = vst [vmem:[#allocation2 + $0x190] sm:$0x3f] 0.0
        %301 = vst [vmem:[#allocation2 + $0x198] sm:$0xff] 0.0
        %302 = vst [vmem:[#allocation2 + $0x1a0] sm:$0xff] 0.0
        %303 = vst [vmem:[#allocation2 + $0x1a8] sm:$0x3f] 0.0
        %304 = vst [vmem:[#allocation2 + $0x1b0] sm:$0xff] 0.0
        %305 = vst [vmem:[#allocation2 + $0x1b8] sm:$0xff] 0.0
        %306 = vst [vmem:[#allocation2 + $0x1c0] sm:$0x3f] 0.0
        %307 = vst [vmem:[#allocation2 + $0x1c8] sm:$0xff] 0.0
        %308 = vst [vmem:[#allocation2 + $0x1d0] sm:$0xff] 0.0
        %309 = vst [vmem:[#allocation2 + $0x1d8] sm:$0x3f] 0.0
        %310 = vst [vmem:[#allocation2 + $0x1e0] sm:$0xff] 0.0
        %311 = vst [vmem:[#allocation2 + $0x1e8] sm:$0xff] 0.0
        %312 = vst [vmem:[#allocation2 + $0x1f0] sm:$0x3f] 0.0
        %313 = vst [vmem:[#allocation2 + $0x1f8] sm:$0xff] 0.0
        %314 = vst [vmem:[#allocation2 + $0x200] sm:$0xff] 0.0
        %315 = vst [vmem:[#allocation2 + $0x208] sm:$0x3f] 0.0
        %v316 = vld [vmem:[%s226] sm:$0xff]
        %v317 = vld [vmem:[%s226 + $0x8] sm:$0xff]
        %v318 = vld [vmem:[%s226 + $0x10] sm:$0xff]
        %v319 = vld [vmem:[%s226 + $0x18] sm:$0xff]
        %v320 = vld [vmem:[%s226 + $0x20] sm:$0xff]
        %v321 = vld [vmem:[%s226 + $0x28] sm:$0xff]
        %v322 = vld [vmem:[%s226 + $0x30] sm:$0xff]
        %v323 = vld [vmem:[%s226 + $0x38] sm:$0xff]
        %v324 = vld [vmem:[%s226 + $0x40] sm:$0xff]
        %v325 = vld [vmem:[%s226 + $0x48] sm:$0xff]
        %v326 = vld [vmem:[%s226 + $0x50] sm:$0xff]
        %v327 = vld [vmem:[%s226 + $0x58] sm:$0xff]
        %v328 = vld [vmem:[%s226 + $0x60] sm:$0xff]
        %v329 = vld [vmem:[%s226 + $0x68] sm:$0xff]
        %v330 = vld [vmem:[%s226 + $0x70] sm:$0xff]
        %v331 = vld [vmem:[%s226 + $0x78] sm:$0xff]
        %v332 = vld [vmem:[%s226 + $0x80] sm:$0xff]
        %v333 = vld [vmem:[%s226 + $0x88] sm:$0xff]
        %v334 = vld [vmem:[%s226 + $0x90] sm:$0xff]
        %v335 = vld [vmem:[%s226 + $0x98] sm:$0xff]
        %v336 = vld [vmem:[%s226 + $0xa0] sm:$0xff]
        %v337 = vld [vmem:[%s226 + $0xa8] sm:$0xff]
        %v338 = vld [vmem:[%s226 + $0xb0] sm:$0xff]
        %v339 = vld [vmem:[%s226 + $0xb8] sm:$0xff]
        %v340 = vld [vmem:[%s226 + $0xc0] sm:$0xff]
        %v341 = vld [vmem:[%s226 + $0xc8] sm:$0xff]
        %v342 = vld [vmem:[%s226 + $0xd0] sm:$0xff]
        %v343 = vld [vmem:[%s226 + $0xd8] sm:$0xff]
        %v344 = vld [vmem:[%s226 + $0xe0] sm:$0xff]
        %v345 = vld [vmem:[%s226 + $0xe8] sm:$0xff]
        %v346 = vld [vmem:[%s226 + $0xf0] sm:$0xff]
        %v347 = vld [vmem:[%s226 + $0xf8] sm:$0xff]
        %s348 = scalar_lea.vmem [#allocation2], 72
        %349 = vst [vmem:[%s348 + $0x3] sm:$0xff] %v316
        %350 = vst [vmem:[%s348 + $0xb] sm:$0xff] %v317
        %351 = vst [vmem:[%s348 + $0x1b] sm:$0xff] %v318
        %352 = vst [vmem:[%s348 + $0x23] sm:$0xff] %v319
        %353 = vst [vmem:[%s348 + $0x33] sm:$0xff] %v320
        %354 = vst [vmem:[%s348 + $0x3b] sm:$0xff] %v321
        %355 = vst [vmem:[%s348 + $0x4b] sm:$0xff] %v322
        %356 = vst [vmem:[%s348 + $0x53] sm:$0xff] %v323
        %357 = vst [vmem:[%s348 + $0x63] sm:$0xff] %v324
        %358 = vst [vmem:[%s348 + $0x6b] sm:$0xff] %v325
        %359 = vst [vmem:[%s348 + $0x7b] sm:$0xff] %v326
        %360 = vst [vmem:[%s348 + $0x83] sm:$0xff] %v327
        %361 = vst [vmem:[%s348 + $0x93] sm:$0xff] %v328
        %362 = vst [vmem:[%s348 + $0x9b] sm:$0xff] %v329
        %363 = vst [vmem:[%s348 + $0xab] sm:$0xff] %v330
        %364 = vst [vmem:[%s348 + $0xb3] sm:$0xff] %v331
        %365 = vst [vmem:[%s348 + $0xc3] sm:$0xff] %v332
        %366 = vst [vmem:[%s348 + $0xcb] sm:$0xff] %v333
        %367 = vst [vmem:[%s348 + $0xdb] sm:$0xff] %v334
        %368 = vst [vmem:[%s348 + $0xe3] sm:$0xff] %v335
        %369 = vst [vmem:[%s348 + $0xf3] sm:$0xff] %v336
        %370 = vst [vmem:[%s348 + $0xfb] sm:$0xff] %v337
        %371 = vst [vmem:[%s348 + $0x10b] sm:$0xff] %v338
        %372 = vst [vmem:[%s348 + $0x113] sm:$0xff] %v339
        %373 = vst [vmem:[%s348 + $0x123] sm:$0xff] %v340
        %374 = vst [vmem:[%s348 + $0x12b] sm:$0xff] %v341
        %375 = vst [vmem:[%s348 + $0x13b] sm:$0xff] %v342
        %376 = vst [vmem:[%s348 + $0x143] sm:$0xff] %v343
        %377 = vst [vmem:[%s348 + $0x153] sm:$0xff] %v344
        %378 = vst [vmem:[%s348 + $0x15b] sm:$0xff] %v345
        %379 = vst [vmem:[%s348 + $0x16b] sm:$0xff] %v346
        %380 = vst [vmem:[%s348 + $0x173] sm:$0xff] %v347
        %v381 = vld [vmem:[#allocation3] sm:$0x1]
        %v382 = vld [vmem:[#allocation2] sm:$0xff]
        %v383 = vld [vmem:[#allocation2 + $0x8] sm:$0xff]
        %v384 = vld [vmem:[#allocation2 + $0x18] sm:$0xff]
        %v385 = vld [vmem:[#allocation2 + $0x20] sm:$0xff]
        %v386 = vld [vmem:[#allocation2 + $0x30] sm:$0xff]
        %v387 = vld [vmem:[#allocation2 + $0x38] sm:$0xff]
        %v388 = vld [vmem:[#allocation2 + $0x48] sm:$0xff]
        %v389 = vld [vmem:[#allocation2 + $0x50] sm:$0xff]
        %v390 = vld [vmem:[#allocation2 + $0x60] sm:$0xff]
        %v391 = vld [vmem:[#allocation2 + $0x68] sm:$0xff]
        %v392 = vld [vmem:[#allocation2 + $0x78] sm:$0xff]
        %v393 = vld [vmem:[#allocation2 + $0x80] sm:$0xff]
        %v394 = vld [vmem:[#allocation2 + $0x90] sm:$0xff]
        %v395 = vld [vmem:[#allocation2 + $0x98] sm:$0xff]
        %v396 = vld [vmem:[#allocation2 + $0xa8] sm:$0xff]
        %v397 = vld [vmem:[#allocation2 + $0xb0] sm:$0xff]
        %v398 = vld [vmem:[#allocation2 + $0xc0] sm:$0xff]
        %v399 = vld [vmem:[#allocation2 + $0xc8] sm:$0xff]
        %v400 = vld [vmem:[#allocation2 + $0xd8] sm:$0xff]
        %v401 = vld [vmem:[#allocation2 + $0xe0] sm:$0xff]
        %v402 = vld [vmem:[#allocation2 + $0xf0] sm:$0xff]
        %v403 = vld [vmem:[#allocation2 + $0xf8] sm:$0xff]
        %v404 = vld [vmem:[#allocation2 + $0x108] sm:$0xff]
        %v405 = vld [vmem:[#allocation2 + $0x110] sm:$0xff]
        %v406 = vld [vmem:[#allocation2 + $0x120] sm:$0xff]
        %v407 = vld [vmem:[#allocation2 + $0x128] sm:$0xff]
        %v408 = vld [vmem:[#allocation2 + $0x138] sm:$0xff]
        %v409 = vld [vmem:[#allocation2 + $0x140] sm:$0xff]
        %v410 = vld [vmem:[#allocation2 + $0x150] sm:$0xff]
        %v411 = vld [vmem:[#allocation2 + $0x158] sm:$0xff]
        %v412 = vld [vmem:[#allocation2 + $0x168] sm:$0xff]
        %v413 = vld [vmem:[#allocation2 + $0x170] sm:$0xff]
        %v414 = vperm.slane %v381, 0
        %v415 = vmul.f32 %v382, %v414
        %v416 = vmul.f32 %v383, %v414
        %v417 = vmul.f32 %v384, %v414
        %v418 = vmul.f32 %v385, %v414
        %v419 = vmul.f32 %v386, %v414
        %v420 = vmul.f32 %v387, %v414
        %v421 = vmul.f32 %v388, %v414
        %v422 = vmul.f32 %v389, %v414
        %v423 = vmul.f32 %v390, %v414
        %v424 = vmul.f32 %v391, %v414
        %v425 = vmul.f32 %v392, %v414
        %v426 = vmul.f32 %v393, %v414
        %v427 = vmul.f32 %v394, %v414
        %v428 = vmul.f32 %v395, %v414
        %v429 = vmul.f32 %v396, %v414
        %v430 = vmul.f32 %v397, %v414
        %v431 = vmul.f32 %v398, %v414
        %v432 = vmul.f32 %v399, %v414
        %v433 = vmul.f32 %v400, %v414
        %v434 = vmul.f32 %v401, %v414
        %v435 = vmul.f32 %v402, %v414
        %v436 = vmul.f32 %v403, %v414
        %v437 = vmul.f32 %v404, %v414
        %v438 = vmul.f32 %v405, %v414
        %v439 = vmul.f32 %v406, %v414
        %v440 = vmul.f32 %v407, %v414
        %v441 = vmul.f32 %v408, %v414
        %v442 = vmul.f32 %v409, %v414
        %v443 = vmul.f32 %v410, %v414
        %v444 = vmul.f32 %v411, %v414
        %v445 = vmul.f32 %v412, %v414
        %v446 = vmul.f32 %v413, %v414
        %v447 = vadd.f32 %v415, 0.0
        %v448 = vadd.f32 %v416, 0.0
        %v449 = vadd.f32 %v417, 0.0
        %v450 = vadd.f32 %v418, 0.0
        %v451 = vadd.f32 %v419, 0.0
        %v452 = vadd.f32 %v420, 0.0
        %v453 = vadd.f32 %v421, 0.0
        %v454 = vadd.f32 %v422, 0.0
        %v455 = vadd.f32 %v423, 0.0
        %v456 = vadd.f32 %v424, 0.0
        %v457 = vadd.f32 %v425, 0.0
        %v458 = vadd.f32 %v426, 0.0
        %v459 = vadd.f32 %v427, 0.0
        %v460 = vadd.f32 %v428, 0.0
        %v461 = vadd.f32 %v429, 0.0
        %v462 = vadd.f32 %v430, 0.0
        %v463 = vadd.f32 %v431, 0.0
        %v464 = vadd.f32 %v432, 0.0
        %v465 = vadd.f32 %v433, 0.0
        %v466 = vadd.f32 %v434, 0.0
        %v467 = vadd.f32 %v435, 0.0
        %v468 = vadd.f32 %v436, 0.0
        %v469 = vadd.f32 %v437, 0.0
        %v470 = vadd.f32 %v438, 0.0
        %v471 = vadd.f32 %v439, 0.0
        %v472 = vadd.f32 %v440, 0.0
        %v473 = vadd.f32 %v441, 0.0
        %v474 = vadd.f32 %v442, 0.0
        %v475 = vadd.f32 %v443, 0.0
        %v476 = vadd.f32 %v444, 0.0
        %v477 = vadd.f32 %v445, 0.0
        %v478 = vadd.f32 %v446, 0.0
        %v479 = vld [vmem:[#allocation3 + $0x1] sm:$0x1]
        %v480 = vld [vmem:[#allocation2 + $0x1] sm:$0xff]
        %v481 = vld [vmem:[#allocation2 + $0x9] sm:$0xff]
        %v482 = vld [vmem:[#allocation2 + $0x19] sm:$0xff]
        %v483 = vld [vmem:[#allocation2 + $0x21] sm:$0xff]
        %v484 = vld [vmem:[#allocation2 + $0x31] sm:$0xff]
        %v485 = vld [vmem:[#allocation2 + $0x39] sm:$0xff]
        %v486 = vld [vmem:[#allocation2 + $0x49] sm:$0xff]
        %v487 = vld [vmem:[#allocation2 + $0x51] sm:$0xff]
        %v488 = vld [vmem:[#allocation2 + $0x61] sm:$0xff]
        %v489 = vld [vmem:[#allocation2 + $0x69] sm:$0xff]
        %v490 = vld [vmem:[#allocation2 + $0x79] sm:$0xff]
        %v491 = vld [vmem:[#allocation2 + $0x81] sm:$0xff]
        %v492 = vld [vmem:[#allocation2 + $0x91] sm:$0xff]
        %v493 = vld [vmem:[#allocation2 + $0x99] sm:$0xff]
        %v494 = vld [vmem:[#allocation2 + $0xa9] sm:$0xff]
        %v495 = vld [vmem:[#allocation2 + $0xb1] sm:$0xff]
        %v496 = vld [vmem:[#allocation2 + $0xc1] sm:$0xff]
        %v497 = vld [vmem:[#allocation2 + $0xc9] sm:$0xff]
        %v498 = vld [vmem:[#allocation2 + $0xd9] sm:$0xff]
        %v499 = vld [vmem:[#allocation2 + $0xe1] sm:$0xff]
        %v500 = vld [vmem:[#allocation2 + $0xf1] sm:$0xff]
        %v501 = vld [vmem:[#allocation2 + $0xf9] sm:$0xff]
        %v502 = vld [vmem:[#allocation2 + $0x109] sm:$0xff]
        %v503 = vld [vmem:[#allocation2 + $0x111] sm:$0xff]
        %v504 = vld [vmem:[#allocation2 + $0x121] sm:$0xff]
        %v505 = vld [vmem:[#allocation2 + $0x129] sm:$0xff]
        %v506 = vld [vmem:[#allocation2 + $0x139] sm:$0xff]
        %v507 = vld [vmem:[#allocation2 + $0x141] sm:$0xff]
        %v508 = vld [vmem:[#allocation2 + $0x151] sm:$0xff]
        %v509 = vld [vmem:[#allocation2 + $0x159] sm:$0xff]
        %v510 = vld [vmem:[#allocation2 + $0x169] sm:$0xff]
        %v511 = vld [vmem:[#allocation2 + $0x171] sm:$0xff]
        %v512 = vperm.slane %v479, 0
        %v513 = vmul.f32 %v480, %v512
        %v514 = vmul.f32 %v481, %v512
        %v515 = vmul.f32 %v482, %v512
        %v516 = vmul.f32 %v483, %v512
        %v517 = vmul.f32 %v484, %v512
        %v518 = vmul.f32 %v485, %v512
        %v519 = vmul.f32 %v486, %v512
        %v520 = vmul.f32 %v487, %v512
        %v521 = vmul.f32 %v488, %v512
        %v522 = vmul.f32 %v489, %v512
        %v523 = vmul.f32 %v490, %v512
        %v524 = vmul.f32 %v491, %v512
        %v525 = vmul.f32 %v492, %v512
        %v526 = vmul.f32 %v493, %v512
        %v527 = vmul.f32 %v494, %v512
        %v528 = vmul.f32 %v495, %v512
        %v529 = vmul.f32 %v496, %v512
        %v530 = vmul.f32 %v497, %v512
        %v531 = vmul.f32 %v498, %v512
        %v532 = vmul.f32 %v499, %v512
        %v533 = vmul.f32 %v500, %v512
        %v534 = vmul.f32 %v501, %v512
        %v535 = vmul.f32 %v502, %v512
        %v536 = vmul.f32 %v503, %v512
        %v537 = vmul.f32 %v504, %v512
        %v538 = vmul.f32 %v505, %v512
        %v539 = vmul.f32 %v506, %v512
        %v540 = vmul.f32 %v507, %v512
        %v541 = vmul.f32 %v508, %v512
        %v542 = vmul.f32 %v509, %v512
        %v543 = vmul.f32 %v510, %v512
        %v544 = vmul.f32 %v511, %v512
        %v545 = vadd.f32 %v447, %v513
        %v546 = vadd.f32 %v448, %v514
        %v547 = vadd.f32 %v449, %v515
        %v548 = vadd.f32 %v450, %v516
        %v549 = vadd.f32 %v451, %v517
        %v550 = vadd.f32 %v452, %v518
        %v551 = vadd.f32 %v453, %v519
        %v552 = vadd.f32 %v454, %v520
        %v553 = vadd.f32 %v455, %v521
        %v554 = vadd.f32 %v456, %v522
        %v555 = vadd.f32 %v457, %v523
        %v556 = vadd.f32 %v458, %v524
        %v557 = vadd.f32 %v459, %v525
        %v558 = vadd.f32 %v460, %v526
        %v559 = vadd.f32 %v461, %v527
        %v560 = vadd.f32 %v462, %v528
        %v561 = vadd.f32 %v463, %v529
        %v562 = vadd.f32 %v464, %v530
        %v563 = vadd.f32 %v465, %v531
        %v564 = vadd.f32 %v466, %v532
        %v565 = vadd.f32 %v467, %v533
        %v566 = vadd.f32 %v468, %v534
        %v567 = vadd.f32 %v469, %v535
        %v568 = vadd.f32 %v470, %v536
        %v569 = vadd.f32 %v471, %v537
        %v570 = vadd.f32 %v472, %v538
        %v571 = vadd.f32 %v473, %v539
        %v572 = vadd.f32 %v474, %v540
        %v573 = vadd.f32 %v475, %v541
        %v574 = vadd.f32 %v476, %v542
        %v575 = vadd.f32 %v477, %v543
        %v576 = vadd.f32 %v478, %v544
        %v577 = vld [vmem:[#allocation3 + $0x2] sm:$0x1]
        %v578 = vld [vmem:[#allocation2 + $0x2] sm:$0xff]
        %v579 = vld [vmem:[#allocation2 + $0xa] sm:$0xff]
        %v580 = vld [vmem:[#allocation2 + $0x1a] sm:$0xff]
        %v581 = vld [vmem:[#allocation2 + $0x22] sm:$0xff]
        %v582 = vld [vmem:[#allocation2 + $0x32] sm:$0xff]
        %v583 = vld [vmem:[#allocation2 + $0x3a] sm:$0xff]
        %v584 = vld [vmem:[#allocation2 + $0x4a] sm:$0xff]
        %v585 = vld [vmem:[#allocation2 + $0x52] sm:$0xff]
        %v586 = vld [vmem:[#allocation2 + $0x62] sm:$0xff]
        %v587 = vld [vmem:[#allocation2 + $0x6a] sm:$0xff]
        %v588 = vld [vmem:[#allocation2 + $0x7a] sm:$0xff]
        %v589 = vld [vmem:[#allocation2 + $0x82] sm:$0xff]
        %v590 = vld [vmem:[#allocation2 + $0x92] sm:$0xff]
        %v591 = vld [vmem:[#allocation2 + $0x9a] sm:$0xff]
        %v592 = vld [vmem:[#allocation2 + $0xaa] sm:$0xff]
        %v593 = vld [vmem:[#allocation2 + $0xb2] sm:$0xff]
        %v594 = vld [vmem:[#allocation2 + $0xc2] sm:$0xff]
        %v595 = vld [vmem:[#allocation2 + $0xca] sm:$0xff]
        %v596 = vld [vmem:[#allocation2 + $0xda] sm:$0xff]
        %v597 = vld [vmem:[#allocation2 + $0xe2] sm:$0xff]
        %v598 = vld [vmem:[#allocation2 + $0xf2] sm:$0xff]
        %v599 = vld [vmem:[#allocation2 + $0xfa] sm:$0xff]
        %v600 = vld [vmem:[#allocation2 + $0x10a] sm:$0xff]
        %v601 = vld [vmem:[#allocation2 + $0x112] sm:$0xff]
        %v602 = vld [vmem:[#allocation2 + $0x122] sm:$0xff]
        %v603 = vld [vmem:[#allocation2 + $0x12a] sm:$0xff]
        %v604 = vld [vmem:[#allocation2 + $0x13a] sm:$0xff]
        %v605 = vld [vmem:[#allocation2 + $0x142] sm:$0xff]
        %v606 = vld [vmem:[#allocation2 + $0x152] sm:$0xff]
        %v607 = vld [vmem:[#allocation2 + $0x15a] sm:$0xff]
        %v608 = vld [vmem:[#allocation2 + $0x16a] sm:$0xff]
        %v609 = vld [vmem:[#allocation2 + $0x172] sm:$0xff]
        %v610 = vperm.slane %v577, 0
        %v611 = vmul.f32 %v578, %v610
        %v612 = vmul.f32 %v579, %v610
        %v613 = vmul.f32 %v580, %v610
        %v614 = vmul.f32 %v581, %v610
        %v615 = vmul.f32 %v582, %v610
        %v616 = vmul.f32 %v583, %v610
        %v617 = vmul.f32 %v584, %v610
        %v618 = vmul.f32 %v585, %v610
        %v619 = vmul.f32 %v586, %v610
        %v620 = vmul.f32 %v587, %v610
        %v621 = vmul.f32 %v588, %v610
        %v622 = vmul.f32 %v589, %v610
        %v623 = vmul.f32 %v590, %v610
        %v624 = vmul.f32 %v591, %v610
        %v625 = vmul.f32 %v592, %v610
        %v626 = vmul.f32 %v593, %v610
        %v627 = vmul.f32 %v594, %v610
        %v628 = vmul.f32 %v595, %v610
        %v629 = vmul.f32 %v596, %v610
        %v630 = vmul.f32 %v597, %v610
        %v631 = vmul.f32 %v598, %v610
        %v632 = vmul.f32 %v599, %v610
        %v633 = vmul.f32 %v600, %v610
        %v634 = vmul.f32 %v601, %v610
        %v635 = vmul.f32 %v602, %v610
        %v636 = vmul.f32 %v603, %v610
        %v637 = vmul.f32 %v604, %v610
        %v638 = vmul.f32 %v605, %v610
        %v639 = vmul.f32 %v606, %v610
        %v640 = vmul.f32 %v607, %v610
        %v641 = vmul.f32 %v608, %v610
        %v642 = vmul.f32 %v609, %v610
        %v643 = vadd.f32 %v545, %v611
        %v644 = vadd.f32 %v546, %v612
        %v645 = vadd.f32 %v547, %v613
        %v646 = vadd.f32 %v548, %v614
        %v647 = vadd.f32 %v549, %v615
        %v648 = vadd.f32 %v550, %v616
        %v649 = vadd.f32 %v551, %v617
        %v650 = vadd.f32 %v552, %v618
        %v651 = vadd.f32 %v553, %v619
        %v652 = vadd.f32 %v554, %v620
        %v653 = vadd.f32 %v555, %v621
        %v654 = vadd.f32 %v556, %v622
        %v655 = vadd.f32 %v557, %v623
        %v656 = vadd.f32 %v558, %v624
        %v657 = vadd.f32 %v559, %v625
        %v658 = vadd.f32 %v560, %v626
        %v659 = vadd.f32 %v561, %v627
        %v660 = vadd.f32 %v562, %v628
        %v661 = vadd.f32 %v563, %v629
        %v662 = vadd.f32 %v564, %v630
        %v663 = vadd.f32 %v565, %v631
        %v664 = vadd.f32 %v566, %v632
        %v665 = vadd.f32 %v567, %v633
        %v666 = vadd.f32 %v568, %v634
        %v667 = vadd.f32 %v569, %v635
        %v668 = vadd.f32 %v570, %v636
        %v669 = vadd.f32 %v571, %v637
        %v670 = vadd.f32 %v572, %v638
        %v671 = vadd.f32 %v573, %v639
        %v672 = vadd.f32 %v574, %v640
        %v673 = vadd.f32 %v575, %v641
        %v674 = vadd.f32 %v576, %v642
        %v675 = vld [vmem:[#allocation3 + $0x3] sm:$0x1]
        %v676 = vld [vmem:[#allocation2 + $0x3] sm:$0xff]
        %v677 = vld [vmem:[#allocation2 + $0xb] sm:$0xff]
        %v678 = vld [vmem:[#allocation2 + $0x1b] sm:$0xff]
        %v679 = vld [vmem:[#allocation2 + $0x23] sm:$0xff]
        %v680 = vld [vmem:[#allocation2 + $0x33] sm:$0xff]
        %v681 = vld [vmem:[#allocation2 + $0x3b] sm:$0xff]
        %v682 = vld [vmem:[#allocation2 + $0x4b] sm:$0xff]
        %v683 = vld [vmem:[#allocation2 + $0x53] sm:$0xff]
        %v684 = vld [vmem:[#allocation2 + $0x63] sm:$0xff]
        %v685 = vld [vmem:[#allocation2 + $0x6b] sm:$0xff]
        %v686 = vld [vmem:[#allocation2 + $0x7b] sm:$0xff]
        %v687 = vld [vmem:[#allocation2 + $0x83] sm:$0xff]
        %v688 = vld [vmem:[#allocation2 + $0x93] sm:$0xff]
        %v689 = vld [vmem:[#allocation2 + $0x9b] sm:$0xff]
        %v690 = vld [vmem:[#allocation2 + $0xab] sm:$0xff]
        %v691 = vld [vmem:[#allocation2 + $0xb3] sm:$0xff]
        %v692 = vld [vmem:[#allocation2 + $0xc3] sm:$0xff]
        %v693 = vld [vmem:[#allocation2 + $0xcb] sm:$0xff]
        %v694 = vld [vmem:[#allocation2 + $0xdb] sm:$0xff]
        %v695 = vld [vmem:[#allocation2 + $0xe3] sm:$0xff]
        %v696 = vld [vmem:[#allocation2 + $0xf3] sm:$0xff]
        %v697 = vld [vmem:[#allocation2 + $0xfb] sm:$0xff]
        %v698 = vld [vmem:[#allocation2 + $0x10b] sm:$0xff]
        %v699 = vld [vmem:[#allocation2 + $0x113] sm:$0xff]
        %v700 = vld [vmem:[#allocation2 + $0x123] sm:$0xff]
        %v701 = vld [vmem:[#allocation2 + $0x12b] sm:$0xff]
        %v702 = vld [vmem:[#allocation2 + $0x13b] sm:$0xff]
        %v703 = vld [vmem:[#allocation2 + $0x143] sm:$0xff]
        %v704 = vld [vmem:[#allocation2 + $0x153] sm:$0xff]
        %v705 = vld [vmem:[#allocation2 + $0x15b] sm:$0xff]
        %v706 = vld [vmem:[#allocation2 + $0x16b] sm:$0xff]
        %v707 = vld [vmem:[#allocation2 + $0x173] sm:$0xff]
        %v708 = vperm.slane %v675, 0
        %v709 = vmul.f32 %v676, %v708
        %v710 = vmul.f32 %v677, %v708
        %v711 = vmul.f32 %v678, %v708
        %v712 = vmul.f32 %v679, %v708
        %v713 = vmul.f32 %v680, %v708
        %v714 = vmul.f32 %v681, %v708
        %v715 = vmul.f32 %v682, %v708
        %v716 = vmul.f32 %v683, %v708
        %v717 = vmul.f32 %v684, %v708
        %v718 = vmul.f32 %v685, %v708
        %v719 = vmul.f32 %v686, %v708
        %v720 = vmul.f32 %v687, %v708
        %v721 = vmul.f32 %v688, %v708
        %v722 = vmul.f32 %v689, %v708
        %v723 = vmul.f32 %v690, %v708
        %v724 = vmul.f32 %v691, %v708
        %v725 = vmul.f32 %v692, %v708
        %v726 = vmul.f32 %v693, %v708
        %v727 = vmul.f32 %v694, %v708
        %v728 = vmul.f32 %v695, %v708
        %v729 = vmul.f32 %v696, %v708
        %v730 = vmul.f32 %v697, %v708
        %v731 = vmul.f32 %v698, %v708
        %v732 = vmul.f32 %v699, %v708
        %v733 = vmul.f32 %v700, %v708
        %v734 = vmul.f32 %v701, %v708
        %v735 = vmul.f32 %v702, %v708
        %v736 = vmul.f32 %v703, %v708
        %v737 = vmul.f32 %v704, %v708
        %v738 = vmul.f32 %v705, %v708
        %v739 = vmul.f32 %v706, %v708
        %v740 = vmul.f32 %v707, %v708
        %v741 = vadd.f32 %v643, %v709
        %v742 = vadd.f32 %v644, %v710
        %v743 = vadd.f32 %v645, %v711
        %v744 = vadd.f32 %v646, %v712
        %v745 = vadd.f32 %v647, %v713
        %v746 = vadd.f32 %v648, %v714
        %v747 = vadd.f32 %v649, %v715
        %v748 = vadd.f32 %v650, %v716
        %v749 = vadd.f32 %v651, %v717
        %v750 = vadd.f32 %v652, %v718
        %v751 = vadd.f32 %v653, %v719
        %v752 = vadd.f32 %v654, %v720
        %v753 = vadd.f32 %v655, %v721
        %v754 = vadd.f32 %v656, %v722
        %v755 = vadd.f32 %v657, %v723
        %v756 = vadd.f32 %v658, %v724
        %v757 = vadd.f32 %v659, %v725
        %v758 = vadd.f32 %v660, %v726
        %v759 = vadd.f32 %v661, %v727
        %v760 = vadd.f32 %v662, %v728
        %v761 = vadd.f32 %v663, %v729
        %v762 = vadd.f32 %v664, %v730
        %v763 = vadd.f32 %v665, %v731
        %v764 = vadd.f32 %v666, %v732
        %v765 = vadd.f32 %v667, %v733
        %v766 = vadd.f32 %v668, %v734
        %v767 = vadd.f32 %v669, %v735
        %v768 = vadd.f32 %v670, %v736
        %v769 = vadd.f32 %v671, %v737
        %v770 = vadd.f32 %v672, %v738
        %v771 = vadd.f32 %v673, %v739
        %v772 = vadd.f32 %v674, %v740
        %v773 = vld [vmem:[#allocation3 + $0x4] sm:$0x1]
        %v774 = vld [vmem:[#allocation2 + $0x4] sm:$0xff]
        %v775 = vld [vmem:[#allocation2 + $0xc] sm:$0xff]
        %v776 = vld [vmem:[#allocation2 + $0x1c] sm:$0xff]
        %v777 = vld [vmem:[#allocation2 + $0x24] sm:$0xff]
        %v778 = vld [vmem:[#allocation2 + $0x34] sm:$0xff]
        %v779 = vld [vmem:[#allocation2 + $0x3c] sm:$0xff]
        %v780 = vld [vmem:[#allocation2 + $0x4c] sm:$0xff]
        %v781 = vld [vmem:[#allocation2 + $0x54] sm:$0xff]
        %v782 = vld [vmem:[#allocation2 + $0x64] sm:$0xff]
        %v783 = vld [vmem:[#allocation2 + $0x6c] sm:$0xff]
        %v784 = vld [vmem:[#allocation2 + $0x7c] sm:$0xff]
        %v785 = vld [vmem:[#allocation2 + $0x84] sm:$0xff]
        %v786 = vld [vmem:[#allocation2 + $0x94] sm:$0xff]
        %v787 = vld [vmem:[#allocation2 + $0x9c] sm:$0xff]
        %v788 = vld [vmem:[#allocation2 + $0xac] sm:$0xff]
        %v789 = vld [vmem:[#allocation2 + $0xb4] sm:$0xff]
        %v790 = vld [vmem:[#allocation2 + $0xc4] sm:$0xff]
        %v791 = vld [vmem:[#allocation2 + $0xcc] sm:$0xff]
        %v792 = vld [vmem:[#allocation2 + $0xdc] sm:$0xff]
        %v793 = vld [vmem:[#allocation2 + $0xe4] sm:$0xff]
        %v794 = vld [vmem:[#allocation2 + $0xf4] sm:$0xff]
        %v795 = vld [vmem:[#allocation2 + $0xfc] sm:$0xff]
        %v796 = vld [vmem:[#allocation2 + $0x10c] sm:$0xff]
        %v797 = vld [vmem:[#allocation2 + $0x114] sm:$0xff]
        %v798 = vld [vmem:[#allocation2 + $0x124] sm:$0xff]
        %v799 = vld [vmem:[#allocation2 + $0x12c] sm:$0xff]
        %v800 = vld [vmem:[#allocation2 + $0x13c] sm:$0xff]
        %v801 = vld [vmem:[#allocation2 + $0x144] sm:$0xff]
        %v802 = vld [vmem:[#allocation2 + $0x154] sm:$0xff]
        %v803 = vld [vmem:[#allocation2 + $0x15c] sm:$0xff]
        %v804 = vld [vmem:[#allocation2 + $0x16c] sm:$0xff]
        %v805 = vld [vmem:[#allocation2 + $0x174] sm:$0xff]
        %v806 = vperm.slane %v773, 0
        %v807 = vmul.f32 %v774, %v806
        %v808 = vmul.f32 %v775, %v806
        %v809 = vmul.f32 %v776, %v806
        %v810 = vmul.f32 %v777, %v806
        %v811 = vmul.f32 %v778, %v806
        %v812 = vmul.f32 %v779, %v806
        %v813 = vmul.f32 %v780, %v806
        %v814 = vmul.f32 %v781, %v806
        %v815 = vmul.f32 %v782, %v806
        %v816 = vmul.f32 %v783, %v806
        %v817 = vmul.f32 %v784, %v806
        %v818 = vmul.f32 %v785, %v806
        %v819 = vmul.f32 %v786, %v806
        %v820 = vmul.f32 %v787, %v806
        %v821 = vmul.f32 %v788, %v806
        %v822 = vmul.f32 %v789, %v806
        %v823 = vmul.f32 %v790, %v806
        %v824 = vmul.f32 %v791, %v806
        %v825 = vmul.f32 %v792, %v806
        %v826 = vmul.f32 %v793, %v806
        %v827 = vmul.f32 %v794, %v806
        %v828 = vmul.f32 %v795, %v806
        %v829 = vmul.f32 %v796, %v806
        %v830 = vmul.f32 %v797, %v806
        %v831 = vmul.f32 %v798, %v806
        %v832 = vmul.f32 %v799, %v806
        %v833 = vmul.f32 %v800, %v806
        %v834 = vmul.f32 %v801, %v806
        %v835 = vmul.f32 %v802, %v806
        %v836 = vmul.f32 %v803, %v806
        %v837 = vmul.f32 %v804, %v806
        %v838 = vmul.f32 %v805, %v806
        %v839 = vadd.f32 %v741, %v807
        %v840 = vadd.f32 %v742, %v808
        %v841 = vadd.f32 %v743, %v809
        %v842 = vadd.f32 %v744, %v810
        %v843 = vadd.f32 %v745, %v811
        %v844 = vadd.f32 %v746, %v812
        %v845 = vadd.f32 %v747, %v813
        %v846 = vadd.f32 %v748, %v814
        %v847 = vadd.f32 %v749, %v815
        %v848 = vadd.f32 %v750, %v816
        %v849 = vadd.f32 %v751, %v817
        %v850 = vadd.f32 %v752, %v818
        %v851 = vadd.f32 %v753, %v819
        %v852 = vadd.f32 %v754, %v820
        %v853 = vadd.f32 %v755, %v821
        %v854 = vadd.f32 %v756, %v822
        %v855 = vadd.f32 %v757, %v823
        %v856 = vadd.f32 %v758, %v824
        %v857 = vadd.f32 %v759, %v825
        %v858 = vadd.f32 %v760, %v826
        %v859 = vadd.f32 %v761, %v827
        %v860 = vadd.f32 %v762, %v828
        %v861 = vadd.f32 %v763, %v829
        %v862 = vadd.f32 %v764, %v830
        %v863 = vadd.f32 %v765, %v831
        %v864 = vadd.f32 %v766, %v832
        %v865 = vadd.f32 %v767, %v833
        %v866 = vadd.f32 %v768, %v834
        %v867 = vadd.f32 %v769, %v835
        %v868 = vadd.f32 %v770, %v836
        %v869 = vadd.f32 %v771, %v837
        %v870 = vadd.f32 %v772, %v838
        %v871 = vld [vmem:[#allocation3 + $0x5] sm:$0x1]
        %v872 = vld [vmem:[#allocation2 + $0x5] sm:$0xff]
        %v873 = vld [vmem:[#allocation2 + $0xd] sm:$0xff]
        %v874 = vld [vmem:[#allocation2 + $0x1d] sm:$0xff]
        %v875 = vld [vmem:[#allocation2 + $0x25] sm:$0xff]
        %v876 = vld [vmem:[#allocation2 + $0x35] sm:$0xff]
        %v877 = vld [vmem:[#allocation2 + $0x3d] sm:$0xff]
        %v878 = vld [vmem:[#allocation2 + $0x4d] sm:$0xff]
        %v879 = vld [vmem:[#allocation2 + $0x55] sm:$0xff]
        %v880 = vld [vmem:[#allocation2 + $0x65] sm:$0xff]
        %v881 = vld [vmem:[#allocation2 + $0x6d] sm:$0xff]
        %v882 = vld [vmem:[#allocation2 + $0x7d] sm:$0xff]
        %v883 = vld [vmem:[#allocation2 + $0x85] sm:$0xff]
        %v884 = vld [vmem:[#allocation2 + $0x95] sm:$0xff]
        %v885 = vld [vmem:[#allocation2 + $0x9d] sm:$0xff]
        %v886 = vld [vmem:[#allocation2 + $0xad] sm:$0xff]
        %v887 = vld [vmem:[#allocation2 + $0xb5] sm:$0xff]
        %v888 = vld [vmem:[#allocation2 + $0xc5] sm:$0xff]
        %v889 = vld [vmem:[#allocation2 + $0xcd] sm:$0xff]
        %v890 = vld [vmem:[#allocation2 + $0xdd] sm:$0xff]
        %v891 = vld [vmem:[#allocation2 + $0xe5] sm:$0xff]
        %v892 = vld [vmem:[#allocation2 + $0xf5] sm:$0xff]
        %v893 = vld [vmem:[#allocation2 + $0xfd] sm:$0xff]
        %v894 = vld [vmem:[#allocation2 + $0x10d] sm:$0xff]
        %v895 = vld [vmem:[#allocation2 + $0x115] sm:$0xff]
        %v896 = vld [vmem:[#allocation2 + $0x125] sm:$0xff]
        %v897 = vld [vmem:[#allocation2 + $0x12d] sm:$0xff]
        %v898 = vld [vmem:[#allocation2 + $0x13d] sm:$0xff]
        %v899 = vld [vmem:[#allocation2 + $0x145] sm:$0xff]
        %v900 = vld [vmem:[#allocation2 + $0x155] sm:$0xff]
        %v901 = vld [vmem:[#allocation2 + $0x15d] sm:$0xff]
        %v902 = vld [vmem:[#allocation2 + $0x16d] sm:$0xff]
        %v903 = vld [vmem:[#allocation2 + $0x175] sm:$0xff]
        %v904 = vperm.slane %v871, 0
        %v905 = vmul.f32 %v872, %v904
        %v906 = vmul.f32 %v873, %v904
        %v907 = vmul.f32 %v874, %v904
        %v908 = vmul.f32 %v875, %v904
        %v909 = vmul.f32 %v876, %v904
        %v910 = vmul.f32 %v877, %v904
        %v911 = vmul.f32 %v878, %v904
        %v912 = vmul.f32 %v879, %v904
        %v913 = vmul.f32 %v880, %v904
        %v914 = vmul.f32 %v881, %v904
        %v915 = vmul.f32 %v882, %v904
        %v916 = vmul.f32 %v883, %v904
        %v917 = vmul.f32 %v884, %v904
        %v918 = vmul.f32 %v885, %v904
        %v919 = vmul.f32 %v886, %v904
        %v920 = vmul.f32 %v887, %v904
        %v921 = vmul.f32 %v888, %v904
        %v922 = vmul.f32 %v889, %v904
        %v923 = vmul.f32 %v890, %v904
        %v924 = vmul.f32 %v891, %v904
        %v925 = vmul.f32 %v892, %v904
        %v926 = vmul.f32 %v893, %v904
        %v927 = vmul.f32 %v894, %v904
        %v928 = vmul.f32 %v895, %v904
        %v929 = vmul.f32 %v896, %v904
        %v930 = vmul.f32 %v897, %v904
        %v931 = vmul.f32 %v898, %v904
        %v932 = vmul.f32 %v899, %v904
        %v933 = vmul.f32 %v900, %v904
        %v934 = vmul.f32 %v901, %v904
        %v935 = vmul.f32 %v902, %v904
        %v936 = vmul.f32 %v903, %v904
        %v937 = vadd.f32 %v839, %v905
        %v938 = vadd.f32 %v840, %v906
        %v939 = vadd.f32 %v841, %v907
        %v940 = vadd.f32 %v842, %v908
        %v941 = vadd.f32 %v843, %v909
        %v942 = vadd.f32 %v844, %v910
        %v943 = vadd.f32 %v845, %v911
        %v944 = vadd.f32 %v846, %v912
        %v945 = vadd.f32 %v847, %v913
        %v946 = vadd.f32 %v848, %v914
        %v947 = vadd.f32 %v849, %v915
        %v948 = vadd.f32 %v850, %v916
        %v949 = vadd.f32 %v851, %v917
        %v950 = vadd.f32 %v852, %v918
        %v951 = vadd.f32 %v853, %v919
        %v952 = vadd.f32 %v854, %v920
        %v953 = vadd.f32 %v855, %v921
        %v954 = vadd.f32 %v856, %v922
        %v955 = vadd.f32 %v857, %v923
        %v956 = vadd.f32 %v858, %v924
        %v957 = vadd.f32 %v859, %v925
        %v958 = vadd.f32 %v860, %v926
        %v959 = vadd.f32 %v861, %v927
        %v960 = vadd.f32 %v862, %v928
        %v961 = vadd.f32 %v863, %v929
        %v962 = vadd.f32 %v864, %v930
        %v963 = vadd.f32 %v865, %v931
        %v964 = vadd.f32 %v866, %v932
        %v965 = vadd.f32 %v867, %v933
        %v966 = vadd.f32 %v868, %v934
        %v967 = vadd.f32 %v869, %v935
        %v968 = vadd.f32 %v870, %v936
        %v969 = vld [vmem:[#allocation3 + $0x6] sm:$0x1]
        %v970 = vld [vmem:[#allocation2 + $0x6] sm:$0xff]
        %v971 = vld [vmem:[#allocation2 + $0xe] sm:$0xff]
        %v972 = vld [vmem:[#allocation2 + $0x1e] sm:$0xff]
        %v973 = vld [vmem:[#allocation2 + $0x26] sm:$0xff]
        %v974 = vld [vmem:[#allocation2 + $0x36] sm:$0xff]
        %v975 = vld [vmem:[#allocation2 + $0x3e] sm:$0xff]
        %v976 = vld [vmem:[#allocation2 + $0x4e] sm:$0xff]
        %v977 = vld [vmem:[#allocation2 + $0x56] sm:$0xff]
        %v978 = vld [vmem:[#allocation2 + $0x66] sm:$0xff]
        %v979 = vld [vmem:[#allocation2 + $0x6e] sm:$0xff]
        %v980 = vld [vmem:[#allocation2 + $0x7e] sm:$0xff]
        %v981 = vld [vmem:[#allocation2 + $0x86] sm:$0xff]
        %v982 = vld [vmem:[#allocation2 + $0x96] sm:$0xff]
        %v983 = vld [vmem:[#allocation2 + $0x9e] sm:$0xff]
        %v984 = vld [vmem:[#allocation2 + $0xae] sm:$0xff]
        %v985 = vld [vmem:[#allocation2 + $0xb6] sm:$0xff]
        %v986 = vld [vmem:[#allocation2 + $0xc6] sm:$0xff]
        %v987 = vld [vmem:[#allocation2 + $0xce] sm:$0xff]
        %v988 = vld [vmem:[#allocation2 + $0xde] sm:$0xff]
        %v989 = vld [vmem:[#allocation2 + $0xe6] sm:$0xff]
        %v990 = vld [vmem:[#allocation2 + $0xf6] sm:$0xff]
        %v991 = vld [vmem:[#allocation2 + $0xfe] sm:$0xff]
        %v992 = vld [vmem:[#allocation2 + $0x10e] sm:$0xff]
        %v993 = vld [vmem:[#allocation2 + $0x116] sm:$0xff]
        %v994 = vld [vmem:[#allocation2 + $0x126] sm:$0xff]
        %v995 = vld [vmem:[#allocation2 + $0x12e] sm:$0xff]
        %v996 = vld [vmem:[#allocation2 + $0x13e] sm:$0xff]
        %v997 = vld [vmem:[#allocation2 + $0x146] sm:$0xff]
        %v998 = vld [vmem:[#allocation2 + $0x156] sm:$0xff]
        %v999 = vld [vmem:[#allocation2 + $0x15e] sm:$0xff]
        %v1000 = vld [vmem:[#allocation2 + $0x16e] sm:$0xff]
        %v1001 = vld [vmem:[#allocation2 + $0x176] sm:$0xff]
        %v1002 = vperm.slane %v969, 0
        %v1003 = vmul.f32 %v970, %v1002
        %v1004 = vmul.f32 %v971, %v1002
        %v1005 = vmul.f32 %v972, %v1002
        %v1006 = vmul.f32 %v973, %v1002
        %v1007 = vmul.f32 %v974, %v1002
        %v1008 = vmul.f32 %v975, %v1002
        %v1009 = vmul.f32 %v976, %v1002
        %v1010 = vmul.f32 %v977, %v1002
        %v1011 = vmul.f32 %v978, %v1002
        %v1012 = vmul.f32 %v979, %v1002
        %v1013 = vmul.f32 %v980, %v1002
        %v1014 = vmul.f32 %v981, %v1002
        %v1015 = vmul.f32 %v982, %v1002
        %v1016 = vmul.f32 %v983, %v1002
        %v1017 = vmul.f32 %v984, %v1002
        %v1018 = vmul.f32 %v985, %v1002
        %v1019 = vmul.f32 %v986, %v1002
        %v1020 = vmul.f32 %v987, %v1002
        %v1021 = vmul.f32 %v988, %v1002
        %v1022 = vmul.f32 %v989, %v1002
        %v1023 = vmul.f32 %v990, %v1002
        %v1024 = vmul.f32 %v991, %v1002
        %v1025 = vmul.f32 %v992, %v1002
        %v1026 = vmul.f32 %v993, %v1002
        %v1027 = vmul.f32 %v994, %v1002
        %v1028 = vmul.f32 %v995, %v1002
        %v1029 = vmul.f32 %v996, %v1002
        %v1030 = vmul.f32 %v997, %v1002
        %v1031 = vmul.f32 %v998, %v1002
        %v1032 = vmul.f32 %v999, %v1002
        %v1033 = vmul.f32 %v1000, %v1002
        %v1034 = vmul.f32 %v1001, %v1002
        %v1035 = vadd.f32 %v937, %v1003
        %v1036 = vadd.f32 %v938, %v1004
        %v1037 = vadd.f32 %v939, %v1005
        %v1038 = vadd.f32 %v940, %v1006
        %v1039 = vadd.f32 %v941, %v1007
        %v1040 = vadd.f32 %v942, %v1008
        %v1041 = vadd.f32 %v943, %v1009
        %v1042 = vadd.f32 %v944, %v1010
        %v1043 = vadd.f32 %v945, %v1011
        %v1044 = vadd.f32 %v946, %v1012
        %v1045 = vadd.f32 %v947, %v1013
        %v1046 = vadd.f32 %v948, %v1014
        %v1047 = vadd.f32 %v949, %v1015
        %v1048 = vadd.f32 %v950, %v1016
        %v1049 = vadd.f32 %v951, %v1017
        %v1050 = vadd.f32 %v952, %v1018
        %v1051 = vadd.f32 %v953, %v1019
        %v1052 = vadd.f32 %v954, %v1020
        %v1053 = vadd.f32 %v955, %v1021
        %v1054 = vadd.f32 %v956, %v1022
        %v1055 = vadd.f32 %v957, %v1023
        %v1056 = vadd.f32 %v958, %v1024
        %v1057 = vadd.f32 %v959, %v1025
        %v1058 = vadd.f32 %v960, %v1026
        %v1059 = vadd.f32 %v961, %v1027
        %v1060 = vadd.f32 %v962, %v1028
        %v1061 = vadd.f32 %v963, %v1029
        %v1062 = vadd.f32 %v964, %v1030
        %v1063 = vadd.f32 %v965, %v1031
        %v1064 = vadd.f32 %v966, %v1032
        %v1065 = vadd.f32 %v967, %v1033
        %v1066 = vadd.f32 %v968, %v1034
        %v1067 = vld [vmem:[#allocation3 + $0x7] sm:$0x1]
        %s1068 = scalar_lea.vmem [#allocation2], 24
        %v1069 = vld [vmem:[%s1068] sm:$0xff]
        %v1070 = vld [vmem:[%s1068 + $0x8] sm:$0xff]
        %v1071 = vld [vmem:[%s1068 + $0x18] sm:$0xff]
        %v1072 = vld [vmem:[%s1068 + $0x20] sm:$0xff]
        %v1073 = vld [vmem:[%s1068 + $0x30] sm:$0xff]
        %v1074 = vld [vmem:[%s1068 + $0x38] sm:$0xff]
        %v1075 = vld [vmem:[%s1068 + $0x48] sm:$0xff]
        %v1076 = vld [vmem:[%s1068 + $0x50] sm:$0xff]
        %v1077 = vld [vmem:[%s1068 + $0x60] sm:$0xff]
        %v1078 = vld [vmem:[%s1068 + $0x68] sm:$0xff]
        %v1079 = vld [vmem:[%s1068 + $0x78] sm:$0xff]
        %v1080 = vld [vmem:[%s1068 + $0x80] sm:$0xff]
        %v1081 = vld [vmem:[%s1068 + $0x90] sm:$0xff]
        %v1082 = vld [vmem:[%s1068 + $0x98] sm:$0xff]
        %v1083 = vld [vmem:[%s1068 + $0xa8] sm:$0xff]
        %v1084 = vld [vmem:[%s1068 + $0xb0] sm:$0xff]
        %v1085 = vld [vmem:[%s1068 + $0xc0] sm:$0xff]
        %v1086 = vld [vmem:[%s1068 + $0xc8] sm:$0xff]
        %v1087 = vld [vmem:[%s1068 + $0xd8] sm:$0xff]
        %v1088 = vld [vmem:[%s1068 + $0xe0] sm:$0xff]
        %v1089 = vld [vmem:[%s1068 + $0xf0] sm:$0xff]
        %v1090 = vld [vmem:[%s1068 + $0xf8] sm:$0xff]
        %v1091 = vld [vmem:[%s1068 + $0x108] sm:$0xff]
        %v1092 = vld [vmem:[%s1068 + $0x110] sm:$0xff]
        %v1093 = vld [vmem:[%s1068 + $0x120] sm:$0xff]
        %v1094 = vld [vmem:[%s1068 + $0x128] sm:$0xff]
        %v1095 = vld [vmem:[%s1068 + $0x138] sm:$0xff]
        %v1096 = vld [vmem:[%s1068 + $0x140] sm:$0xff]
        %v1097 = vld [vmem:[%s1068 + $0x150] sm:$0xff]
        %v1098 = vld [vmem:[%s1068 + $0x158] sm:$0xff]
        %v1099 = vld [vmem:[%s1068 + $0x168] sm:$0xff]
        %v1100 = vld [vmem:[%s1068 + $0x170] sm:$0xff]
        %v1101 = vperm.slane %v1067, 0
        %v1102 = vmul.f32 %v1069, %v1101
        %v1103 = vmul.f32 %v1070, %v1101
        %v1104 = vmul.f32 %v1071, %v1101
        %v1105 = vmul.f32 %v1072, %v1101
        %v1106 = vmul.f32 %v1073, %v1101
        %v1107 = vmul.f32 %v1074, %v1101
        %v1108 = vmul.f32 %v1075, %v1101
        %v1109 = vmul.f32 %v1076, %v1101
        %v1110 = vmul.f32 %v1077, %v1101
        %v1111 = vmul.f32 %v1078, %v1101
        %v1112 = vmul.f32 %v1079, %v1101
        %v1113 = vmul.f32 %v1080, %v1101
        %v1114 = vmul.f32 %v1081, %v1101
        %v1115 = vmul.f32 %v1082, %v1101
        %v1116 = vmul.f32 %v1083, %v1101
        %v1117 = vmul.f32 %v1084, %v1101
        %v1118 = vmul.f32 %v1085, %v1101
        %v1119 = vmul.f32 %v1086, %v1101
        %v1120 = vmul.f32 %v1087, %v1101
        %v1121 = vmul.f32 %v1088, %v1101
        %v1122 = vmul.f32 %v1089, %v1101
        %v1123 = vmul.f32 %v1090, %v1101
        %v1124 = vmul.f32 %v1091, %v1101
        %v1125 = vmul.f32 %v1092, %v1101
        %v1126 = vmul.f32 %v1093, %v1101
        %v1127 = vmul.f32 %v1094, %v1101
        %v1128 = vmul.f32 %v1095, %v1101
        %v1129 = vmul.f32 %v1096, %v1101
        %v1130 = vmul.f32 %v1097, %v1101
        %v1131 = vmul.f32 %v1098, %v1101
        %v1132 = vmul.f32 %v1099, %v1101
        %v1133 = vmul.f32 %v1100, %v1101
        %v1134 = vadd.f32 %v1035, %v1102
        %v1135 = vadd.f32 %v1036, %v1103
        %v1136 = vadd.f32 %v1037, %v1104
        %v1137 = vadd.f32 %v1038, %v1105
        %v1138 = vadd.f32 %v1039, %v1106
        %v1139 = vadd.f32 %v1040, %v1107
        %v1140 = vadd.f32 %v1041, %v1108
        %v1141 = vadd.f32 %v1042, %v1109
        %v1142 = vadd.f32 %v1043, %v1110
        %v1143 = vadd.f32 %v1044, %v1111
        %v1144 = vadd.f32 %v1045, %v1112
        %v1145 = vadd.f32 %v1046, %v1113
        %v1146 = vadd.f32 %v1047, %v1114
        %v1147 = vadd.f32 %v1048, %v1115
        %v1148 = vadd.f32 %v1049, %v1116
        %v1149 = vadd.f32 %v1050, %v1117
        %v1150 = vadd.f32 %v1051, %v1118
        %v1151 = vadd.f32 %v1052, %v1119
        %v1152 = vadd.f32 %v1053, %v1120
        %v1153 = vadd.f32 %v1054, %v1121
        %v1154 = vadd.f32 %v1055, %v1122
        %v1155 = vadd.f32 %v1056, %v1123
        %v1156 = vadd.f32 %v1057, %v1124
        %v1157 = vadd.f32 %v1058, %v1125
        %v1158 = vadd.f32 %v1059, %v1126
        %v1159 = vadd.f32 %v1060, %v1127
        %v1160 = vadd.f32 %v1061, %v1128
        %v1161 = vadd.f32 %v1062, %v1129
        %v1162 = vadd.f32 %v1063, %v1130
        %v1163 = vadd.f32 %v1064, %v1131
        %v1164 = vadd.f32 %v1065, %v1132
        %v1165 = vadd.f32 %v1066, %v1133
        %v1166 = vld [vmem:[#allocation3 + $0x8] sm:$0x1]
        %v1167 = vld [vmem:[%s1068 + $0x1] sm:$0xff]
        %v1168 = vld [vmem:[%s1068 + $0x9] sm:$0xff]
        %v1169 = vld [vmem:[%s1068 + $0x19] sm:$0xff]
        %v1170 = vld [vmem:[%s1068 + $0x21] sm:$0xff]
        %v1171 = vld [vmem:[%s1068 + $0x31] sm:$0xff]
        %v1172 = vld [vmem:[%s1068 + $0x39] sm:$0xff]
        %v1173 = vld [vmem:[%s1068 + $0x49] sm:$0xff]
        %v1174 = vld [vmem:[%s1068 + $0x51] sm:$0xff]
        %v1175 = vld [vmem:[%s1068 + $0x61] sm:$0xff]
        %v1176 = vld [vmem:[%s1068 + $0x69] sm:$0xff]
        %v1177 = vld [vmem:[%s1068 + $0x79] sm:$0xff]
        %v1178 = vld [vmem:[%s1068 + $0x81] sm:$0xff]
        %v1179 = vld [vmem:[%s1068 + $0x91] sm:$0xff]
        %v1180 = vld [vmem:[%s1068 + $0x99] sm:$0xff]
        %v1181 = vld [vmem:[%s1068 + $0xa9] sm:$0xff]
        %v1182 = vld [vmem:[%s1068 + $0xb1] sm:$0xff]
        %v1183 = vld [vmem:[%s1068 + $0xc1] sm:$0xff]
        %v1184 = vld [vmem:[%s1068 + $0xc9] sm:$0xff]
        %v1185 = vld [vmem:[%s1068 + $0xd9] sm:$0xff]
        %v1186 = vld [vmem:[%s1068 + $0xe1] sm:$0xff]
        %v1187 = vld [vmem:[%s1068 + $0xf1] sm:$0xff]
        %v1188 = vld [vmem:[%s1068 + $0xf9] sm:$0xff]
        %v1189 = vld [vmem:[%s1068 + $0x109] sm:$0xff]
        %v1190 = vld [vmem:[%s1068 + $0x111] sm:$0xff]
        %v1191 = vld [vmem:[%s1068 + $0x121] sm:$0xff]
        %v1192 = vld [vmem:[%s1068 + $0x129] sm:$0xff]
        %v1193 = vld [vmem:[%s1068 + $0x139] sm:$0xff]
        %v1194 = vld [vmem:[%s1068 + $0x141] sm:$0xff]
        %v1195 = vld [vmem:[%s1068 + $0x151] sm:$0xff]
        %v1196 = vld [vmem:[%s1068 + $0x159] sm:$0xff]
        %v1197 = vld [vmem:[%s1068 + $0x169] sm:$0xff]
        %v1198 = vld [vmem:[%s1068 + $0x171] sm:$0xff]
        %v1199 = vperm.slane %v1166, 0
        %v1200 = vmul.f32 %v1167, %v1199
        %v1201 = vmul.f32 %v1168, %v1199
        %v1202 = vmul.f32 %v1169, %v1199
        %v1203 = vmul.f32 %v1170, %v1199
        %v1204 = vmul.f32 %v1171, %v1199
        %v1205 = vmul.f32 %v1172, %v1199
        %v1206 = vmul.f32 %v1173, %v1199
        %v1207 = vmul.f32 %v1174, %v1199
        %v1208 = vmul.f32 %v1175, %v1199
        %v1209 = vmul.f32 %v1176, %v1199
        %v1210 = vmul.f32 %v1177, %v1199
        %v1211 = vmul.f32 %v1178, %v1199
        %v1212 = vmul.f32 %v1179, %v1199
        %v1213 = vmul.f32 %v1180, %v1199
        %v1214 = vmul.f32 %v1181, %v1199
        %v1215 = vmul.f32 %v1182, %v1199
        %v1216 = vmul.f32 %v1183, %v1199
        %v1217 = vmul.f32 %v1184, %v1199
        %v1218 = vmul.f32 %v1185, %v1199
        %v1219 = vmul.f32 %v1186, %v1199
        %v1220 = vmul.f32 %v1187, %v1199
        %v1221 = vmul.f32 %v1188, %v1199
        %v1222 = vmul.f32 %v1189, %v1199
        %v1223 = vmul.f32 %v1190, %v1199
        %v1224 = vmul.f32 %v1191, %v1199
        %v1225 = vmul.f32 %v1192, %v1199
        %v1226 = vmul.f32 %v1193, %v1199
        %v1227 = vmul.f32 %v1194, %v1199
        %v1228 = vmul.f32 %v1195, %v1199
        %v1229 = vmul.f32 %v1196, %v1199
        %v1230 = vmul.f32 %v1197, %v1199
        %v1231 = vmul.f32 %v1198, %v1199
        %v1232 = vadd.f32 %v1134, %v1200
        %v1233 = vadd.f32 %v1135, %v1201
        %v1234 = vadd.f32 %v1136, %v1202
        %v1235 = vadd.f32 %v1137, %v1203
        %v1236 = vadd.f32 %v1138, %v1204
        %v1237 = vadd.f32 %v1139, %v1205
        %v1238 = vadd.f32 %v1140, %v1206
        %v1239 = vadd.f32 %v1141, %v1207
        %v1240 = vadd.f32 %v1142, %v1208
        %v1241 = vadd.f32 %v1143, %v1209
        %v1242 = vadd.f32 %v1144, %v1210
        %v1243 = vadd.f32 %v1145, %v1211
        %v1244 = vadd.f32 %v1146, %v1212
        %v1245 = vadd.f32 %v1147, %v1213
        %v1246 = vadd.f32 %v1148, %v1214
        %v1247 = vadd.f32 %v1149, %v1215
        %v1248 = vadd.f32 %v1150, %v1216
        %v1249 = vadd.f32 %v1151, %v1217
        %v1250 = vadd.f32 %v1152, %v1218
        %v1251 = vadd.f32 %v1153, %v1219
        %v1252 = vadd.f32 %v1154, %v1220
        %v1253 = vadd.f32 %v1155, %v1221
        %v1254 = vadd.f32 %v1156, %v1222
        %v1255 = vadd.f32 %v1157, %v1223
        %v1256 = vadd.f32 %v1158, %v1224
        %v1257 = vadd.f32 %v1159, %v1225
        %v1258 = vadd.f32 %v1160, %v1226
        %v1259 = vadd.f32 %v1161, %v1227
        %v1260 = vadd.f32 %v1162, %v1228
        %v1261 = vadd.f32 %v1163, %v1229
        %v1262 = vadd.f32 %v1164, %v1230
        %v1263 = vadd.f32 %v1165, %v1231
        %v1264 = vld [vmem:[#allocation3 + $0x9] sm:$0x1]
        %v1265 = vld [vmem:[%s1068 + $0x2] sm:$0xff]
        %v1266 = vld [vmem:[%s1068 + $0xa] sm:$0xff]
        %v1267 = vld [vmem:[%s1068 + $0x1a] sm:$0xff]
        %v1268 = vld [vmem:[%s1068 + $0x22] sm:$0xff]
        %v1269 = vld [vmem:[%s1068 + $0x32] sm:$0xff]
        %v1270 = vld [vmem:[%s1068 + $0x3a] sm:$0xff]
        %v1271 = vld [vmem:[%s1068 + $0x4a] sm:$0xff]
        %v1272 = vld [vmem:[%s1068 + $0x52] sm:$0xff]
        %v1273 = vld [vmem:[%s1068 + $0x62] sm:$0xff]
        %v1274 = vld [vmem:[%s1068 + $0x6a] sm:$0xff]
        %v1275 = vld [vmem:[%s1068 + $0x7a] sm:$0xff]
        %v1276 = vld [vmem:[%s1068 + $0x82] sm:$0xff]
        %v1277 = vld [vmem:[%s1068 + $0x92] sm:$0xff]
        %v1278 = vld [vmem:[%s1068 + $0x9a] sm:$0xff]
        %v1279 = vld [vmem:[%s1068 + $0xaa] sm:$0xff]
        %v1280 = vld [vmem:[%s1068 + $0xb2] sm:$0xff]
        %v1281 = vld [vmem:[%s1068 + $0xc2] sm:$0xff]
        %v1282 = vld [vmem:[%s1068 + $0xca] sm:$0xff]
        %v1283 = vld [vmem:[%s1068 + $0xda] sm:$0xff]
        %v1284 = vld [vmem:[%s1068 + $0xe2] sm:$0xff]
        %v1285 = vld [vmem:[%s1068 + $0xf2] sm:$0xff]
        %v1286 = vld [vmem:[%s1068 + $0xfa] sm:$0xff]
        %v1287 = vld [vmem:[%s1068 + $0x10a] sm:$0xff]
        %v1288 = vld [vmem:[%s1068 + $0x112] sm:$0xff]
        %v1289 = vld [vmem:[%s1068 + $0x122] sm:$0xff]
        %v1290 = vld [vmem:[%s1068 + $0x12a] sm:$0xff]
        %v1291 = vld [vmem:[%s1068 + $0x13a] sm:$0xff]
        %v1292 = vld [vmem:[%s1068 + $0x142] sm:$0xff]
        %v1293 = vld [vmem:[%s1068 + $0x152] sm:$0xff]
        %v1294 = vld [vmem:[%s1068 + $0x15a] sm:$0xff]
        %v1295 = vld [vmem:[%s1068 + $0x16a] sm:$0xff]
        %v1296 = vld [vmem:[%s1068 + $0x172] sm:$0xff]
        %v1297 = vperm.slane %v1264, 0
        %v1298 = vmul.f32 %v1265, %v1297
        %v1299 = vmul.f32 %v1266, %v1297
        %v1300 = vmul.f32 %v1267, %v1297
        %v1301 = vmul.f32 %v1268, %v1297
        %v1302 = vmul.f32 %v1269, %v1297
        %v1303 = vmul.f32 %v1270, %v1297
        %v1304 = vmul.f32 %v1271, %v1297
        %v1305 = vmul.f32 %v1272, %v1297
        %v1306 = vmul.f32 %v1273, %v1297
        %v1307 = vmul.f32 %v1274, %v1297
        %v1308 = vmul.f32 %v1275, %v1297
        %v1309 = vmul.f32 %v1276, %v1297
        %v1310 = vmul.f32 %v1277, %v1297
        %v1311 = vmul.f32 %v1278, %v1297
        %v1312 = vmul.f32 %v1279, %v1297
        %v1313 = vmul.f32 %v1280, %v1297
        %v1314 = vmul.f32 %v1281, %v1297
        %v1315 = vmul.f32 %v1282, %v1297
        %v1316 = vmul.f32 %v1283, %v1297
        %v1317 = vmul.f32 %v1284, %v1297
        %v1318 = vmul.f32 %v1285, %v1297
        %v1319 = vmul.f32 %v1286, %v1297
        %v1320 = vmul.f32 %v1287, %v1297
        %v1321 = vmul.f32 %v1288, %v1297
        %v1322 = vmul.f32 %v1289, %v1297
        %v1323 = vmul.f32 %v1290, %v1297
        %v1324 = vmul.f32 %v1291, %v1297
        %v1325 = vmul.f32 %v1292, %v1297
        %v1326 = vmul.f32 %v1293, %v1297
        %v1327 = vmul.f32 %v1294, %v1297
        %v1328 = vmul.f32 %v1295, %v1297
        %v1329 = vmul.f32 %v1296, %v1297
        %v1330 = vadd.f32 %v1232, %v1298
        %v1331 = vadd.f32 %v1233, %v1299
        %v1332 = vadd.f32 %v1234, %v1300
        %v1333 = vadd.f32 %v1235, %v1301
        %v1334 = vadd.f32 %v1236, %v1302
        %v1335 = vadd.f32 %v1237, %v1303
        %v1336 = vadd.f32 %v1238, %v1304
        %v1337 = vadd.f32 %v1239, %v1305
        %v1338 = vadd.f32 %v1240, %v1306
        %v1339 = vadd.f32 %v1241, %v1307
        %v1340 = vadd.f32 %v1242, %v1308
        %v1341 = vadd.f32 %v1243, %v1309
        %v1342 = vadd.f32 %v1244, %v1310
        %v1343 = vadd.f32 %v1245, %v1311
        %v1344 = vadd.f32 %v1246, %v1312
        %v1345 = vadd.f32 %v1247, %v1313
        %v1346 = vadd.f32 %v1248, %v1314
        %v1347 = vadd.f32 %v1249, %v1315
        %v1348 = vadd.f32 %v1250, %v1316
        %v1349 = vadd.f32 %v1251, %v1317
        %v1350 = vadd.f32 %v1252, %v1318
        %v1351 = vadd.f32 %v1253, %v1319
        %v1352 = vadd.f32 %v1254, %v1320
        %v1353 = vadd.f32 %v1255, %v1321
        %v1354 = vadd.f32 %v1256, %v1322
        %v1355 = vadd.f32 %v1257, %v1323
        %v1356 = vadd.f32 %v1258, %v1324
        %v1357 = vadd.f32 %v1259, %v1325
        %v1358 = vadd.f32 %v1260, %v1326
        %v1359 = vadd.f32 %v1261, %v1327
        %v1360 = vadd.f32 %v1262, %v1328
        %v1361 = vadd.f32 %v1263, %v1329
        %v1362 = vld [vmem:[#allocation3 + $0xa] sm:$0x1]
        %v1363 = vld [vmem:[%s1068 + $0x3] sm:$0xff]
        %v1364 = vld [vmem:[%s1068 + $0xb] sm:$0xff]
        %v1365 = vld [vmem:[%s1068 + $0x1b] sm:$0xff]
        %v1366 = vld [vmem:[%s1068 + $0x23] sm:$0xff]
        %v1367 = vld [vmem:[%s1068 + $0x33] sm:$0xff]
        %v1368 = vld [vmem:[%s1068 + $0x3b] sm:$0xff]
        %v1369 = vld [vmem:[%s1068 + $0x4b] sm:$0xff]
        %v1370 = vld [vmem:[%s1068 + $0x53] sm:$0xff]
        %v1371 = vld [vmem:[%s1068 + $0x63] sm:$0xff]
        %v1372 = vld [vmem:[%s1068 + $0x6b] sm:$0xff]
        %v1373 = vld [vmem:[%s1068 + $0x7b] sm:$0xff]
        %v1374 = vld [vmem:[%s1068 + $0x83] sm:$0xff]
        %v1375 = vld [vmem:[%s1068 + $0x93] sm:$0xff]
        %v1376 = vld [vmem:[%s1068 + $0x9b] sm:$0xff]
        %v1377 = vld [vmem:[%s1068 + $0xab] sm:$0xff]
        %v1378 = vld [vmem:[%s1068 + $0xb3] sm:$0xff]
        %v1379 = vld [vmem:[%s1068 + $0xc3] sm:$0xff]
        %v1380 = vld [vmem:[%s1068 + $0xcb] sm:$0xff]
        %v1381 = vld [vmem:[%s1068 + $0xdb] sm:$0xff]
        %v1382 = vld [vmem:[%s1068 + $0xe3] sm:$0xff]
        %v1383 = vld [vmem:[%s1068 + $0xf3] sm:$0xff]
        %v1384 = vld [vmem:[%s1068 + $0xfb] sm:$0xff]
        %v1385 = vld [vmem:[%s1068 + $0x10b] sm:$0xff]
        %v1386 = vld [vmem:[%s1068 + $0x113] sm:$0xff]
        %v1387 = vld [vmem:[%s1068 + $0x123] sm:$0xff]
        %v1388 = vld [vmem:[%s1068 + $0x12b] sm:$0xff]
        %v1389 = vld [vmem:[%s1068 + $0x13b] sm:$0xff]
        %v1390 = vld [vmem:[%s1068 + $0x143] sm:$0xff]
        %v1391 = vld [vmem:[%s1068 + $0x153] sm:$0xff]
        %v1392 = vld [vmem:[%s1068 + $0x15b] sm:$0xff]
        %v1393 = vld [vmem:[%s1068 + $0x16b] sm:$0xff]
        %v1394 = vld [vmem:[%s1068 + $0x173] sm:$0xff]
        %v1395 = vperm.slane %v1362, 0
        %v1396 = vmul.f32 %v1363, %v1395
        %v1397 = vmul.f32 %v1364, %v1395
        %v1398 = vmul.f32 %v1365, %v1395
        %v1399 = vmul.f32 %v1366, %v1395
        %v1400 = vmul.f32 %v1367, %v1395
        %v1401 = vmul.f32 %v1368, %v1395
        %v1402 = vmul.f32 %v1369, %v1395
        %v1403 = vmul.f32 %v1370, %v1395
        %v1404 = vmul.f32 %v1371, %v1395
        %v1405 = vmul.f32 %v1372, %v1395
        %v1406 = vmul.f32 %v1373, %v1395
        %v1407 = vmul.f32 %v1374, %v1395
        %v1408 = vmul.f32 %v1375, %v1395
        %v1409 = vmul.f32 %v1376, %v1395
        %v1410 = vmul.f32 %v1377, %v1395
        %v1411 = vmul.f32 %v1378, %v1395
        %v1412 = vmul.f32 %v1379, %v1395
        %v1413 = vmul.f32 %v1380, %v1395
        %v1414 = vmul.f32 %v1381, %v1395
        %v1415 = vmul.f32 %v1382, %v1395
        %v1416 = vmul.f32 %v1383, %v1395
        %v1417 = vmul.f32 %v1384, %v1395
        %v1418 = vmul.f32 %v1385, %v1395
        %v1419 = vmul.f32 %v1386, %v1395
        %v1420 = vmul.f32 %v1387, %v1395
        %v1421 = vmul.f32 %v1388, %v1395
        %v1422 = vmul.f32 %v1389, %v1395
        %v1423 = vmul.f32 %v1390, %v1395
        %v1424 = vmul.f32 %v1391, %v1395
        %v1425 = vmul.f32 %v1392, %v1395
        %v1426 = vmul.f32 %v1393, %v1395
        %v1427 = vmul.f32 %v1394, %v1395
        %v1428 = vadd.f32 %v1330, %v1396
        %v1429 = vadd.f32 %v1331, %v1397
        %v1430 = vadd.f32 %v1332, %v1398
        %v1431 = vadd.f32 %v1333, %v1399
        %v1432 = vadd.f32 %v1334, %v1400
        %v1433 = vadd.f32 %v1335, %v1401
        %v1434 = vadd.f32 %v1336, %v1402
        %v1435 = vadd.f32 %v1337, %v1403
        %v1436 = vadd.f32 %v1338, %v1404
        %v1437 = vadd.f32 %v1339, %v1405
        %v1438 = vadd.f32 %v1340, %v1406
        %v1439 = vadd.f32 %v1341, %v1407
        %v1440 = vadd.f32 %v1342, %v1408
        %v1441 = vadd.f32 %v1343, %v1409
        %v1442 = vadd.f32 %v1344, %v1410
        %v1443 = vadd.f32 %v1345, %v1411
        %v1444 = vadd.f32 %v1346, %v1412
        %v1445 = vadd.f32 %v1347, %v1413
        %v1446 = vadd.f32 %v1348, %v1414
        %v1447 = vadd.f32 %v1349, %v1415
        %v1448 = vadd.f32 %v1350, %v1416
        %v1449 = vadd.f32 %v1351, %v1417
        %v1450 = vadd.f32 %v1352, %v1418
        %v1451 = vadd.f32 %v1353, %v1419
        %v1452 = vadd.f32 %v1354, %v1420
        %v1453 = vadd.f32 %v1355, %v1421
        %v1454 = vadd.f32 %v1356, %v1422
        %v1455 = vadd.f32 %v1357, %v1423
        %v1456 = vadd.f32 %v1358, %v1424
        %v1457 = vadd.f32 %v1359, %v1425
        %v1458 = vadd.f32 %v1360, %v1426
        %v1459 = vadd.f32 %v1361, %v1427
        %v1460 = vld [vmem:[#allocation3 + $0xb] sm:$0x1]
        %v1461 = vld [vmem:[%s1068 + $0x4] sm:$0xff]
        %v1462 = vld [vmem:[%s1068 + $0xc] sm:$0xff]
        %v1463 = vld [vmem:[%s1068 + $0x1c] sm:$0xff]
        %v1464 = vld [vmem:[%s1068 + $0x24] sm:$0xff]
        %v1465 = vld [vmem:[%s1068 + $0x34] sm:$0xff]
        %v1466 = vld [vmem:[%s1068 + $0x3c] sm:$0xff]
        %v1467 = vld [vmem:[%s1068 + $0x4c] sm:$0xff]
        %v1468 = vld [vmem:[%s1068 + $0x54] sm:$0xff]
        %v1469 = vld [vmem:[%s1068 + $0x64] sm:$0xff]
        %v1470 = vld [vmem:[%s1068 + $0x6c] sm:$0xff]
        %v1471 = vld [vmem:[%s1068 + $0x7c] sm:$0xff]
        %v1472 = vld [vmem:[%s1068 + $0x84] sm:$0xff]
        %v1473 = vld [vmem:[%s1068 + $0x94] sm:$0xff]
        %v1474 = vld [vmem:[%s1068 + $0x9c] sm:$0xff]
        %v1475 = vld [vmem:[%s1068 + $0xac] sm:$0xff]
        %v1476 = vld [vmem:[%s1068 + $0xb4] sm:$0xff]
        %v1477 = vld [vmem:[%s1068 + $0xc4] sm:$0xff]
        %v1478 = vld [vmem:[%s1068 + $0xcc] sm:$0xff]
        %v1479 = vld [vmem:[%s1068 + $0xdc] sm:$0xff]
        %v1480 = vld [vmem:[%s1068 + $0xe4] sm:$0xff]
        %v1481 = vld [vmem:[%s1068 + $0xf4] sm:$0xff]
        %v1482 = vld [vmem:[%s1068 + $0xfc] sm:$0xff]
        %v1483 = vld [vmem:[%s1068 + $0x10c] sm:$0xff]
        %v1484 = vld [vmem:[%s1068 + $0x114] sm:$0xff]
        %v1485 = vld [vmem:[%s1068 + $0x124] sm:$0xff]
        %v1486 = vld [vmem:[%s1068 + $0x12c] sm:$0xff]
        %v1487 = vld [vmem:[%s1068 + $0x13c] sm:$0xff]
        %v1488 = vld [vmem:[%s1068 + $0x144] sm:$0xff]
        %v1489 = vld [vmem:[%s1068 + $0x154] sm:$0xff]
        %v1490 = vld [vmem:[%s1068 + $0x15c] sm:$0xff]
        %v1491 = vld [vmem:[%s1068 + $0x16c] sm:$0xff]
        %v1492 = vld [vmem:[%s1068 + $0x174] sm:$0xff]
        %v1493 = vperm.slane %v1460, 0
        %v1494 = vmul.f32 %v1461, %v1493
        %v1495 = vmul.f32 %v1462, %v1493
        %v1496 = vmul.f32 %v1463, %v1493
        %v1497 = vmul.f32 %v1464, %v1493
        %v1498 = vmul.f32 %v1465, %v1493
        %v1499 = vmul.f32 %v1466, %v1493
        %v1500 = vmul.f32 %v1467, %v1493
        %v1501 = vmul.f32 %v1468, %v1493
        %v1502 = vmul.f32 %v1469, %v1493
        %v1503 = vmul.f32 %v1470, %v1493
        %v1504 = vmul.f32 %v1471, %v1493
        %v1505 = vmul.f32 %v1472, %v1493
        %v1506 = vmul.f32 %v1473, %v1493
        %v1507 = vmul.f32 %v1474, %v1493
        %v1508 = vmul.f32 %v1475, %v1493
        %v1509 = vmul.f32 %v1476, %v1493
        %v1510 = vmul.f32 %v1477, %v1493
        %v1511 = vmul.f32 %v1478, %v1493
        %v1512 = vmul.f32 %v1479, %v1493
        %v1513 = vmul.f32 %v1480, %v1493
        %v1514 = vmul.f32 %v1481, %v1493
        %v1515 = vmul.f32 %v1482, %v1493
        %v1516 = vmul.f32 %v1483, %v1493
        %v1517 = vmul.f32 %v1484, %v1493
        %v1518 = vmul.f32 %v1485, %v1493
        %v1519 = vmul.f32 %v1486, %v1493
        %v1520 = vmul.f32 %v1487, %v1493
        %v1521 = vmul.f32 %v1488, %v1493
        %v1522 = vmul.f32 %v1489, %v1493
        %v1523 = vmul.f32 %v1490, %v1493
        %v1524 = vmul.f32 %v1491, %v1493
        %v1525 = vmul.f32 %v1492, %v1493
        %v1526 = vadd.f32 %v1428, %v1494
        %v1527 = vadd.f32 %v1429, %v1495
        %v1528 = vadd.f32 %v1430, %v1496
        %v1529 = vadd.f32 %v1431, %v1497
        %v1530 = vadd.f32 %v1432, %v1498
        %v1531 = vadd.f32 %v1433, %v1499
        %v1532 = vadd.f32 %v1434, %v1500
        %v1533 = vadd.f32 %v1435, %v1501
        %v1534 = vadd.f32 %v1436, %v1502
        %v1535 = vadd.f32 %v1437, %v1503
        %v1536 = vadd.f32 %v1438, %v1504
        %v1537 = vadd.f32 %v1439, %v1505
        %v1538 = vadd.f32 %v1440, %v1506
        %v1539 = vadd.f32 %v1441, %v1507
        %v1540 = vadd.f32 %v1442, %v1508
        %v1541 = vadd.f32 %v1443, %v1509
        %v1542 = vadd.f32 %v1444, %v1510
        %v1543 = vadd.f32 %v1445, %v1511
        %v1544 = vadd.f32 %v1446, %v1512
        %v1545 = vadd.f32 %v1447, %v1513
        %v1546 = vadd.f32 %v1448, %v1514
        %v1547 = vadd.f32 %v1449, %v1515
        %v1548 = vadd.f32 %v1450, %v1516
        %v1549 = vadd.f32 %v1451, %v1517
        %v1550 = vadd.f32 %v1452, %v1518
        %v1551 = vadd.f32 %v1453, %v1519
        %v1552 = vadd.f32 %v1454, %v1520
        %v1553 = vadd.f32 %v1455, %v1521
        %v1554 = vadd.f32 %v1456, %v1522
        %v1555 = vadd.f32 %v1457, %v1523
        %v1556 = vadd.f32 %v1458, %v1524
        %v1557 = vadd.f32 %v1459, %v1525
        %v1558 = vld [vmem:[#allocation3 + $0xc] sm:$0x1]
        %v1559 = vld [vmem:[%s1068 + $0x5] sm:$0xff]
        %v1560 = vld [vmem:[%s1068 + $0xd] sm:$0xff]
        %v1561 = vld [vmem:[%s1068 + $0x1d] sm:$0xff]
        %v1562 = vld [vmem:[%s1068 + $0x25] sm:$0xff]
        %v1563 = vld [vmem:[%s1068 + $0x35] sm:$0xff]
        %v1564 = vld [vmem:[%s1068 + $0x3d] sm:$0xff]
        %v1565 = vld [vmem:[%s1068 + $0x4d] sm:$0xff]
        %v1566 = vld [vmem:[%s1068 + $0x55] sm:$0xff]
        %v1567 = vld [vmem:[%s1068 + $0x65] sm:$0xff]
        %v1568 = vld [vmem:[%s1068 + $0x6d] sm:$0xff]
        %v1569 = vld [vmem:[%s1068 + $0x7d] sm:$0xff]
        %v1570 = vld [vmem:[%s1068 + $0x85] sm:$0xff]
        %v1571 = vld [vmem:[%s1068 + $0x95] sm:$0xff]
        %v1572 = vld [vmem:[%s1068 + $0x9d] sm:$0xff]
        %v1573 = vld [vmem:[%s1068 + $0xad] sm:$0xff]
        %v1574 = vld [vmem:[%s1068 + $0xb5] sm:$0xff]
        %v1575 = vld [vmem:[%s1068 + $0xc5] sm:$0xff]
        %v1576 = vld [vmem:[%s1068 + $0xcd] sm:$0xff]
        %v1577 = vld [vmem:[%s1068 + $0xdd] sm:$0xff]
        %v1578 = vld [vmem:[%s1068 + $0xe5] sm:$0xff]
        %v1579 = vld [vmem:[%s1068 + $0xf5] sm:$0xff]
        %v1580 = vld [vmem:[%s1068 + $0xfd] sm:$0xff]
        %v1581 = vld [vmem:[%s1068 + $0x10d] sm:$0xff]
        %v1582 = vld [vmem:[%s1068 + $0x115] sm:$0xff]
        %v1583 = vld [vmem:[%s1068 + $0x125] sm:$0xff]
        %v1584 = vld [vmem:[%s1068 + $0x12d] sm:$0xff]
        %v1585 = vld [vmem:[%s1068 + $0x13d] sm:$0xff]
        %v1586 = vld [vmem:[%s1068 + $0x145] sm:$0xff]
        %v1587 = vld [vmem:[%s1068 + $0x155] sm:$0xff]
        %v1588 = vld [vmem:[%s1068 + $0x15d] sm:$0xff]
        %v1589 = vld [vmem:[%s1068 + $0x16d] sm:$0xff]
        %v1590 = vld [vmem:[%s1068 + $0x175] sm:$0xff]
        %v1591 = vperm.slane %v1558, 0
        %v1592 = vmul.f32 %v1559, %v1591
        %v1593 = vmul.f32 %v1560, %v1591
        %v1594 = vmul.f32 %v1561, %v1591
        %v1595 = vmul.f32 %v1562, %v1591
        %v1596 = vmul.f32 %v1563, %v1591
        %v1597 = vmul.f32 %v1564, %v1591
        %v1598 = vmul.f32 %v1565, %v1591
        %v1599 = vmul.f32 %v1566, %v1591
        %v1600 = vmul.f32 %v1567, %v1591
        %v1601 = vmul.f32 %v1568, %v1591
        %v1602 = vmul.f32 %v1569, %v1591
        %v1603 = vmul.f32 %v1570, %v1591
        %v1604 = vmul.f32 %v1571, %v1591
        %v1605 = vmul.f32 %v1572, %v1591
        %v1606 = vmul.f32 %v1573, %v1591
        %v1607 = vmul.f32 %v1574, %v1591
        %v1608 = vmul.f32 %v1575, %v1591
        %v1609 = vmul.f32 %v1576, %v1591
        %v1610 = vmul.f32 %v1577, %v1591
        %v1611 = vmul.f32 %v1578, %v1591
        %v1612 = vmul.f32 %v1579, %v1591
        %v1613 = vmul.f32 %v1580, %v1591
        %v1614 = vmul.f32 %v1581, %v1591
        %v1615 = vmul.f32 %v1582, %v1591
        %v1616 = vmul.f32 %v1583, %v1591
        %v1617 = vmul.f32 %v1584, %v1591
        %v1618 = vmul.f32 %v1585, %v1591
        %v1619 = vmul.f32 %v1586, %v1591
        %v1620 = vmul.f32 %v1587, %v1591
        %v1621 = vmul.f32 %v1588, %v1591
        %v1622 = vmul.f32 %v1589, %v1591
        %v1623 = vmul.f32 %v1590, %v1591
        %v1624 = vadd.f32 %v1526, %v1592
        %v1625 = vadd.f32 %v1527, %v1593
        %v1626 = vadd.f32 %v1528, %v1594
        %v1627 = vadd.f32 %v1529, %v1595
        %v1628 = vadd.f32 %v1530, %v1596
        %v1629 = vadd.f32 %v1531, %v1597
        %v1630 = vadd.f32 %v1532, %v1598
        %v1631 = vadd.f32 %v1533, %v1599
        %v1632 = vadd.f32 %v1534, %v1600
        %v1633 = vadd.f32 %v1535, %v1601
        %v1634 = vadd.f32 %v1536, %v1602
        %v1635 = vadd.f32 %v1537, %v1603
        %v1636 = vadd.f32 %v1538, %v1604
        %v1637 = vadd.f32 %v1539, %v1605
        %v1638 = vadd.f32 %v1540, %v1606
        %v1639 = vadd.f32 %v1541, %v1607
        %v1640 = vadd.f32 %v1542, %v1608
        %v1641 = vadd.f32 %v1543, %v1609
        %v1642 = vadd.f32 %v1544, %v1610
        %v1643 = vadd.f32 %v1545, %v1611
        %v1644 = vadd.f32 %v1546, %v1612
        %v1645 = vadd.f32 %v1547, %v1613
        %v1646 = vadd.f32 %v1548, %v1614
        %v1647 = vadd.f32 %v1549, %v1615
        %v1648 = vadd.f32 %v1550, %v1616
        %v1649 = vadd.f32 %v1551, %v1617
        %v1650 = vadd.f32 %v1552, %v1618
        %v1651 = vadd.f32 %v1553, %v1619
        %v1652 = vadd.f32 %v1554, %v1620
        %v1653 = vadd.f32 %v1555, %v1621
        %v1654 = vadd.f32 %v1556, %v1622
        %v1655 = vadd.f32 %v1557, %v1623
        %v1656 = vld [vmem:[#allocation3 + $0xd] sm:$0x1]
        %v1657 = vld [vmem:[%s1068 + $0x6] sm:$0xff]
        %v1658 = vld [vmem:[%s1068 + $0xe] sm:$0xff]
        %v1659 = vld [vmem:[%s1068 + $0x1e] sm:$0xff]
        %v1660 = vld [vmem:[%s1068 + $0x26] sm:$0xff]
        %v1661 = vld [vmem:[%s1068 + $0x36] sm:$0xff]
        %v1662 = vld [vmem:[%s1068 + $0x3e] sm:$0xff]
        %v1663 = vld [vmem:[%s1068 + $0x4e] sm:$0xff]
        %v1664 = vld [vmem:[%s1068 + $0x56] sm:$0xff]
        %v1665 = vld [vmem:[%s1068 + $0x66] sm:$0xff]
        %v1666 = vld [vmem:[%s1068 + $0x6e] sm:$0xff]
        %v1667 = vld [vmem:[%s1068 + $0x7e] sm:$0xff]
        %v1668 = vld [vmem:[%s1068 + $0x86] sm:$0xff]
        %v1669 = vld [vmem:[%s1068 + $0x96] sm:$0xff]
        %v1670 = vld [vmem:[%s1068 + $0x9e] sm:$0xff]
        %v1671 = vld [vmem:[%s1068 + $0xae] sm:$0xff]
        %v1672 = vld [vmem:[%s1068 + $0xb6] sm:$0xff]
        %v1673 = vld [vmem:[%s1068 + $0xc6] sm:$0xff]
        %v1674 = vld [vmem:[%s1068 + $0xce] sm:$0xff]
        %v1675 = vld [vmem:[%s1068 + $0xde] sm:$0xff]
        %v1676 = vld [vmem:[%s1068 + $0xe6] sm:$0xff]
        %v1677 = vld [vmem:[%s1068 + $0xf6] sm:$0xff]
        %v1678 = vld [vmem:[%s1068 + $0xfe] sm:$0xff]
        %v1679 = vld [vmem:[%s1068 + $0x10e] sm:$0xff]
        %v1680 = vld [vmem:[%s1068 + $0x116] sm:$0xff]
        %v1681 = vld [vmem:[%s1068 + $0x126] sm:$0xff]
        %v1682 = vld [vmem:[%s1068 + $0x12e] sm:$0xff]
        %v1683 = vld [vmem:[%s1068 + $0x13e] sm:$0xff]
        %v1684 = vld [vmem:[%s1068 + $0x146] sm:$0xff]
        %v1685 = vld [vmem:[%s1068 + $0x156] sm:$0xff]
        %v1686 = vld [vmem:[%s1068 + $0x15e] sm:$0xff]
        %v1687 = vld [vmem:[%s1068 + $0x16e] sm:$0xff]
        %v1688 = vld [vmem:[%s1068 + $0x176] sm:$0xff]
        %v1689 = vperm.slane %v1656, 0
        %v1690 = vmul.f32 %v1657, %v1689
        %v1691 = vmul.f32 %v1658, %v1689
        %v1692 = vmul.f32 %v1659, %v1689
        %v1693 = vmul.f32 %v1660, %v1689
        %v1694 = vmul.f32 %v1661, %v1689
        %v1695 = vmul.f32 %v1662, %v1689
        %v1696 = vmul.f32 %v1663, %v1689
        %v1697 = vmul.f32 %v1664, %v1689
        %v1698 = vmul.f32 %v1665, %v1689
        %v1699 = vmul.f32 %v1666, %v1689
        %v1700 = vmul.f32 %v1667, %v1689
        %v1701 = vmul.f32 %v1668, %v1689
        %v1702 = vmul.f32 %v1669, %v1689
        %v1703 = vmul.f32 %v1670, %v1689
        %v1704 = vmul.f32 %v1671, %v1689
        %v1705 = vmul.f32 %v1672, %v1689
        %v1706 = vmul.f32 %v1673, %v1689
        %v1707 = vmul.f32 %v1674, %v1689
        %v1708 = vmul.f32 %v1675, %v1689
        %v1709 = vmul.f32 %v1676, %v1689
        %v1710 = vmul.f32 %v1677, %v1689
        %v1711 = vmul.f32 %v1678, %v1689
        %v1712 = vmul.f32 %v1679, %v1689
        %v1713 = vmul.f32 %v1680, %v1689
        %v1714 = vmul.f32 %v1681, %v1689
        %v1715 = vmul.f32 %v1682, %v1689
        %v1716 = vmul.f32 %v1683, %v1689
        %v1717 = vmul.f32 %v1684, %v1689
        %v1718 = vmul.f32 %v1685, %v1689
        %v1719 = vmul.f32 %v1686, %v1689
        %v1720 = vmul.f32 %v1687, %v1689
        %v1721 = vmul.f32 %v1688, %v1689
        %v1722 = vadd.f32 %v1624, %v1690
        %v1723 = vadd.f32 %v1625, %v1691
        %v1724 = vadd.f32 %v1626, %v1692
        %v1725 = vadd.f32 %v1627, %v1693
        %v1726 = vadd.f32 %v1628, %v1694
        %v1727 = vadd.f32 %v1629, %v1695
        %v1728 = vadd.f32 %v1630, %v1696
        %v1729 = vadd.f32 %v1631, %v1697
        %v1730 = vadd.f32 %v1632, %v1698
        %v1731 = vadd.f32 %v1633, %v1699
        %v1732 = vadd.f32 %v1634, %v1700
        %v1733 = vadd.f32 %v1635, %v1701
        %v1734 = vadd.f32 %v1636, %v1702
        %v1735 = vadd.f32 %v1637, %v1703
        %v1736 = vadd.f32 %v1638, %v1704
        %v1737 = vadd.f32 %v1639, %v1705
        %v1738 = vadd.f32 %v1640, %v1706
        %v1739 = vadd.f32 %v1641, %v1707
        %v1740 = vadd.f32 %v1642, %v1708
        %v1741 = vadd.f32 %v1643, %v1709
        %v1742 = vadd.f32 %v1644, %v1710
        %v1743 = vadd.f32 %v1645, %v1711
        %v1744 = vadd.f32 %v1646, %v1712
        %v1745 = vadd.f32 %v1647, %v1713
        %v1746 = vadd.f32 %v1648, %v1714
        %v1747 = vadd.f32 %v1649, %v1715
        %v1748 = vadd.f32 %v1650, %v1716
        %v1749 = vadd.f32 %v1651, %v1717
        %v1750 = vadd.f32 %v1652, %v1718
        %v1751 = vadd.f32 %v1653, %v1719
        %v1752 = vadd.f32 %v1654, %v1720
        %v1753 = vadd.f32 %v1655, %v1721
        %v1754 = vld [vmem:[#allocation3 + $0xe] sm:$0x1]
        %s1755 = scalar_lea.vmem [#allocation2], 48
        %v1756 = vld [vmem:[%s1755] sm:$0xff]
        %v1757 = vld [vmem:[%s1755 + $0x8] sm:$0xff]
        %v1758 = vld [vmem:[%s1755 + $0x18] sm:$0xff]
        %v1759 = vld [vmem:[%s1755 + $0x20] sm:$0xff]
        %v1760 = vld [vmem:[%s1755 + $0x30] sm:$0xff]
        %v1761 = vld [vmem:[%s1755 + $0x38] sm:$0xff]
        %v1762 = vld [vmem:[%s1755 + $0x48] sm:$0xff]
        %v1763 = vld [vmem:[%s1755 + $0x50] sm:$0xff]
        %v1764 = vld [vmem:[%s1755 + $0x60] sm:$0xff]
        %v1765 = vld [vmem:[%s1755 + $0x68] sm:$0xff]
        %v1766 = vld [vmem:[%s1755 + $0x78] sm:$0xff]
        %v1767 = vld [vmem:[%s1755 + $0x80] sm:$0xff]
        %v1768 = vld [vmem:[%s1755 + $0x90] sm:$0xff]
        %v1769 = vld [vmem:[%s1755 + $0x98] sm:$0xff]
        %v1770 = vld [vmem:[%s1755 + $0xa8] sm:$0xff]
        %v1771 = vld [vmem:[%s1755 + $0xb0] sm:$0xff]
        %v1772 = vld [vmem:[%s1755 + $0xc0] sm:$0xff]
        %v1773 = vld [vmem:[%s1755 + $0xc8] sm:$0xff]
        %v1774 = vld [vmem:[%s1755 + $0xd8] sm:$0xff]
        %v1775 = vld [vmem:[%s1755 + $0xe0] sm:$0xff]
        %v1776 = vld [vmem:[%s1755 + $0xf0] sm:$0xff]
        %v1777 = vld [vmem:[%s1755 + $0xf8] sm:$0xff]
        %v1778 = vld [vmem:[%s1755 + $0x108] sm:$0xff]
        %v1779 = vld [vmem:[%s1755 + $0x110] sm:$0xff]
        %v1780 = vld [vmem:[%s1755 + $0x120] sm:$0xff]
        %v1781 = vld [vmem:[%s1755 + $0x128] sm:$0xff]
        %v1782 = vld [vmem:[%s1755 + $0x138] sm:$0xff]
        %v1783 = vld [vmem:[%s1755 + $0x140] sm:$0xff]
        %v1784 = vld [vmem:[%s1755 + $0x150] sm:$0xff]
        %v1785 = vld [vmem:[%s1755 + $0x158] sm:$0xff]
        %v1786 = vld [vmem:[%s1755 + $0x168] sm:$0xff]
        %v1787 = vld [vmem:[%s1755 + $0x170] sm:$0xff]
        %v1788 = vperm.slane %v1754, 0
        %v1789 = vmul.f32 %v1756, %v1788
        %v1790 = vmul.f32 %v1757, %v1788
        %v1791 = vmul.f32 %v1758, %v1788
        %v1792 = vmul.f32 %v1759, %v1788
        %v1793 = vmul.f32 %v1760, %v1788
        %v1794 = vmul.f32 %v1761, %v1788
        %v1795 = vmul.f32 %v1762, %v1788
        %v1796 = vmul.f32 %v1763, %v1788
        %v1797 = vmul.f32 %v1764, %v1788
        %v1798 = vmul.f32 %v1765, %v1788
        %v1799 = vmul.f32 %v1766, %v1788
        %v1800 = vmul.f32 %v1767, %v1788
        %v1801 = vmul.f32 %v1768, %v1788
        %v1802 = vmul.f32 %v1769, %v1788
        %v1803 = vmul.f32 %v1770, %v1788
        %v1804 = vmul.f32 %v1771, %v1788
        %v1805 = vmul.f32 %v1772, %v1788
        %v1806 = vmul.f32 %v1773, %v1788
        %v1807 = vmul.f32 %v1774, %v1788
        %v1808 = vmul.f32 %v1775, %v1788
        %v1809 = vmul.f32 %v1776, %v1788
        %v1810 = vmul.f32 %v1777, %v1788
        %v1811 = vmul.f32 %v1778, %v1788
        %v1812 = vmul.f32 %v1779, %v1788
        %v1813 = vmul.f32 %v1780, %v1788
        %v1814 = vmul.f32 %v1781, %v1788
        %v1815 = vmul.f32 %v1782, %v1788
        %v1816 = vmul.f32 %v1783, %v1788
        %v1817 = vmul.f32 %v1784, %v1788
        %v1818 = vmul.f32 %v1785, %v1788
        %v1819 = vmul.f32 %v1786, %v1788
        %v1820 = vmul.f32 %v1787, %v1788
        %v1821 = vadd.f32 %v1722, %v1789
        %v1822 = vadd.f32 %v1723, %v1790
        %v1823 = vadd.f32 %v1724, %v1791
        %v1824 = vadd.f32 %v1725, %v1792
        %v1825 = vadd.f32 %v1726, %v1793
        %v1826 = vadd.f32 %v1727, %v1794
        %v1827 = vadd.f32 %v1728, %v1795
        %v1828 = vadd.f32 %v1729, %v1796
        %v1829 = vadd.f32 %v1730, %v1797
        %v1830 = vadd.f32 %v1731, %v1798
        %v1831 = vadd.f32 %v1732, %v1799
        %v1832 = vadd.f32 %v1733, %v1800
        %v1833 = vadd.f32 %v1734, %v1801
        %v1834 = vadd.f32 %v1735, %v1802
        %v1835 = vadd.f32 %v1736, %v1803
        %v1836 = vadd.f32 %v1737, %v1804
        %v1837 = vadd.f32 %v1738, %v1805
        %v1838 = vadd.f32 %v1739, %v1806
        %v1839 = vadd.f32 %v1740, %v1807
        %v1840 = vadd.f32 %v1741, %v1808
        %v1841 = vadd.f32 %v1742, %v1809
        %v1842 = vadd.f32 %v1743, %v1810
        %v1843 = vadd.f32 %v1744, %v1811
        %v1844 = vadd.f32 %v1745, %v1812
        %v1845 = vadd.f32 %v1746, %v1813
        %v1846 = vadd.f32 %v1747, %v1814
        %v1847 = vadd.f32 %v1748, %v1815
        %v1848 = vadd.f32 %v1749, %v1816
        %v1849 = vadd.f32 %v1750, %v1817
        %v1850 = vadd.f32 %v1751, %v1818
        %v1851 = vadd.f32 %v1752, %v1819
        %v1852 = vadd.f32 %v1753, %v1820
        %v1853 = vld [vmem:[#allocation3 + $0xf] sm:$0x1]
        %v1854 = vld [vmem:[%s1755 + $0x1] sm:$0xff]
        %v1855 = vld [vmem:[%s1755 + $0x9] sm:$0xff]
        %v1856 = vld [vmem:[%s1755 + $0x19] sm:$0xff]
        %v1857 = vld [vmem:[%s1755 + $0x21] sm:$0xff]
        %v1858 = vld [vmem:[%s1755 + $0x31] sm:$0xff]
        %v1859 = vld [vmem:[%s1755 + $0x39] sm:$0xff]
        %v1860 = vld [vmem:[%s1755 + $0x49] sm:$0xff]
        %v1861 = vld [vmem:[%s1755 + $0x51] sm:$0xff]
        %v1862 = vld [vmem:[%s1755 + $0x61] sm:$0xff]
        %v1863 = vld [vmem:[%s1755 + $0x69] sm:$0xff]
        %v1864 = vld [vmem:[%s1755 + $0x79] sm:$0xff]
        %v1865 = vld [vmem:[%s1755 + $0x81] sm:$0xff]
        %v1866 = vld [vmem:[%s1755 + $0x91] sm:$0xff]
        %v1867 = vld [vmem:[%s1755 + $0x99] sm:$0xff]
        %v1868 = vld [vmem:[%s1755 + $0xa9] sm:$0xff]
        %v1869 = vld [vmem:[%s1755 + $0xb1] sm:$0xff]
        %v1870 = vld [vmem:[%s1755 + $0xc1] sm:$0xff]
        %v1871 = vld [vmem:[%s1755 + $0xc9] sm:$0xff]
        %v1872 = vld [vmem:[%s1755 + $0xd9] sm:$0xff]
        %v1873 = vld [vmem:[%s1755 + $0xe1] sm:$0xff]
        %v1874 = vld [vmem:[%s1755 + $0xf1] sm:$0xff]
        %v1875 = vld [vmem:[%s1755 + $0xf9] sm:$0xff]
        %v1876 = vld [vmem:[%s1755 + $0x109] sm:$0xff]
        %v1877 = vld [vmem:[%s1755 + $0x111] sm:$0xff]
        %v1878 = vld [vmem:[%s1755 + $0x121] sm:$0xff]
        %v1879 = vld [vmem:[%s1755 + $0x129] sm:$0xff]
        %v1880 = vld [vmem:[%s1755 + $0x139] sm:$0xff]
        %v1881 = vld [vmem:[%s1755 + $0x141] sm:$0xff]
        %v1882 = vld [vmem:[%s1755 + $0x151] sm:$0xff]
        %v1883 = vld [vmem:[%s1755 + $0x159] sm:$0xff]
        %v1884 = vld [vmem:[%s1755 + $0x169] sm:$0xff]
        %v1885 = vld [vmem:[%s1755 + $0x171] sm:$0xff]
        %v1886 = vperm.slane %v1853, 0
        %v1887 = vmul.f32 %v1854, %v1886
        %v1888 = vmul.f32 %v1855, %v1886
        %v1889 = vmul.f32 %v1856, %v1886
        %v1890 = vmul.f32 %v1857, %v1886
        %v1891 = vmul.f32 %v1858, %v1886
        %v1892 = vmul.f32 %v1859, %v1886
        %v1893 = vmul.f32 %v1860, %v1886
        %v1894 = vmul.f32 %v1861, %v1886
        %v1895 = vmul.f32 %v1862, %v1886
        %v1896 = vmul.f32 %v1863, %v1886
        %v1897 = vmul.f32 %v1864, %v1886
        %v1898 = vmul.f32 %v1865, %v1886
        %v1899 = vmul.f32 %v1866, %v1886
        %v1900 = vmul.f32 %v1867, %v1886
        %v1901 = vmul.f32 %v1868, %v1886
        %v1902 = vmul.f32 %v1869, %v1886
        %v1903 = vmul.f32 %v1870, %v1886
        %v1904 = vmul.f32 %v1871, %v1886
        %v1905 = vmul.f32 %v1872, %v1886
        %v1906 = vmul.f32 %v1873, %v1886
        %v1907 = vmul.f32 %v1874, %v1886
        %v1908 = vmul.f32 %v1875, %v1886
        %v1909 = vmul.f32 %v1876, %v1886
        %v1910 = vmul.f32 %v1877, %v1886
        %v1911 = vmul.f32 %v1878, %v1886
        %v1912 = vmul.f32 %v1879, %v1886
        %v1913 = vmul.f32 %v1880, %v1886
        %v1914 = vmul.f32 %v1881, %v1886
        %v1915 = vmul.f32 %v1882, %v1886
        %v1916 = vmul.f32 %v1883, %v1886
        %v1917 = vmul.f32 %v1884, %v1886
        %v1918 = vmul.f32 %v1885, %v1886
        %v1919 = vadd.f32 %v1821, %v1887
        %v1920 = vadd.f32 %v1822, %v1888
        %v1921 = vadd.f32 %v1823, %v1889
        %v1922 = vadd.f32 %v1824, %v1890
        %v1923 = vadd.f32 %v1825, %v1891
        %v1924 = vadd.f32 %v1826, %v1892
        %v1925 = vadd.f32 %v1827, %v1893
        %v1926 = vadd.f32 %v1828, %v1894
        %v1927 = vadd.f32 %v1829, %v1895
        %v1928 = vadd.f32 %v1830, %v1896
        %v1929 = vadd.f32 %v1831, %v1897
        %v1930 = vadd.f32 %v1832, %v1898
        %v1931 = vadd.f32 %v1833, %v1899
        %v1932 = vadd.f32 %v1834, %v1900
        %v1933 = vadd.f32 %v1835, %v1901
        %v1934 = vadd.f32 %v1836, %v1902
        %v1935 = vadd.f32 %v1837, %v1903
        %v1936 = vadd.f32 %v1838, %v1904
        %v1937 = vadd.f32 %v1839, %v1905
        %v1938 = vadd.f32 %v1840, %v1906
        %v1939 = vadd.f32 %v1841, %v1907
        %v1940 = vadd.f32 %v1842, %v1908
        %v1941 = vadd.f32 %v1843, %v1909
        %v1942 = vadd.f32 %v1844, %v1910
        %v1943 = vadd.f32 %v1845, %v1911
        %v1944 = vadd.f32 %v1846, %v1912
        %v1945 = vadd.f32 %v1847, %v1913
        %v1946 = vadd.f32 %v1848, %v1914
        %v1947 = vadd.f32 %v1849, %v1915
        %v1948 = vadd.f32 %v1850, %v1916
        %v1949 = vadd.f32 %v1851, %v1917
        %v1950 = vadd.f32 %v1852, %v1918
        %v1951 = vld [vmem:[#allocation3 + $0x10] sm:$0x1]
        %v1952 = vld [vmem:[%s1755 + $0x2] sm:$0xff]
        %v1953 = vld [vmem:[%s1755 + $0xa] sm:$0xff]
        %v1954 = vld [vmem:[%s1755 + $0x1a] sm:$0xff]
        %v1955 = vld [vmem:[%s1755 + $0x22] sm:$0xff]
        %v1956 = vld [vmem:[%s1755 + $0x32] sm:$0xff]
        %v1957 = vld [vmem:[%s1755 + $0x3a] sm:$0xff]
        %v1958 = vld [vmem:[%s1755 + $0x4a] sm:$0xff]
        %v1959 = vld [vmem:[%s1755 + $0x52] sm:$0xff]
        %v1960 = vld [vmem:[%s1755 + $0x62] sm:$0xff]
        %v1961 = vld [vmem:[%s1755 + $0x6a] sm:$0xff]
        %v1962 = vld [vmem:[%s1755 + $0x7a] sm:$0xff]
        %v1963 = vld [vmem:[%s1755 + $0x82] sm:$0xff]
        %v1964 = vld [vmem:[%s1755 + $0x92] sm:$0xff]
        %v1965 = vld [vmem:[%s1755 + $0x9a] sm:$0xff]
        %v1966 = vld [vmem:[%s1755 + $0xaa] sm:$0xff]
        %v1967 = vld [vmem:[%s1755 + $0xb2] sm:$0xff]
        %v1968 = vld [vmem:[%s1755 + $0xc2] sm:$0xff]
        %v1969 = vld [vmem:[%s1755 + $0xca] sm:$0xff]
        %v1970 = vld [vmem:[%s1755 + $0xda] sm:$0xff]
        %v1971 = vld [vmem:[%s1755 + $0xe2] sm:$0xff]
        %v1972 = vld [vmem:[%s1755 + $0xf2] sm:$0xff]
        %v1973 = vld [vmem:[%s1755 + $0xfa] sm:$0xff]
        %v1974 = vld [vmem:[%s1755 + $0x10a] sm:$0xff]
        %v1975 = vld [vmem:[%s1755 + $0x112] sm:$0xff]
        %v1976 = vld [vmem:[%s1755 + $0x122] sm:$0xff]
        %v1977 = vld [vmem:[%s1755 + $0x12a] sm:$0xff]
        %v1978 = vld [vmem:[%s1755 + $0x13a] sm:$0xff]
        %v1979 = vld [vmem:[%s1755 + $0x142] sm:$0xff]
        %v1980 = vld [vmem:[%s1755 + $0x152] sm:$0xff]
        %v1981 = vld [vmem:[%s1755 + $0x15a] sm:$0xff]
        %v1982 = vld [vmem:[%s1755 + $0x16a] sm:$0xff]
        %v1983 = vld [vmem:[%s1755 + $0x172] sm:$0xff]
        %v1984 = vperm.slane %v1951, 0
        %v1985 = vmul.f32 %v1952, %v1984
        %v1986 = vmul.f32 %v1953, %v1984
        %v1987 = vmul.f32 %v1954, %v1984
        %v1988 = vmul.f32 %v1955, %v1984
        %v1989 = vmul.f32 %v1956, %v1984
        %v1990 = vmul.f32 %v1957, %v1984
        %v1991 = vmul.f32 %v1958, %v1984
        %v1992 = vmul.f32 %v1959, %v1984
        %v1993 = vmul.f32 %v1960, %v1984
        %v1994 = vmul.f32 %v1961, %v1984
        %v1995 = vmul.f32 %v1962, %v1984
        %v1996 = vmul.f32 %v1963, %v1984
        %v1997 = vmul.f32 %v1964, %v1984
        %v1998 = vmul.f32 %v1965, %v1984
        %v1999 = vmul.f32 %v1966, %v1984
        %v2000 = vmul.f32 %v1967, %v1984
        %v2001 = vmul.f32 %v1968, %v1984
        %v2002 = vmul.f32 %v1969, %v1984
        %v2003 = vmul.f32 %v1970, %v1984
        %v2004 = vmul.f32 %v1971, %v1984
        %v2005 = vmul.f32 %v1972, %v1984
        %v2006 = vmul.f32 %v1973, %v1984
        %v2007 = vmul.f32 %v1974, %v1984
        %v2008 = vmul.f32 %v1975, %v1984
        %v2009 = vmul.f32 %v1976, %v1984
        %v2010 = vmul.f32 %v1977, %v1984
        %v2011 = vmul.f32 %v1978, %v1984
        %v2012 = vmul.f32 %v1979, %v1984
        %v2013 = vmul.f32 %v1980, %v1984
        %v2014 = vmul.f32 %v1981, %v1984
        %v2015 = vmul.f32 %v1982, %v1984
        %v2016 = vmul.f32 %v1983, %v1984
        %v2017 = vadd.f32 %v1919, %v1985
        %v2018 = vadd.f32 %v1920, %v1986
        %v2019 = vadd.f32 %v1921, %v1987
        %v2020 = vadd.f32 %v1922, %v1988
        %v2021 = vadd.f32 %v1923, %v1989
        %v2022 = vadd.f32 %v1924, %v1990
        %v2023 = vadd.f32 %v1925, %v1991
        %v2024 = vadd.f32 %v1926, %v1992
        %v2025 = vadd.f32 %v1927, %v1993
        %v2026 = vadd.f32 %v1928, %v1994
        %v2027 = vadd.f32 %v1929, %v1995
        %v2028 = vadd.f32 %v1930, %v1996
        %v2029 = vadd.f32 %v1931, %v1997
        %v2030 = vadd.f32 %v1932, %v1998
        %v2031 = vadd.f32 %v1933, %v1999
        %v2032 = vadd.f32 %v1934, %v2000
        %v2033 = vadd.f32 %v1935, %v2001
        %v2034 = vadd.f32 %v1936, %v2002
        %v2035 = vadd.f32 %v1937, %v2003
        %v2036 = vadd.f32 %v1938, %v2004
        %v2037 = vadd.f32 %v1939, %v2005
        %v2038 = vadd.f32 %v1940, %v2006
        %v2039 = vadd.f32 %v1941, %v2007
        %v2040 = vadd.f32 %v1942, %v2008
        %v2041 = vadd.f32 %v1943, %v2009
        %v2042 = vadd.f32 %v1944, %v2010
        %v2043 = vadd.f32 %v1945, %v2011
        %v2044 = vadd.f32 %v1946, %v2012
        %v2045 = vadd.f32 %v1947, %v2013
        %v2046 = vadd.f32 %v1948, %v2014
        %v2047 = vadd.f32 %v1949, %v2015
        %v2048 = vadd.f32 %v1950, %v2016
        %v2049 = vld [vmem:[#allocation3 + $0x11] sm:$0x1]
        %v2050 = vld [vmem:[%s1755 + $0x3] sm:$0xff]
        %v2051 = vld [vmem:[%s1755 + $0xb] sm:$0xff]
        %v2052 = vld [vmem:[%s1755 + $0x1b] sm:$0xff]
        %v2053 = vld [vmem:[%s1755 + $0x23] sm:$0xff]
        %v2054 = vld [vmem:[%s1755 + $0x33] sm:$0xff]
        %v2055 = vld [vmem:[%s1755 + $0x3b] sm:$0xff]
        %v2056 = vld [vmem:[%s1755 + $0x4b] sm:$0xff]
        %v2057 = vld [vmem:[%s1755 + $0x53] sm:$0xff]
        %v2058 = vld [vmem:[%s1755 + $0x63] sm:$0xff]
        %v2059 = vld [vmem:[%s1755 + $0x6b] sm:$0xff]
        %v2060 = vld [vmem:[%s1755 + $0x7b] sm:$0xff]
        %v2061 = vld [vmem:[%s1755 + $0x83] sm:$0xff]
        %v2062 = vld [vmem:[%s1755 + $0x93] sm:$0xff]
        %v2063 = vld [vmem:[%s1755 + $0x9b] sm:$0xff]
        %v2064 = vld [vmem:[%s1755 + $0xab] sm:$0xff]
        %v2065 = vld [vmem:[%s1755 + $0xb3] sm:$0xff]
        %v2066 = vld [vmem:[%s1755 + $0xc3] sm:$0xff]
        %v2067 = vld [vmem:[%s1755 + $0xcb] sm:$0xff]
        %v2068 = vld [vmem:[%s1755 + $0xdb] sm:$0xff]
        %v2069 = vld [vmem:[%s1755 + $0xe3] sm:$0xff]
        %v2070 = vld [vmem:[%s1755 + $0xf3] sm:$0xff]
        %v2071 = vld [vmem:[%s1755 + $0xfb] sm:$0xff]
        %v2072 = vld [vmem:[%s1755 + $0x10b] sm:$0xff]
        %v2073 = vld [vmem:[%s1755 + $0x113] sm:$0xff]
        %v2074 = vld [vmem:[%s1755 + $0x123] sm:$0xff]
        %v2075 = vld [vmem:[%s1755 + $0x12b] sm:$0xff]
        %v2076 = vld [vmem:[%s1755 + $0x13b] sm:$0xff]
        %v2077 = vld [vmem:[%s1755 + $0x143] sm:$0xff]
        %v2078 = vld [vmem:[%s1755 + $0x153] sm:$0xff]
        %v2079 = vld [vmem:[%s1755 + $0x15b] sm:$0xff]
        %v2080 = vld [vmem:[%s1755 + $0x16b] sm:$0xff]
        %v2081 = vld [vmem:[%s1755 + $0x173] sm:$0xff]
        %v2082 = vperm.slane %v2049, 0
        %v2083 = vmul.f32 %v2050, %v2082
        %v2084 = vmul.f32 %v2051, %v2082
        %v2085 = vmul.f32 %v2052, %v2082
        %v2086 = vmul.f32 %v2053, %v2082
        %v2087 = vmul.f32 %v2054, %v2082
        %v2088 = vmul.f32 %v2055, %v2082
        %v2089 = vmul.f32 %v2056, %v2082
        %v2090 = vmul.f32 %v2057, %v2082
        %v2091 = vmul.f32 %v2058, %v2082
        %v2092 = vmul.f32 %v2059, %v2082
        %v2093 = vmul.f32 %v2060, %v2082
        %v2094 = vmul.f32 %v2061, %v2082
        %v2095 = vmul.f32 %v2062, %v2082
        %v2096 = vmul.f32 %v2063, %v2082
        %v2097 = vmul.f32 %v2064, %v2082
        %v2098 = vmul.f32 %v2065, %v2082
        %v2099 = vmul.f32 %v2066, %v2082
        %v2100 = vmul.f32 %v2067, %v2082
        %v2101 = vmul.f32 %v2068, %v2082
        %v2102 = vmul.f32 %v2069, %v2082
        %v2103 = vmul.f32 %v2070, %v2082
        %v2104 = vmul.f32 %v2071, %v2082
        %v2105 = vmul.f32 %v2072, %v2082
        %v2106 = vmul.f32 %v2073, %v2082
        %v2107 = vmul.f32 %v2074, %v2082
        %v2108 = vmul.f32 %v2075, %v2082
        %v2109 = vmul.f32 %v2076, %v2082
        %v2110 = vmul.f32 %v2077, %v2082
        %v2111 = vmul.f32 %v2078, %v2082
        %v2112 = vmul.f32 %v2079, %v2082
        %v2113 = vmul.f32 %v2080, %v2082
        %v2114 = vmul.f32 %v2081, %v2082
        %v2115 = vadd.f32 %v2017, %v2083
        %v2116 = vadd.f32 %v2018, %v2084
        %v2117 = vadd.f32 %v2019, %v2085
        %v2118 = vadd.f32 %v2020, %v2086
        %v2119 = vadd.f32 %v2021, %v2087
        %v2120 = vadd.f32 %v2022, %v2088
        %v2121 = vadd.f32 %v2023, %v2089
        %v2122 = vadd.f32 %v2024, %v2090
        %v2123 = vadd.f32 %v2025, %v2091
        %v2124 = vadd.f32 %v2026, %v2092
        %v2125 = vadd.f32 %v2027, %v2093
        %v2126 = vadd.f32 %v2028, %v2094
        %v2127 = vadd.f32 %v2029, %v2095
        %v2128 = vadd.f32 %v2030, %v2096
        %v2129 = vadd.f32 %v2031, %v2097
        %v2130 = vadd.f32 %v2032, %v2098
        %v2131 = vadd.f32 %v2033, %v2099
        %v2132 = vadd.f32 %v2034, %v2100
        %v2133 = vadd.f32 %v2035, %v2101
        %v2134 = vadd.f32 %v2036, %v2102
        %v2135 = vadd.f32 %v2037, %v2103
        %v2136 = vadd.f32 %v2038, %v2104
        %v2137 = vadd.f32 %v2039, %v2105
        %v2138 = vadd.f32 %v2040, %v2106
        %v2139 = vadd.f32 %v2041, %v2107
        %v2140 = vadd.f32 %v2042, %v2108
        %v2141 = vadd.f32 %v2043, %v2109
        %v2142 = vadd.f32 %v2044, %v2110
        %v2143 = vadd.f32 %v2045, %v2111
        %v2144 = vadd.f32 %v2046, %v2112
        %v2145 = vadd.f32 %v2047, %v2113
        %v2146 = vadd.f32 %v2048, %v2114
        %v2147 = vld [vmem:[#allocation3 + $0x12] sm:$0x1]
        %v2148 = vld [vmem:[%s1755 + $0x4] sm:$0xff]
        %v2149 = vld [vmem:[%s1755 + $0xc] sm:$0xff]
        %v2150 = vld [vmem:[%s1755 + $0x1c] sm:$0xff]
        %v2151 = vld [vmem:[%s1755 + $0x24] sm:$0xff]
        %v2152 = vld [vmem:[%s1755 + $0x34] sm:$0xff]
        %v2153 = vld [vmem:[%s1755 + $0x3c] sm:$0xff]
        %v2154 = vld [vmem:[%s1755 + $0x4c] sm:$0xff]
        %v2155 = vld [vmem:[%s1755 + $0x54] sm:$0xff]
        %v2156 = vld [vmem:[%s1755 + $0x64] sm:$0xff]
        %v2157 = vld [vmem:[%s1755 + $0x6c] sm:$0xff]
        %v2158 = vld [vmem:[%s1755 + $0x7c] sm:$0xff]
        %v2159 = vld [vmem:[%s1755 + $0x84] sm:$0xff]
        %v2160 = vld [vmem:[%s1755 + $0x94] sm:$0xff]
        %v2161 = vld [vmem:[%s1755 + $0x9c] sm:$0xff]
        %v2162 = vld [vmem:[%s1755 + $0xac] sm:$0xff]
        %v2163 = vld [vmem:[%s1755 + $0xb4] sm:$0xff]
        %v2164 = vld [vmem:[%s1755 + $0xc4] sm:$0xff]
        %v2165 = vld [vmem:[%s1755 + $0xcc] sm:$0xff]
        %v2166 = vld [vmem:[%s1755 + $0xdc] sm:$0xff]
        %v2167 = vld [vmem:[%s1755 + $0xe4] sm:$0xff]
        %v2168 = vld [vmem:[%s1755 + $0xf4] sm:$0xff]
        %v2169 = vld [vmem:[%s1755 + $0xfc] sm:$0xff]
        %v2170 = vld [vmem:[%s1755 + $0x10c] sm:$0xff]
        %v2171 = vld [vmem:[%s1755 + $0x114] sm:$0xff]
        %v2172 = vld [vmem:[%s1755 + $0x124] sm:$0xff]
        %v2173 = vld [vmem:[%s1755 + $0x12c] sm:$0xff]
        %v2174 = vld [vmem:[%s1755 + $0x13c] sm:$0xff]
        %v2175 = vld [vmem:[%s1755 + $0x144] sm:$0xff]
        %v2176 = vld [vmem:[%s1755 + $0x154] sm:$0xff]
        %v2177 = vld [vmem:[%s1755 + $0x15c] sm:$0xff]
        %v2178 = vld [vmem:[%s1755 + $0x16c] sm:$0xff]
        %v2179 = vld [vmem:[%s1755 + $0x174] sm:$0xff]
        %v2180 = vperm.slane %v2147, 0
        %v2181 = vmul.f32 %v2148, %v2180
        %v2182 = vmul.f32 %v2149, %v2180
        %v2183 = vmul.f32 %v2150, %v2180
        %v2184 = vmul.f32 %v2151, %v2180
        %v2185 = vmul.f32 %v2152, %v2180
        %v2186 = vmul.f32 %v2153, %v2180
        %v2187 = vmul.f32 %v2154, %v2180
        %v2188 = vmul.f32 %v2155, %v2180
        %v2189 = vmul.f32 %v2156, %v2180
        %v2190 = vmul.f32 %v2157, %v2180
        %v2191 = vmul.f32 %v2158, %v2180
        %v2192 = vmul.f32 %v2159, %v2180
        %v2193 = vmul.f32 %v2160, %v2180
        %v2194 = vmul.f32 %v2161, %v2180
        %v2195 = vmul.f32 %v2162, %v2180
        %v2196 = vmul.f32 %v2163, %v2180
        %v2197 = vmul.f32 %v2164, %v2180
        %v2198 = vmul.f32 %v2165, %v2180
        %v2199 = vmul.f32 %v2166, %v2180
        %v2200 = vmul.f32 %v2167, %v2180
        %v2201 = vmul.f32 %v2168, %v2180
        %v2202 = vmul.f32 %v2169, %v2180
        %v2203 = vmul.f32 %v2170, %v2180
        %v2204 = vmul.f32 %v2171, %v2180
        %v2205 = vmul.f32 %v2172, %v2180
        %v2206 = vmul.f32 %v2173, %v2180
        %v2207 = vmul.f32 %v2174, %v2180
        %v2208 = vmul.f32 %v2175, %v2180
        %v2209 = vmul.f32 %v2176, %v2180
        %v2210 = vmul.f32 %v2177, %v2180
        %v2211 = vmul.f32 %v2178, %v2180
        %v2212 = vmul.f32 %v2179, %v2180
        %v2213 = vadd.f32 %v2115, %v2181
        %v2214 = vadd.f32 %v2116, %v2182
        %v2215 = vadd.f32 %v2117, %v2183
        %v2216 = vadd.f32 %v2118, %v2184
        %v2217 = vadd.f32 %v2119, %v2185
        %v2218 = vadd.f32 %v2120, %v2186
        %v2219 = vadd.f32 %v2121, %v2187
        %v2220 = vadd.f32 %v2122, %v2188
        %v2221 = vadd.f32 %v2123, %v2189
        %v2222 = vadd.f32 %v2124, %v2190
        %v2223 = vadd.f32 %v2125, %v2191
        %v2224 = vadd.f32 %v2126, %v2192
        %v2225 = vadd.f32 %v2127, %v2193
        %v2226 = vadd.f32 %v2128, %v2194
        %v2227 = vadd.f32 %v2129, %v2195
        %v2228 = vadd.f32 %v2130, %v2196
        %v2229 = vadd.f32 %v2131, %v2197
        %v2230 = vadd.f32 %v2132, %v2198
        %v2231 = vadd.f32 %v2133, %v2199
        %v2232 = vadd.f32 %v2134, %v2200
        %v2233 = vadd.f32 %v2135, %v2201
        %v2234 = vadd.f32 %v2136, %v2202
        %v2235 = vadd.f32 %v2137, %v2203
        %v2236 = vadd.f32 %v2138, %v2204
        %v2237 = vadd.f32 %v2139, %v2205
        %v2238 = vadd.f32 %v2140, %v2206
        %v2239 = vadd.f32 %v2141, %v2207
        %v2240 = vadd.f32 %v2142, %v2208
        %v2241 = vadd.f32 %v2143, %v2209
        %v2242 = vadd.f32 %v2144, %v2210
        %v2243 = vadd.f32 %v2145, %v2211
        %v2244 = vadd.f32 %v2146, %v2212
        %v2245 = vld [vmem:[#allocation3 + $0x13] sm:$0x1]
        %v2246 = vld [vmem:[%s1755 + $0x5] sm:$0xff]
        %v2247 = vld [vmem:[%s1755 + $0xd] sm:$0xff]
        %v2248 = vld [vmem:[%s1755 + $0x1d] sm:$0xff]
        %v2249 = vld [vmem:[%s1755 + $0x25] sm:$0xff]
        %v2250 = vld [vmem:[%s1755 + $0x35] sm:$0xff]
        %v2251 = vld [vmem:[%s1755 + $0x3d] sm:$0xff]
        %v2252 = vld [vmem:[%s1755 + $0x4d] sm:$0xff]
        %v2253 = vld [vmem:[%s1755 + $0x55] sm:$0xff]
        %v2254 = vld [vmem:[%s1755 + $0x65] sm:$0xff]
        %v2255 = vld [vmem:[%s1755 + $0x6d] sm:$0xff]
        %v2256 = vld [vmem:[%s1755 + $0x7d] sm:$0xff]
        %v2257 = vld [vmem:[%s1755 + $0x85] sm:$0xff]
        %v2258 = vld [vmem:[%s1755 + $0x95] sm:$0xff]
        %v2259 = vld [vmem:[%s1755 + $0x9d] sm:$0xff]
        %v2260 = vld [vmem:[%s1755 + $0xad] sm:$0xff]
        %v2261 = vld [vmem:[%s1755 + $0xb5] sm:$0xff]
        %v2262 = vld [vmem:[%s1755 + $0xc5] sm:$0xff]
        %v2263 = vld [vmem:[%s1755 + $0xcd] sm:$0xff]
        %v2264 = vld [vmem:[%s1755 + $0xdd] sm:$0xff]
        %v2265 = vld [vmem:[%s1755 + $0xe5] sm:$0xff]
        %v2266 = vld [vmem:[%s1755 + $0xf5] sm:$0xff]
        %v2267 = vld [vmem:[%s1755 + $0xfd] sm:$0xff]
        %v2268 = vld [vmem:[%s1755 + $0x10d] sm:$0xff]
        %v2269 = vld [vmem:[%s1755 + $0x115] sm:$0xff]
        %v2270 = vld [vmem:[%s1755 + $0x125] sm:$0xff]
        %v2271 = vld [vmem:[%s1755 + $0x12d] sm:$0xff]
        %v2272 = vld [vmem:[%s1755 + $0x13d] sm:$0xff]
        %v2273 = vld [vmem:[%s1755 + $0x145] sm:$0xff]
        %v2274 = vld [vmem:[%s1755 + $0x155] sm:$0xff]
        %v2275 = vld [vmem:[%s1755 + $0x15d] sm:$0xff]
        %v2276 = vld [vmem:[%s1755 + $0x16d] sm:$0xff]
        %v2277 = vld [vmem:[%s1755 + $0x175] sm:$0xff]
        %v2278 = vperm.slane %v2245, 0
        %v2279 = vmul.f32 %v2246, %v2278
        %v2280 = vmul.f32 %v2247, %v2278
        %v2281 = vmul.f32 %v2248, %v2278
        %v2282 = vmul.f32 %v2249, %v2278
        %v2283 = vmul.f32 %v2250, %v2278
        %v2284 = vmul.f32 %v2251, %v2278
        %v2285 = vmul.f32 %v2252, %v2278
        %v2286 = vmul.f32 %v2253, %v2278
        %v2287 = vmul.f32 %v2254, %v2278
        %v2288 = vmul.f32 %v2255, %v2278
        %v2289 = vmul.f32 %v2256, %v2278
        %v2290 = vmul.f32 %v2257, %v2278
        %v2291 = vmul.f32 %v2258, %v2278
        %v2292 = vmul.f32 %v2259, %v2278
        %v2293 = vmul.f32 %v2260, %v2278
        %v2294 = vmul.f32 %v2261, %v2278
        %v2295 = vmul.f32 %v2262, %v2278
        %v2296 = vmul.f32 %v2263, %v2278
        %v2297 = vmul.f32 %v2264, %v2278
        %v2298 = vmul.f32 %v2265, %v2278
        %v2299 = vmul.f32 %v2266, %v2278
        %v2300 = vmul.f32 %v2267, %v2278
        %v2301 = vmul.f32 %v2268, %v2278
        %v2302 = vmul.f32 %v2269, %v2278
        %v2303 = vmul.f32 %v2270, %v2278
        %v2304 = vmul.f32 %v2271, %v2278
        %v2305 = vmul.f32 %v2272, %v2278
        %v2306 = vmul.f32 %v2273, %v2278
        %v2307 = vmul.f32 %v2274, %v2278
        %v2308 = vmul.f32 %v2275, %v2278
        %v2309 = vmul.f32 %v2276, %v2278
        %v2310 = vmul.f32 %v2277, %v2278
        %v2311 = vadd.f32 %v2213, %v2279
        %v2312 = vadd.f32 %v2214, %v2280
        %v2313 = vadd.f32 %v2215, %v2281
        %v2314 = vadd.f32 %v2216, %v2282
        %v2315 = vadd.f32 %v2217, %v2283
        %v2316 = vadd.f32 %v2218, %v2284
        %v2317 = vadd.f32 %v2219, %v2285
        %v2318 = vadd.f32 %v2220, %v2286
        %v2319 = vadd.f32 %v2221, %v2287
        %v2320 = vadd.f32 %v2222, %v2288
        %v2321 = vadd.f32 %v2223, %v2289
        %v2322 = vadd.f32 %v2224, %v2290
        %v2323 = vadd.f32 %v2225, %v2291
        %v2324 = vadd.f32 %v2226, %v2292
        %v2325 = vadd.f32 %v2227, %v2293
        %v2326 = vadd.f32 %v2228, %v2294
        %v2327 = vadd.f32 %v2229, %v2295
        %v2328 = vadd.f32 %v2230, %v2296
        %v2329 = vadd.f32 %v2231, %v2297
        %v2330 = vadd.f32 %v2232, %v2298
        %v2331 = vadd.f32 %v2233, %v2299
        %v2332 = vadd.f32 %v2234, %v2300
        %v2333 = vadd.f32 %v2235, %v2301
        %v2334 = vadd.f32 %v2236, %v2302
        %v2335 = vadd.f32 %v2237, %v2303
        %v2336 = vadd.f32 %v2238, %v2304
        %v2337 = vadd.f32 %v2239, %v2305
        %v2338 = vadd.f32 %v2240, %v2306
        %v2339 = vadd.f32 %v2241, %v2307
        %v2340 = vadd.f32 %v2242, %v2308
        %v2341 = vadd.f32 %v2243, %v2309
        %v2342 = vadd.f32 %v2244, %v2310
        %v2343 = vld [vmem:[#allocation3 + $0x14] sm:$0x1]
        %v2344 = vld [vmem:[%s1755 + $0x6] sm:$0xff]
        %v2345 = vld [vmem:[%s1755 + $0xe] sm:$0xff]
        %v2346 = vld [vmem:[%s1755 + $0x1e] sm:$0xff]
        %v2347 = vld [vmem:[%s1755 + $0x26] sm:$0xff]
        %v2348 = vld [vmem:[%s1755 + $0x36] sm:$0xff]
        %v2349 = vld [vmem:[%s1755 + $0x3e] sm:$0xff]
        %v2350 = vld [vmem:[%s1755 + $0x4e] sm:$0xff]
        %v2351 = vld [vmem:[%s1755 + $0x56] sm:$0xff]
        %v2352 = vld [vmem:[%s1755 + $0x66] sm:$0xff]
        %v2353 = vld [vmem:[%s1755 + $0x6e] sm:$0xff]
        %v2354 = vld [vmem:[%s1755 + $0x7e] sm:$0xff]
        %v2355 = vld [vmem:[%s1755 + $0x86] sm:$0xff]
        %v2356 = vld [vmem:[%s1755 + $0x96] sm:$0xff]
        %v2357 = vld [vmem:[%s1755 + $0x9e] sm:$0xff]
        %v2358 = vld [vmem:[%s1755 + $0xae] sm:$0xff]
        %v2359 = vld [vmem:[%s1755 + $0xb6] sm:$0xff]
        %v2360 = vld [vmem:[%s1755 + $0xc6] sm:$0xff]
        %v2361 = vld [vmem:[%s1755 + $0xce] sm:$0xff]
        %v2362 = vld [vmem:[%s1755 + $0xde] sm:$0xff]
        %v2363 = vld [vmem:[%s1755 + $0xe6] sm:$0xff]
        %v2364 = vld [vmem:[%s1755 + $0xf6] sm:$0xff]
        %v2365 = vld [vmem:[%s1755 + $0xfe] sm:$0xff]
        %v2366 = vld [vmem:[%s1755 + $0x10e] sm:$0xff]
        %v2367 = vld [vmem:[%s1755 + $0x116] sm:$0xff]
        %v2368 = vld [vmem:[%s1755 + $0x126] sm:$0xff]
        %v2369 = vld [vmem:[%s1755 + $0x12e] sm:$0xff]
        %v2370 = vld [vmem:[%s1755 + $0x13e] sm:$0xff]
        %v2371 = vld [vmem:[%s1755 + $0x146] sm:$0xff]
        %v2372 = vld [vmem:[%s1755 + $0x156] sm:$0xff]
        %v2373 = vld [vmem:[%s1755 + $0x15e] sm:$0xff]
        %v2374 = vld [vmem:[%s1755 + $0x16e] sm:$0xff]
        %v2375 = vld [vmem:[%s1755 + $0x176] sm:$0xff]
        %v2376 = vperm.slane %v2343, 0
        %v2377 = vmul.f32 %v2344, %v2376
        %v2378 = vmul.f32 %v2345, %v2376
        %v2379 = vmul.f32 %v2346, %v2376
        %v2380 = vmul.f32 %v2347, %v2376
        %v2381 = vmul.f32 %v2348, %v2376
        %v2382 = vmul.f32 %v2349, %v2376
        %v2383 = vmul.f32 %v2350, %v2376
        %v2384 = vmul.f32 %v2351, %v2376
        %v2385 = vmul.f32 %v2352, %v2376
        %v2386 = vmul.f32 %v2353, %v2376
        %v2387 = vmul.f32 %v2354, %v2376
        %v2388 = vmul.f32 %v2355, %v2376
        %v2389 = vmul.f32 %v2356, %v2376
        %v2390 = vmul.f32 %v2357, %v2376
        %v2391 = vmul.f32 %v2358, %v2376
        %v2392 = vmul.f32 %v2359, %v2376
        %v2393 = vmul.f32 %v2360, %v2376
        %v2394 = vmul.f32 %v2361, %v2376
        %v2395 = vmul.f32 %v2362, %v2376
        %v2396 = vmul.f32 %v2363, %v2376
        %v2397 = vmul.f32 %v2364, %v2376
        %v2398 = vmul.f32 %v2365, %v2376
        %v2399 = vmul.f32 %v2366, %v2376
        %v2400 = vmul.f32 %v2367, %v2376
        %v2401 = vmul.f32 %v2368, %v2376
        %v2402 = vmul.f32 %v2369, %v2376
        %v2403 = vmul.f32 %v2370, %v2376
        %v2404 = vmul.f32 %v2371, %v2376
        %v2405 = vmul.f32 %v2372, %v2376
        %v2406 = vmul.f32 %v2373, %v2376
        %v2407 = vmul.f32 %v2374, %v2376
        %v2408 = vmul.f32 %v2375, %v2376
        %v2409 = vadd.f32 %v2311, %v2377
        %v2410 = vadd.f32 %v2312, %v2378
        %v2411 = vadd.f32 %v2313, %v2379
        %v2412 = vadd.f32 %v2314, %v2380
        %v2413 = vadd.f32 %v2315, %v2381
        %v2414 = vadd.f32 %v2316, %v2382
        %v2415 = vadd.f32 %v2317, %v2383
        %v2416 = vadd.f32 %v2318, %v2384
        %v2417 = vadd.f32 %v2319, %v2385
        %v2418 = vadd.f32 %v2320, %v2386
        %v2419 = vadd.f32 %v2321, %v2387
        %v2420 = vadd.f32 %v2322, %v2388
        %v2421 = vadd.f32 %v2323, %v2389
        %v2422 = vadd.f32 %v2324, %v2390
        %v2423 = vadd.f32 %v2325, %v2391
        %v2424 = vadd.f32 %v2326, %v2392
        %v2425 = vadd.f32 %v2327, %v2393
        %v2426 = vadd.f32 %v2328, %v2394
        %v2427 = vadd.f32 %v2329, %v2395
        %v2428 = vadd.f32 %v2330, %v2396
        %v2429 = vadd.f32 %v2331, %v2397
        %v2430 = vadd.f32 %v2332, %v2398
        %v2431 = vadd.f32 %v2333, %v2399
        %v2432 = vadd.f32 %v2334, %v2400
        %v2433 = vadd.f32 %v2335, %v2401
        %v2434 = vadd.f32 %v2336, %v2402
        %v2435 = vadd.f32 %v2337, %v2403
        %v2436 = vadd.f32 %v2338, %v2404
        %v2437 = vadd.f32 %v2339, %v2405
        %v2438 = vadd.f32 %v2340, %v2406
        %v2439 = vadd.f32 %v2341, %v2407
        %v2440 = vadd.f32 %v2342, %v2408
        %v2441 = vld [vmem:[#allocation3 + $0x15] sm:$0x1]
        %v2442 = vld [vmem:[%s348] sm:$0xff]
        %v2443 = vld [vmem:[%s348 + $0x8] sm:$0xff]
        %v2444 = vld [vmem:[%s348 + $0x18] sm:$0xff]
        %v2445 = vld [vmem:[%s348 + $0x20] sm:$0xff]
        %v2446 = vld [vmem:[%s348 + $0x30] sm:$0xff]
        %v2447 = vld [vmem:[%s348 + $0x38] sm:$0xff]
        %v2448 = vld [vmem:[%s348 + $0x48] sm:$0xff]
        %v2449 = vld [vmem:[%s348 + $0x50] sm:$0xff]
        %v2450 = vld [vmem:[%s348 + $0x60] sm:$0xff]
        %v2451 = vld [vmem:[%s348 + $0x68] sm:$0xff]
        %v2452 = vld [vmem:[%s348 + $0x78] sm:$0xff]
        %v2453 = vld [vmem:[%s348 + $0x80] sm:$0xff]
        %v2454 = vld [vmem:[%s348 + $0x90] sm:$0xff]
        %v2455 = vld [vmem:[%s348 + $0x98] sm:$0xff]
        %v2456 = vld [vmem:[%s348 + $0xa8] sm:$0xff]
        %v2457 = vld [vmem:[%s348 + $0xb0] sm:$0xff]
        %v2458 = vld [vmem:[%s348 + $0xc0] sm:$0xff]
        %v2459 = vld [vmem:[%s348 + $0xc8] sm:$0xff]
        %v2460 = vld [vmem:[%s348 + $0xd8] sm:$0xff]
        %v2461 = vld [vmem:[%s348 + $0xe0] sm:$0xff]
        %v2462 = vld [vmem:[%s348 + $0xf0] sm:$0xff]
        %v2463 = vld [vmem:[%s348 + $0xf8] sm:$0xff]
        %v2464 = vld [vmem:[%s348 + $0x108] sm:$0xff]
        %v2465 = vld [vmem:[%s348 + $0x110] sm:$0xff]
        %v2466 = vld [vmem:[%s348 + $0x120] sm:$0xff]
        %v2467 = vld [vmem:[%s348 + $0x128] sm:$0xff]
        %v2468 = vld [vmem:[%s348 + $0x138] sm:$0xff]
        %v2469 = vld [vmem:[%s348 + $0x140] sm:$0xff]
        %v2470 = vld [vmem:[%s348 + $0x150] sm:$0xff]
        %v2471 = vld [vmem:[%s348 + $0x158] sm:$0xff]
        %v2472 = vld [vmem:[%s348 + $0x168] sm:$0xff]
        %v2473 = vld [vmem:[%s348 + $0x170] sm:$0xff]
        %v2474 = vperm.slane %v2441, 0
        %v2475 = vmul.f32 %v2442, %v2474
        %v2476 = vmul.f32 %v2443, %v2474
        %v2477 = vmul.f32 %v2444, %v2474
        %v2478 = vmul.f32 %v2445, %v2474
        %v2479 = vmul.f32 %v2446, %v2474
        %v2480 = vmul.f32 %v2447, %v2474
        %v2481 = vmul.f32 %v2448, %v2474
        %v2482 = vmul.f32 %v2449, %v2474
        %v2483 = vmul.f32 %v2450, %v2474
        %v2484 = vmul.f32 %v2451, %v2474
        %v2485 = vmul.f32 %v2452, %v2474
        %v2486 = vmul.f32 %v2453, %v2474
        %v2487 = vmul.f32 %v2454, %v2474
        %v2488 = vmul.f32 %v2455, %v2474
        %v2489 = vmul.f32 %v2456, %v2474
        %v2490 = vmul.f32 %v2457, %v2474
        %v2491 = vmul.f32 %v2458, %v2474
        %v2492 = vmul.f32 %v2459, %v2474
        %v2493 = vmul.f32 %v2460, %v2474
        %v2494 = vmul.f32 %v2461, %v2474
        %v2495 = vmul.f32 %v2462, %v2474
        %v2496 = vmul.f32 %v2463, %v2474
        %v2497 = vmul.f32 %v2464, %v2474
        %v2498 = vmul.f32 %v2465, %v2474
        %v2499 = vmul.f32 %v2466, %v2474
        %v2500 = vmul.f32 %v2467, %v2474
        %v2501 = vmul.f32 %v2468, %v2474
        %v2502 = vmul.f32 %v2469, %v2474
        %v2503 = vmul.f32 %v2470, %v2474
        %v2504 = vmul.f32 %v2471, %v2474
        %v2505 = vmul.f32 %v2472, %v2474
        %v2506 = vmul.f32 %v2473, %v2474
        %v2507 = vadd.f32 %v2409, %v2475
        %v2508 = vadd.f32 %v2410, %v2476
        %v2509 = vadd.f32 %v2411, %v2477
        %v2510 = vadd.f32 %v2412, %v2478
        %v2511 = vadd.f32 %v2413, %v2479
        %v2512 = vadd.f32 %v2414, %v2480
        %v2513 = vadd.f32 %v2415, %v2481
        %v2514 = vadd.f32 %v2416, %v2482
        %v2515 = vadd.f32 %v2417, %v2483
        %v2516 = vadd.f32 %v2418, %v2484
        %v2517 = vadd.f32 %v2419, %v2485
        %v2518 = vadd.f32 %v2420, %v2486
        %v2519 = vadd.f32 %v2421, %v2487
        %v2520 = vadd.f32 %v2422, %v2488
        %v2521 = vadd.f32 %v2423, %v2489
        %v2522 = vadd.f32 %v2424, %v2490
        %v2523 = vadd.f32 %v2425, %v2491
        %v2524 = vadd.f32 %v2426, %v2492
        %v2525 = vadd.f32 %v2427, %v2493
        %v2526 = vadd.f32 %v2428, %v2494
        %v2527 = vadd.f32 %v2429, %v2495
        %v2528 = vadd.f32 %v2430, %v2496
        %v2529 = vadd.f32 %v2431, %v2497
        %v2530 = vadd.f32 %v2432, %v2498
        %v2531 = vadd.f32 %v2433, %v2499
        %v2532 = vadd.f32 %v2434, %v2500
        %v2533 = vadd.f32 %v2435, %v2501
        %v2534 = vadd.f32 %v2436, %v2502
        %v2535 = vadd.f32 %v2437, %v2503
        %v2536 = vadd.f32 %v2438, %v2504
        %v2537 = vadd.f32 %v2439, %v2505
        %v2538 = vadd.f32 %v2440, %v2506
        %v2539 = vld [vmem:[#allocation3 + $0x16] sm:$0x1]
        %v2540 = vld [vmem:[%s348 + $0x1] sm:$0xff]
        %v2541 = vld [vmem:[%s348 + $0x9] sm:$0xff]
        %v2542 = vld [vmem:[%s348 + $0x19] sm:$0xff]
        %v2543 = vld [vmem:[%s348 + $0x21] sm:$0xff]
        %v2544 = vld [vmem:[%s348 + $0x31] sm:$0xff]
        %v2545 = vld [vmem:[%s348 + $0x39] sm:$0xff]
        %v2546 = vld [vmem:[%s348 + $0x49] sm:$0xff]
        %v2547 = vld [vmem:[%s348 + $0x51] sm:$0xff]
        %v2548 = vld [vmem:[%s348 + $0x61] sm:$0xff]
        %v2549 = vld [vmem:[%s348 + $0x69] sm:$0xff]
        %v2550 = vld [vmem:[%s348 + $0x79] sm:$0xff]
        %v2551 = vld [vmem:[%s348 + $0x81] sm:$0xff]
        %v2552 = vld [vmem:[%s348 + $0x91] sm:$0xff]
        %v2553 = vld [vmem:[%s348 + $0x99] sm:$0xff]
        %v2554 = vld [vmem:[%s348 + $0xa9] sm:$0xff]
        %v2555 = vld [vmem:[%s348 + $0xb1] sm:$0xff]
        %v2556 = vld [vmem:[%s348 + $0xc1] sm:$0xff]
        %v2557 = vld [vmem:[%s348 + $0xc9] sm:$0xff]
        %v2558 = vld [vmem:[%s348 + $0xd9] sm:$0xff]
        %v2559 = vld [vmem:[%s348 + $0xe1] sm:$0xff]
        %v2560 = vld [vmem:[%s348 + $0xf1] sm:$0xff]
        %v2561 = vld [vmem:[%s348 + $0xf9] sm:$0xff]
        %v2562 = vld [vmem:[%s348 + $0x109] sm:$0xff]
        %v2563 = vld [vmem:[%s348 + $0x111] sm:$0xff]
        %v2564 = vld [vmem:[%s348 + $0x121] sm:$0xff]
        %v2565 = vld [vmem:[%s348 + $0x129] sm:$0xff]
        %v2566 = vld [vmem:[%s348 + $0x139] sm:$0xff]
        %v2567 = vld [vmem:[%s348 + $0x141] sm:$0xff]
        %v2568 = vld [vmem:[%s348 + $0x151] sm:$0xff]
        %v2569 = vld [vmem:[%s348 + $0x159] sm:$0xff]
        %v2570 = vld [vmem:[%s348 + $0x169] sm:$0xff]
        %v2571 = vld [vmem:[%s348 + $0x171] sm:$0xff]
        %v2572 = vperm.slane %v2539, 0
        %v2573 = vmul.f32 %v2540, %v2572
        %v2574 = vmul.f32 %v2541, %v2572
        %v2575 = vmul.f32 %v2542, %v2572
        %v2576 = vmul.f32 %v2543, %v2572
        %v2577 = vmul.f32 %v2544, %v2572
        %v2578 = vmul.f32 %v2545, %v2572
        %v2579 = vmul.f32 %v2546, %v2572
        %v2580 = vmul.f32 %v2547, %v2572
        %v2581 = vmul.f32 %v2548, %v2572
        %v2582 = vmul.f32 %v2549, %v2572
        %v2583 = vmul.f32 %v2550, %v2572
        %v2584 = vmul.f32 %v2551, %v2572
        %v2585 = vmul.f32 %v2552, %v2572
        %v2586 = vmul.f32 %v2553, %v2572
        %v2587 = vmul.f32 %v2554, %v2572
        %v2588 = vmul.f32 %v2555, %v2572
        %v2589 = vmul.f32 %v2556, %v2572
        %v2590 = vmul.f32 %v2557, %v2572
        %v2591 = vmul.f32 %v2558, %v2572
        %v2592 = vmul.f32 %v2559, %v2572
        %v2593 = vmul.f32 %v2560, %v2572
        %v2594 = vmul.f32 %v2561, %v2572
        %v2595 = vmul.f32 %v2562, %v2572
        %v2596 = vmul.f32 %v2563, %v2572
        %v2597 = vmul.f32 %v2564, %v2572
        %v2598 = vmul.f32 %v2565, %v2572
        %v2599 = vmul.f32 %v2566, %v2572
        %v2600 = vmul.f32 %v2567, %v2572
        %v2601 = vmul.f32 %v2568, %v2572
        %v2602 = vmul.f32 %v2569, %v2572
        %v2603 = vmul.f32 %v2570, %v2572
        %v2604 = vmul.f32 %v2571, %v2572
        %v2605 = vadd.f32 %v2507, %v2573
        %v2606 = vadd.f32 %v2508, %v2574
        %v2607 = vadd.f32 %v2509, %v2575
        %v2608 = vadd.f32 %v2510, %v2576
        %v2609 = vadd.f32 %v2511, %v2577
        %v2610 = vadd.f32 %v2512, %v2578
        %v2611 = vadd.f32 %v2513, %v2579
        %v2612 = vadd.f32 %v2514, %v2580
        %v2613 = vadd.f32 %v2515, %v2581
        %v2614 = vadd.f32 %v2516, %v2582
        %v2615 = vadd.f32 %v2517, %v2583
        %v2616 = vadd.f32 %v2518, %v2584
        %v2617 = vadd.f32 %v2519, %v2585
        %v2618 = vadd.f32 %v2520, %v2586
        %v2619 = vadd.f32 %v2521, %v2587
        %v2620 = vadd.f32 %v2522, %v2588
        %v2621 = vadd.f32 %v2523, %v2589
        %v2622 = vadd.f32 %v2524, %v2590
        %v2623 = vadd.f32 %v2525, %v2591
        %v2624 = vadd.f32 %v2526, %v2592
        %v2625 = vadd.f32 %v2527, %v2593
        %v2626 = vadd.f32 %v2528, %v2594
        %v2627 = vadd.f32 %v2529, %v2595
        %v2628 = vadd.f32 %v2530, %v2596
        %v2629 = vadd.f32 %v2531, %v2597
        %v2630 = vadd.f32 %v2532, %v2598
        %v2631 = vadd.f32 %v2533, %v2599
        %v2632 = vadd.f32 %v2534, %v2600
        %v2633 = vadd.f32 %v2535, %v2601
        %v2634 = vadd.f32 %v2536, %v2602
        %v2635 = vadd.f32 %v2537, %v2603
        %v2636 = vadd.f32 %v2538, %v2604
        %v2637 = vld [vmem:[#allocation3 + $0x17] sm:$0x1]
        %v2638 = vld [vmem:[%s348 + $0x2] sm:$0xff]
        %v2639 = vld [vmem:[%s348 + $0xa] sm:$0xff]
        %v2640 = vld [vmem:[%s348 + $0x1a] sm:$0xff]
        %v2641 = vld [vmem:[%s348 + $0x22] sm:$0xff]
        %v2642 = vld [vmem:[%s348 + $0x32] sm:$0xff]
        %v2643 = vld [vmem:[%s348 + $0x3a] sm:$0xff]
        %v2644 = vld [vmem:[%s348 + $0x4a] sm:$0xff]
        %v2645 = vld [vmem:[%s348 + $0x52] sm:$0xff]
        %v2646 = vld [vmem:[%s348 + $0x62] sm:$0xff]
        %v2647 = vld [vmem:[%s348 + $0x6a] sm:$0xff]
        %v2648 = vld [vmem:[%s348 + $0x7a] sm:$0xff]
        %v2649 = vld [vmem:[%s348 + $0x82] sm:$0xff]
        %v2650 = vld [vmem:[%s348 + $0x92] sm:$0xff]
        %v2651 = vld [vmem:[%s348 + $0x9a] sm:$0xff]
        %v2652 = vld [vmem:[%s348 + $0xaa] sm:$0xff]
        %v2653 = vld [vmem:[%s348 + $0xb2] sm:$0xff]
        %v2654 = vld [vmem:[%s348 + $0xc2] sm:$0xff]
        %v2655 = vld [vmem:[%s348 + $0xca] sm:$0xff]
        %v2656 = vld [vmem:[%s348 + $0xda] sm:$0xff]
        %v2657 = vld [vmem:[%s348 + $0xe2] sm:$0xff]
        %v2658 = vld [vmem:[%s348 + $0xf2] sm:$0xff]
        %v2659 = vld [vmem:[%s348 + $0xfa] sm:$0xff]
        %v2660 = vld [vmem:[%s348 + $0x10a] sm:$0xff]
        %v2661 = vld [vmem:[%s348 + $0x112] sm:$0xff]
        %v2662 = vld [vmem:[%s348 + $0x122] sm:$0xff]
        %v2663 = vld [vmem:[%s348 + $0x12a] sm:$0xff]
        %v2664 = vld [vmem:[%s348 + $0x13a] sm:$0xff]
        %v2665 = vld [vmem:[%s348 + $0x142] sm:$0xff]
        %v2666 = vld [vmem:[%s348 + $0x152] sm:$0xff]
        %v2667 = vld [vmem:[%s348 + $0x15a] sm:$0xff]
        %v2668 = vld [vmem:[%s348 + $0x16a] sm:$0xff]
        %v2669 = vld [vmem:[%s348 + $0x172] sm:$0xff]
        %v2670 = vperm.slane %v2637, 0
        %v2671 = vmul.f32 %v2638, %v2670
        %v2672 = vmul.f32 %v2639, %v2670
        %v2673 = vmul.f32 %v2640, %v2670
        %v2674 = vmul.f32 %v2641, %v2670
        %v2675 = vmul.f32 %v2642, %v2670
        %v2676 = vmul.f32 %v2643, %v2670
        %v2677 = vmul.f32 %v2644, %v2670
        %v2678 = vmul.f32 %v2645, %v2670
        %v2679 = vmul.f32 %v2646, %v2670
        %v2680 = vmul.f32 %v2647, %v2670
        %v2681 = vmul.f32 %v2648, %v2670
        %v2682 = vmul.f32 %v2649, %v2670
        %v2683 = vmul.f32 %v2650, %v2670
        %v2684 = vmul.f32 %v2651, %v2670
        %v2685 = vmul.f32 %v2652, %v2670
        %v2686 = vmul.f32 %v2653, %v2670
        %v2687 = vmul.f32 %v2654, %v2670
        %v2688 = vmul.f32 %v2655, %v2670
        %v2689 = vmul.f32 %v2656, %v2670
        %v2690 = vmul.f32 %v2657, %v2670
        %v2691 = vmul.f32 %v2658, %v2670
        %v2692 = vmul.f32 %v2659, %v2670
        %v2693 = vmul.f32 %v2660, %v2670
        %v2694 = vmul.f32 %v2661, %v2670
        %v2695 = vmul.f32 %v2662, %v2670
        %v2696 = vmul.f32 %v2663, %v2670
        %v2697 = vmul.f32 %v2664, %v2670
        %v2698 = vmul.f32 %v2665, %v2670
        %v2699 = vmul.f32 %v2666, %v2670
        %v2700 = vmul.f32 %v2667, %v2670
        %v2701 = vmul.f32 %v2668, %v2670
        %v2702 = vmul.f32 %v2669, %v2670
        %v2703 = vadd.f32 %v2605, %v2671
        %v2704 = vadd.f32 %v2606, %v2672
        %v2705 = vadd.f32 %v2607, %v2673
        %v2706 = vadd.f32 %v2608, %v2674
        %v2707 = vadd.f32 %v2609, %v2675
        %v2708 = vadd.f32 %v2610, %v2676
        %v2709 = vadd.f32 %v2611, %v2677
        %v2710 = vadd.f32 %v2612, %v2678
        %v2711 = vadd.f32 %v2613, %v2679
        %v2712 = vadd.f32 %v2614, %v2680
        %v2713 = vadd.f32 %v2615, %v2681
        %v2714 = vadd.f32 %v2616, %v2682
        %v2715 = vadd.f32 %v2617, %v2683
        %v2716 = vadd.f32 %v2618, %v2684
        %v2717 = vadd.f32 %v2619, %v2685
        %v2718 = vadd.f32 %v2620, %v2686
        %v2719 = vadd.f32 %v2621, %v2687
        %v2720 = vadd.f32 %v2622, %v2688
        %v2721 = vadd.f32 %v2623, %v2689
        %v2722 = vadd.f32 %v2624, %v2690
        %v2723 = vadd.f32 %v2625, %v2691
        %v2724 = vadd.f32 %v2626, %v2692
        %v2725 = vadd.f32 %v2627, %v2693
        %v2726 = vadd.f32 %v2628, %v2694
        %v2727 = vadd.f32 %v2629, %v2695
        %v2728 = vadd.f32 %v2630, %v2696
        %v2729 = vadd.f32 %v2631, %v2697
        %v2730 = vadd.f32 %v2632, %v2698
        %v2731 = vadd.f32 %v2633, %v2699
        %v2732 = vadd.f32 %v2634, %v2700
        %v2733 = vadd.f32 %v2635, %v2701
        %v2734 = vadd.f32 %v2636, %v2702
        %v2735 = vld [vmem:[#allocation3 + $0x18] sm:$0x1]
        %v2736 = vld [vmem:[%s348 + $0x3] sm:$0xff]
        %v2737 = vld [vmem:[%s348 + $0xb] sm:$0xff]
        %v2738 = vld [vmem:[%s348 + $0x1b] sm:$0xff]
        %v2739 = vld [vmem:[%s348 + $0x23] sm:$0xff]
        %v2740 = vld [vmem:[%s348 + $0x33] sm:$0xff]
        %v2741 = vld [vmem:[%s348 + $0x3b] sm:$0xff]
        %v2742 = vld [vmem:[%s348 + $0x4b] sm:$0xff]
        %v2743 = vld [vmem:[%s348 + $0x53] sm:$0xff]
        %v2744 = vld [vmem:[%s348 + $0x63] sm:$0xff]
        %v2745 = vld [vmem:[%s348 + $0x6b] sm:$0xff]
        %v2746 = vld [vmem:[%s348 + $0x7b] sm:$0xff]
        %v2747 = vld [vmem:[%s348 + $0x83] sm:$0xff]
        %v2748 = vld [vmem:[%s348 + $0x93] sm:$0xff]
        %v2749 = vld [vmem:[%s348 + $0x9b] sm:$0xff]
        %v2750 = vld [vmem:[%s348 + $0xab] sm:$0xff]
        %v2751 = vld [vmem:[%s348 + $0xb3] sm:$0xff]
        %v2752 = vld [vmem:[%s348 + $0xc3] sm:$0xff]
        %v2753 = vld [vmem:[%s348 + $0xcb] sm:$0xff]
        %v2754 = vld [vmem:[%s348 + $0xdb] sm:$0xff]
        %v2755 = vld [vmem:[%s348 + $0xe3] sm:$0xff]
        %v2756 = vld [vmem:[%s348 + $0xf3] sm:$0xff]
        %v2757 = vld [vmem:[%s348 + $0xfb] sm:$0xff]
        %v2758 = vld [vmem:[%s348 + $0x10b] sm:$0xff]
        %v2759 = vld [vmem:[%s348 + $0x113] sm:$0xff]
        %v2760 = vld [vmem:[%s348 + $0x123] sm:$0xff]
        %v2761 = vld [vmem:[%s348 + $0x12b] sm:$0xff]
        %v2762 = vld [vmem:[%s348 + $0x13b] sm:$0xff]
        %v2763 = vld [vmem:[%s348 + $0x143] sm:$0xff]
        %v2764 = vld [vmem:[%s348 + $0x153] sm:$0xff]
        %v2765 = vld [vmem:[%s348 + $0x15b] sm:$0xff]
        %v2766 = vld [vmem:[%s348 + $0x16b] sm:$0xff]
        %v2767 = vld [vmem:[%s348 + $0x173] sm:$0xff]
        %v2768 = vperm.slane %v2735, 0
        %v2769 = vmul.f32 %v2736, %v2768
        %v2770 = vmul.f32 %v2737, %v2768
        %v2771 = vmul.f32 %v2738, %v2768
        %v2772 = vmul.f32 %v2739, %v2768
        %v2773 = vmul.f32 %v2740, %v2768
        %v2774 = vmul.f32 %v2741, %v2768
        %v2775 = vmul.f32 %v2742, %v2768
        %v2776 = vmul.f32 %v2743, %v2768
        %v2777 = vmul.f32 %v2744, %v2768
        %v2778 = vmul.f32 %v2745, %v2768
        %v2779 = vmul.f32 %v2746, %v2768
        %v2780 = vmul.f32 %v2747, %v2768
        %v2781 = vmul.f32 %v2748, %v2768
        %v2782 = vmul.f32 %v2749, %v2768
        %v2783 = vmul.f32 %v2750, %v2768
        %v2784 = vmul.f32 %v2751, %v2768
        %v2785 = vmul.f32 %v2752, %v2768
        %v2786 = vmul.f32 %v2753, %v2768
        %v2787 = vmul.f32 %v2754, %v2768
        %v2788 = vmul.f32 %v2755, %v2768
        %v2789 = vmul.f32 %v2756, %v2768
        %v2790 = vmul.f32 %v2757, %v2768
        %v2791 = vmul.f32 %v2758, %v2768
        %v2792 = vmul.f32 %v2759, %v2768
        %v2793 = vmul.f32 %v2760, %v2768
        %v2794 = vmul.f32 %v2761, %v2768
        %v2795 = vmul.f32 %v2762, %v2768
        %v2796 = vmul.f32 %v2763, %v2768
        %v2797 = vmul.f32 %v2764, %v2768
        %v2798 = vmul.f32 %v2765, %v2768
        %v2799 = vmul.f32 %v2766, %v2768
        %v2800 = vmul.f32 %v2767, %v2768
        %v2801 = vadd.f32 %v2703, %v2769
        %v2802 = vadd.f32 %v2704, %v2770
        %v2803 = vadd.f32 %v2705, %v2771
        %v2804 = vadd.f32 %v2706, %v2772
        %v2805 = vadd.f32 %v2707, %v2773
        %v2806 = vadd.f32 %v2708, %v2774
        %v2807 = vadd.f32 %v2709, %v2775
        %v2808 = vadd.f32 %v2710, %v2776
        %v2809 = vadd.f32 %v2711, %v2777
        %v2810 = vadd.f32 %v2712, %v2778
        %v2811 = vadd.f32 %v2713, %v2779
        %v2812 = vadd.f32 %v2714, %v2780
        %v2813 = vadd.f32 %v2715, %v2781
        %v2814 = vadd.f32 %v2716, %v2782
        %v2815 = vadd.f32 %v2717, %v2783
        %v2816 = vadd.f32 %v2718, %v2784
        %v2817 = vadd.f32 %v2719, %v2785
        %v2818 = vadd.f32 %v2720, %v2786
        %v2819 = vadd.f32 %v2721, %v2787
        %v2820 = vadd.f32 %v2722, %v2788
        %v2821 = vadd.f32 %v2723, %v2789
        %v2822 = vadd.f32 %v2724, %v2790
        %v2823 = vadd.f32 %v2725, %v2791
        %v2824 = vadd.f32 %v2726, %v2792
        %v2825 = vadd.f32 %v2727, %v2793
        %v2826 = vadd.f32 %v2728, %v2794
        %v2827 = vadd.f32 %v2729, %v2795
        %v2828 = vadd.f32 %v2730, %v2796
        %v2829 = vadd.f32 %v2731, %v2797
        %v2830 = vadd.f32 %v2732, %v2798
        %v2831 = vadd.f32 %v2733, %v2799
        %v2832 = vadd.f32 %v2734, %v2800
        %v2833 = vld [vmem:[#allocation3 + $0x19] sm:$0x1]
        %v2834 = vld [vmem:[%s348 + $0x4] sm:$0xff]
        %v2835 = vld [vmem:[%s348 + $0xc] sm:$0xff]
        %v2836 = vld [vmem:[%s348 + $0x1c] sm:$0xff]
        %v2837 = vld [vmem:[%s348 + $0x24] sm:$0xff]
        %v2838 = vld [vmem:[%s348 + $0x34] sm:$0xff]
        %v2839 = vld [vmem:[%s348 + $0x3c] sm:$0xff]
        %v2840 = vld [vmem:[%s348 + $0x4c] sm:$0xff]
        %v2841 = vld [vmem:[%s348 + $0x54] sm:$0xff]
        %v2842 = vld [vmem:[%s348 + $0x64] sm:$0xff]
        %v2843 = vld [vmem:[%s348 + $0x6c] sm:$0xff]
        %v2844 = vld [vmem:[%s348 + $0x7c] sm:$0xff]
        %v2845 = vld [vmem:[%s348 + $0x84] sm:$0xff]
        %v2846 = vld [vmem:[%s348 + $0x94] sm:$0xff]
        %v2847 = vld [vmem:[%s348 + $0x9c] sm:$0xff]
        %v2848 = vld [vmem:[%s348 + $0xac] sm:$0xff]
        %v2849 = vld [vmem:[%s348 + $0xb4] sm:$0xff]
        %v2850 = vld [vmem:[%s348 + $0xc4] sm:$0xff]
        %v2851 = vld [vmem:[%s348 + $0xcc] sm:$0xff]
        %v2852 = vld [vmem:[%s348 + $0xdc] sm:$0xff]
        %v2853 = vld [vmem:[%s348 + $0xe4] sm:$0xff]
        %v2854 = vld [vmem:[%s348 + $0xf4] sm:$0xff]
        %v2855 = vld [vmem:[%s348 + $0xfc] sm:$0xff]
        %v2856 = vld [vmem:[%s348 + $0x10c] sm:$0xff]
        %v2857 = vld [vmem:[%s348 + $0x114] sm:$0xff]
        %v2858 = vld [vmem:[%s348 + $0x124] sm:$0xff]
        %v2859 = vld [vmem:[%s348 + $0x12c] sm:$0xff]
        %v2860 = vld [vmem:[%s348 + $0x13c] sm:$0xff]
        %v2861 = vld [vmem:[%s348 + $0x144] sm:$0xff]
        %v2862 = vld [vmem:[%s348 + $0x154] sm:$0xff]
        %v2863 = vld [vmem:[%s348 + $0x15c] sm:$0xff]
        %v2864 = vld [vmem:[%s348 + $0x16c] sm:$0xff]
        %v2865 = vld [vmem:[%s348 + $0x174] sm:$0xff]
        %v2866 = vperm.slane %v2833, 0
        %v2867 = vmul.f32 %v2834, %v2866
        %v2868 = vmul.f32 %v2835, %v2866
        %v2869 = vmul.f32 %v2836, %v2866
        %v2870 = vmul.f32 %v2837, %v2866
        %v2871 = vmul.f32 %v2838, %v2866
        %v2872 = vmul.f32 %v2839, %v2866
        %v2873 = vmul.f32 %v2840, %v2866
        %v2874 = vmul.f32 %v2841, %v2866
        %v2875 = vmul.f32 %v2842, %v2866
        %v2876 = vmul.f32 %v2843, %v2866
        %v2877 = vmul.f32 %v2844, %v2866
        %v2878 = vmul.f32 %v2845, %v2866
        %v2879 = vmul.f32 %v2846, %v2866
        %v2880 = vmul.f32 %v2847, %v2866
        %v2881 = vmul.f32 %v2848, %v2866
        %v2882 = vmul.f32 %v2849, %v2866
        %v2883 = vmul.f32 %v2850, %v2866
        %v2884 = vmul.f32 %v2851, %v2866
        %v2885 = vmul.f32 %v2852, %v2866
        %v2886 = vmul.f32 %v2853, %v2866
        %v2887 = vmul.f32 %v2854, %v2866
        %v2888 = vmul.f32 %v2855, %v2866
        %v2889 = vmul.f32 %v2856, %v2866
        %v2890 = vmul.f32 %v2857, %v2866
        %v2891 = vmul.f32 %v2858, %v2866
        %v2892 = vmul.f32 %v2859, %v2866
        %v2893 = vmul.f32 %v2860, %v2866
        %v2894 = vmul.f32 %v2861, %v2866
        %v2895 = vmul.f32 %v2862, %v2866
        %v2896 = vmul.f32 %v2863, %v2866
        %v2897 = vmul.f32 %v2864, %v2866
        %v2898 = vmul.f32 %v2865, %v2866
        %v2899 = vadd.f32 %v2801, %v2867
        %v2900 = vadd.f32 %v2802, %v2868
        %v2901 = vadd.f32 %v2803, %v2869
        %v2902 = vadd.f32 %v2804, %v2870
        %v2903 = vadd.f32 %v2805, %v2871
        %v2904 = vadd.f32 %v2806, %v2872
        %v2905 = vadd.f32 %v2807, %v2873
        %v2906 = vadd.f32 %v2808, %v2874
        %v2907 = vadd.f32 %v2809, %v2875
        %v2908 = vadd.f32 %v2810, %v2876
        %v2909 = vadd.f32 %v2811, %v2877
        %v2910 = vadd.f32 %v2812, %v2878
        %v2911 = vadd.f32 %v2813, %v2879
        %v2912 = vadd.f32 %v2814, %v2880
        %v2913 = vadd.f32 %v2815, %v2881
        %v2914 = vadd.f32 %v2816, %v2882
        %v2915 = vadd.f32 %v2817, %v2883
        %v2916 = vadd.f32 %v2818, %v2884
        %v2917 = vadd.f32 %v2819, %v2885
        %v2918 = vadd.f32 %v2820, %v2886
        %v2919 = vadd.f32 %v2821, %v2887
        %v2920 = vadd.f32 %v2822, %v2888
        %v2921 = vadd.f32 %v2823, %v2889
        %v2922 = vadd.f32 %v2824, %v2890
        %v2923 = vadd.f32 %v2825, %v2891
        %v2924 = vadd.f32 %v2826, %v2892
        %v2925 = vadd.f32 %v2827, %v2893
        %v2926 = vadd.f32 %v2828, %v2894
        %v2927 = vadd.f32 %v2829, %v2895
        %v2928 = vadd.f32 %v2830, %v2896
        %v2929 = vadd.f32 %v2831, %v2897
        %v2930 = vadd.f32 %v2832, %v2898
        %v2931 = vld [vmem:[#allocation3 + $0x1a] sm:$0x1]
        %v2932 = vld [vmem:[%s348 + $0x5] sm:$0xff]
        %v2933 = vld [vmem:[%s348 + $0xd] sm:$0xff]
        %v2934 = vld [vmem:[%s348 + $0x1d] sm:$0xff]
        %v2935 = vld [vmem:[%s348 + $0x25] sm:$0xff]
        %v2936 = vld [vmem:[%s348 + $0x35] sm:$0xff]
        %v2937 = vld [vmem:[%s348 + $0x3d] sm:$0xff]
        %v2938 = vld [vmem:[%s348 + $0x4d] sm:$0xff]
        %v2939 = vld [vmem:[%s348 + $0x55] sm:$0xff]
        %v2940 = vld [vmem:[%s348 + $0x65] sm:$0xff]
        %v2941 = vld [vmem:[%s348 + $0x6d] sm:$0xff]
        %v2942 = vld [vmem:[%s348 + $0x7d] sm:$0xff]
        %v2943 = vld [vmem:[%s348 + $0x85] sm:$0xff]
        %v2944 = vld [vmem:[%s348 + $0x95] sm:$0xff]
        %v2945 = vld [vmem:[%s348 + $0x9d] sm:$0xff]
        %v2946 = vld [vmem:[%s348 + $0xad] sm:$0xff]
        %v2947 = vld [vmem:[%s348 + $0xb5] sm:$0xff]
        %v2948 = vld [vmem:[%s348 + $0xc5] sm:$0xff]
        %v2949 = vld [vmem:[%s348 + $0xcd] sm:$0xff]
        %v2950 = vld [vmem:[%s348 + $0xdd] sm:$0xff]
        %v2951 = vld [vmem:[%s348 + $0xe5] sm:$0xff]
        %v2952 = vld [vmem:[%s348 + $0xf5] sm:$0xff]
        %v2953 = vld [vmem:[%s348 + $0xfd] sm:$0xff]
        %v2954 = vld [vmem:[%s348 + $0x10d] sm:$0xff]
        %v2955 = vld [vmem:[%s348 + $0x115] sm:$0xff]
        %v2956 = vld [vmem:[%s348 + $0x125] sm:$0xff]
        %v2957 = vld [vmem:[%s348 + $0x12d] sm:$0xff]
        %v2958 = vld [vmem:[%s348 + $0x13d] sm:$0xff]
        %v2959 = vld [vmem:[%s348 + $0x145] sm:$0xff]
        %v2960 = vld [vmem:[%s348 + $0x155] sm:$0xff]
        %v2961 = vld [vmem:[%s348 + $0x15d] sm:$0xff]
        %v2962 = vld [vmem:[%s348 + $0x16d] sm:$0xff]
        %v2963 = vld [vmem:[%s348 + $0x175] sm:$0xff]
        %v2964 = vperm.slane %v2931, 0
        %v2965 = vmul.f32 %v2932, %v2964
        %v2966 = vmul.f32 %v2933, %v2964
        %v2967 = vmul.f32 %v2934, %v2964
        %v2968 = vmul.f32 %v2935, %v2964
        %v2969 = vmul.f32 %v2936, %v2964
        %v2970 = vmul.f32 %v2937, %v2964
        %v2971 = vmul.f32 %v2938, %v2964
        %v2972 = vmul.f32 %v2939, %v2964
        %v2973 = vmul.f32 %v2940, %v2964
        %v2974 = vmul.f32 %v2941, %v2964
        %v2975 = vmul.f32 %v2942, %v2964
        %v2976 = vmul.f32 %v2943, %v2964
        %v2977 = vmul.f32 %v2944, %v2964
        %v2978 = vmul.f32 %v2945, %v2964
        %v2979 = vmul.f32 %v2946, %v2964
        %v2980 = vmul.f32 %v2947, %v2964
        %v2981 = vmul.f32 %v2948, %v2964
        %v2982 = vmul.f32 %v2949, %v2964
        %v2983 = vmul.f32 %v2950, %v2964
        %v2984 = vmul.f32 %v2951, %v2964
        %v2985 = vmul.f32 %v2952, %v2964
        %v2986 = vmul.f32 %v2953, %v2964
        %v2987 = vmul.f32 %v2954, %v2964
        %v2988 = vmul.f32 %v2955, %v2964
        %v2989 = vmul.f32 %v2956, %v2964
        %v2990 = vmul.f32 %v2957, %v2964
        %v2991 = vmul.f32 %v2958, %v2964
        %v2992 = vmul.f32 %v2959, %v2964
        %v2993 = vmul.f32 %v2960, %v2964
        %v2994 = vmul.f32 %v2961, %v2964
        %v2995 = vmul.f32 %v2962, %v2964
        %v2996 = vmul.f32 %v2963, %v2964
        %v2997 = vadd.f32 %v2899, %v2965
        %v2998 = vadd.f32 %v2900, %v2966
        %v2999 = vadd.f32 %v2901, %v2967
        %v3000 = vadd.f32 %v2902, %v2968
        %v3001 = vadd.f32 %v2903, %v2969
        %v3002 = vadd.f32 %v2904, %v2970
        %v3003 = vadd.f32 %v2905, %v2971
        %v3004 = vadd.f32 %v2906, %v2972
        %v3005 = vadd.f32 %v2907, %v2973
        %v3006 = vadd.f32 %v2908, %v2974
        %v3007 = vadd.f32 %v2909, %v2975
        %v3008 = vadd.f32 %v2910, %v2976
        %v3009 = vadd.f32 %v2911, %v2977
        %v3010 = vadd.f32 %v2912, %v2978
        %v3011 = vadd.f32 %v2913, %v2979
        %v3012 = vadd.f32 %v2914, %v2980
        %v3013 = vadd.f32 %v2915, %v2981
        %v3014 = vadd.f32 %v2916, %v2982
        %v3015 = vadd.f32 %v2917, %v2983
        %v3016 = vadd.f32 %v2918, %v2984
        %v3017 = vadd.f32 %v2919, %v2985
        %v3018 = vadd.f32 %v2920, %v2986
        %v3019 = vadd.f32 %v2921, %v2987
        %v3020 = vadd.f32 %v2922, %v2988
        %v3021 = vadd.f32 %v2923, %v2989
        %v3022 = vadd.f32 %v2924, %v2990
        %v3023 = vadd.f32 %v2925, %v2991
        %v3024 = vadd.f32 %v2926, %v2992
        %v3025 = vadd.f32 %v2927, %v2993
        %v3026 = vadd.f32 %v2928, %v2994
        %v3027 = vadd.f32 %v2929, %v2995
        %v3028 = vadd.f32 %v2930, %v2996
        %v3029 = vld [vmem:[#allocation3 + $0x1b] sm:$0x1]
        %v3030 = vld [vmem:[%s348 + $0x6] sm:$0xff]
        %v3031 = vld [vmem:[%s348 + $0xe] sm:$0xff]
        %v3032 = vld [vmem:[%s348 + $0x1e] sm:$0xff]
        %v3033 = vld [vmem:[%s348 + $0x26] sm:$0xff]
        %v3034 = vld [vmem:[%s348 + $0x36] sm:$0xff]
        %v3035 = vld [vmem:[%s348 + $0x3e] sm:$0xff]
        %v3036 = vld [vmem:[%s348 + $0x4e] sm:$0xff]
        %v3037 = vld [vmem:[%s348 + $0x56] sm:$0xff]
        %v3038 = vld [vmem:[%s348 + $0x66] sm:$0xff]
        %v3039 = vld [vmem:[%s348 + $0x6e] sm:$0xff]
        %v3040 = vld [vmem:[%s348 + $0x7e] sm:$0xff]
        %v3041 = vld [vmem:[%s348 + $0x86] sm:$0xff]
        %v3042 = vld [vmem:[%s348 + $0x96] sm:$0xff]
        %v3043 = vld [vmem:[%s348 + $0x9e] sm:$0xff]
        %v3044 = vld [vmem:[%s348 + $0xae] sm:$0xff]
        %v3045 = vld [vmem:[%s348 + $0xb6] sm:$0xff]
        %v3046 = vld [vmem:[%s348 + $0xc6] sm:$0xff]
        %v3047 = vld [vmem:[%s348 + $0xce] sm:$0xff]
        %v3048 = vld [vmem:[%s348 + $0xde] sm:$0xff]
        %v3049 = vld [vmem:[%s348 + $0xe6] sm:$0xff]
        %v3050 = vld [vmem:[%s348 + $0xf6] sm:$0xff]
        %v3051 = vld [vmem:[%s348 + $0xfe] sm:$0xff]
        %v3052 = vld [vmem:[%s348 + $0x10e] sm:$0xff]
        %v3053 = vld [vmem:[%s348 + $0x116] sm:$0xff]
        %v3054 = vld [vmem:[%s348 + $0x126] sm:$0xff]
        %v3055 = vld [vmem:[%s348 + $0x12e] sm:$0xff]
        %v3056 = vld [vmem:[%s348 + $0x13e] sm:$0xff]
        %v3057 = vld [vmem:[%s348 + $0x146] sm:$0xff]
        %v3058 = vld [vmem:[%s348 + $0x156] sm:$0xff]
        %v3059 = vld [vmem:[%s348 + $0x15e] sm:$0xff]
        %v3060 = vld [vmem:[%s348 + $0x16e] sm:$0xff]
        %v3061 = vld [vmem:[%s348 + $0x176] sm:$0xff]
        %v3062 = vperm.slane %v3029, 0
        %v3063 = vmul.f32 %v3030, %v3062
        %v3064 = vmul.f32 %v3031, %v3062
        %v3065 = vmul.f32 %v3032, %v3062
        %v3066 = vmul.f32 %v3033, %v3062
        %v3067 = vmul.f32 %v3034, %v3062
        %v3068 = vmul.f32 %v3035, %v3062
        %v3069 = vmul.f32 %v3036, %v3062
        %v3070 = vmul.f32 %v3037, %v3062
        %v3071 = vmul.f32 %v3038, %v3062
        %v3072 = vmul.f32 %v3039, %v3062
        %v3073 = vmul.f32 %v3040, %v3062
        %v3074 = vmul.f32 %v3041, %v3062
        %v3075 = vmul.f32 %v3042, %v3062
        %v3076 = vmul.f32 %v3043, %v3062
        %v3077 = vmul.f32 %v3044, %v3062
        %v3078 = vmul.f32 %v3045, %v3062
        %v3079 = vmul.f32 %v3046, %v3062
        %v3080 = vmul.f32 %v3047, %v3062
        %v3081 = vmul.f32 %v3048, %v3062
        %v3082 = vmul.f32 %v3049, %v3062
        %v3083 = vmul.f32 %v3050, %v3062
        %v3084 = vmul.f32 %v3051, %v3062
        %v3085 = vmul.f32 %v3052, %v3062
        %v3086 = vmul.f32 %v3053, %v3062
        %v3087 = vmul.f32 %v3054, %v3062
        %v3088 = vmul.f32 %v3055, %v3062
        %v3089 = vmul.f32 %v3056, %v3062
        %v3090 = vmul.f32 %v3057, %v3062
        %v3091 = vmul.f32 %v3058, %v3062
        %v3092 = vmul.f32 %v3059, %v3062
        %v3093 = vmul.f32 %v3060, %v3062
        %v3094 = vmul.f32 %v3061, %v3062
        %v3095 = vadd.f32 %v2997, %v3063
        %v3096 = vadd.f32 %v2998, %v3064
        %v3097 = vadd.f32 %v2999, %v3065
        %v3098 = vadd.f32 %v3000, %v3066
        %v3099 = vadd.f32 %v3001, %v3067
        %v3100 = vadd.f32 %v3002, %v3068
        %v3101 = vadd.f32 %v3003, %v3069
        %v3102 = vadd.f32 %v3004, %v3070
        %v3103 = vadd.f32 %v3005, %v3071
        %v3104 = vadd.f32 %v3006, %v3072
        %v3105 = vadd.f32 %v3007, %v3073
        %v3106 = vadd.f32 %v3008, %v3074
        %v3107 = vadd.f32 %v3009, %v3075
        %v3108 = vadd.f32 %v3010, %v3076
        %v3109 = vadd.f32 %v3011, %v3077
        %v3110 = vadd.f32 %v3012, %v3078
        %v3111 = vadd.f32 %v3013, %v3079
        %v3112 = vadd.f32 %v3014, %v3080
        %v3113 = vadd.f32 %v3015, %v3081
        %v3114 = vadd.f32 %v3016, %v3082
        %v3115 = vadd.f32 %v3017, %v3083
        %v3116 = vadd.f32 %v3018, %v3084
        %v3117 = vadd.f32 %v3019, %v3085
        %v3118 = vadd.f32 %v3020, %v3086
        %v3119 = vadd.f32 %v3021, %v3087
        %v3120 = vadd.f32 %v3022, %v3088
        %v3121 = vadd.f32 %v3023, %v3089
        %v3122 = vadd.f32 %v3024, %v3090
        %v3123 = vadd.f32 %v3025, %v3091
        %v3124 = vadd.f32 %v3026, %v3092
        %v3125 = vadd.f32 %v3027, %v3093
        %v3126 = vadd.f32 %v3028, %v3094
        %v3127 = vld [vmem:[#allocation3 + $0x1c] sm:$0x1]
        %s3128 = scalar_lea.vmem [#allocation2], 96
        %v3129 = vld [vmem:[%s3128] sm:$0xff]
        %v3130 = vld [vmem:[%s3128 + $0x8] sm:$0xff]
        %v3131 = vld [vmem:[%s3128 + $0x18] sm:$0xff]
        %v3132 = vld [vmem:[%s3128 + $0x20] sm:$0xff]
        %v3133 = vld [vmem:[%s3128 + $0x30] sm:$0xff]
        %v3134 = vld [vmem:[%s3128 + $0x38] sm:$0xff]
        %v3135 = vld [vmem:[%s3128 + $0x48] sm:$0xff]
        %v3136 = vld [vmem:[%s3128 + $0x50] sm:$0xff]
        %v3137 = vld [vmem:[%s3128 + $0x60] sm:$0xff]
        %v3138 = vld [vmem:[%s3128 + $0x68] sm:$0xff]
        %v3139 = vld [vmem:[%s3128 + $0x78] sm:$0xff]
        %v3140 = vld [vmem:[%s3128 + $0x80] sm:$0xff]
        %v3141 = vld [vmem:[%s3128 + $0x90] sm:$0xff]
        %v3142 = vld [vmem:[%s3128 + $0x98] sm:$0xff]
        %v3143 = vld [vmem:[%s3128 + $0xa8] sm:$0xff]
        %v3144 = vld [vmem:[%s3128 + $0xb0] sm:$0xff]
        %v3145 = vld [vmem:[%s3128 + $0xc0] sm:$0xff]
        %v3146 = vld [vmem:[%s3128 + $0xc8] sm:$0xff]
        %v3147 = vld [vmem:[%s3128 + $0xd8] sm:$0xff]
        %v3148 = vld [vmem:[%s3128 + $0xe0] sm:$0xff]
        %v3149 = vld [vmem:[%s3128 + $0xf0] sm:$0xff]
        %v3150 = vld [vmem:[%s3128 + $0xf8] sm:$0xff]
        %v3151 = vld [vmem:[%s3128 + $0x108] sm:$0xff]
        %v3152 = vld [vmem:[%s3128 + $0x110] sm:$0xff]
        %v3153 = vld [vmem:[%s3128 + $0x120] sm:$0xff]
        %v3154 = vld [vmem:[%s3128 + $0x128] sm:$0xff]
        %v3155 = vld [vmem:[%s3128 + $0x138] sm:$0xff]
        %v3156 = vld [vmem:[%s3128 + $0x140] sm:$0xff]
        %v3157 = vld [vmem:[%s3128 + $0x150] sm:$0xff]
        %v3158 = vld [vmem:[%s3128 + $0x158] sm:$0xff]
        %v3159 = vld [vmem:[%s3128 + $0x168] sm:$0xff]
        %v3160 = vld [vmem:[%s3128 + $0x170] sm:$0xff]
        %v3161 = vperm.slane %v3127, 0
        %v3162 = vmul.f32 %v3129, %v3161
        %v3163 = vmul.f32 %v3130, %v3161
        %v3164 = vmul.f32 %v3131, %v3161
        %v3165 = vmul.f32 %v3132, %v3161
        %v3166 = vmul.f32 %v3133, %v3161
        %v3167 = vmul.f32 %v3134, %v3161
        %v3168 = vmul.f32 %v3135, %v3161
        %v3169 = vmul.f32 %v3136, %v3161
        %v3170 = vmul.f32 %v3137, %v3161
        %v3171 = vmul.f32 %v3138, %v3161
        %v3172 = vmul.f32 %v3139, %v3161
        %v3173 = vmul.f32 %v3140, %v3161
        %v3174 = vmul.f32 %v3141, %v3161
        %v3175 = vmul.f32 %v3142, %v3161
        %v3176 = vmul.f32 %v3143, %v3161
        %v3177 = vmul.f32 %v3144, %v3161
        %v3178 = vmul.f32 %v3145, %v3161
        %v3179 = vmul.f32 %v3146, %v3161
        %v3180 = vmul.f32 %v3147, %v3161
        %v3181 = vmul.f32 %v3148, %v3161
        %v3182 = vmul.f32 %v3149, %v3161
        %v3183 = vmul.f32 %v3150, %v3161
        %v3184 = vmul.f32 %v3151, %v3161
        %v3185 = vmul.f32 %v3152, %v3161
        %v3186 = vmul.f32 %v3153, %v3161
        %v3187 = vmul.f32 %v3154, %v3161
        %v3188 = vmul.f32 %v3155, %v3161
        %v3189 = vmul.f32 %v3156, %v3161
        %v3190 = vmul.f32 %v3157, %v3161
        %v3191 = vmul.f32 %v3158, %v3161
        %v3192 = vmul.f32 %v3159, %v3161
        %v3193 = vmul.f32 %v3160, %v3161
        %v3194 = vadd.f32 %v3095, %v3162
        %v3195 = vadd.f32 %v3096, %v3163
        %v3196 = vadd.f32 %v3097, %v3164
        %v3197 = vadd.f32 %v3098, %v3165
        %v3198 = vadd.f32 %v3099, %v3166
        %v3199 = vadd.f32 %v3100, %v3167
        %v3200 = vadd.f32 %v3101, %v3168
        %v3201 = vadd.f32 %v3102, %v3169
        %v3202 = vadd.f32 %v3103, %v3170
        %v3203 = vadd.f32 %v3104, %v3171
        %v3204 = vadd.f32 %v3105, %v3172
        %v3205 = vadd.f32 %v3106, %v3173
        %v3206 = vadd.f32 %v3107, %v3174
        %v3207 = vadd.f32 %v3108, %v3175
        %v3208 = vadd.f32 %v3109, %v3176
        %v3209 = vadd.f32 %v3110, %v3177
        %v3210 = vadd.f32 %v3111, %v3178
        %v3211 = vadd.f32 %v3112, %v3179
        %v3212 = vadd.f32 %v3113, %v3180
        %v3213 = vadd.f32 %v3114, %v3181
        %v3214 = vadd.f32 %v3115, %v3182
        %v3215 = vadd.f32 %v3116, %v3183
        %v3216 = vadd.f32 %v3117, %v3184
        %v3217 = vadd.f32 %v3118, %v3185
        %v3218 = vadd.f32 %v3119, %v3186
        %v3219 = vadd.f32 %v3120, %v3187
        %v3220 = vadd.f32 %v3121, %v3188
        %v3221 = vadd.f32 %v3122, %v3189
        %v3222 = vadd.f32 %v3123, %v3190
        %v3223 = vadd.f32 %v3124, %v3191
        %v3224 = vadd.f32 %v3125, %v3192
        %v3225 = vadd.f32 %v3126, %v3193
        %v3226 = vld [vmem:[#allocation3 + $0x1d] sm:$0x1]
        %v3227 = vld [vmem:[%s3128 + $0x1] sm:$0xff]
        %v3228 = vld [vmem:[%s3128 + $0x9] sm:$0xff]
        %v3229 = vld [vmem:[%s3128 + $0x19] sm:$0xff]
        %v3230 = vld [vmem:[%s3128 + $0x21] sm:$0xff]
        %v3231 = vld [vmem:[%s3128 + $0x31] sm:$0xff]
        %v3232 = vld [vmem:[%s3128 + $0x39] sm:$0xff]
        %v3233 = vld [vmem:[%s3128 + $0x49] sm:$0xff]
        %v3234 = vld [vmem:[%s3128 + $0x51] sm:$0xff]
        %v3235 = vld [vmem:[%s3128 + $0x61] sm:$0xff]
        %v3236 = vld [vmem:[%s3128 + $0x69] sm:$0xff]
        %v3237 = vld [vmem:[%s3128 + $0x79] sm:$0xff]
        %v3238 = vld [vmem:[%s3128 + $0x81] sm:$0xff]
        %v3239 = vld [vmem:[%s3128 + $0x91] sm:$0xff]
        %v3240 = vld [vmem:[%s3128 + $0x99] sm:$0xff]
        %v3241 = vld [vmem:[%s3128 + $0xa9] sm:$0xff]
        %v3242 = vld [vmem:[%s3128 + $0xb1] sm:$0xff]
        %v3243 = vld [vmem:[%s3128 + $0xc1] sm:$0xff]
        %v3244 = vld [vmem:[%s3128 + $0xc9] sm:$0xff]
        %v3245 = vld [vmem:[%s3128 + $0xd9] sm:$0xff]
        %v3246 = vld [vmem:[%s3128 + $0xe1] sm:$0xff]
        %v3247 = vld [vmem:[%s3128 + $0xf1] sm:$0xff]
        %v3248 = vld [vmem:[%s3128 + $0xf9] sm:$0xff]
        %v3249 = vld [vmem:[%s3128 + $0x109] sm:$0xff]
        %v3250 = vld [vmem:[%s3128 + $0x111] sm:$0xff]
        %v3251 = vld [vmem:[%s3128 + $0x121] sm:$0xff]
        %v3252 = vld [vmem:[%s3128 + $0x129] sm:$0xff]
        %v3253 = vld [vmem:[%s3128 + $0x139] sm:$0xff]
        %v3254 = vld [vmem:[%s3128 + $0x141] sm:$0xff]
        %v3255 = vld [vmem:[%s3128 + $0x151] sm:$0xff]
        %v3256 = vld [vmem:[%s3128 + $0x159] sm:$0xff]
        %v3257 = vld [vmem:[%s3128 + $0x169] sm:$0xff]
        %v3258 = vld [vmem:[%s3128 + $0x171] sm:$0xff]
        %v3259 = vperm.slane %v3226, 0
        %v3260 = vmul.f32 %v3227, %v3259
        %v3261 = vmul.f32 %v3228, %v3259
        %v3262 = vmul.f32 %v3229, %v3259
        %v3263 = vmul.f32 %v3230, %v3259
        %v3264 = vmul.f32 %v3231, %v3259
        %v3265 = vmul.f32 %v3232, %v3259
        %v3266 = vmul.f32 %v3233, %v3259
        %v3267 = vmul.f32 %v3234, %v3259
        %v3268 = vmul.f32 %v3235, %v3259
        %v3269 = vmul.f32 %v3236, %v3259
        %v3270 = vmul.f32 %v3237, %v3259
        %v3271 = vmul.f32 %v3238, %v3259
        %v3272 = vmul.f32 %v3239, %v3259
        %v3273 = vmul.f32 %v3240, %v3259
        %v3274 = vmul.f32 %v3241, %v3259
        %v3275 = vmul.f32 %v3242, %v3259
        %v3276 = vmul.f32 %v3243, %v3259
        %v3277 = vmul.f32 %v3244, %v3259
        %v3278 = vmul.f32 %v3245, %v3259
        %v3279 = vmul.f32 %v3246, %v3259
        %v3280 = vmul.f32 %v3247, %v3259
        %v3281 = vmul.f32 %v3248, %v3259
        %v3282 = vmul.f32 %v3249, %v3259
        %v3283 = vmul.f32 %v3250, %v3259
        %v3284 = vmul.f32 %v3251, %v3259
        %v3285 = vmul.f32 %v3252, %v3259
        %v3286 = vmul.f32 %v3253, %v3259
        %v3287 = vmul.f32 %v3254, %v3259
        %v3288 = vmul.f32 %v3255, %v3259
        %v3289 = vmul.f32 %v3256, %v3259
        %v3290 = vmul.f32 %v3257, %v3259
        %v3291 = vmul.f32 %v3258, %v3259
        %v3292 = vadd.f32 %v3194, %v3260
        %v3293 = vadd.f32 %v3195, %v3261
        %v3294 = vadd.f32 %v3196, %v3262
        %v3295 = vadd.f32 %v3197, %v3263
        %v3296 = vadd.f32 %v3198, %v3264
        %v3297 = vadd.f32 %v3199, %v3265
        %v3298 = vadd.f32 %v3200, %v3266
        %v3299 = vadd.f32 %v3201, %v3267
        %v3300 = vadd.f32 %v3202, %v3268
        %v3301 = vadd.f32 %v3203, %v3269
        %v3302 = vadd.f32 %v3204, %v3270
        %v3303 = vadd.f32 %v3205, %v3271
        %v3304 = vadd.f32 %v3206, %v3272
        %v3305 = vadd.f32 %v3207, %v3273
        %v3306 = vadd.f32 %v3208, %v3274
        %v3307 = vadd.f32 %v3209, %v3275
        %v3308 = vadd.f32 %v3210, %v3276
        %v3309 = vadd.f32 %v3211, %v3277
        %v3310 = vadd.f32 %v3212, %v3278
        %v3311 = vadd.f32 %v3213, %v3279
        %v3312 = vadd.f32 %v3214, %v3280
        %v3313 = vadd.f32 %v3215, %v3281
        %v3314 = vadd.f32 %v3216, %v3282
        %v3315 = vadd.f32 %v3217, %v3283
        %v3316 = vadd.f32 %v3218, %v3284
        %v3317 = vadd.f32 %v3219, %v3285
        %v3318 = vadd.f32 %v3220, %v3286
        %v3319 = vadd.f32 %v3221, %v3287
        %v3320 = vadd.f32 %v3222, %v3288
        %v3321 = vadd.f32 %v3223, %v3289
        %v3322 = vadd.f32 %v3224, %v3290
        %v3323 = vadd.f32 %v3225, %v3291
        %v3324 = vld [vmem:[#allocation3 + $0x1e] sm:$0x1]
        %v3325 = vld [vmem:[%s3128 + $0x2] sm:$0xff]
        %v3326 = vld [vmem:[%s3128 + $0xa] sm:$0xff]
        %v3327 = vld [vmem:[%s3128 + $0x1a] sm:$0xff]
        %v3328 = vld [vmem:[%s3128 + $0x22] sm:$0xff]
        %v3329 = vld [vmem:[%s3128 + $0x32] sm:$0xff]
        %v3330 = vld [vmem:[%s3128 + $0x3a] sm:$0xff]
        %v3331 = vld [vmem:[%s3128 + $0x4a] sm:$0xff]
        %v3332 = vld [vmem:[%s3128 + $0x52] sm:$0xff]
        %v3333 = vld [vmem:[%s3128 + $0x62] sm:$0xff]
        %v3334 = vld [vmem:[%s3128 + $0x6a] sm:$0xff]
        %v3335 = vld [vmem:[%s3128 + $0x7a] sm:$0xff]
        %v3336 = vld [vmem:[%s3128 + $0x82] sm:$0xff]
        %v3337 = vld [vmem:[%s3128 + $0x92] sm:$0xff]
        %v3338 = vld [vmem:[%s3128 + $0x9a] sm:$0xff]
        %v3339 = vld [vmem:[%s3128 + $0xaa] sm:$0xff]
        %v3340 = vld [vmem:[%s3128 + $0xb2] sm:$0xff]
        %v3341 = vld [vmem:[%s3128 + $0xc2] sm:$0xff]
        %v3342 = vld [vmem:[%s3128 + $0xca] sm:$0xff]
        %v3343 = vld [vmem:[%s3128 + $0xda] sm:$0xff]
        %v3344 = vld [vmem:[%s3128 + $0xe2] sm:$0xff]
        %v3345 = vld [vmem:[%s3128 + $0xf2] sm:$0xff]
        %v3346 = vld [vmem:[%s3128 + $0xfa] sm:$0xff]
        %v3347 = vld [vmem:[%s3128 + $0x10a] sm:$0xff]
        %v3348 = vld [vmem:[%s3128 + $0x112] sm:$0xff]
        %v3349 = vld [vmem:[%s3128 + $0x122] sm:$0xff]
        %v3350 = vld [vmem:[%s3128 + $0x12a] sm:$0xff]
        %v3351 = vld [vmem:[%s3128 + $0x13a] sm:$0xff]
        %v3352 = vld [vmem:[%s3128 + $0x142] sm:$0xff]
        %v3353 = vld [vmem:[%s3128 + $0x152] sm:$0xff]
        %v3354 = vld [vmem:[%s3128 + $0x15a] sm:$0xff]
        %v3355 = vld [vmem:[%s3128 + $0x16a] sm:$0xff]
        %v3356 = vld [vmem:[%s3128 + $0x172] sm:$0xff]
        %v3357 = vperm.slane %v3324, 0
        %v3358 = vmul.f32 %v3325, %v3357
        %v3359 = vmul.f32 %v3326, %v3357
        %v3360 = vmul.f32 %v3327, %v3357
        %v3361 = vmul.f32 %v3328, %v3357
        %v3362 = vmul.f32 %v3329, %v3357
        %v3363 = vmul.f32 %v3330, %v3357
        %v3364 = vmul.f32 %v3331, %v3357
        %v3365 = vmul.f32 %v3332, %v3357
        %v3366 = vmul.f32 %v3333, %v3357
        %v3367 = vmul.f32 %v3334, %v3357
        %v3368 = vmul.f32 %v3335, %v3357
        %v3369 = vmul.f32 %v3336, %v3357
        %v3370 = vmul.f32 %v3337, %v3357
        %v3371 = vmul.f32 %v3338, %v3357
        %v3372 = vmul.f32 %v3339, %v3357
        %v3373 = vmul.f32 %v3340, %v3357
        %v3374 = vmul.f32 %v3341, %v3357
        %v3375 = vmul.f32 %v3342, %v3357
        %v3376 = vmul.f32 %v3343, %v3357
        %v3377 = vmul.f32 %v3344, %v3357
        %v3378 = vmul.f32 %v3345, %v3357
        %v3379 = vmul.f32 %v3346, %v3357
        %v3380 = vmul.f32 %v3347, %v3357
        %v3381 = vmul.f32 %v3348, %v3357
        %v3382 = vmul.f32 %v3349, %v3357
        %v3383 = vmul.f32 %v3350, %v3357
        %v3384 = vmul.f32 %v3351, %v3357
        %v3385 = vmul.f32 %v3352, %v3357
        %v3386 = vmul.f32 %v3353, %v3357
        %v3387 = vmul.f32 %v3354, %v3357
        %v3388 = vmul.f32 %v3355, %v3357
        %v3389 = vmul.f32 %v3356, %v3357
        %v3390 = vadd.f32 %v3292, %v3358
        %v3391 = vadd.f32 %v3293, %v3359
        %v3392 = vadd.f32 %v3294, %v3360
        %v3393 = vadd.f32 %v3295, %v3361
        %v3394 = vadd.f32 %v3296, %v3362
        %v3395 = vadd.f32 %v3297, %v3363
        %v3396 = vadd.f32 %v3298, %v3364
        %v3397 = vadd.f32 %v3299, %v3365
        %v3398 = vadd.f32 %v3300, %v3366
        %v3399 = vadd.f32 %v3301, %v3367
        %v3400 = vadd.f32 %v3302, %v3368
        %v3401 = vadd.f32 %v3303, %v3369
        %v3402 = vadd.f32 %v3304, %v3370
        %v3403 = vadd.f32 %v3305, %v3371
        %v3404 = vadd.f32 %v3306, %v3372
        %v3405 = vadd.f32 %v3307, %v3373
        %v3406 = vadd.f32 %v3308, %v3374
        %v3407 = vadd.f32 %v3309, %v3375
        %v3408 = vadd.f32 %v3310, %v3376
        %v3409 = vadd.f32 %v3311, %v3377
        %v3410 = vadd.f32 %v3312, %v3378
        %v3411 = vadd.f32 %v3313, %v3379
        %v3412 = vadd.f32 %v3314, %v3380
        %v3413 = vadd.f32 %v3315, %v3381
        %v3414 = vadd.f32 %v3316, %v3382
        %v3415 = vadd.f32 %v3317, %v3383
        %v3416 = vadd.f32 %v3318, %v3384
        %v3417 = vadd.f32 %v3319, %v3385
        %v3418 = vadd.f32 %v3320, %v3386
        %v3419 = vadd.f32 %v3321, %v3387
        %v3420 = vadd.f32 %v3322, %v3388
        %v3421 = vadd.f32 %v3323, %v3389
        %v3422 = vld [vmem:[#allocation3 + $0x1f] sm:$0x1]
        %v3423 = vld [vmem:[%s3128 + $0x3] sm:$0xff]
        %v3424 = vld [vmem:[%s3128 + $0xb] sm:$0xff]
        %v3425 = vld [vmem:[%s3128 + $0x1b] sm:$0xff]
        %v3426 = vld [vmem:[%s3128 + $0x23] sm:$0xff]
        %v3427 = vld [vmem:[%s3128 + $0x33] sm:$0xff]
        %v3428 = vld [vmem:[%s3128 + $0x3b] sm:$0xff]
        %v3429 = vld [vmem:[%s3128 + $0x4b] sm:$0xff]
        %v3430 = vld [vmem:[%s3128 + $0x53] sm:$0xff]
        %v3431 = vld [vmem:[%s3128 + $0x63] sm:$0xff]
        %v3432 = vld [vmem:[%s3128 + $0x6b] sm:$0xff]
        %v3433 = vld [vmem:[%s3128 + $0x7b] sm:$0xff]
        %v3434 = vld [vmem:[%s3128 + $0x83] sm:$0xff]
        %v3435 = vld [vmem:[%s3128 + $0x93] sm:$0xff]
        %v3436 = vld [vmem:[%s3128 + $0x9b] sm:$0xff]
        %v3437 = vld [vmem:[%s3128 + $0xab] sm:$0xff]
        %v3438 = vld [vmem:[%s3128 + $0xb3] sm:$0xff]
        %v3439 = vld [vmem:[%s3128 + $0xc3] sm:$0xff]
        %v3440 = vld [vmem:[%s3128 + $0xcb] sm:$0xff]
        %v3441 = vld [vmem:[%s3128 + $0xdb] sm:$0xff]
        %v3442 = vld [vmem:[%s3128 + $0xe3] sm:$0xff]
        %v3443 = vld [vmem:[%s3128 + $0xf3] sm:$0xff]
        %v3444 = vld [vmem:[%s3128 + $0xfb] sm:$0xff]
        %v3445 = vld [vmem:[%s3128 + $0x10b] sm:$0xff]
        %v3446 = vld [vmem:[%s3128 + $0x113] sm:$0xff]
        %v3447 = vld [vmem:[%s3128 + $0x123] sm:$0xff]
        %v3448 = vld [vmem:[%s3128 + $0x12b] sm:$0xff]
        %v3449 = vld [vmem:[%s3128 + $0x13b] sm:$0xff]
        %v3450 = vld [vmem:[%s3128 + $0x143] sm:$0xff]
        %v3451 = vld [vmem:[%s3128 + $0x153] sm:$0xff]
        %v3452 = vld [vmem:[%s3128 + $0x15b] sm:$0xff]
        %v3453 = vld [vmem:[%s3128 + $0x16b] sm:$0xff]
        %v3454 = vld [vmem:[%s3128 + $0x173] sm:$0xff]
        %v3455 = vperm.slane %v3422, 0
        %v3456 = vmul.f32 %v3423, %v3455
        %v3457 = vmul.f32 %v3424, %v3455
        %v3458 = vmul.f32 %v3425, %v3455
        %v3459 = vmul.f32 %v3426, %v3455
        %v3460 = vmul.f32 %v3427, %v3455
        %v3461 = vmul.f32 %v3428, %v3455
        %v3462 = vmul.f32 %v3429, %v3455
        %v3463 = vmul.f32 %v3430, %v3455
        %v3464 = vmul.f32 %v3431, %v3455
        %v3465 = vmul.f32 %v3432, %v3455
        %v3466 = vmul.f32 %v3433, %v3455
        %v3467 = vmul.f32 %v3434, %v3455
        %v3468 = vmul.f32 %v3435, %v3455
        %v3469 = vmul.f32 %v3436, %v3455
        %v3470 = vmul.f32 %v3437, %v3455
        %v3471 = vmul.f32 %v3438, %v3455
        %v3472 = vmul.f32 %v3439, %v3455
        %v3473 = vmul.f32 %v3440, %v3455
        %v3474 = vmul.f32 %v3441, %v3455
        %v3475 = vmul.f32 %v3442, %v3455
        %v3476 = vmul.f32 %v3443, %v3455
        %v3477 = vmul.f32 %v3444, %v3455
        %v3478 = vmul.f32 %v3445, %v3455
        %v3479 = vmul.f32 %v3446, %v3455
        %v3480 = vmul.f32 %v3447, %v3455
        %v3481 = vmul.f32 %v3448, %v3455
        %v3482 = vmul.f32 %v3449, %v3455
        %v3483 = vmul.f32 %v3450, %v3455
        %v3484 = vmul.f32 %v3451, %v3455
        %v3485 = vmul.f32 %v3452, %v3455
        %v3486 = vmul.f32 %v3453, %v3455
        %v3487 = vmul.f32 %v3454, %v3455
        %v3488 = vadd.f32 %v3390, %v3456
        %v3489 = vadd.f32 %v3391, %v3457
        %v3490 = vadd.f32 %v3392, %v3458
        %v3491 = vadd.f32 %v3393, %v3459
        %v3492 = vadd.f32 %v3394, %v3460
        %v3493 = vadd.f32 %v3395, %v3461
        %v3494 = vadd.f32 %v3396, %v3462
        %v3495 = vadd.f32 %v3397, %v3463
        %v3496 = vadd.f32 %v3398, %v3464
        %v3497 = vadd.f32 %v3399, %v3465
        %v3498 = vadd.f32 %v3400, %v3466
        %v3499 = vadd.f32 %v3401, %v3467
        %v3500 = vadd.f32 %v3402, %v3468
        %v3501 = vadd.f32 %v3403, %v3469
        %v3502 = vadd.f32 %v3404, %v3470
        %v3503 = vadd.f32 %v3405, %v3471
        %v3504 = vadd.f32 %v3406, %v3472
        %v3505 = vadd.f32 %v3407, %v3473
        %v3506 = vadd.f32 %v3408, %v3474
        %v3507 = vadd.f32 %v3409, %v3475
        %v3508 = vadd.f32 %v3410, %v3476
        %v3509 = vadd.f32 %v3411, %v3477
        %v3510 = vadd.f32 %v3412, %v3478
        %v3511 = vadd.f32 %v3413, %v3479
        %v3512 = vadd.f32 %v3414, %v3480
        %v3513 = vadd.f32 %v3415, %v3481
        %v3514 = vadd.f32 %v3416, %v3482
        %v3515 = vadd.f32 %v3417, %v3483
        %v3516 = vadd.f32 %v3418, %v3484
        %v3517 = vadd.f32 %v3419, %v3485
        %v3518 = vadd.f32 %v3420, %v3486
        %v3519 = vadd.f32 %v3421, %v3487
        %v3520 = vld [vmem:[#allocation3 + $0x20] sm:$0x1]
        %v3521 = vld [vmem:[%s3128 + $0x4] sm:$0xff]
        %v3522 = vld [vmem:[%s3128 + $0xc] sm:$0xff]
        %v3523 = vld [vmem:[%s3128 + $0x1c] sm:$0xff]
        %v3524 = vld [vmem:[%s3128 + $0x24] sm:$0xff]
        %v3525 = vld [vmem:[%s3128 + $0x34] sm:$0xff]
        %v3526 = vld [vmem:[%s3128 + $0x3c] sm:$0xff]
        %v3527 = vld [vmem:[%s3128 + $0x4c] sm:$0xff]
        %v3528 = vld [vmem:[%s3128 + $0x54] sm:$0xff]
        %v3529 = vld [vmem:[%s3128 + $0x64] sm:$0xff]
        %v3530 = vld [vmem:[%s3128 + $0x6c] sm:$0xff]
        %v3531 = vld [vmem:[%s3128 + $0x7c] sm:$0xff]
        %v3532 = vld [vmem:[%s3128 + $0x84] sm:$0xff]
        %v3533 = vld [vmem:[%s3128 + $0x94] sm:$0xff]
        %v3534 = vld [vmem:[%s3128 + $0x9c] sm:$0xff]
        %v3535 = vld [vmem:[%s3128 + $0xac] sm:$0xff]
        %v3536 = vld [vmem:[%s3128 + $0xb4] sm:$0xff]
        %v3537 = vld [vmem:[%s3128 + $0xc4] sm:$0xff]
        %v3538 = vld [vmem:[%s3128 + $0xcc] sm:$0xff]
        %v3539 = vld [vmem:[%s3128 + $0xdc] sm:$0xff]
        %v3540 = vld [vmem:[%s3128 + $0xe4] sm:$0xff]
        %v3541 = vld [vmem:[%s3128 + $0xf4] sm:$0xff]
        %v3542 = vld [vmem:[%s3128 + $0xfc] sm:$0xff]
        %v3543 = vld [vmem:[%s3128 + $0x10c] sm:$0xff]
        %v3544 = vld [vmem:[%s3128 + $0x114] sm:$0xff]
        %v3545 = vld [vmem:[%s3128 + $0x124] sm:$0xff]
        %v3546 = vld [vmem:[%s3128 + $0x12c] sm:$0xff]
        %v3547 = vld [vmem:[%s3128 + $0x13c] sm:$0xff]
        %v3548 = vld [vmem:[%s3128 + $0x144] sm:$0xff]
        %v3549 = vld [vmem:[%s3128 + $0x154] sm:$0xff]
        %v3550 = vld [vmem:[%s3128 + $0x15c] sm:$0xff]
        %v3551 = vld [vmem:[%s3128 + $0x16c] sm:$0xff]
        %v3552 = vld [vmem:[%s3128 + $0x174] sm:$0xff]
        %v3553 = vperm.slane %v3520, 0
        %v3554 = vmul.f32 %v3521, %v3553
        %v3555 = vmul.f32 %v3522, %v3553
        %v3556 = vmul.f32 %v3523, %v3553
        %v3557 = vmul.f32 %v3524, %v3553
        %v3558 = vmul.f32 %v3525, %v3553
        %v3559 = vmul.f32 %v3526, %v3553
        %v3560 = vmul.f32 %v3527, %v3553
        %v3561 = vmul.f32 %v3528, %v3553
        %v3562 = vmul.f32 %v3529, %v3553
        %v3563 = vmul.f32 %v3530, %v3553
        %v3564 = vmul.f32 %v3531, %v3553
        %v3565 = vmul.f32 %v3532, %v3553
        %v3566 = vmul.f32 %v3533, %v3553
        %v3567 = vmul.f32 %v3534, %v3553
        %v3568 = vmul.f32 %v3535, %v3553
        %v3569 = vmul.f32 %v3536, %v3553
        %v3570 = vmul.f32 %v3537, %v3553
        %v3571 = vmul.f32 %v3538, %v3553
        %v3572 = vmul.f32 %v3539, %v3553
        %v3573 = vmul.f32 %v3540, %v3553
        %v3574 = vmul.f32 %v3541, %v3553
        %v3575 = vmul.f32 %v3542, %v3553
        %v3576 = vmul.f32 %v3543, %v3553
        %v3577 = vmul.f32 %v3544, %v3553
        %v3578 = vmul.f32 %v3545, %v3553
        %v3579 = vmul.f32 %v3546, %v3553
        %v3580 = vmul.f32 %v3547, %v3553
        %v3581 = vmul.f32 %v3548, %v3553
        %v3582 = vmul.f32 %v3549, %v3553
        %v3583 = vmul.f32 %v3550, %v3553
        %v3584 = vmul.f32 %v3551, %v3553
        %v3585 = vmul.f32 %v3552, %v3553
        %v3586 = vadd.f32 %v3488, %v3554
        %v3587 = vadd.f32 %v3489, %v3555
        %v3588 = vadd.f32 %v3490, %v3556
        %v3589 = vadd.f32 %v3491, %v3557
        %v3590 = vadd.f32 %v3492, %v3558
        %v3591 = vadd.f32 %v3493, %v3559
        %v3592 = vadd.f32 %v3494, %v3560
        %v3593 = vadd.f32 %v3495, %v3561
        %v3594 = vadd.f32 %v3496, %v3562
        %v3595 = vadd.f32 %v3497, %v3563
        %v3596 = vadd.f32 %v3498, %v3564
        %v3597 = vadd.f32 %v3499, %v3565
        %v3598 = vadd.f32 %v3500, %v3566
        %v3599 = vadd.f32 %v3501, %v3567
        %v3600 = vadd.f32 %v3502, %v3568
        %v3601 = vadd.f32 %v3503, %v3569
        %v3602 = vadd.f32 %v3504, %v3570
        %v3603 = vadd.f32 %v3505, %v3571
        %v3604 = vadd.f32 %v3506, %v3572
        %v3605 = vadd.f32 %v3507, %v3573
        %v3606 = vadd.f32 %v3508, %v3574
        %v3607 = vadd.f32 %v3509, %v3575
        %v3608 = vadd.f32 %v3510, %v3576
        %v3609 = vadd.f32 %v3511, %v3577
        %v3610 = vadd.f32 %v3512, %v3578
        %v3611 = vadd.f32 %v3513, %v3579
        %v3612 = vadd.f32 %v3514, %v3580
        %v3613 = vadd.f32 %v3515, %v3581
        %v3614 = vadd.f32 %v3516, %v3582
        %v3615 = vadd.f32 %v3517, %v3583
        %v3616 = vadd.f32 %v3518, %v3584
        %v3617 = vadd.f32 %v3519, %v3585
        %v3618 = vld [vmem:[#allocation3 + $0x21] sm:$0x1]
        %v3619 = vld [vmem:[%s3128 + $0x5] sm:$0xff]
        %v3620 = vld [vmem:[%s3128 + $0xd] sm:$0xff]
        %v3621 = vld [vmem:[%s3128 + $0x1d] sm:$0xff]
        %v3622 = vld [vmem:[%s3128 + $0x25] sm:$0xff]
        %v3623 = vld [vmem:[%s3128 + $0x35] sm:$0xff]
        %v3624 = vld [vmem:[%s3128 + $0x3d] sm:$0xff]
        %v3625 = vld [vmem:[%s3128 + $0x4d] sm:$0xff]
        %v3626 = vld [vmem:[%s3128 + $0x55] sm:$0xff]
        %v3627 = vld [vmem:[%s3128 + $0x65] sm:$0xff]
        %v3628 = vld [vmem:[%s3128 + $0x6d] sm:$0xff]
        %v3629 = vld [vmem:[%s3128 + $0x7d] sm:$0xff]
        %v3630 = vld [vmem:[%s3128 + $0x85] sm:$0xff]
        %v3631 = vld [vmem:[%s3128 + $0x95] sm:$0xff]
        %v3632 = vld [vmem:[%s3128 + $0x9d] sm:$0xff]
        %v3633 = vld [vmem:[%s3128 + $0xad] sm:$0xff]
        %v3634 = vld [vmem:[%s3128 + $0xb5] sm:$0xff]
        %v3635 = vld [vmem:[%s3128 + $0xc5] sm:$0xff]
        %v3636 = vld [vmem:[%s3128 + $0xcd] sm:$0xff]
        %v3637 = vld [vmem:[%s3128 + $0xdd] sm:$0xff]
        %v3638 = vld [vmem:[%s3128 + $0xe5] sm:$0xff]
        %v3639 = vld [vmem:[%s3128 + $0xf5] sm:$0xff]
        %v3640 = vld [vmem:[%s3128 + $0xfd] sm:$0xff]
        %v3641 = vld [vmem:[%s3128 + $0x10d] sm:$0xff]
        %v3642 = vld [vmem:[%s3128 + $0x115] sm:$0xff]
        %v3643 = vld [vmem:[%s3128 + $0x125] sm:$0xff]
        %v3644 = vld [vmem:[%s3128 + $0x12d] sm:$0xff]
        %v3645 = vld [vmem:[%s3128 + $0x13d] sm:$0xff]
        %v3646 = vld [vmem:[%s3128 + $0x145] sm:$0xff]
        %v3647 = vld [vmem:[%s3128 + $0x155] sm:$0xff]
        %v3648 = vld [vmem:[%s3128 + $0x15d] sm:$0xff]
        %v3649 = vld [vmem:[%s3128 + $0x16d] sm:$0xff]
        %v3650 = vld [vmem:[%s3128 + $0x175] sm:$0xff]
        %v3651 = vperm.slane %v3618, 0
        %v3652 = vmul.f32 %v3619, %v3651
        %v3653 = vmul.f32 %v3620, %v3651
        %v3654 = vmul.f32 %v3621, %v3651
        %v3655 = vmul.f32 %v3622, %v3651
        %v3656 = vmul.f32 %v3623, %v3651
        %v3657 = vmul.f32 %v3624, %v3651
        %v3658 = vmul.f32 %v3625, %v3651
        %v3659 = vmul.f32 %v3626, %v3651
        %v3660 = vmul.f32 %v3627, %v3651
        %v3661 = vmul.f32 %v3628, %v3651
        %v3662 = vmul.f32 %v3629, %v3651
        %v3663 = vmul.f32 %v3630, %v3651
        %v3664 = vmul.f32 %v3631, %v3651
        %v3665 = vmul.f32 %v3632, %v3651
        %v3666 = vmul.f32 %v3633, %v3651
        %v3667 = vmul.f32 %v3634, %v3651
        %v3668 = vmul.f32 %v3635, %v3651
        %v3669 = vmul.f32 %v3636, %v3651
        %v3670 = vmul.f32 %v3637, %v3651
        %v3671 = vmul.f32 %v3638, %v3651
        %v3672 = vmul.f32 %v3639, %v3651
        %v3673 = vmul.f32 %v3640, %v3651
        %v3674 = vmul.f32 %v3641, %v3651
        %v3675 = vmul.f32 %v3642, %v3651
        %v3676 = vmul.f32 %v3643, %v3651
        %v3677 = vmul.f32 %v3644, %v3651
        %v3678 = vmul.f32 %v3645, %v3651
        %v3679 = vmul.f32 %v3646, %v3651
        %v3680 = vmul.f32 %v3647, %v3651
        %v3681 = vmul.f32 %v3648, %v3651
        %v3682 = vmul.f32 %v3649, %v3651
        %v3683 = vmul.f32 %v3650, %v3651
        %v3684 = vadd.f32 %v3586, %v3652
        %v3685 = vadd.f32 %v3587, %v3653
        %v3686 = vadd.f32 %v3588, %v3654
        %v3687 = vadd.f32 %v3589, %v3655
        %v3688 = vadd.f32 %v3590, %v3656
        %v3689 = vadd.f32 %v3591, %v3657
        %v3690 = vadd.f32 %v3592, %v3658
        %v3691 = vadd.f32 %v3593, %v3659
        %v3692 = vadd.f32 %v3594, %v3660
        %v3693 = vadd.f32 %v3595, %v3661
        %v3694 = vadd.f32 %v3596, %v3662
        %v3695 = vadd.f32 %v3597, %v3663
        %v3696 = vadd.f32 %v3598, %v3664
        %v3697 = vadd.f32 %v3599, %v3665
        %v3698 = vadd.f32 %v3600, %v3666
        %v3699 = vadd.f32 %v3601, %v3667
        %v3700 = vadd.f32 %v3602, %v3668
        %v3701 = vadd.f32 %v3603, %v3669
        %v3702 = vadd.f32 %v3604, %v3670
        %v3703 = vadd.f32 %v3605, %v3671
        %v3704 = vadd.f32 %v3606, %v3672
        %v3705 = vadd.f32 %v3607, %v3673
        %v3706 = vadd.f32 %v3608, %v3674
        %v3707 = vadd.f32 %v3609, %v3675
        %v3708 = vadd.f32 %v3610, %v3676
        %v3709 = vadd.f32 %v3611, %v3677
        %v3710 = vadd.f32 %v3612, %v3678
        %v3711 = vadd.f32 %v3613, %v3679
        %v3712 = vadd.f32 %v3614, %v3680
        %v3713 = vadd.f32 %v3615, %v3681
        %v3714 = vadd.f32 %v3616, %v3682
        %v3715 = vadd.f32 %v3617, %v3683
        %v3716 = vld [vmem:[#allocation3 + $0x22] sm:$0x1]
        %v3717 = vld [vmem:[%s3128 + $0x6] sm:$0xff]
        %v3718 = vld [vmem:[%s3128 + $0xe] sm:$0xff]
        %v3719 = vld [vmem:[%s3128 + $0x1e] sm:$0xff]
        %v3720 = vld [vmem:[%s3128 + $0x26] sm:$0xff]
        %v3721 = vld [vmem:[%s3128 + $0x36] sm:$0xff]
        %v3722 = vld [vmem:[%s3128 + $0x3e] sm:$0xff]
        %v3723 = vld [vmem:[%s3128 + $0x4e] sm:$0xff]
        %v3724 = vld [vmem:[%s3128 + $0x56] sm:$0xff]
        %v3725 = vld [vmem:[%s3128 + $0x66] sm:$0xff]
        %v3726 = vld [vmem:[%s3128 + $0x6e] sm:$0xff]
        %v3727 = vld [vmem:[%s3128 + $0x7e] sm:$0xff]
        %v3728 = vld [vmem:[%s3128 + $0x86] sm:$0xff]
        %v3729 = vld [vmem:[%s3128 + $0x96] sm:$0xff]
        %v3730 = vld [vmem:[%s3128 + $0x9e] sm:$0xff]
        %v3731 = vld [vmem:[%s3128 + $0xae] sm:$0xff]
        %v3732 = vld [vmem:[%s3128 + $0xb6] sm:$0xff]
        %v3733 = vld [vmem:[%s3128 + $0xc6] sm:$0xff]
        %v3734 = vld [vmem:[%s3128 + $0xce] sm:$0xff]
        %v3735 = vld [vmem:[%s3128 + $0xde] sm:$0xff]
        %v3736 = vld [vmem:[%s3128 + $0xe6] sm:$0xff]
        %v3737 = vld [vmem:[%s3128 + $0xf6] sm:$0xff]
        %v3738 = vld [vmem:[%s3128 + $0xfe] sm:$0xff]
        %v3739 = vld [vmem:[%s3128 + $0x10e] sm:$0xff]
        %v3740 = vld [vmem:[%s3128 + $0x116] sm:$0xff]
        %v3741 = vld [vmem:[%s3128 + $0x126] sm:$0xff]
        %v3742 = vld [vmem:[%s3128 + $0x12e] sm:$0xff]
        %v3743 = vld [vmem:[%s3128 + $0x13e] sm:$0xff]
        %v3744 = vld [vmem:[%s3128 + $0x146] sm:$0xff]
        %v3745 = vld [vmem:[%s3128 + $0x156] sm:$0xff]
        %v3746 = vld [vmem:[%s3128 + $0x15e] sm:$0xff]
        %v3747 = vld [vmem:[%s3128 + $0x16e] sm:$0xff]
        %v3748 = vld [vmem:[%s3128 + $0x176] sm:$0xff]
        %v3749 = vperm.slane %v3716, 0
        %v3750 = vmul.f32 %v3717, %v3749
        %v3751 = vmul.f32 %v3718, %v3749
        %v3752 = vmul.f32 %v3719, %v3749
        %v3753 = vmul.f32 %v3720, %v3749
        %v3754 = vmul.f32 %v3721, %v3749
        %v3755 = vmul.f32 %v3722, %v3749
        %v3756 = vmul.f32 %v3723, %v3749
        %v3757 = vmul.f32 %v3724, %v3749
        %v3758 = vmul.f32 %v3725, %v3749
        %v3759 = vmul.f32 %v3726, %v3749
        %v3760 = vmul.f32 %v3727, %v3749
        %v3761 = vmul.f32 %v3728, %v3749
        %v3762 = vmul.f32 %v3729, %v3749
        %v3763 = vmul.f32 %v3730, %v3749
        %v3764 = vmul.f32 %v3731, %v3749
        %v3765 = vmul.f32 %v3732, %v3749
        %v3766 = vmul.f32 %v3733, %v3749
        %v3767 = vmul.f32 %v3734, %v3749
        %v3768 = vmul.f32 %v3735, %v3749
        %v3769 = vmul.f32 %v3736, %v3749
        %v3770 = vmul.f32 %v3737, %v3749
        %v3771 = vmul.f32 %v3738, %v3749
        %v3772 = vmul.f32 %v3739, %v3749
        %v3773 = vmul.f32 %v3740, %v3749
        %v3774 = vmul.f32 %v3741, %v3749
        %v3775 = vmul.f32 %v3742, %v3749
        %v3776 = vmul.f32 %v3743, %v3749
        %v3777 = vmul.f32 %v3744, %v3749
        %v3778 = vmul.f32 %v3745, %v3749
        %v3779 = vmul.f32 %v3746, %v3749
        %v3780 = vmul.f32 %v3747, %v3749
        %v3781 = vmul.f32 %v3748, %v3749
        %v3782 = vadd.f32 %v3684, %v3750
        %v3783 = vadd.f32 %v3685, %v3751
        %v3784 = vadd.f32 %v3686, %v3752
        %v3785 = vadd.f32 %v3687, %v3753
        %v3786 = vadd.f32 %v3688, %v3754
        %v3787 = vadd.f32 %v3689, %v3755
        %v3788 = vadd.f32 %v3690, %v3756
        %v3789 = vadd.f32 %v3691, %v3757
        %v3790 = vadd.f32 %v3692, %v3758
        %v3791 = vadd.f32 %v3693, %v3759
        %v3792 = vadd.f32 %v3694, %v3760
        %v3793 = vadd.f32 %v3695, %v3761
        %v3794 = vadd.f32 %v3696, %v3762
        %v3795 = vadd.f32 %v3697, %v3763
        %v3796 = vadd.f32 %v3698, %v3764
        %v3797 = vadd.f32 %v3699, %v3765
        %v3798 = vadd.f32 %v3700, %v3766
        %v3799 = vadd.f32 %v3701, %v3767
        %v3800 = vadd.f32 %v3702, %v3768
        %v3801 = vadd.f32 %v3703, %v3769
        %v3802 = vadd.f32 %v3704, %v3770
        %v3803 = vadd.f32 %v3705, %v3771
        %v3804 = vadd.f32 %v3706, %v3772
        %v3805 = vadd.f32 %v3707, %v3773
        %v3806 = vadd.f32 %v3708, %v3774
        %v3807 = vadd.f32 %v3709, %v3775
        %v3808 = vadd.f32 %v3710, %v3776
        %v3809 = vadd.f32 %v3711, %v3777
        %v3810 = vadd.f32 %v3712, %v3778
        %v3811 = vadd.f32 %v3713, %v3779
        %v3812 = vadd.f32 %v3714, %v3780
        %v3813 = vadd.f32 %v3715, %v3781
        %v3814 = vld [vmem:[#allocation3 + $0x23] sm:$0x1]
        %s3815 = scalar_lea.vmem [#allocation2], 120
        %v3816 = vld [vmem:[%s3815] sm:$0xff]
        %v3817 = vld [vmem:[%s3815 + $0x8] sm:$0xff]
        %v3818 = vld [vmem:[%s3815 + $0x18] sm:$0xff]
        %v3819 = vld [vmem:[%s3815 + $0x20] sm:$0xff]
        %v3820 = vld [vmem:[%s3815 + $0x30] sm:$0xff]
        %v3821 = vld [vmem:[%s3815 + $0x38] sm:$0xff]
        %v3822 = vld [vmem:[%s3815 + $0x48] sm:$0xff]
        %v3823 = vld [vmem:[%s3815 + $0x50] sm:$0xff]
        %v3824 = vld [vmem:[%s3815 + $0x60] sm:$0xff]
        %v3825 = vld [vmem:[%s3815 + $0x68] sm:$0xff]
        %v3826 = vld [vmem:[%s3815 + $0x78] sm:$0xff]
        %v3827 = vld [vmem:[%s3815 + $0x80] sm:$0xff]
        %v3828 = vld [vmem:[%s3815 + $0x90] sm:$0xff]
        %v3829 = vld [vmem:[%s3815 + $0x98] sm:$0xff]
        %v3830 = vld [vmem:[%s3815 + $0xa8] sm:$0xff]
        %v3831 = vld [vmem:[%s3815 + $0xb0] sm:$0xff]
        %v3832 = vld [vmem:[%s3815 + $0xc0] sm:$0xff]
        %v3833 = vld [vmem:[%s3815 + $0xc8] sm:$0xff]
        %v3834 = vld [vmem:[%s3815 + $0xd8] sm:$0xff]
        %v3835 = vld [vmem:[%s3815 + $0xe0] sm:$0xff]
        %v3836 = vld [vmem:[%s3815 + $0xf0] sm:$0xff]
        %v3837 = vld [vmem:[%s3815 + $0xf8] sm:$0xff]
        %v3838 = vld [vmem:[%s3815 + $0x108] sm:$0xff]
        %v3839 = vld [vmem:[%s3815 + $0x110] sm:$0xff]
        %v3840 = vld [vmem:[%s3815 + $0x120] sm:$0xff]
        %v3841 = vld [vmem:[%s3815 + $0x128] sm:$0xff]
        %v3842 = vld [vmem:[%s3815 + $0x138] sm:$0xff]
        %v3843 = vld [vmem:[%s3815 + $0x140] sm:$0xff]
        %v3844 = vld [vmem:[%s3815 + $0x150] sm:$0xff]
        %v3845 = vld [vmem:[%s3815 + $0x158] sm:$0xff]
        %v3846 = vld [vmem:[%s3815 + $0x168] sm:$0xff]
        %v3847 = vld [vmem:[%s3815 + $0x170] sm:$0xff]
        %v3848 = vperm.slane %v3814, 0
        %v3849 = vmul.f32 %v3816, %v3848
        %v3850 = vmul.f32 %v3817, %v3848
        %v3851 = vmul.f32 %v3818, %v3848
        %v3852 = vmul.f32 %v3819, %v3848
        %v3853 = vmul.f32 %v3820, %v3848
        %v3854 = vmul.f32 %v3821, %v3848
        %v3855 = vmul.f32 %v3822, %v3848
        %v3856 = vmul.f32 %v3823, %v3848
        %v3857 = vmul.f32 %v3824, %v3848
        %v3858 = vmul.f32 %v3825, %v3848
        %v3859 = vmul.f32 %v3826, %v3848
        %v3860 = vmul.f32 %v3827, %v3848
        %v3861 = vmul.f32 %v3828, %v3848
        %v3862 = vmul.f32 %v3829, %v3848
        %v3863 = vmul.f32 %v3830, %v3848
        %v3864 = vmul.f32 %v3831, %v3848
        %v3865 = vmul.f32 %v3832, %v3848
        %v3866 = vmul.f32 %v3833, %v3848
        %v3867 = vmul.f32 %v3834, %v3848
        %v3868 = vmul.f32 %v3835, %v3848
        %v3869 = vmul.f32 %v3836, %v3848
        %v3870 = vmul.f32 %v3837, %v3848
        %v3871 = vmul.f32 %v3838, %v3848
        %v3872 = vmul.f32 %v3839, %v3848
        %v3873 = vmul.f32 %v3840, %v3848
        %v3874 = vmul.f32 %v3841, %v3848
        %v3875 = vmul.f32 %v3842, %v3848
        %v3876 = vmul.f32 %v3843, %v3848
        %v3877 = vmul.f32 %v3844, %v3848
        %v3878 = vmul.f32 %v3845, %v3848
        %v3879 = vmul.f32 %v3846, %v3848
        %v3880 = vmul.f32 %v3847, %v3848
        %v3881 = vadd.f32 %v3782, %v3849
        %v3882 = vadd.f32 %v3783, %v3850
        %v3883 = vadd.f32 %v3784, %v3851
        %v3884 = vadd.f32 %v3785, %v3852
        %v3885 = vadd.f32 %v3786, %v3853
        %v3886 = vadd.f32 %v3787, %v3854
        %v3887 = vadd.f32 %v3788, %v3855
        %v3888 = vadd.f32 %v3789, %v3856
        %v3889 = vadd.f32 %v3790, %v3857
        %v3890 = vadd.f32 %v3791, %v3858
        %v3891 = vadd.f32 %v3792, %v3859
        %v3892 = vadd.f32 %v3793, %v3860
        %v3893 = vadd.f32 %v3794, %v3861
        %v3894 = vadd.f32 %v3795, %v3862
        %v3895 = vadd.f32 %v3796, %v3863
        %v3896 = vadd.f32 %v3797, %v3864
        %v3897 = vadd.f32 %v3798, %v3865
        %v3898 = vadd.f32 %v3799, %v3866
        %v3899 = vadd.f32 %v3800, %v3867
        %v3900 = vadd.f32 %v3801, %v3868
        %v3901 = vadd.f32 %v3802, %v3869
        %v3902 = vadd.f32 %v3803, %v3870
        %v3903 = vadd.f32 %v3804, %v3871
        %v3904 = vadd.f32 %v3805, %v3872
        %v3905 = vadd.f32 %v3806, %v3873
        %v3906 = vadd.f32 %v3807, %v3874
        %v3907 = vadd.f32 %v3808, %v3875
        %v3908 = vadd.f32 %v3809, %v3876
        %v3909 = vadd.f32 %v3810, %v3877
        %v3910 = vadd.f32 %v3811, %v3878
        %v3911 = vadd.f32 %v3812, %v3879
        %v3912 = vadd.f32 %v3813, %v3880
        %v3913 = vld [vmem:[#allocation3 + $0x24] sm:$0x1]
        %v3914 = vld [vmem:[%s3815 + $0x1] sm:$0xff]
        %v3915 = vld [vmem:[%s3815 + $0x9] sm:$0xff]
        %v3916 = vld [vmem:[%s3815 + $0x19] sm:$0xff]
        %v3917 = vld [vmem:[%s3815 + $0x21] sm:$0xff]
        %v3918 = vld [vmem:[%s3815 + $0x31] sm:$0xff]
        %v3919 = vld [vmem:[%s3815 + $0x39] sm:$0xff]
        %v3920 = vld [vmem:[%s3815 + $0x49] sm:$0xff]
        %v3921 = vld [vmem:[%s3815 + $0x51] sm:$0xff]
        %v3922 = vld [vmem:[%s3815 + $0x61] sm:$0xff]
        %v3923 = vld [vmem:[%s3815 + $0x69] sm:$0xff]
        %v3924 = vld [vmem:[%s3815 + $0x79] sm:$0xff]
        %v3925 = vld [vmem:[%s3815 + $0x81] sm:$0xff]
        %v3926 = vld [vmem:[%s3815 + $0x91] sm:$0xff]
        %v3927 = vld [vmem:[%s3815 + $0x99] sm:$0xff]
        %v3928 = vld [vmem:[%s3815 + $0xa9] sm:$0xff]
        %v3929 = vld [vmem:[%s3815 + $0xb1] sm:$0xff]
        %v3930 = vld [vmem:[%s3815 + $0xc1] sm:$0xff]
        %v3931 = vld [vmem:[%s3815 + $0xc9] sm:$0xff]
        %v3932 = vld [vmem:[%s3815 + $0xd9] sm:$0xff]
        %v3933 = vld [vmem:[%s3815 + $0xe1] sm:$0xff]
        %v3934 = vld [vmem:[%s3815 + $0xf1] sm:$0xff]
        %v3935 = vld [vmem:[%s3815 + $0xf9] sm:$0xff]
        %v3936 = vld [vmem:[%s3815 + $0x109] sm:$0xff]
        %v3937 = vld [vmem:[%s3815 + $0x111] sm:$0xff]
        %v3938 = vld [vmem:[%s3815 + $0x121] sm:$0xff]
        %v3939 = vld [vmem:[%s3815 + $0x129] sm:$0xff]
        %v3940 = vld [vmem:[%s3815 + $0x139] sm:$0xff]
        %v3941 = vld [vmem:[%s3815 + $0x141] sm:$0xff]
        %v3942 = vld [vmem:[%s3815 + $0x151] sm:$0xff]
        %v3943 = vld [vmem:[%s3815 + $0x159] sm:$0xff]
        %v3944 = vld [vmem:[%s3815 + $0x169] sm:$0xff]
        %v3945 = vld [vmem:[%s3815 + $0x171] sm:$0xff]
        %v3946 = vperm.slane %v3913, 0
        %v3947 = vmul.f32 %v3914, %v3946
        %v3948 = vmul.f32 %v3915, %v3946
        %v3949 = vmul.f32 %v3916, %v3946
        %v3950 = vmul.f32 %v3917, %v3946
        %v3951 = vmul.f32 %v3918, %v3946
        %v3952 = vmul.f32 %v3919, %v3946
        %v3953 = vmul.f32 %v3920, %v3946
        %v3954 = vmul.f32 %v3921, %v3946
        %v3955 = vmul.f32 %v3922, %v3946
        %v3956 = vmul.f32 %v3923, %v3946
        %v3957 = vmul.f32 %v3924, %v3946
        %v3958 = vmul.f32 %v3925, %v3946
        %v3959 = vmul.f32 %v3926, %v3946
        %v3960 = vmul.f32 %v3927, %v3946
        %v3961 = vmul.f32 %v3928, %v3946
        %v3962 = vmul.f32 %v3929, %v3946
        %v3963 = vmul.f32 %v3930, %v3946
        %v3964 = vmul.f32 %v3931, %v3946
        %v3965 = vmul.f32 %v3932, %v3946
        %v3966 = vmul.f32 %v3933, %v3946
        %v3967 = vmul.f32 %v3934, %v3946
        %v3968 = vmul.f32 %v3935, %v3946
        %v3969 = vmul.f32 %v3936, %v3946
        %v3970 = vmul.f32 %v3937, %v3946
        %v3971 = vmul.f32 %v3938, %v3946
        %v3972 = vmul.f32 %v3939, %v3946
        %v3973 = vmul.f32 %v3940, %v3946
        %v3974 = vmul.f32 %v3941, %v3946
        %v3975 = vmul.f32 %v3942, %v3946
        %v3976 = vmul.f32 %v3943, %v3946
        %v3977 = vmul.f32 %v3944, %v3946
        %v3978 = vmul.f32 %v3945, %v3946
        %v3979 = vadd.f32 %v3881, %v3947
        %v3980 = vadd.f32 %v3882, %v3948
        %v3981 = vadd.f32 %v3883, %v3949
        %v3982 = vadd.f32 %v3884, %v3950
        %v3983 = vadd.f32 %v3885, %v3951
        %v3984 = vadd.f32 %v3886, %v3952
        %v3985 = vadd.f32 %v3887, %v3953
        %v3986 = vadd.f32 %v3888, %v3954
        %v3987 = vadd.f32 %v3889, %v3955
        %v3988 = vadd.f32 %v3890, %v3956
        %v3989 = vadd.f32 %v3891, %v3957
        %v3990 = vadd.f32 %v3892, %v3958
        %v3991 = vadd.f32 %v3893, %v3959
        %v3992 = vadd.f32 %v3894, %v3960
        %v3993 = vadd.f32 %v3895, %v3961
        %v3994 = vadd.f32 %v3896, %v3962
        %v3995 = vadd.f32 %v3897, %v3963
        %v3996 = vadd.f32 %v3898, %v3964
        %v3997 = vadd.f32 %v3899, %v3965
        %v3998 = vadd.f32 %v3900, %v3966
        %v3999 = vadd.f32 %v3901, %v3967
        %v4000 = vadd.f32 %v3902, %v3968
        %v4001 = vadd.f32 %v3903, %v3969
        %v4002 = vadd.f32 %v3904, %v3970
        %v4003 = vadd.f32 %v3905, %v3971
        %v4004 = vadd.f32 %v3906, %v3972
        %v4005 = vadd.f32 %v3907, %v3973
        %v4006 = vadd.f32 %v3908, %v3974
        %v4007 = vadd.f32 %v3909, %v3975
        %v4008 = vadd.f32 %v3910, %v3976
        %v4009 = vadd.f32 %v3911, %v3977
        %v4010 = vadd.f32 %v3912, %v3978
        %v4011 = vld [vmem:[#allocation3 + $0x25] sm:$0x1]
        %v4012 = vld [vmem:[%s3815 + $0x2] sm:$0xff]
        %v4013 = vld [vmem:[%s3815 + $0xa] sm:$0xff]
        %v4014 = vld [vmem:[%s3815 + $0x1a] sm:$0xff]
        %v4015 = vld [vmem:[%s3815 + $0x22] sm:$0xff]
        %v4016 = vld [vmem:[%s3815 + $0x32] sm:$0xff]
        %v4017 = vld [vmem:[%s3815 + $0x3a] sm:$0xff]
        %v4018 = vld [vmem:[%s3815 + $0x4a] sm:$0xff]
        %v4019 = vld [vmem:[%s3815 + $0x52] sm:$0xff]
        %v4020 = vld [vmem:[%s3815 + $0x62] sm:$0xff]
        %v4021 = vld [vmem:[%s3815 + $0x6a] sm:$0xff]
        %v4022 = vld [vmem:[%s3815 + $0x7a] sm:$0xff]
        %v4023 = vld [vmem:[%s3815 + $0x82] sm:$0xff]
        %v4024 = vld [vmem:[%s3815 + $0x92] sm:$0xff]
        %v4025 = vld [vmem:[%s3815 + $0x9a] sm:$0xff]
        %v4026 = vld [vmem:[%s3815 + $0xaa] sm:$0xff]
        %v4027 = vld [vmem:[%s3815 + $0xb2] sm:$0xff]
        %v4028 = vld [vmem:[%s3815 + $0xc2] sm:$0xff]
        %v4029 = vld [vmem:[%s3815 + $0xca] sm:$0xff]
        %v4030 = vld [vmem:[%s3815 + $0xda] sm:$0xff]
        %v4031 = vld [vmem:[%s3815 + $0xe2] sm:$0xff]
        %v4032 = vld [vmem:[%s3815 + $0xf2] sm:$0xff]
        %v4033 = vld [vmem:[%s3815 + $0xfa] sm:$0xff]
        %v4034 = vld [vmem:[%s3815 + $0x10a] sm:$0xff]
        %v4035 = vld [vmem:[%s3815 + $0x112] sm:$0xff]
        %v4036 = vld [vmem:[%s3815 + $0x122] sm:$0xff]
        %v4037 = vld [vmem:[%s3815 + $0x12a] sm:$0xff]
        %v4038 = vld [vmem:[%s3815 + $0x13a] sm:$0xff]
        %v4039 = vld [vmem:[%s3815 + $0x142] sm:$0xff]
        %v4040 = vld [vmem:[%s3815 + $0x152] sm:$0xff]
        %v4041 = vld [vmem:[%s3815 + $0x15a] sm:$0xff]
        %v4042 = vld [vmem:[%s3815 + $0x16a] sm:$0xff]
        %v4043 = vld [vmem:[%s3815 + $0x172] sm:$0xff]
        %v4044 = vperm.slane %v4011, 0
        %v4045 = vmul.f32 %v4012, %v4044
        %v4046 = vmul.f32 %v4013, %v4044
        %v4047 = vmul.f32 %v4014, %v4044
        %v4048 = vmul.f32 %v4015, %v4044
        %v4049 = vmul.f32 %v4016, %v4044
        %v4050 = vmul.f32 %v4017, %v4044
        %v4051 = vmul.f32 %v4018, %v4044
        %v4052 = vmul.f32 %v4019, %v4044
        %v4053 = vmul.f32 %v4020, %v4044
        %v4054 = vmul.f32 %v4021, %v4044
        %v4055 = vmul.f32 %v4022, %v4044
        %v4056 = vmul.f32 %v4023, %v4044
        %v4057 = vmul.f32 %v4024, %v4044
        %v4058 = vmul.f32 %v4025, %v4044
        %v4059 = vmul.f32 %v4026, %v4044
        %v4060 = vmul.f32 %v4027, %v4044
        %v4061 = vmul.f32 %v4028, %v4044
        %v4062 = vmul.f32 %v4029, %v4044
        %v4063 = vmul.f32 %v4030, %v4044
        %v4064 = vmul.f32 %v4031, %v4044
        %v4065 = vmul.f32 %v4032, %v4044
        %v4066 = vmul.f32 %v4033, %v4044
        %v4067 = vmul.f32 %v4034, %v4044
        %v4068 = vmul.f32 %v4035, %v4044
        %v4069 = vmul.f32 %v4036, %v4044
        %v4070 = vmul.f32 %v4037, %v4044
        %v4071 = vmul.f32 %v4038, %v4044
        %v4072 = vmul.f32 %v4039, %v4044
        %v4073 = vmul.f32 %v4040, %v4044
        %v4074 = vmul.f32 %v4041, %v4044
        %v4075 = vmul.f32 %v4042, %v4044
        %v4076 = vmul.f32 %v4043, %v4044
        %v4077 = vadd.f32 %v3979, %v4045
        %v4078 = vadd.f32 %v3980, %v4046
        %v4079 = vadd.f32 %v3981, %v4047
        %v4080 = vadd.f32 %v3982, %v4048
        %v4081 = vadd.f32 %v3983, %v4049
        %v4082 = vadd.f32 %v3984, %v4050
        %v4083 = vadd.f32 %v3985, %v4051
        %v4084 = vadd.f32 %v3986, %v4052
        %v4085 = vadd.f32 %v3987, %v4053
        %v4086 = vadd.f32 %v3988, %v4054
        %v4087 = vadd.f32 %v3989, %v4055
        %v4088 = vadd.f32 %v3990, %v4056
        %v4089 = vadd.f32 %v3991, %v4057
        %v4090 = vadd.f32 %v3992, %v4058
        %v4091 = vadd.f32 %v3993, %v4059
        %v4092 = vadd.f32 %v3994, %v4060
        %v4093 = vadd.f32 %v3995, %v4061
        %v4094 = vadd.f32 %v3996, %v4062
        %v4095 = vadd.f32 %v3997, %v4063
        %v4096 = vadd.f32 %v3998, %v4064
        %v4097 = vadd.f32 %v3999, %v4065
        %v4098 = vadd.f32 %v4000, %v4066
        %v4099 = vadd.f32 %v4001, %v4067
        %v4100 = vadd.f32 %v4002, %v4068
        %v4101 = vadd.f32 %v4003, %v4069
        %v4102 = vadd.f32 %v4004, %v4070
        %v4103 = vadd.f32 %v4005, %v4071
        %v4104 = vadd.f32 %v4006, %v4072
        %v4105 = vadd.f32 %v4007, %v4073
        %v4106 = vadd.f32 %v4008, %v4074
        %v4107 = vadd.f32 %v4009, %v4075
        %v4108 = vadd.f32 %v4010, %v4076
        %v4109 = vld [vmem:[#allocation3 + $0x26] sm:$0x1]
        %v4110 = vld [vmem:[%s3815 + $0x3] sm:$0xff]
        %v4111 = vld [vmem:[%s3815 + $0xb] sm:$0xff]
        %v4112 = vld [vmem:[%s3815 + $0x1b] sm:$0xff]
        %v4113 = vld [vmem:[%s3815 + $0x23] sm:$0xff]
        %v4114 = vld [vmem:[%s3815 + $0x33] sm:$0xff]
        %v4115 = vld [vmem:[%s3815 + $0x3b] sm:$0xff]
        %v4116 = vld [vmem:[%s3815 + $0x4b] sm:$0xff]
        %v4117 = vld [vmem:[%s3815 + $0x53] sm:$0xff]
        %v4118 = vld [vmem:[%s3815 + $0x63] sm:$0xff]
        %v4119 = vld [vmem:[%s3815 + $0x6b] sm:$0xff]
        %v4120 = vld [vmem:[%s3815 + $0x7b] sm:$0xff]
        %v4121 = vld [vmem:[%s3815 + $0x83] sm:$0xff]
        %v4122 = vld [vmem:[%s3815 + $0x93] sm:$0xff]
        %v4123 = vld [vmem:[%s3815 + $0x9b] sm:$0xff]
        %v4124 = vld [vmem:[%s3815 + $0xab] sm:$0xff]
        %v4125 = vld [vmem:[%s3815 + $0xb3] sm:$0xff]
        %v4126 = vld [vmem:[%s3815 + $0xc3] sm:$0xff]
        %v4127 = vld [vmem:[%s3815 + $0xcb] sm:$0xff]
        %v4128 = vld [vmem:[%s3815 + $0xdb] sm:$0xff]
        %v4129 = vld [vmem:[%s3815 + $0xe3] sm:$0xff]
        %v4130 = vld [vmem:[%s3815 + $0xf3] sm:$0xff]
        %v4131 = vld [vmem:[%s3815 + $0xfb] sm:$0xff]
        %v4132 = vld [vmem:[%s3815 + $0x10b] sm:$0xff]
        %v4133 = vld [vmem:[%s3815 + $0x113] sm:$0xff]
        %v4134 = vld [vmem:[%s3815 + $0x123] sm:$0xff]
        %v4135 = vld [vmem:[%s3815 + $0x12b] sm:$0xff]
        %v4136 = vld [vmem:[%s3815 + $0x13b] sm:$0xff]
        %v4137 = vld [vmem:[%s3815 + $0x143] sm:$0xff]
        %v4138 = vld [vmem:[%s3815 + $0x153] sm:$0xff]
        %v4139 = vld [vmem:[%s3815 + $0x15b] sm:$0xff]
        %v4140 = vld [vmem:[%s3815 + $0x16b] sm:$0xff]
        %v4141 = vld [vmem:[%s3815 + $0x173] sm:$0xff]
        %v4142 = vperm.slane %v4109, 0
        %v4143 = vmul.f32 %v4110, %v4142
        %v4144 = vmul.f32 %v4111, %v4142
        %v4145 = vmul.f32 %v4112, %v4142
        %v4146 = vmul.f32 %v4113, %v4142
        %v4147 = vmul.f32 %v4114, %v4142
        %v4148 = vmul.f32 %v4115, %v4142
        %v4149 = vmul.f32 %v4116, %v4142
        %v4150 = vmul.f32 %v4117, %v4142
        %v4151 = vmul.f32 %v4118, %v4142
        %v4152 = vmul.f32 %v4119, %v4142
        %v4153 = vmul.f32 %v4120, %v4142
        %v4154 = vmul.f32 %v4121, %v4142
        %v4155 = vmul.f32 %v4122, %v4142
        %v4156 = vmul.f32 %v4123, %v4142
        %v4157 = vmul.f32 %v4124, %v4142
        %v4158 = vmul.f32 %v4125, %v4142
        %v4159 = vmul.f32 %v4126, %v4142
        %v4160 = vmul.f32 %v4127, %v4142
        %v4161 = vmul.f32 %v4128, %v4142
        %v4162 = vmul.f32 %v4129, %v4142
        %v4163 = vmul.f32 %v4130, %v4142
        %v4164 = vmul.f32 %v4131, %v4142
        %v4165 = vmul.f32 %v4132, %v4142
        %v4166 = vmul.f32 %v4133, %v4142
        %v4167 = vmul.f32 %v4134, %v4142
        %v4168 = vmul.f32 %v4135, %v4142
        %v4169 = vmul.f32 %v4136, %v4142
        %v4170 = vmul.f32 %v4137, %v4142
        %v4171 = vmul.f32 %v4138, %v4142
        %v4172 = vmul.f32 %v4139, %v4142
        %v4173 = vmul.f32 %v4140, %v4142
        %v4174 = vmul.f32 %v4141, %v4142
        %v4175 = vadd.f32 %v4077, %v4143
        %v4176 = vadd.f32 %v4078, %v4144
        %v4177 = vadd.f32 %v4079, %v4145
        %v4178 = vadd.f32 %v4080, %v4146
        %v4179 = vadd.f32 %v4081, %v4147
        %v4180 = vadd.f32 %v4082, %v4148
        %v4181 = vadd.f32 %v4083, %v4149
        %v4182 = vadd.f32 %v4084, %v4150
        %v4183 = vadd.f32 %v4085, %v4151
        %v4184 = vadd.f32 %v4086, %v4152
        %v4185 = vadd.f32 %v4087, %v4153
        %v4186 = vadd.f32 %v4088, %v4154
        %v4187 = vadd.f32 %v4089, %v4155
        %v4188 = vadd.f32 %v4090, %v4156
        %v4189 = vadd.f32 %v4091, %v4157
        %v4190 = vadd.f32 %v4092, %v4158
        %v4191 = vadd.f32 %v4093, %v4159
        %v4192 = vadd.f32 %v4094, %v4160
        %v4193 = vadd.f32 %v4095, %v4161
        %v4194 = vadd.f32 %v4096, %v4162
        %v4195 = vadd.f32 %v4097, %v4163
        %v4196 = vadd.f32 %v4098, %v4164
        %v4197 = vadd.f32 %v4099, %v4165
        %v4198 = vadd.f32 %v4100, %v4166
        %v4199 = vadd.f32 %v4101, %v4167
        %v4200 = vadd.f32 %v4102, %v4168
        %v4201 = vadd.f32 %v4103, %v4169
        %v4202 = vadd.f32 %v4104, %v4170
        %v4203 = vadd.f32 %v4105, %v4171
        %v4204 = vadd.f32 %v4106, %v4172
        %v4205 = vadd.f32 %v4107, %v4173
        %v4206 = vadd.f32 %v4108, %v4174
        %v4207 = vld [vmem:[#allocation3 + $0x27] sm:$0x1]
        %v4208 = vld [vmem:[%s3815 + $0x4] sm:$0xff]
        %v4209 = vld [vmem:[%s3815 + $0xc] sm:$0xff]
        %v4210 = vld [vmem:[%s3815 + $0x1c] sm:$0xff]
        %v4211 = vld [vmem:[%s3815 + $0x24] sm:$0xff]
        %v4212 = vld [vmem:[%s3815 + $0x34] sm:$0xff]
        %v4213 = vld [vmem:[%s3815 + $0x3c] sm:$0xff]
        %v4214 = vld [vmem:[%s3815 + $0x4c] sm:$0xff]
        %v4215 = vld [vmem:[%s3815 + $0x54] sm:$0xff]
        %v4216 = vld [vmem:[%s3815 + $0x64] sm:$0xff]
        %v4217 = vld [vmem:[%s3815 + $0x6c] sm:$0xff]
        %v4218 = vld [vmem:[%s3815 + $0x7c] sm:$0xff]
        %v4219 = vld [vmem:[%s3815 + $0x84] sm:$0xff]
        %v4220 = vld [vmem:[%s3815 + $0x94] sm:$0xff]
        %v4221 = vld [vmem:[%s3815 + $0x9c] sm:$0xff]
        %v4222 = vld [vmem:[%s3815 + $0xac] sm:$0xff]
        %v4223 = vld [vmem:[%s3815 + $0xb4] sm:$0xff]
        %v4224 = vld [vmem:[%s3815 + $0xc4] sm:$0xff]
        %v4225 = vld [vmem:[%s3815 + $0xcc] sm:$0xff]
        %v4226 = vld [vmem:[%s3815 + $0xdc] sm:$0xff]
        %v4227 = vld [vmem:[%s3815 + $0xe4] sm:$0xff]
        %v4228 = vld [vmem:[%s3815 + $0xf4] sm:$0xff]
        %v4229 = vld [vmem:[%s3815 + $0xfc] sm:$0xff]
        %v4230 = vld [vmem:[%s3815 + $0x10c] sm:$0xff]
        %v4231 = vld [vmem:[%s3815 + $0x114] sm:$0xff]
        %v4232 = vld [vmem:[%s3815 + $0x124] sm:$0xff]
        %v4233 = vld [vmem:[%s3815 + $0x12c] sm:$0xff]
        %v4234 = vld [vmem:[%s3815 + $0x13c] sm:$0xff]
        %v4235 = vld [vmem:[%s3815 + $0x144] sm:$0xff]
        %v4236 = vld [vmem:[%s3815 + $0x154] sm:$0xff]
        %v4237 = vld [vmem:[%s3815 + $0x15c] sm:$0xff]
        %v4238 = vld [vmem:[%s3815 + $0x16c] sm:$0xff]
        %v4239 = vld [vmem:[%s3815 + $0x174] sm:$0xff]
        %v4240 = vperm.slane %v4207, 0
        %v4241 = vmul.f32 %v4208, %v4240
        %v4242 = vmul.f32 %v4209, %v4240
        %v4243 = vmul.f32 %v4210, %v4240
        %v4244 = vmul.f32 %v4211, %v4240
        %v4245 = vmul.f32 %v4212, %v4240
        %v4246 = vmul.f32 %v4213, %v4240
        %v4247 = vmul.f32 %v4214, %v4240
        %v4248 = vmul.f32 %v4215, %v4240
        %v4249 = vmul.f32 %v4216, %v4240
        %v4250 = vmul.f32 %v4217, %v4240
        %v4251 = vmul.f32 %v4218, %v4240
        %v4252 = vmul.f32 %v4219, %v4240
        %v4253 = vmul.f32 %v4220, %v4240
        %v4254 = vmul.f32 %v4221, %v4240
        %v4255 = vmul.f32 %v4222, %v4240
        %v4256 = vmul.f32 %v4223, %v4240
        %v4257 = vmul.f32 %v4224, %v4240
        %v4258 = vmul.f32 %v4225, %v4240
        %v4259 = vmul.f32 %v4226, %v4240
        %v4260 = vmul.f32 %v4227, %v4240
        %v4261 = vmul.f32 %v4228, %v4240
        %v4262 = vmul.f32 %v4229, %v4240
        %v4263 = vmul.f32 %v4230, %v4240
        %v4264 = vmul.f32 %v4231, %v4240
        %v4265 = vmul.f32 %v4232, %v4240
        %v4266 = vmul.f32 %v4233, %v4240
        %v4267 = vmul.f32 %v4234, %v4240
        %v4268 = vmul.f32 %v4235, %v4240
        %v4269 = vmul.f32 %v4236, %v4240
        %v4270 = vmul.f32 %v4237, %v4240
        %v4271 = vmul.f32 %v4238, %v4240
        %v4272 = vmul.f32 %v4239, %v4240
        %v4273 = vadd.f32 %v4175, %v4241
        %v4274 = vadd.f32 %v4176, %v4242
        %v4275 = vadd.f32 %v4177, %v4243
        %v4276 = vadd.f32 %v4178, %v4244
        %v4277 = vadd.f32 %v4179, %v4245
        %v4278 = vadd.f32 %v4180, %v4246
        %v4279 = vadd.f32 %v4181, %v4247
        %v4280 = vadd.f32 %v4182, %v4248
        %v4281 = vadd.f32 %v4183, %v4249
        %v4282 = vadd.f32 %v4184, %v4250
        %v4283 = vadd.f32 %v4185, %v4251
        %v4284 = vadd.f32 %v4186, %v4252
        %v4285 = vadd.f32 %v4187, %v4253
        %v4286 = vadd.f32 %v4188, %v4254
        %v4287 = vadd.f32 %v4189, %v4255
        %v4288 = vadd.f32 %v4190, %v4256
        %v4289 = vadd.f32 %v4191, %v4257
        %v4290 = vadd.f32 %v4192, %v4258
        %v4291 = vadd.f32 %v4193, %v4259
        %v4292 = vadd.f32 %v4194, %v4260
        %v4293 = vadd.f32 %v4195, %v4261
        %v4294 = vadd.f32 %v4196, %v4262
        %v4295 = vadd.f32 %v4197, %v4263
        %v4296 = vadd.f32 %v4198, %v4264
        %v4297 = vadd.f32 %v4199, %v4265
        %v4298 = vadd.f32 %v4200, %v4266
        %v4299 = vadd.f32 %v4201, %v4267
        %v4300 = vadd.f32 %v4202, %v4268
        %v4301 = vadd.f32 %v4203, %v4269
        %v4302 = vadd.f32 %v4204, %v4270
        %v4303 = vadd.f32 %v4205, %v4271
        %v4304 = vadd.f32 %v4206, %v4272
        %v4305 = vld [vmem:[#allocation3 + $0x28] sm:$0x1]
        %v4306 = vld [vmem:[%s3815 + $0x5] sm:$0xff]
        %v4307 = vld [vmem:[%s3815 + $0xd] sm:$0xff]
        %v4308 = vld [vmem:[%s3815 + $0x1d] sm:$0xff]
        %v4309 = vld [vmem:[%s3815 + $0x25] sm:$0xff]
        %v4310 = vld [vmem:[%s3815 + $0x35] sm:$0xff]
        %v4311 = vld [vmem:[%s3815 + $0x3d] sm:$0xff]
        %v4312 = vld [vmem:[%s3815 + $0x4d] sm:$0xff]
        %v4313 = vld [vmem:[%s3815 + $0x55] sm:$0xff]
        %v4314 = vld [vmem:[%s3815 + $0x65] sm:$0xff]
        %v4315 = vld [vmem:[%s3815 + $0x6d] sm:$0xff]
        %v4316 = vld [vmem:[%s3815 + $0x7d] sm:$0xff]
        %v4317 = vld [vmem:[%s3815 + $0x85] sm:$0xff]
        %v4318 = vld [vmem:[%s3815 + $0x95] sm:$0xff]
        %v4319 = vld [vmem:[%s3815 + $0x9d] sm:$0xff]
        %v4320 = vld [vmem:[%s3815 + $0xad] sm:$0xff]
        %v4321 = vld [vmem:[%s3815 + $0xb5] sm:$0xff]
        %v4322 = vld [vmem:[%s3815 + $0xc5] sm:$0xff]
        %v4323 = vld [vmem:[%s3815 + $0xcd] sm:$0xff]
        %v4324 = vld [vmem:[%s3815 + $0xdd] sm:$0xff]
        %v4325 = vld [vmem:[%s3815 + $0xe5] sm:$0xff]
        %v4326 = vld [vmem:[%s3815 + $0xf5] sm:$0xff]
        %v4327 = vld [vmem:[%s3815 + $0xfd] sm:$0xff]
        %v4328 = vld [vmem:[%s3815 + $0x10d] sm:$0xff]
        %v4329 = vld [vmem:[%s3815 + $0x115] sm:$0xff]
        %v4330 = vld [vmem:[%s3815 + $0x125] sm:$0xff]
        %v4331 = vld [vmem:[%s3815 + $0x12d] sm:$0xff]
        %v4332 = vld [vmem:[%s3815 + $0x13d] sm:$0xff]
        %v4333 = vld [vmem:[%s3815 + $0x145] sm:$0xff]
        %v4334 = vld [vmem:[%s3815 + $0x155] sm:$0xff]
        %v4335 = vld [vmem:[%s3815 + $0x15d] sm:$0xff]
        %v4336 = vld [vmem:[%s3815 + $0x16d] sm:$0xff]
        %v4337 = vld [vmem:[%s3815 + $0x175] sm:$0xff]
        %v4338 = vperm.slane %v4305, 0
        %v4339 = vmul.f32 %v4306, %v4338
        %v4340 = vmul.f32 %v4307, %v4338
        %v4341 = vmul.f32 %v4308, %v4338
        %v4342 = vmul.f32 %v4309, %v4338
        %v4343 = vmul.f32 %v4310, %v4338
        %v4344 = vmul.f32 %v4311, %v4338
        %v4345 = vmul.f32 %v4312, %v4338
        %v4346 = vmul.f32 %v4313, %v4338
        %v4347 = vmul.f32 %v4314, %v4338
        %v4348 = vmul.f32 %v4315, %v4338
        %v4349 = vmul.f32 %v4316, %v4338
        %v4350 = vmul.f32 %v4317, %v4338
        %v4351 = vmul.f32 %v4318, %v4338
        %v4352 = vmul.f32 %v4319, %v4338
        %v4353 = vmul.f32 %v4320, %v4338
        %v4354 = vmul.f32 %v4321, %v4338
        %v4355 = vmul.f32 %v4322, %v4338
        %v4356 = vmul.f32 %v4323, %v4338
        %v4357 = vmul.f32 %v4324, %v4338
        %v4358 = vmul.f32 %v4325, %v4338
        %v4359 = vmul.f32 %v4326, %v4338
        %v4360 = vmul.f32 %v4327, %v4338
        %v4361 = vmul.f32 %v4328, %v4338
        %v4362 = vmul.f32 %v4329, %v4338
        %v4363 = vmul.f32 %v4330, %v4338
        %v4364 = vmul.f32 %v4331, %v4338
        %v4365 = vmul.f32 %v4332, %v4338
        %v4366 = vmul.f32 %v4333, %v4338
        %v4367 = vmul.f32 %v4334, %v4338
        %v4368 = vmul.f32 %v4335, %v4338
        %v4369 = vmul.f32 %v4336, %v4338
        %v4370 = vmul.f32 %v4337, %v4338
        %v4371 = vadd.f32 %v4273, %v4339
        %v4372 = vadd.f32 %v4274, %v4340
        %v4373 = vadd.f32 %v4275, %v4341
        %v4374 = vadd.f32 %v4276, %v4342
        %v4375 = vadd.f32 %v4277, %v4343
        %v4376 = vadd.f32 %v4278, %v4344
        %v4377 = vadd.f32 %v4279, %v4345
        %v4378 = vadd.f32 %v4280, %v4346
        %v4379 = vadd.f32 %v4281, %v4347
        %v4380 = vadd.f32 %v4282, %v4348
        %v4381 = vadd.f32 %v4283, %v4349
        %v4382 = vadd.f32 %v4284, %v4350
        %v4383 = vadd.f32 %v4285, %v4351
        %v4384 = vadd.f32 %v4286, %v4352
        %v4385 = vadd.f32 %v4287, %v4353
        %v4386 = vadd.f32 %v4288, %v4354
        %v4387 = vadd.f32 %v4289, %v4355
        %v4388 = vadd.f32 %v4290, %v4356
        %v4389 = vadd.f32 %v4291, %v4357
        %v4390 = vadd.f32 %v4292, %v4358
        %v4391 = vadd.f32 %v4293, %v4359
        %v4392 = vadd.f32 %v4294, %v4360
        %v4393 = vadd.f32 %v4295, %v4361
        %v4394 = vadd.f32 %v4296, %v4362
        %v4395 = vadd.f32 %v4297, %v4363
        %v4396 = vadd.f32 %v4298, %v4364
        %v4397 = vadd.f32 %v4299, %v4365
        %v4398 = vadd.f32 %v4300, %v4366
        %v4399 = vadd.f32 %v4301, %v4367
        %v4400 = vadd.f32 %v4302, %v4368
        %v4401 = vadd.f32 %v4303, %v4369
        %v4402 = vadd.f32 %v4304, %v4370
        %v4403 = vld [vmem:[#allocation3 + $0x29] sm:$0x1]
        %v4404 = vld [vmem:[%s3815 + $0x6] sm:$0xff]
        %v4405 = vld [vmem:[%s3815 + $0xe] sm:$0xff]
        %v4406 = vld [vmem:[%s3815 + $0x1e] sm:$0xff]
        %v4407 = vld [vmem:[%s3815 + $0x26] sm:$0xff]
        %v4408 = vld [vmem:[%s3815 + $0x36] sm:$0xff]
        %v4409 = vld [vmem:[%s3815 + $0x3e] sm:$0xff]
        %v4410 = vld [vmem:[%s3815 + $0x4e] sm:$0xff]
        %v4411 = vld [vmem:[%s3815 + $0x56] sm:$0xff]
        %v4412 = vld [vmem:[%s3815 + $0x66] sm:$0xff]
        %v4413 = vld [vmem:[%s3815 + $0x6e] sm:$0xff]
        %v4414 = vld [vmem:[%s3815 + $0x7e] sm:$0xff]
        %v4415 = vld [vmem:[%s3815 + $0x86] sm:$0xff]
        %v4416 = vld [vmem:[%s3815 + $0x96] sm:$0xff]
        %v4417 = vld [vmem:[%s3815 + $0x9e] sm:$0xff]
        %v4418 = vld [vmem:[%s3815 + $0xae] sm:$0xff]
        %v4419 = vld [vmem:[%s3815 + $0xb6] sm:$0xff]
        %v4420 = vld [vmem:[%s3815 + $0xc6] sm:$0xff]
        %v4421 = vld [vmem:[%s3815 + $0xce] sm:$0xff]
        %v4422 = vld [vmem:[%s3815 + $0xde] sm:$0xff]
        %v4423 = vld [vmem:[%s3815 + $0xe6] sm:$0xff]
        %v4424 = vld [vmem:[%s3815 + $0xf6] sm:$0xff]
        %v4425 = vld [vmem:[%s3815 + $0xfe] sm:$0xff]
        %v4426 = vld [vmem:[%s3815 + $0x10e] sm:$0xff]
        %v4427 = vld [vmem:[%s3815 + $0x116] sm:$0xff]
        %v4428 = vld [vmem:[%s3815 + $0x126] sm:$0xff]
        %v4429 = vld [vmem:[%s3815 + $0x12e] sm:$0xff]
        %v4430 = vld [vmem:[%s3815 + $0x13e] sm:$0xff]
        %v4431 = vld [vmem:[%s3815 + $0x146] sm:$0xff]
        %v4432 = vld [vmem:[%s3815 + $0x156] sm:$0xff]
        %v4433 = vld [vmem:[%s3815 + $0x15e] sm:$0xff]
        %v4434 = vld [vmem:[%s3815 + $0x16e] sm:$0xff]
        %v4435 = vld [vmem:[%s3815 + $0x176] sm:$0xff]
        %v4436 = vperm.slane %v4403, 0
        %v4437 = vmul.f32 %v4404, %v4436
        %v4438 = vmul.f32 %v4405, %v4436
        %v4439 = vmul.f32 %v4406, %v4436
        %v4440 = vmul.f32 %v4407, %v4436
        %v4441 = vmul.f32 %v4408, %v4436
        %v4442 = vmul.f32 %v4409, %v4436
        %v4443 = vmul.f32 %v4410, %v4436
        %v4444 = vmul.f32 %v4411, %v4436
        %v4445 = vmul.f32 %v4412, %v4436
        %v4446 = vmul.f32 %v4413, %v4436
        %v4447 = vmul.f32 %v4414, %v4436
        %v4448 = vmul.f32 %v4415, %v4436
        %v4449 = vmul.f32 %v4416, %v4436
        %v4450 = vmul.f32 %v4417, %v4436
        %v4451 = vmul.f32 %v4418, %v4436
        %v4452 = vmul.f32 %v4419, %v4436
        %v4453 = vmul.f32 %v4420, %v4436
        %v4454 = vmul.f32 %v4421, %v4436
        %v4455 = vmul.f32 %v4422, %v4436
        %v4456 = vmul.f32 %v4423, %v4436
        %v4457 = vmul.f32 %v4424, %v4436
        %v4458 = vmul.f32 %v4425, %v4436
        %v4459 = vmul.f32 %v4426, %v4436
        %v4460 = vmul.f32 %v4427, %v4436
        %v4461 = vmul.f32 %v4428, %v4436
        %v4462 = vmul.f32 %v4429, %v4436
        %v4463 = vmul.f32 %v4430, %v4436
        %v4464 = vmul.f32 %v4431, %v4436
        %v4465 = vmul.f32 %v4432, %v4436
        %v4466 = vmul.f32 %v4433, %v4436
        %v4467 = vmul.f32 %v4434, %v4436
        %v4468 = vmul.f32 %v4435, %v4436
        %v4469 = vadd.f32 %v4371, %v4437
        %v4470 = vadd.f32 %v4372, %v4438
        %v4471 = vadd.f32 %v4373, %v4439
        %v4472 = vadd.f32 %v4374, %v4440
        %v4473 = vadd.f32 %v4375, %v4441
        %v4474 = vadd.f32 %v4376, %v4442
        %v4475 = vadd.f32 %v4377, %v4443
        %v4476 = vadd.f32 %v4378, %v4444
        %v4477 = vadd.f32 %v4379, %v4445
        %v4478 = vadd.f32 %v4380, %v4446
        %v4479 = vadd.f32 %v4381, %v4447
        %v4480 = vadd.f32 %v4382, %v4448
        %v4481 = vadd.f32 %v4383, %v4449
        %v4482 = vadd.f32 %v4384, %v4450
        %v4483 = vadd.f32 %v4385, %v4451
        %v4484 = vadd.f32 %v4386, %v4452
        %v4485 = vadd.f32 %v4387, %v4453
        %v4486 = vadd.f32 %v4388, %v4454
        %v4487 = vadd.f32 %v4389, %v4455
        %v4488 = vadd.f32 %v4390, %v4456
        %v4489 = vadd.f32 %v4391, %v4457
        %v4490 = vadd.f32 %v4392, %v4458
        %v4491 = vadd.f32 %v4393, %v4459
        %v4492 = vadd.f32 %v4394, %v4460
        %v4493 = vadd.f32 %v4395, %v4461
        %v4494 = vadd.f32 %v4396, %v4462
        %v4495 = vadd.f32 %v4397, %v4463
        %v4496 = vadd.f32 %v4398, %v4464
        %v4497 = vadd.f32 %v4399, %v4465
        %v4498 = vadd.f32 %v4400, %v4466
        %v4499 = vadd.f32 %v4401, %v4467
        %v4500 = vadd.f32 %v4402, %v4468
        %v4501 = vld [vmem:[#allocation3 + $0x2a] sm:$0x1]
        %s4502 = scalar_lea.vmem [#allocation2], 144
        %v4503 = vld [vmem:[%s4502] sm:$0xff]
        %v4504 = vld [vmem:[%s4502 + $0x8] sm:$0xff]
        %v4505 = vld [vmem:[%s4502 + $0x18] sm:$0xff]
        %v4506 = vld [vmem:[%s4502 + $0x20] sm:$0xff]
        %v4507 = vld [vmem:[%s4502 + $0x30] sm:$0xff]
        %v4508 = vld [vmem:[%s4502 + $0x38] sm:$0xff]
        %v4509 = vld [vmem:[%s4502 + $0x48] sm:$0xff]
        %v4510 = vld [vmem:[%s4502 + $0x50] sm:$0xff]
        %v4511 = vld [vmem:[%s4502 + $0x60] sm:$0xff]
        %v4512 = vld [vmem:[%s4502 + $0x68] sm:$0xff]
        %v4513 = vld [vmem:[%s4502 + $0x78] sm:$0xff]
        %v4514 = vld [vmem:[%s4502 + $0x80] sm:$0xff]
        %v4515 = vld [vmem:[%s4502 + $0x90] sm:$0xff]
        %v4516 = vld [vmem:[%s4502 + $0x98] sm:$0xff]
        %v4517 = vld [vmem:[%s4502 + $0xa8] sm:$0xff]
        %v4518 = vld [vmem:[%s4502 + $0xb0] sm:$0xff]
        %v4519 = vld [vmem:[%s4502 + $0xc0] sm:$0xff]
        %v4520 = vld [vmem:[%s4502 + $0xc8] sm:$0xff]
        %v4521 = vld [vmem:[%s4502 + $0xd8] sm:$0xff]
        %v4522 = vld [vmem:[%s4502 + $0xe0] sm:$0xff]
        %v4523 = vld [vmem:[%s4502 + $0xf0] sm:$0xff]
        %v4524 = vld [vmem:[%s4502 + $0xf8] sm:$0xff]
        %v4525 = vld [vmem:[%s4502 + $0x108] sm:$0xff]
        %v4526 = vld [vmem:[%s4502 + $0x110] sm:$0xff]
        %v4527 = vld [vmem:[%s4502 + $0x120] sm:$0xff]
        %v4528 = vld [vmem:[%s4502 + $0x128] sm:$0xff]
        %v4529 = vld [vmem:[%s4502 + $0x138] sm:$0xff]
        %v4530 = vld [vmem:[%s4502 + $0x140] sm:$0xff]
        %v4531 = vld [vmem:[%s4502 + $0x150] sm:$0xff]
        %v4532 = vld [vmem:[%s4502 + $0x158] sm:$0xff]
        %v4533 = vld [vmem:[%s4502 + $0x168] sm:$0xff]
        %v4534 = vld [vmem:[%s4502 + $0x170] sm:$0xff]
        %v4535 = vperm.slane %v4501, 0
        %v4536 = vmul.f32 %v4503, %v4535
        %v4537 = vmul.f32 %v4504, %v4535
        %v4538 = vmul.f32 %v4505, %v4535
        %v4539 = vmul.f32 %v4506, %v4535
        %v4540 = vmul.f32 %v4507, %v4535
        %v4541 = vmul.f32 %v4508, %v4535
        %v4542 = vmul.f32 %v4509, %v4535
        %v4543 = vmul.f32 %v4510, %v4535
        %v4544 = vmul.f32 %v4511, %v4535
        %v4545 = vmul.f32 %v4512, %v4535
        %v4546 = vmul.f32 %v4513, %v4535
        %v4547 = vmul.f32 %v4514, %v4535
        %v4548 = vmul.f32 %v4515, %v4535
        %v4549 = vmul.f32 %v4516, %v4535
        %v4550 = vmul.f32 %v4517, %v4535
        %v4551 = vmul.f32 %v4518, %v4535
        %v4552 = vmul.f32 %v4519, %v4535
        %v4553 = vmul.f32 %v4520, %v4535
        %v4554 = vmul.f32 %v4521, %v4535
        %v4555 = vmul.f32 %v4522, %v4535
        %v4556 = vmul.f32 %v4523, %v4535
        %v4557 = vmul.f32 %v4524, %v4535
        %v4558 = vmul.f32 %v4525, %v4535
        %v4559 = vmul.f32 %v4526, %v4535
        %v4560 = vmul.f32 %v4527, %v4535
        %v4561 = vmul.f32 %v4528, %v4535
        %v4562 = vmul.f32 %v4529, %v4535
        %v4563 = vmul.f32 %v4530, %v4535
        %v4564 = vmul.f32 %v4531, %v4535
        %v4565 = vmul.f32 %v4532, %v4535
        %v4566 = vmul.f32 %v4533, %v4535
        %v4567 = vmul.f32 %v4534, %v4535
        %v4568 = vadd.f32 %v4469, %v4536
        %v4569 = vadd.f32 %v4470, %v4537
        %v4570 = vadd.f32 %v4471, %v4538
        %v4571 = vadd.f32 %v4472, %v4539
        %v4572 = vadd.f32 %v4473, %v4540
        %v4573 = vadd.f32 %v4474, %v4541
        %v4574 = vadd.f32 %v4475, %v4542
        %v4575 = vadd.f32 %v4476, %v4543
        %v4576 = vadd.f32 %v4477, %v4544
        %v4577 = vadd.f32 %v4478, %v4545
        %v4578 = vadd.f32 %v4479, %v4546
        %v4579 = vadd.f32 %v4480, %v4547
        %v4580 = vadd.f32 %v4481, %v4548
        %v4581 = vadd.f32 %v4482, %v4549
        %v4582 = vadd.f32 %v4483, %v4550
        %v4583 = vadd.f32 %v4484, %v4551
        %v4584 = vadd.f32 %v4485, %v4552
        %v4585 = vadd.f32 %v4486, %v4553
        %v4586 = vadd.f32 %v4487, %v4554
        %v4587 = vadd.f32 %v4488, %v4555
        %v4588 = vadd.f32 %v4489, %v4556
        %v4589 = vadd.f32 %v4490, %v4557
        %v4590 = vadd.f32 %v4491, %v4558
        %v4591 = vadd.f32 %v4492, %v4559
        %v4592 = vadd.f32 %v4493, %v4560
        %v4593 = vadd.f32 %v4494, %v4561
        %v4594 = vadd.f32 %v4495, %v4562
        %v4595 = vadd.f32 %v4496, %v4563
        %v4596 = vadd.f32 %v4497, %v4564
        %v4597 = vadd.f32 %v4498, %v4565
        %v4598 = vadd.f32 %v4499, %v4566
        %v4599 = vadd.f32 %v4500, %v4567
        %v4600 = vld [vmem:[#allocation3 + $0x2b] sm:$0x1]
        %v4601 = vld [vmem:[%s4502 + $0x1] sm:$0xff]
        %v4602 = vld [vmem:[%s4502 + $0x9] sm:$0xff]
        %v4603 = vld [vmem:[%s4502 + $0x19] sm:$0xff]
        %v4604 = vld [vmem:[%s4502 + $0x21] sm:$0xff]
        %v4605 = vld [vmem:[%s4502 + $0x31] sm:$0xff]
        %v4606 = vld [vmem:[%s4502 + $0x39] sm:$0xff]
        %v4607 = vld [vmem:[%s4502 + $0x49] sm:$0xff]
        %v4608 = vld [vmem:[%s4502 + $0x51] sm:$0xff]
        %v4609 = vld [vmem:[%s4502 + $0x61] sm:$0xff]
        %v4610 = vld [vmem:[%s4502 + $0x69] sm:$0xff]
        %v4611 = vld [vmem:[%s4502 + $0x79] sm:$0xff]
        %v4612 = vld [vmem:[%s4502 + $0x81] sm:$0xff]
        %v4613 = vld [vmem:[%s4502 + $0x91] sm:$0xff]
        %v4614 = vld [vmem:[%s4502 + $0x99] sm:$0xff]
        %v4615 = vld [vmem:[%s4502 + $0xa9] sm:$0xff]
        %v4616 = vld [vmem:[%s4502 + $0xb1] sm:$0xff]
        %v4617 = vld [vmem:[%s4502 + $0xc1] sm:$0xff]
        %v4618 = vld [vmem:[%s4502 + $0xc9] sm:$0xff]
        %v4619 = vld [vmem:[%s4502 + $0xd9] sm:$0xff]
        %v4620 = vld [vmem:[%s4502 + $0xe1] sm:$0xff]
        %v4621 = vld [vmem:[%s4502 + $0xf1] sm:$0xff]
        %v4622 = vld [vmem:[%s4502 + $0xf9] sm:$0xff]
        %v4623 = vld [vmem:[%s4502 + $0x109] sm:$0xff]
        %v4624 = vld [vmem:[%s4502 + $0x111] sm:$0xff]
        %v4625 = vld [vmem:[%s4502 + $0x121] sm:$0xff]
        %v4626 = vld [vmem:[%s4502 + $0x129] sm:$0xff]
        %v4627 = vld [vmem:[%s4502 + $0x139] sm:$0xff]
        %v4628 = vld [vmem:[%s4502 + $0x141] sm:$0xff]
        %v4629 = vld [vmem:[%s4502 + $0x151] sm:$0xff]
        %v4630 = vld [vmem:[%s4502 + $0x159] sm:$0xff]
        %v4631 = vld [vmem:[%s4502 + $0x169] sm:$0xff]
        %v4632 = vld [vmem:[%s4502 + $0x171] sm:$0xff]
        %v4633 = vperm.slane %v4600, 0
        %v4634 = vmul.f32 %v4601, %v4633
        %v4635 = vmul.f32 %v4602, %v4633
        %v4636 = vmul.f32 %v4603, %v4633
        %v4637 = vmul.f32 %v4604, %v4633
        %v4638 = vmul.f32 %v4605, %v4633
        %v4639 = vmul.f32 %v4606, %v4633
        %v4640 = vmul.f32 %v4607, %v4633
        %v4641 = vmul.f32 %v4608, %v4633
        %v4642 = vmul.f32 %v4609, %v4633
        %v4643 = vmul.f32 %v4610, %v4633
        %v4644 = vmul.f32 %v4611, %v4633
        %v4645 = vmul.f32 %v4612, %v4633
        %v4646 = vmul.f32 %v4613, %v4633
        %v4647 = vmul.f32 %v4614, %v4633
        %v4648 = vmul.f32 %v4615, %v4633
        %v4649 = vmul.f32 %v4616, %v4633
        %v4650 = vmul.f32 %v4617, %v4633
        %v4651 = vmul.f32 %v4618, %v4633
        %v4652 = vmul.f32 %v4619, %v4633
        %v4653 = vmul.f32 %v4620, %v4633
        %v4654 = vmul.f32 %v4621, %v4633
        %v4655 = vmul.f32 %v4622, %v4633
        %v4656 = vmul.f32 %v4623, %v4633
        %v4657 = vmul.f32 %v4624, %v4633
        %v4658 = vmul.f32 %v4625, %v4633
        %v4659 = vmul.f32 %v4626, %v4633
        %v4660 = vmul.f32 %v4627, %v4633
        %v4661 = vmul.f32 %v4628, %v4633
        %v4662 = vmul.f32 %v4629, %v4633
        %v4663 = vmul.f32 %v4630, %v4633
        %v4664 = vmul.f32 %v4631, %v4633
        %v4665 = vmul.f32 %v4632, %v4633
        %v4666 = vadd.f32 %v4568, %v4634
        %v4667 = vadd.f32 %v4569, %v4635
        %v4668 = vadd.f32 %v4570, %v4636
        %v4669 = vadd.f32 %v4571, %v4637
        %v4670 = vadd.f32 %v4572, %v4638
        %v4671 = vadd.f32 %v4573, %v4639
        %v4672 = vadd.f32 %v4574, %v4640
        %v4673 = vadd.f32 %v4575, %v4641
        %v4674 = vadd.f32 %v4576, %v4642
        %v4675 = vadd.f32 %v4577, %v4643
        %v4676 = vadd.f32 %v4578, %v4644
        %v4677 = vadd.f32 %v4579, %v4645
        %v4678 = vadd.f32 %v4580, %v4646
        %v4679 = vadd.f32 %v4581, %v4647
        %v4680 = vadd.f32 %v4582, %v4648
        %v4681 = vadd.f32 %v4583, %v4649
        %v4682 = vadd.f32 %v4584, %v4650
        %v4683 = vadd.f32 %v4585, %v4651
        %v4684 = vadd.f32 %v4586, %v4652
        %v4685 = vadd.f32 %v4587, %v4653
        %v4686 = vadd.f32 %v4588, %v4654
        %v4687 = vadd.f32 %v4589, %v4655
        %v4688 = vadd.f32 %v4590, %v4656
        %v4689 = vadd.f32 %v4591, %v4657
        %v4690 = vadd.f32 %v4592, %v4658
        %v4691 = vadd.f32 %v4593, %v4659
        %v4692 = vadd.f32 %v4594, %v4660
        %v4693 = vadd.f32 %v4595, %v4661
        %v4694 = vadd.f32 %v4596, %v4662
        %v4695 = vadd.f32 %v4597, %v4663
        %v4696 = vadd.f32 %v4598, %v4664
        %v4697 = vadd.f32 %v4599, %v4665
        %v4698 = vld [vmem:[#allocation3 + $0x2c] sm:$0x1]
        %v4699 = vld [vmem:[%s4502 + $0x2] sm:$0xff]
        %v4700 = vld [vmem:[%s4502 + $0xa] sm:$0xff]
        %v4701 = vld [vmem:[%s4502 + $0x1a] sm:$0xff]
        %v4702 = vld [vmem:[%s4502 + $0x22] sm:$0xff]
        %v4703 = vld [vmem:[%s4502 + $0x32] sm:$0xff]
        %v4704 = vld [vmem:[%s4502 + $0x3a] sm:$0xff]
        %v4705 = vld [vmem:[%s4502 + $0x4a] sm:$0xff]
        %v4706 = vld [vmem:[%s4502 + $0x52] sm:$0xff]
        %v4707 = vld [vmem:[%s4502 + $0x62] sm:$0xff]
        %v4708 = vld [vmem:[%s4502 + $0x6a] sm:$0xff]
        %v4709 = vld [vmem:[%s4502 + $0x7a] sm:$0xff]
        %v4710 = vld [vmem:[%s4502 + $0x82] sm:$0xff]
        %v4711 = vld [vmem:[%s4502 + $0x92] sm:$0xff]
        %v4712 = vld [vmem:[%s4502 + $0x9a] sm:$0xff]
        %v4713 = vld [vmem:[%s4502 + $0xaa] sm:$0xff]
        %v4714 = vld [vmem:[%s4502 + $0xb2] sm:$0xff]
        %v4715 = vld [vmem:[%s4502 + $0xc2] sm:$0xff]
        %v4716 = vld [vmem:[%s4502 + $0xca] sm:$0xff]
        %v4717 = vld [vmem:[%s4502 + $0xda] sm:$0xff]
        %v4718 = vld [vmem:[%s4502 + $0xe2] sm:$0xff]
        %v4719 = vld [vmem:[%s4502 + $0xf2] sm:$0xff]
        %v4720 = vld [vmem:[%s4502 + $0xfa] sm:$0xff]
        %v4721 = vld [vmem:[%s4502 + $0x10a] sm:$0xff]
        %v4722 = vld [vmem:[%s4502 + $0x112] sm:$0xff]
        %v4723 = vld [vmem:[%s4502 + $0x122] sm:$0xff]
        %v4724 = vld [vmem:[%s4502 + $0x12a] sm:$0xff]
        %v4725 = vld [vmem:[%s4502 + $0x13a] sm:$0xff]
        %v4726 = vld [vmem:[%s4502 + $0x142] sm:$0xff]
        %v4727 = vld [vmem:[%s4502 + $0x152] sm:$0xff]
        %v4728 = vld [vmem:[%s4502 + $0x15a] sm:$0xff]
        %v4729 = vld [vmem:[%s4502 + $0x16a] sm:$0xff]
        %v4730 = vld [vmem:[%s4502 + $0x172] sm:$0xff]
        %v4731 = vperm.slane %v4698, 0
        %v4732 = vmul.f32 %v4699, %v4731
        %v4733 = vmul.f32 %v4700, %v4731
        %v4734 = vmul.f32 %v4701, %v4731
        %v4735 = vmul.f32 %v4702, %v4731
        %v4736 = vmul.f32 %v4703, %v4731
        %v4737 = vmul.f32 %v4704, %v4731
        %v4738 = vmul.f32 %v4705, %v4731
        %v4739 = vmul.f32 %v4706, %v4731
        %v4740 = vmul.f32 %v4707, %v4731
        %v4741 = vmul.f32 %v4708, %v4731
        %v4742 = vmul.f32 %v4709, %v4731
        %v4743 = vmul.f32 %v4710, %v4731
        %v4744 = vmul.f32 %v4711, %v4731
        %v4745 = vmul.f32 %v4712, %v4731
        %v4746 = vmul.f32 %v4713, %v4731
        %v4747 = vmul.f32 %v4714, %v4731
        %v4748 = vmul.f32 %v4715, %v4731
        %v4749 = vmul.f32 %v4716, %v4731
        %v4750 = vmul.f32 %v4717, %v4731
        %v4751 = vmul.f32 %v4718, %v4731
        %v4752 = vmul.f32 %v4719, %v4731
        %v4753 = vmul.f32 %v4720, %v4731
        %v4754 = vmul.f32 %v4721, %v4731
        %v4755 = vmul.f32 %v4722, %v4731
        %v4756 = vmul.f32 %v4723, %v4731
        %v4757 = vmul.f32 %v4724, %v4731
        %v4758 = vmul.f32 %v4725, %v4731
        %v4759 = vmul.f32 %v4726, %v4731
        %v4760 = vmul.f32 %v4727, %v4731
        %v4761 = vmul.f32 %v4728, %v4731
        %v4762 = vmul.f32 %v4729, %v4731
        %v4763 = vmul.f32 %v4730, %v4731
        %v4764 = vadd.f32 %v4666, %v4732
        %v4765 = vadd.f32 %v4667, %v4733
        %v4766 = vadd.f32 %v4668, %v4734
        %v4767 = vadd.f32 %v4669, %v4735
        %v4768 = vadd.f32 %v4670, %v4736
        %v4769 = vadd.f32 %v4671, %v4737
        %v4770 = vadd.f32 %v4672, %v4738
        %v4771 = vadd.f32 %v4673, %v4739
        %v4772 = vadd.f32 %v4674, %v4740
        %v4773 = vadd.f32 %v4675, %v4741
        %v4774 = vadd.f32 %v4676, %v4742
        %v4775 = vadd.f32 %v4677, %v4743
        %v4776 = vadd.f32 %v4678, %v4744
        %v4777 = vadd.f32 %v4679, %v4745
        %v4778 = vadd.f32 %v4680, %v4746
        %v4779 = vadd.f32 %v4681, %v4747
        %v4780 = vadd.f32 %v4682, %v4748
        %v4781 = vadd.f32 %v4683, %v4749
        %v4782 = vadd.f32 %v4684, %v4750
        %v4783 = vadd.f32 %v4685, %v4751
        %v4784 = vadd.f32 %v4686, %v4752
        %v4785 = vadd.f32 %v4687, %v4753
        %v4786 = vadd.f32 %v4688, %v4754
        %v4787 = vadd.f32 %v4689, %v4755
        %v4788 = vadd.f32 %v4690, %v4756
        %v4789 = vadd.f32 %v4691, %v4757
        %v4790 = vadd.f32 %v4692, %v4758
        %v4791 = vadd.f32 %v4693, %v4759
        %v4792 = vadd.f32 %v4694, %v4760
        %v4793 = vadd.f32 %v4695, %v4761
        %v4794 = vadd.f32 %v4696, %v4762
        %v4795 = vadd.f32 %v4697, %v4763
        %v4796 = vld [vmem:[#allocation3 + $0x2d] sm:$0x1]
        %v4797 = vld [vmem:[%s4502 + $0x3] sm:$0xff]
        %v4798 = vld [vmem:[%s4502 + $0xb] sm:$0xff]
        %v4799 = vld [vmem:[%s4502 + $0x1b] sm:$0xff]
        %v4800 = vld [vmem:[%s4502 + $0x23] sm:$0xff]
        %v4801 = vld [vmem:[%s4502 + $0x33] sm:$0xff]
        %v4802 = vld [vmem:[%s4502 + $0x3b] sm:$0xff]
        %v4803 = vld [vmem:[%s4502 + $0x4b] sm:$0xff]
        %v4804 = vld [vmem:[%s4502 + $0x53] sm:$0xff]
        %v4805 = vld [vmem:[%s4502 + $0x63] sm:$0xff]
        %v4806 = vld [vmem:[%s4502 + $0x6b] sm:$0xff]
        %v4807 = vld [vmem:[%s4502 + $0x7b] sm:$0xff]
        %v4808 = vld [vmem:[%s4502 + $0x83] sm:$0xff]
        %v4809 = vld [vmem:[%s4502 + $0x93] sm:$0xff]
        %v4810 = vld [vmem:[%s4502 + $0x9b] sm:$0xff]
        %v4811 = vld [vmem:[%s4502 + $0xab] sm:$0xff]
        %v4812 = vld [vmem:[%s4502 + $0xb3] sm:$0xff]
        %v4813 = vld [vmem:[%s4502 + $0xc3] sm:$0xff]
        %v4814 = vld [vmem:[%s4502 + $0xcb] sm:$0xff]
        %v4815 = vld [vmem:[%s4502 + $0xdb] sm:$0xff]
        %v4816 = vld [vmem:[%s4502 + $0xe3] sm:$0xff]
        %v4817 = vld [vmem:[%s4502 + $0xf3] sm:$0xff]
        %v4818 = vld [vmem:[%s4502 + $0xfb] sm:$0xff]
        %v4819 = vld [vmem:[%s4502 + $0x10b] sm:$0xff]
        %v4820 = vld [vmem:[%s4502 + $0x113] sm:$0xff]
        %v4821 = vld [vmem:[%s4502 + $0x123] sm:$0xff]
        %v4822 = vld [vmem:[%s4502 + $0x12b] sm:$0xff]
        %v4823 = vld [vmem:[%s4502 + $0x13b] sm:$0xff]
        %v4824 = vld [vmem:[%s4502 + $0x143] sm:$0xff]
        %v4825 = vld [vmem:[%s4502 + $0x153] sm:$0xff]
        %v4826 = vld [vmem:[%s4502 + $0x15b] sm:$0xff]
        %v4827 = vld [vmem:[%s4502 + $0x16b] sm:$0xff]
        %v4828 = vld [vmem:[%s4502 + $0x173] sm:$0xff]
        %v4829 = vperm.slane %v4796, 0
        %v4830 = vmul.f32 %v4797, %v4829
        %v4831 = vmul.f32 %v4798, %v4829
        %v4832 = vmul.f32 %v4799, %v4829
        %v4833 = vmul.f32 %v4800, %v4829
        %v4834 = vmul.f32 %v4801, %v4829
        %v4835 = vmul.f32 %v4802, %v4829
        %v4836 = vmul.f32 %v4803, %v4829
        %v4837 = vmul.f32 %v4804, %v4829
        %v4838 = vmul.f32 %v4805, %v4829
        %v4839 = vmul.f32 %v4806, %v4829
        %v4840 = vmul.f32 %v4807, %v4829
        %v4841 = vmul.f32 %v4808, %v4829
        %v4842 = vmul.f32 %v4809, %v4829
        %v4843 = vmul.f32 %v4810, %v4829
        %v4844 = vmul.f32 %v4811, %v4829
        %v4845 = vmul.f32 %v4812, %v4829
        %v4846 = vmul.f32 %v4813, %v4829
        %v4847 = vmul.f32 %v4814, %v4829
        %v4848 = vmul.f32 %v4815, %v4829
        %v4849 = vmul.f32 %v4816, %v4829
        %v4850 = vmul.f32 %v4817, %v4829
        %v4851 = vmul.f32 %v4818, %v4829
        %v4852 = vmul.f32 %v4819, %v4829
        %v4853 = vmul.f32 %v4820, %v4829
        %v4854 = vmul.f32 %v4821, %v4829
        %v4855 = vmul.f32 %v4822, %v4829
        %v4856 = vmul.f32 %v4823, %v4829
        %v4857 = vmul.f32 %v4824, %v4829
        %v4858 = vmul.f32 %v4825, %v4829
        %v4859 = vmul.f32 %v4826, %v4829
        %v4860 = vmul.f32 %v4827, %v4829
        %v4861 = vmul.f32 %v4828, %v4829
        %v4862 = vadd.f32 %v4764, %v4830
        %v4863 = vadd.f32 %v4765, %v4831
        %v4864 = vadd.f32 %v4766, %v4832
        %v4865 = vadd.f32 %v4767, %v4833
        %v4866 = vadd.f32 %v4768, %v4834
        %v4867 = vadd.f32 %v4769, %v4835
        %v4868 = vadd.f32 %v4770, %v4836
        %v4869 = vadd.f32 %v4771, %v4837
        %v4870 = vadd.f32 %v4772, %v4838
        %v4871 = vadd.f32 %v4773, %v4839
        %v4872 = vadd.f32 %v4774, %v4840
        %v4873 = vadd.f32 %v4775, %v4841
        %v4874 = vadd.f32 %v4776, %v4842
        %v4875 = vadd.f32 %v4777, %v4843
        %v4876 = vadd.f32 %v4778, %v4844
        %v4877 = vadd.f32 %v4779, %v4845
        %v4878 = vadd.f32 %v4780, %v4846
        %v4879 = vadd.f32 %v4781, %v4847
        %v4880 = vadd.f32 %v4782, %v4848
        %v4881 = vadd.f32 %v4783, %v4849
        %v4882 = vadd.f32 %v4784, %v4850
        %v4883 = vadd.f32 %v4785, %v4851
        %v4884 = vadd.f32 %v4786, %v4852
        %v4885 = vadd.f32 %v4787, %v4853
        %v4886 = vadd.f32 %v4788, %v4854
        %v4887 = vadd.f32 %v4789, %v4855
        %v4888 = vadd.f32 %v4790, %v4856
        %v4889 = vadd.f32 %v4791, %v4857
        %v4890 = vadd.f32 %v4792, %v4858
        %v4891 = vadd.f32 %v4793, %v4859
        %v4892 = vadd.f32 %v4794, %v4860
        %v4893 = vadd.f32 %v4795, %v4861
        %v4894 = vld [vmem:[#allocation3 + $0x2e] sm:$0x1]
        %v4895 = vld [vmem:[%s4502 + $0x4] sm:$0xff]
        %v4896 = vld [vmem:[%s4502 + $0xc] sm:$0xff]
        %v4897 = vld [vmem:[%s4502 + $0x1c] sm:$0xff]
        %v4898 = vld [vmem:[%s4502 + $0x24] sm:$0xff]
        %v4899 = vld [vmem:[%s4502 + $0x34] sm:$0xff]
        %v4900 = vld [vmem:[%s4502 + $0x3c] sm:$0xff]
        %v4901 = vld [vmem:[%s4502 + $0x4c] sm:$0xff]
        %v4902 = vld [vmem:[%s4502 + $0x54] sm:$0xff]
        %v4903 = vld [vmem:[%s4502 + $0x64] sm:$0xff]
        %v4904 = vld [vmem:[%s4502 + $0x6c] sm:$0xff]
        %v4905 = vld [vmem:[%s4502 + $0x7c] sm:$0xff]
        %v4906 = vld [vmem:[%s4502 + $0x84] sm:$0xff]
        %v4907 = vld [vmem:[%s4502 + $0x94] sm:$0xff]
        %v4908 = vld [vmem:[%s4502 + $0x9c] sm:$0xff]
        %v4909 = vld [vmem:[%s4502 + $0xac] sm:$0xff]
        %v4910 = vld [vmem:[%s4502 + $0xb4] sm:$0xff]
        %v4911 = vld [vmem:[%s4502 + $0xc4] sm:$0xff]
        %v4912 = vld [vmem:[%s4502 + $0xcc] sm:$0xff]
        %v4913 = vld [vmem:[%s4502 + $0xdc] sm:$0xff]
        %v4914 = vld [vmem:[%s4502 + $0xe4] sm:$0xff]
        %v4915 = vld [vmem:[%s4502 + $0xf4] sm:$0xff]
        %v4916 = vld [vmem:[%s4502 + $0xfc] sm:$0xff]
        %v4917 = vld [vmem:[%s4502 + $0x10c] sm:$0xff]
        %v4918 = vld [vmem:[%s4502 + $0x114] sm:$0xff]
        %v4919 = vld [vmem:[%s4502 + $0x124] sm:$0xff]
        %v4920 = vld [vmem:[%s4502 + $0x12c] sm:$0xff]
        %v4921 = vld [vmem:[%s4502 + $0x13c] sm:$0xff]
        %v4922 = vld [vmem:[%s4502 + $0x144] sm:$0xff]
        %v4923 = vld [vmem:[%s4502 + $0x154] sm:$0xff]
        %v4924 = vld [vmem:[%s4502 + $0x15c] sm:$0xff]
        %v4925 = vld [vmem:[%s4502 + $0x16c] sm:$0xff]
        %v4926 = vld [vmem:[%s4502 + $0x174] sm:$0xff]
        %v4927 = vperm.slane %v4894, 0
        %v4928 = vmul.f32 %v4895, %v4927
        %v4929 = vmul.f32 %v4896, %v4927
        %v4930 = vmul.f32 %v4897, %v4927
        %v4931 = vmul.f32 %v4898, %v4927
        %v4932 = vmul.f32 %v4899, %v4927
        %v4933 = vmul.f32 %v4900, %v4927
        %v4934 = vmul.f32 %v4901, %v4927
        %v4935 = vmul.f32 %v4902, %v4927
        %v4936 = vmul.f32 %v4903, %v4927
        %v4937 = vmul.f32 %v4904, %v4927
        %v4938 = vmul.f32 %v4905, %v4927
        %v4939 = vmul.f32 %v4906, %v4927
        %v4940 = vmul.f32 %v4907, %v4927
        %v4941 = vmul.f32 %v4908, %v4927
        %v4942 = vmul.f32 %v4909, %v4927
        %v4943 = vmul.f32 %v4910, %v4927
        %v4944 = vmul.f32 %v4911, %v4927
        %v4945 = vmul.f32 %v4912, %v4927
        %v4946 = vmul.f32 %v4913, %v4927
        %v4947 = vmul.f32 %v4914, %v4927
        %v4948 = vmul.f32 %v4915, %v4927
        %v4949 = vmul.f32 %v4916, %v4927
        %v4950 = vmul.f32 %v4917, %v4927
        %v4951 = vmul.f32 %v4918, %v4927
        %v4952 = vmul.f32 %v4919, %v4927
        %v4953 = vmul.f32 %v4920, %v4927
        %v4954 = vmul.f32 %v4921, %v4927
        %v4955 = vmul.f32 %v4922, %v4927
        %v4956 = vmul.f32 %v4923, %v4927
        %v4957 = vmul.f32 %v4924, %v4927
        %v4958 = vmul.f32 %v4925, %v4927
        %v4959 = vmul.f32 %v4926, %v4927
        %v4960 = vadd.f32 %v4862, %v4928
        %v4961 = vadd.f32 %v4863, %v4929
        %v4962 = vadd.f32 %v4864, %v4930
        %v4963 = vadd.f32 %v4865, %v4931
        %v4964 = vadd.f32 %v4866, %v4932
        %v4965 = vadd.f32 %v4867, %v4933
        %v4966 = vadd.f32 %v4868, %v4934
        %v4967 = vadd.f32 %v4869, %v4935
        %v4968 = vadd.f32 %v4870, %v4936
        %v4969 = vadd.f32 %v4871, %v4937
        %v4970 = vadd.f32 %v4872, %v4938
        %v4971 = vadd.f32 %v4873, %v4939
        %v4972 = vadd.f32 %v4874, %v4940
        %v4973 = vadd.f32 %v4875, %v4941
        %v4974 = vadd.f32 %v4876, %v4942
        %v4975 = vadd.f32 %v4877, %v4943
        %v4976 = vadd.f32 %v4878, %v4944
        %v4977 = vadd.f32 %v4879, %v4945
        %v4978 = vadd.f32 %v4880, %v4946
        %v4979 = vadd.f32 %v4881, %v4947
        %v4980 = vadd.f32 %v4882, %v4948
        %v4981 = vadd.f32 %v4883, %v4949
        %v4982 = vadd.f32 %v4884, %v4950
        %v4983 = vadd.f32 %v4885, %v4951
        %v4984 = vadd.f32 %v4886, %v4952
        %v4985 = vadd.f32 %v4887, %v4953
        %v4986 = vadd.f32 %v4888, %v4954
        %v4987 = vadd.f32 %v4889, %v4955
        %v4988 = vadd.f32 %v4890, %v4956
        %v4989 = vadd.f32 %v4891, %v4957
        %v4990 = vadd.f32 %v4892, %v4958
        %v4991 = vadd.f32 %v4893, %v4959
        %v4992 = vld [vmem:[#allocation3 + $0x2f] sm:$0x1]
        %v4993 = vld [vmem:[%s4502 + $0x5] sm:$0xff]
        %v4994 = vld [vmem:[%s4502 + $0xd] sm:$0xff]
        %v4995 = vld [vmem:[%s4502 + $0x1d] sm:$0xff]
        %v4996 = vld [vmem:[%s4502 + $0x25] sm:$0xff]
        %v4997 = vld [vmem:[%s4502 + $0x35] sm:$0xff]
        %v4998 = vld [vmem:[%s4502 + $0x3d] sm:$0xff]
        %v4999 = vld [vmem:[%s4502 + $0x4d] sm:$0xff]
        %v5000 = vld [vmem:[%s4502 + $0x55] sm:$0xff]
        %v5001 = vld [vmem:[%s4502 + $0x65] sm:$0xff]
        %v5002 = vld [vmem:[%s4502 + $0x6d] sm:$0xff]
        %v5003 = vld [vmem:[%s4502 + $0x7d] sm:$0xff]
        %v5004 = vld [vmem:[%s4502 + $0x85] sm:$0xff]
        %v5005 = vld [vmem:[%s4502 + $0x95] sm:$0xff]
        %v5006 = vld [vmem:[%s4502 + $0x9d] sm:$0xff]
        %v5007 = vld [vmem:[%s4502 + $0xad] sm:$0xff]
        %v5008 = vld [vmem:[%s4502 + $0xb5] sm:$0xff]
        %v5009 = vld [vmem:[%s4502 + $0xc5] sm:$0xff]
        %v5010 = vld [vmem:[%s4502 + $0xcd] sm:$0xff]
        %v5011 = vld [vmem:[%s4502 + $0xdd] sm:$0xff]
        %v5012 = vld [vmem:[%s4502 + $0xe5] sm:$0xff]
        %v5013 = vld [vmem:[%s4502 + $0xf5] sm:$0xff]
        %v5014 = vld [vmem:[%s4502 + $0xfd] sm:$0xff]
        %v5015 = vld [vmem:[%s4502 + $0x10d] sm:$0xff]
        %v5016 = vld [vmem:[%s4502 + $0x115] sm:$0xff]
        %v5017 = vld [vmem:[%s4502 + $0x125] sm:$0xff]
        %v5018 = vld [vmem:[%s4502 + $0x12d] sm:$0xff]
        %v5019 = vld [vmem:[%s4502 + $0x13d] sm:$0xff]
        %v5020 = vld [vmem:[%s4502 + $0x145] sm:$0xff]
        %v5021 = vld [vmem:[%s4502 + $0x155] sm:$0xff]
        %v5022 = vld [vmem:[%s4502 + $0x15d] sm:$0xff]
        %v5023 = vld [vmem:[%s4502 + $0x16d] sm:$0xff]
        %v5024 = vld [vmem:[%s4502 + $0x175] sm:$0xff]
        %v5025 = vperm.slane %v4992, 0
        %v5026 = vmul.f32 %v4993, %v5025
        %v5027 = vmul.f32 %v4994, %v5025
        %v5028 = vmul.f32 %v4995, %v5025
        %v5029 = vmul.f32 %v4996, %v5025
        %v5030 = vmul.f32 %v4997, %v5025
        %v5031 = vmul.f32 %v4998, %v5025
        %v5032 = vmul.f32 %v4999, %v5025
        %v5033 = vmul.f32 %v5000, %v5025
        %v5034 = vmul.f32 %v5001, %v5025
        %v5035 = vmul.f32 %v5002, %v5025
        %v5036 = vmul.f32 %v5003, %v5025
        %v5037 = vmul.f32 %v5004, %v5025
        %v5038 = vmul.f32 %v5005, %v5025
        %v5039 = vmul.f32 %v5006, %v5025
        %v5040 = vmul.f32 %v5007, %v5025
        %v5041 = vmul.f32 %v5008, %v5025
        %v5042 = vmul.f32 %v5009, %v5025
        %v5043 = vmul.f32 %v5010, %v5025
        %v5044 = vmul.f32 %v5011, %v5025
        %v5045 = vmul.f32 %v5012, %v5025
        %v5046 = vmul.f32 %v5013, %v5025
        %v5047 = vmul.f32 %v5014, %v5025
        %v5048 = vmul.f32 %v5015, %v5025
        %v5049 = vmul.f32 %v5016, %v5025
        %v5050 = vmul.f32 %v5017, %v5025
        %v5051 = vmul.f32 %v5018, %v5025
        %v5052 = vmul.f32 %v5019, %v5025
        %v5053 = vmul.f32 %v5020, %v5025
        %v5054 = vmul.f32 %v5021, %v5025
        %v5055 = vmul.f32 %v5022, %v5025
        %v5056 = vmul.f32 %v5023, %v5025
        %v5057 = vmul.f32 %v5024, %v5025
        %v5058 = vadd.f32 %v4960, %v5026
        %v5059 = vadd.f32 %v4961, %v5027
        %v5060 = vadd.f32 %v4962, %v5028
        %v5061 = vadd.f32 %v4963, %v5029
        %v5062 = vadd.f32 %v4964, %v5030
        %v5063 = vadd.f32 %v4965, %v5031
        %v5064 = vadd.f32 %v4966, %v5032
        %v5065 = vadd.f32 %v4967, %v5033
        %v5066 = vadd.f32 %v4968, %v5034
        %v5067 = vadd.f32 %v4969, %v5035
        %v5068 = vadd.f32 %v4970, %v5036
        %v5069 = vadd.f32 %v4971, %v5037
        %v5070 = vadd.f32 %v4972, %v5038
        %v5071 = vadd.f32 %v4973, %v5039
        %v5072 = vadd.f32 %v4974, %v5040
        %v5073 = vadd.f32 %v4975, %v5041
        %v5074 = vadd.f32 %v4976, %v5042
        %v5075 = vadd.f32 %v4977, %v5043
        %v5076 = vadd.f32 %v4978, %v5044
        %v5077 = vadd.f32 %v4979, %v5045
        %v5078 = vadd.f32 %v4980, %v5046
        %v5079 = vadd.f32 %v4981, %v5047
        %v5080 = vadd.f32 %v4982, %v5048
        %v5081 = vadd.f32 %v4983, %v5049
        %v5082 = vadd.f32 %v4984, %v5050
        %v5083 = vadd.f32 %v4985, %v5051
        %v5084 = vadd.f32 %v4986, %v5052
        %v5085 = vadd.f32 %v4987, %v5053
        %v5086 = vadd.f32 %v4988, %v5054
        %v5087 = vadd.f32 %v4989, %v5055
        %v5088 = vadd.f32 %v4990, %v5056
        %v5089 = vadd.f32 %v4991, %v5057
        %v5090 = vld [vmem:[#allocation3 + $0x30] sm:$0x1]
        %v5091 = vld [vmem:[%s4502 + $0x6] sm:$0xff]
        %v5092 = vld [vmem:[%s4502 + $0xe] sm:$0xff]
        %v5093 = vld [vmem:[%s4502 + $0x1e] sm:$0xff]
        %v5094 = vld [vmem:[%s4502 + $0x26] sm:$0xff]
        %v5095 = vld [vmem:[%s4502 + $0x36] sm:$0xff]
        %v5096 = vld [vmem:[%s4502 + $0x3e] sm:$0xff]
        %v5097 = vld [vmem:[%s4502 + $0x4e] sm:$0xff]
        %v5098 = vld [vmem:[%s4502 + $0x56] sm:$0xff]
        %v5099 = vld [vmem:[%s4502 + $0x66] sm:$0xff]
        %v5100 = vld [vmem:[%s4502 + $0x6e] sm:$0xff]
        %v5101 = vld [vmem:[%s4502 + $0x7e] sm:$0xff]
        %v5102 = vld [vmem:[%s4502 + $0x86] sm:$0xff]
        %v5103 = vld [vmem:[%s4502 + $0x96] sm:$0xff]
        %v5104 = vld [vmem:[%s4502 + $0x9e] sm:$0xff]
        %v5105 = vld [vmem:[%s4502 + $0xae] sm:$0xff]
        %v5106 = vld [vmem:[%s4502 + $0xb6] sm:$0xff]
        %v5107 = vld [vmem:[%s4502 + $0xc6] sm:$0xff]
        %v5108 = vld [vmem:[%s4502 + $0xce] sm:$0xff]
        %v5109 = vld [vmem:[%s4502 + $0xde] sm:$0xff]
        %v5110 = vld [vmem:[%s4502 + $0xe6] sm:$0xff]
        %v5111 = vld [vmem:[%s4502 + $0xf6] sm:$0xff]
        %v5112 = vld [vmem:[%s4502 + $0xfe] sm:$0xff]
        %v5113 = vld [vmem:[%s4502 + $0x10e] sm:$0xff]
        %v5114 = vld [vmem:[%s4502 + $0x116] sm:$0xff]
        %v5115 = vld [vmem:[%s4502 + $0x126] sm:$0xff]
        %v5116 = vld [vmem:[%s4502 + $0x12e] sm:$0xff]
        %v5117 = vld [vmem:[%s4502 + $0x13e] sm:$0xff]
        %v5118 = vld [vmem:[%s4502 + $0x146] sm:$0xff]
        %v5119 = vld [vmem:[%s4502 + $0x156] sm:$0xff]
        %v5120 = vld [vmem:[%s4502 + $0x15e] sm:$0xff]
        %v5121 = vld [vmem:[%s4502 + $0x16e] sm:$0xff]
        %v5122 = vld [vmem:[%s4502 + $0x176] sm:$0xff]
        %v5123 = vperm.slane %v5090, 0
        %v5124 = vmul.f32 %v5091, %v5123
        %v5125 = vmul.f32 %v5092, %v5123
        %v5126 = vmul.f32 %v5093, %v5123
        %v5127 = vmul.f32 %v5094, %v5123
        %v5128 = vmul.f32 %v5095, %v5123
        %v5129 = vmul.f32 %v5096, %v5123
        %v5130 = vmul.f32 %v5097, %v5123
        %v5131 = vmul.f32 %v5098, %v5123
        %v5132 = vmul.f32 %v5099, %v5123
        %v5133 = vmul.f32 %v5100, %v5123
        %v5134 = vmul.f32 %v5101, %v5123
        %v5135 = vmul.f32 %v5102, %v5123
        %v5136 = vmul.f32 %v5103, %v5123
        %v5137 = vmul.f32 %v5104, %v5123
        %v5138 = vmul.f32 %v5105, %v5123
        %v5139 = vmul.f32 %v5106, %v5123
        %v5140 = vmul.f32 %v5107, %v5123
        %v5141 = vmul.f32 %v5108, %v5123
        %v5142 = vmul.f32 %v5109, %v5123
        %v5143 = vmul.f32 %v5110, %v5123
        %v5144 = vmul.f32 %v5111, %v5123
        %v5145 = vmul.f32 %v5112, %v5123
        %v5146 = vmul.f32 %v5113, %v5123
        %v5147 = vmul.f32 %v5114, %v5123
        %v5148 = vmul.f32 %v5115, %v5123
        %v5149 = vmul.f32 %v5116, %v5123
        %v5150 = vmul.f32 %v5117, %v5123
        %v5151 = vmul.f32 %v5118, %v5123
        %v5152 = vmul.f32 %v5119, %v5123
        %v5153 = vmul.f32 %v5120, %v5123
        %v5154 = vmul.f32 %v5121, %v5123
        %v5155 = vmul.f32 %v5122, %v5123
        %v5156 = vadd.f32 %v5058, %v5124
        %v5157 = vadd.f32 %v5059, %v5125
        %v5158 = vadd.f32 %v5060, %v5126
        %v5159 = vadd.f32 %v5061, %v5127
        %v5160 = vadd.f32 %v5062, %v5128
        %v5161 = vadd.f32 %v5063, %v5129
        %v5162 = vadd.f32 %v5064, %v5130
        %v5163 = vadd.f32 %v5065, %v5131
        %v5164 = vadd.f32 %v5066, %v5132
        %v5165 = vadd.f32 %v5067, %v5133
        %v5166 = vadd.f32 %v5068, %v5134
        %v5167 = vadd.f32 %v5069, %v5135
        %v5168 = vadd.f32 %v5070, %v5136
        %v5169 = vadd.f32 %v5071, %v5137
        %v5170 = vadd.f32 %v5072, %v5138
        %v5171 = vadd.f32 %v5073, %v5139
        %v5172 = vadd.f32 %v5074, %v5140
        %v5173 = vadd.f32 %v5075, %v5141
        %v5174 = vadd.f32 %v5076, %v5142
        %v5175 = vadd.f32 %v5077, %v5143
        %v5176 = vadd.f32 %v5078, %v5144
        %v5177 = vadd.f32 %v5079, %v5145
        %v5178 = vadd.f32 %v5080, %v5146
        %v5179 = vadd.f32 %v5081, %v5147
        %v5180 = vadd.f32 %v5082, %v5148
        %v5181 = vadd.f32 %v5083, %v5149
        %v5182 = vadd.f32 %v5084, %v5150
        %v5183 = vadd.f32 %v5085, %v5151
        %v5184 = vadd.f32 %v5086, %v5152
        %v5185 = vadd.f32 %v5087, %v5153
        %v5186 = vadd.f32 %v5088, %v5154
        %v5187 = vadd.f32 %v5089, %v5155
        %v5188 = vld [vmem:[#allocation6] sm:$0x1]
        %v5190 = vperm.slane %v5188, 0
        %v5192 = vadd.f32 %v5156, %v5190
        %v5193 = vadd.f32 %v5157, %v5190
        %v5194 = vadd.f32 %v5158, %v5190
        %v5195 = vadd.f32 %v5159, %v5190
        %v5196 = vadd.f32 %v5160, %v5190
        %v5197 = vadd.f32 %v5161, %v5190
        %v5198 = vadd.f32 %v5162, %v5190
        %v5199 = vadd.f32 %v5163, %v5190
        %v5200 = vadd.f32 %v5164, %v5190
        %v5201 = vadd.f32 %v5165, %v5190
        %v5202 = vadd.f32 %v5166, %v5190
        %v5203 = vadd.f32 %v5167, %v5190
        %v5204 = vadd.f32 %v5168, %v5190
        %v5205 = vadd.f32 %v5169, %v5190
        %v5206 = vadd.f32 %v5170, %v5190
        %v5207 = vadd.f32 %v5171, %v5190
        %v5208 = vadd.f32 %v5172, %v5190
        %v5209 = vadd.f32 %v5173, %v5190
        %v5210 = vadd.f32 %v5174, %v5190
        %v5211 = vadd.f32 %v5175, %v5190
        %v5212 = vadd.f32 %v5176, %v5190
        %v5213 = vadd.f32 %v5177, %v5190
        %v5214 = vadd.f32 %v5178, %v5190
        %v5215 = vadd.f32 %v5179, %v5190
        %v5216 = vadd.f32 %v5180, %v5190
        %v5217 = vadd.f32 %v5181, %v5190
        %v5218 = vadd.f32 %v5182, %v5190
        %v5219 = vadd.f32 %v5183, %v5190
        %v5220 = vadd.f32 %v5184, %v5190
        %v5221 = vadd.f32 %v5185, %v5190
        %v5222 = vadd.f32 %v5186, %v5190
        %v5223 = vadd.f32 %v5187, %v5190
        %5224 = vst [vmem:[%s249] sm:$0xff] %v5192
        %5225 = vst [vmem:[%s249 + $0x8] sm:$0xff] %v5193
        %5226 = vst [vmem:[%s249 + $0x10] sm:$0xff] %v5194
        %5227 = vst [vmem:[%s249 + $0x18] sm:$0xff] %v5195
        %5228 = vst [vmem:[%s249 + $0x20] sm:$0xff] %v5196
        %5229 = vst [vmem:[%s249 + $0x28] sm:$0xff] %v5197
        %5230 = vst [vmem:[%s249 + $0x30] sm:$0xff] %v5198
        %5231 = vst [vmem:[%s249 + $0x38] sm:$0xff] %v5199
        %5232 = vst [vmem:[%s249 + $0x40] sm:$0xff] %v5200
        %5233 = vst [vmem:[%s249 + $0x48] sm:$0xff] %v5201
        %5234 = vst [vmem:[%s249 + $0x50] sm:$0xff] %v5202
        %5235 = vst [vmem:[%s249 + $0x58] sm:$0xff] %v5203
        %5236 = vst [vmem:[%s249 + $0x60] sm:$0xff] %v5204
        %5237 = vst [vmem:[%s249 + $0x68] sm:$0xff] %v5205
        %5238 = vst [vmem:[%s249 + $0x70] sm:$0xff] %v5206
        %5239 = vst [vmem:[%s249 + $0x78] sm:$0xff] %v5207
        %5240 = vst [vmem:[%s249 + $0x80] sm:$0xff] %v5208
        %5241 = vst [vmem:[%s249 + $0x88] sm:$0xff] %v5209
        %5242 = vst [vmem:[%s249 + $0x90] sm:$0xff] %v5210
        %5243 = vst [vmem:[%s249 + $0x98] sm:$0xff] %v5211
        %5244 = vst [vmem:[%s249 + $0xa0] sm:$0xff] %v5212
        %5245 = vst [vmem:[%s249 + $0xa8] sm:$0xff] %v5213
        %5246 = vst [vmem:[%s249 + $0xb0] sm:$0xff] %v5214
        %5247 = vst [vmem:[%s249 + $0xb8] sm:$0xff] %v5215
        %5248 = vst [vmem:[%s249 + $0xc0] sm:$0xff] %v5216
        %5249 = vst [vmem:[%s249 + $0xc8] sm:$0xff] %v5217
        %5250 = vst [vmem:[%s249 + $0xd0] sm:$0xff] %v5218
        %5251 = vst [vmem:[%s249 + $0xd8] sm:$0xff] %v5219
        %5252 = vst [vmem:[%s249 + $0xe0] sm:$0xff] %v5220
        %5253 = vst [vmem:[%s249 + $0xe8] sm:$0xff] %v5221
        %5254 = vst [vmem:[%s249 + $0xf0] sm:$0xff] %v5222
        %5255 = vst [vmem:[%s249 + $0xf8] sm:$0xff] %v5223
        %s5256 = sand.u32 %s121, 1
        %s5257 = scalar_lea.sflag [#allocation5], %s5256
        %s5258 = sand.u32 %s121, 1
        %s5259 = smul.addr %s5258, 256
        %s5260 = scalar_lea.vmem [#allocation9], %s5259
        // Predicated region
        $region45: #{tpu_custom_call.1} parent=31 // pred_check
          %p5261 = pneg %p131
        $region46: #{tpu_custom_call.1} parent=31 // pred_check_branch
          %5263 = sbr.rel (%p5261) target = $region48
        $region47: #{tpu_custom_call.1} parent=31 // pred_region
          %5265 = vsyncadd %s5257, 0
          %s5266 = smul.addr %s23, 32
          %s5267 = sadd.s32 %s24, %s5266
          %s5268 = smul.addr %s5267, 8
          %s5269 = scalar_lea.hbm %s3, %s5268
          %s5270 = sshll.u32 %s5260, 4
          %s5271 = int_to_ptr.vmem [resolvable:$true] %s5270
          %s5272 = sshll.u32 %s5269, 4
          %s5273 = int_to_ptr.hbm [resolvable:$true] %s5272
          %5278 = dma.vmem_to_hbm [thread:$0]  %s5271, 4096, %s5273, %s5257, 128, 128, 8
        $region48: #{tpu_custom_call.1} parent=31 // pred_fallthru
          _
      $region32: #{tpu_custom_call.1} parent=5 // pred_fallthru
        _
      %p5279 = scmp.le.s32.totalorder 2, %s14
      // Predicated region
      $region49: #{tpu_custom_call.1} parent=5 // pred_check
        %p5280 = pneg %p5279
      $region50: #{tpu_custom_call.1} parent=5 // pred_check_branch
        %5282 = sbr.rel (%p5280) target = $region52
      $region51: #{tpu_custom_call.1} parent=5 // pred_region
        %s5283 = ssub.s32 %s14, 2
        // Predicated region
        $region53: #{tpu_custom_call.1} parent=51 // pred_check
          %p5284 = pneg %p137
        $region54: #{tpu_custom_call.1} parent=51 // pred_check_branch
          %5286 = sbr.rel (%p5284) target = $region56
        $region55: #{tpu_custom_call.1} parent=51 // pred_region
          %s5287 = sand.u32 %s122, 1
          %s5288 = scalar_lea.sflag [#allocation5], %s5287
          %s5289 = sand.u32 %s122, 1
          %s5290 = smul.addr %s5289, 256
          %s5291 = scalar_lea.vmem [#allocation9], %s5290
          %5293 = dma.done %s5288, 4096
        $region56: #{tpu_custom_call.1} parent=51 // pred_fallthru
          _
      $region52: #{tpu_custom_call.1} parent=5 // pred_fallthru
        _
    $region6: #{tpu_custom_call.1} parent=1 // loop_footer
      %s18 = sadd.s32 1, %s14
    $region7: #{tpu_custom_call.1} parent=1 // loop_footer_branch
      %13 = sbr.rel target = $region3
    $region8: #{tpu_custom_call.1} parent=1 // loop_exit
      _
    %5294 = vsyncpa [#allocation4], 1
    %s5295 = scalar_lea.sflag [#allocation4], 1
    %5296 = vsyncpa %s5295, 1
    %5297 = vsyncpa [#allocation7], 1
    %5298 = vsyncpa [#allocation5], 1
    %s5299 = scalar_lea.sflag [#allocation5], 1
    %5300 = vsyncpa %s5299, 1

</llo_original>
